<compile_context>
chip_gen: v7x
topology: tpu7x:2x2x1
jax: 0.10.0
libtpu: 0.0.40
codegen_flags: <defaults>
</compile_context>

<pallas_src>
import jax
import jax.numpy as jnp
from jax import lax
from jax.experimental import pallas as pl
from jax.experimental.pallas import tpu as pltpu

_PAD_NEG = -1.0e4                      # logit pad value -> bce/sigmoid contributions exactly 0
_DEFAULT_BLOCK_ROWS = 2048             # upper bound; VMEM model below clamps it
_VMEM_BUDGET_BYTES = 12 * 1024 * 1024  # keeps us under every scoped-VMEM default
_SUBLANE = 32                          # sublane granularity safe for f32/bf16/int8


def _cdiv(a, b):
    return -(-a // b)


def _round_up(x, m):
    return _cdiv(x, m) * m


def _num_tensorcores_per_chip():
    """Best-effort detection of TensorCores reachable by one pallas_call (v7x: 2)."""
    try:
        info = pltpu.get_tpu_info()
    except Exception:
        return 1
    for name in ("num_cores", "num_tensorcores", "tensorcore_count", "cores_per_chip"):
        n = getattr(info, name, None)
        if isinstance(n, int) and 1 <= n <= 2:
            return int(n)
    return 1


def _igbus_partials_kernel(pred_ref, lab_ref, out_ref,
                           bce_acc, inter_acc, psum_acc, tsum_acc):
    """Accumulate per-prediction partials: sum(bce), sum(sig*t), sum(sig), sum(t).

    Partials are kept lane-wise ((S, 128) per quantity) in VMEM scratch; the
    cross-lane collapse and the tiny weight/dice math happen once in JAX.
    """
    i = pl.program_id(1)                       # inner reduction axis

    @pl.when(i == 0)
    def _init():
        bce_acc[...] = jnp.zeros_like(bce_acc)
        inter_acc[...] = jnp.zeros_like(inter_acc)
        psum_acc[...] = jnp.zeros_like(psum_acc)
        tsum_acc[...] = jnp.zeros_like(tsum_acc)

    x = pred_ref[...].astype(jnp.float32)      # (S, R, 128) logits
    t = lab_ref[...].astype(jnp.float32)       # (1, R, 128) targets
    s_dim, r_dim = x.shape[0], x.shape[1]

    # sigmoid via tanh: single EUP op, no divide/select, full f32 accuracy.
    sig = 0.5 * jnp.tanh(0.5 * x) + 0.5
    # log1p(exp(-|x|)) == -log(sigmoid(|x|)) and sigmoid(|x|) == max(sig, 1 - sig),
    # so BCEWithLogits costs only one more EUP op (log): 2 EUP ops/element total.
    bce = jnp.maximum(x, 0.0) - x * t - jnp.log(jnp.maximum(sig, 1.0 - sig))
    sig_t = sig * t

    # Row reductions on the otherwise-idle MXU: ones(8,R) @ v(R,128) -> (8,128)
    # (all rows identical), keep row 0. HIGHEST precision keeps the f32 data exact.
    ones_row = jnp.full((8, r_dim), 1.0, dtype=jnp.float32)

    def _rowsum(v):                            # (R, 128) -> (1, 128)
        acc = jnp.dot(ones_row, v, precision=lax.Precision.HIGHEST,
                      preferred_element_type=jnp.float32)
        return acc[0:1, :]

    bce_acc[...] += jnp.concatenate([_rowsum(bce[s]) for s in range(s_dim)], axis=0)
    inter_acc[...] += jnp.concatenate([_rowsum(sig_t[s]) for s in range(s_dim)], axis=0)
    psum_acc[...] += jnp.concatenate([_rowsum(sig[s]) for s in range(s_dim)], axis=0)
    tsum_acc[...] += _rowsum(t[0])

    @pl.when(i == pl.num_programs(1) - 1)
    def _finalize():
        out_ref[0, 0, :, :] = bce_acc[...]
        out_ref[0, 1, :, :] = inter_acc[...]
        out_ref[0, 2, :, :] = psum_acc[...]
        out_ref[0, 3, :, :] = jnp.broadcast_to(tsum_acc[...], bce_acc.shape)


def igbus_loss(predictions, label, *, ep=1e-6,
               block_rows=_DEFAULT_BLOCK_ROWS, num_core_splits=None):
    """predictions: stacked [S, *label.shape] array or a list/tuple of arrays.

    Inputs keep their dtype (bf16 predictions / int8 labels halve / quarter the
    HBM streams); the kernel upcasts to f32 in-register.
    """
    if isinstance(predictions, (list, tuple)):
        predictions = jnp.stack(predictions, axis=0)
    S = predictions.shape[0]
    assert predictions.shape[1:] == label.shape, (predictions.shape, label.shape)

    if label.dtype == jnp.bool_:
        label = label.astype(jnp.int8)         # exact; avoids 1-bit layouts

    C = num_core_splits if num_core_splits is not None else _num_tensorcores_per_chip()
    C = max(1, int(C))

    M = label.size
    rows = _cdiv(M, 128)

    # Tile sizing: as many rows per step as the per-step VMEM footprint allows
    # (double-buffered blocks + f32 block-sized intermediates), capped by
    # block_rows, then shrunk so padding stays at sublane granularity.
    pred_isz = predictions.dtype.itemsize
    lab_isz = label.dtype.itemsize
    bytes_per_row = 128 * (2 * (S * pred_isz + lab_isz) + 4 * (3 * S + 2))
    vmem_rows = max(_SUBLANE,
                    (_VMEM_BUDGET_BYTES // bytes_per_row) // _SUBLANE * _SUBLANE)
    max_rows = max(_SUBLANE, min(block_rows, vmem_rows) // _SUBLANE * _SUBLANE)

    tiles = max(1, _cdiv(rows, C * max_rows))
    r_blk = min(max_rows, _round_up(_cdiv(rows, C * tiles), _SUBLANE))
    rows_pad = C * tiles * r_blk
    m_pad = rows_pad * 128

    p = predictions.reshape(S, M)              # contiguous reshape; keeps dtype
    t = label.reshape(1, M)
    if m_pad != M:
        # Pad logits with a large negative value and labels with 0 so padded
        # elements contribute exactly 0 to every partial sum (no per-step mask).
        p = jnp.pad(p, ((0, 0), (0, m_pad - M)), constant_values=_PAD_NEG)
        t = jnp.pad(t, ((0, 0), (0, m_pad - M)))
    p = p.reshape(S, rows_pad, 128)
    t = t.reshape(1, rows_pad, 128)

    # Leading axis shards the reduction across TensorCores on dual-TC chips
    # (v7x, CORE_PARALLEL); on single-TC chips it is a size-1 no-op.
    if C > 1:
        dims = (pltpu.CORE_PARALLEL, pltpu.ARBITRARY)
    else:
        dims = ("arbitrary", "arbitrary")

    partials = pl.pallas_call(
        _igbus_partials_kernel,
        out_shape=jax.ShapeDtypeStruct((C, 4, S, 128), jnp.float32),
        grid_spec=pltpu.PrefetchScalarGridSpec(
            num_scalar_prefetch=0,
            grid=(C, tiles),
            in_specs=[
                pl.BlockSpec((S, r_blk, 128),
                             lambda c, i: (0, c * tiles + i, 0)),
                pl.BlockSpec((1, r_blk, 128),
                             lambda c, i: (0, c * tiles + i, 0)),
            ],
            out_specs=pl.BlockSpec((1, 4, S, 128), lambda c, i: (c, 0, 0, 0)),
            scratch_shapes=[
                pltpu.VMEM((S, 128), jnp.float32),   # sum(bce)
                pltpu.VMEM((S, 128), jnp.float32),   # sum(sig * label)
                pltpu.VMEM((S, 128), jnp.float32),   # sum(sig)
                pltpu.VMEM((1, 128), jnp.float32),   # sum(label)
            ],
        ),
        compiler_params=pltpu.CompilerParams(dimension_semantics=dims),
    )(p, t)

    # Tiny epilogue in plain JAX: collapse core/lane partials, apply the
    # 1/(S-idx) deep-supervision weights, the BCE mean and the dice ratio.
    sums = jnp.sum(partials, axis=(0, 3))                      # (4, S)
    bce_sum, inter, psum, tsum = sums[0], sums[1], sums[2], sums[3]
    weights = 1.0 / (S - jnp.arange(S, dtype=jnp.float32))
    bce_mean = bce_sum / jnp.float32(M)
    dice = 1.0 - (2.0 * inter + ep) / (psum + tsum + ep)
    return jnp.sum(weights * (bce_mean + 0.1 * dice))


def _reference_loss(pred_list, label, ep=1e-6):
    """Pure-JAX replica of the PyTorch IGBUSLoss.forward for verification."""
    S = len(pred_list)
    t = label.astype(jnp.float32)
    loss = 0.0
    for idx in range(S):
        x = pred_list[idx].astype(jnp.float32)
        bce = jnp.mean(jnp.maximum(x, 0.0) - x * t + jnp.log1p(jnp.exp(-jnp.abs(x))))
        s = jax.nn.sigmoid(x)
        dice = 1.0 - (2.0 * jnp.sum(s * t) + ep) / (jnp.sum(s) + jnp.sum(t) + ep)
        loss += (1.0 / (S - idx)) * (bce + 0.1 * dice)
    return loss


if __name__ == "__main__":
    key = jax.random.PRNGKey(0)
    k1, k2 = jax.random.split(key)

    S, N, CH, H, W = 4, 2, 4, 16, 16          # 4 deep-supervision heads
    predictions = jax.random.normal(k1, (S, N, CH, H, W), dtype=jnp.float32)
    label = jax.random.bernoulli(k2, 0.35, (N, CH, H, W)).astype(jnp.float32)

    loss = jax.block_until_ready(igbus_loss(predictions, label))
    ref = jax.block_until_ready(
        _reference_loss([predictions[i] for i in range(S)], label))

    assert jnp.allclose(loss, ref, rtol=3e-5, atol=3e-6), (loss, ref)
    print("KERNEL_OK")
</pallas_src>

<mosaic_0001>
module attributes {stable_mosaic.version = 11 : i64} {
  func.func @_igbus_partials_kernel(%arg0: i32, %arg1: i32, %arg2: memref<4x32x128xf32, #tpu.memory_space<vmem>>, %arg3: memref<1x32x128xf32, #tpu.memory_space<vmem>>, %arg4: memref<1x4x4x128xf32, #tpu.memory_space<vmem>>, %arg5: memref<4x128xf32, #tpu.memory_space<vmem>>, %arg6: memref<4x128xf32, #tpu.memory_space<vmem>>, %arg7: memref<4x128xf32, #tpu.memory_space<vmem>>, %arg8: memref<1x128xf32, #tpu.memory_space<vmem>>) attributes {dimension_semantics = [#tpu.dimension_semantics<arbitrary>, #tpu.dimension_semantics<arbitrary>], iteration_bounds = array<i64: 1, 1>, scalar_prefetch = 0 : i64, scratch_operands = 4 : i64, tpu.core_type = #tpu.core_type<tc>, window_params = [{transform_indices = @transform_0, window_bounds = array<i64: 4, 32, 128>}, {transform_indices = @transform_1, window_bounds = array<i64: 1, 32, 128>}, {transform_indices = @transform_2, window_bounds = array<i64: 1, 4, 4, 128>}]} {
    %c0_i32 = arith.constant 0 : i32
    %0 = arith.cmpi eq, %arg1, %c0_i32 : i32
    %1 = arith.extui %0 : i1 to i32
    %c0_i32_0 = arith.constant 0 : i32
    %2 = arith.cmpi ne, %1, %c0_i32_0 : i32
    scf.if %2 {
      %cst_42 = arith.constant 0.000000e+00 : f32
      %94 = vector.broadcast %cst_42 : f32 to vector<4x128xf32>
      %c0_43 = arith.constant 0 : index
      %c0_44 = arith.constant 0 : index
      %95 = vector.load %arg5[%c0_43, %c0_44] : memref<4x128xf32, #tpu.memory_space<vmem>>, vector<4x128xf32>
      tpu.vector_store %arg5[%c0_43, %c0_44], %94 {strides = array<i32>} : memref<4x128xf32, #tpu.memory_space<vmem>>, vector<4x128xf32>,
      %cst_45 = arith.constant 0.000000e+00 : f32
      %96 = vector.broadcast %cst_45 : f32 to vector<4x128xf32>
      %c0_46 = arith.constant 0 : index
      %c0_47 = arith.constant 0 : index
      %97 = vector.load %arg6[%c0_46, %c0_47] : memref<4x128xf32, #tpu.memory_space<vmem>>, vector<4x128xf32>
      tpu.vector_store %arg6[%c0_46, %c0_47], %96 {strides = array<i32>} : memref<4x128xf32, #tpu.memory_space<vmem>>, vector<4x128xf32>,
      %cst_48 = arith.constant 0.000000e+00 : f32
      %98 = vector.broadcast %cst_48 : f32 to vector<4x128xf32>
      %c0_49 = arith.constant 0 : index
      %c0_50 = arith.constant 0 : index
      %99 = vector.load %arg7[%c0_49, %c0_50] : memref<4x128xf32, #tpu.memory_space<vmem>>, vector<4x128xf32>
      tpu.vector_store %arg7[%c0_49, %c0_50], %98 {strides = array<i32>} : memref<4x128xf32, #tpu.memory_space<vmem>>, vector<4x128xf32>,
      %cst_51 = arith.constant 0.000000e+00 : f32
      %100 = vector.broadcast %cst_51 : f32 to vector<1x128xf32>
      %c0_52 = arith.constant 0 : index
      %c0_53 = arith.constant 0 : index
      %101 = vector.load %arg8[%c0_52, %c0_53] : memref<1x128xf32, #tpu.memory_space<vmem>>, vector<1x128xf32>
      tpu.vector_store %arg8[%c0_52, %c0_53], %100 {strides = array<i32>} : memref<1x128xf32, #tpu.memory_space<vmem>>, vector<1x128xf32>,
    } else {
    }
    %c0 = arith.constant 0 : index
    %c0_1 = arith.constant 0 : index
    %c0_2 = arith.constant 0 : index
    %3 = vector.load %arg2[%c0, %c0_1, %c0_2] : memref<4x32x128xf32, #tpu.memory_space<vmem>>, vector<4x32x128xf32>
    %c0_3 = arith.constant 0 : index
    %c0_4 = arith.constant 0 : index
    %c0_5 = arith.constant 0 : index
    %4 = vector.load %arg3[%c0_3, %c0_4, %c0_5] : memref<1x32x128xf32, #tpu.memory_space<vmem>>, vector<1x32x128xf32>
    %cst = arith.constant 5.000000e-01 : f32
    %5 = vector.broadcast %cst : f32 to vector<4x32x128xf32>
    %6 = arith.mulf %5, %3 : vector<4x32x128xf32>
    %7 = math.tanh %6 : vector<4x32x128xf32>
    %cst_6 = arith.constant 5.000000e-01 : f32
    %8 = vector.broadcast %cst_6 : f32 to vector<4x32x128xf32>
    %9 = arith.mulf %8, %7 : vector<4x32x128xf32>
    %cst_7 = arith.constant 5.000000e-01 : f32
    %10 = vector.broadcast %cst_7 : f32 to vector<4x32x128xf32>
    %11 = arith.addf %9, %10 : vector<4x32x128xf32>
    %cst_8 = arith.constant 0.000000e+00 : f32
    %12 = vector.broadcast %cst_8 : f32 to vector<4x32x128xf32>
    %13 = arith.maximumf %3, %12 : vector<4x32x128xf32>
    %14 = vector.broadcast %4 : vector<1x32x128xf32> to vector<4x32x128xf32>
    %15 = arith.mulf %3, %14 : vector<4x32x128xf32>
    %16 = arith.subf %13, %15 : vector<4x32x128xf32>
    %cst_9 = arith.constant 1.000000e+00 : f32
    %17 = vector.broadcast %cst_9 : f32 to vector<4x32x128xf32>
    %18 = arith.subf %17, %11 : vector<4x32x128xf32>
    %19 = arith.maximumf %11, %18 : vector<4x32x128xf32>
    %20 = math.log %19 : vector<4x32x128xf32>
    %21 = arith.subf %16, %20 : vector<4x32x128xf32>
    %22 = vector.broadcast %4 : vector<1x32x128xf32> to vector<4x32x128xf32>
    %23 = arith.mulf %11, %22 : vector<4x32x128xf32>
    %cst_10 = arith.constant 1.000000e+00 : f32
    %24 = vector.broadcast %cst_10 : f32 to vector<8x32xf32>
    %c0_11 = arith.constant 0 : index
    %c0_12 = arith.constant 0 : index
    %25 = vector.load %arg5[%c0_11, %c0_12] : memref<4x128xf32, #tpu.memory_space<vmem>>, vector<4x128xf32>
    %26 = vector.extract_strided_slice %21 {offsets = [0, 0, 0], sizes = [1, 32, 128], strides = [1, 1, 1]} : vector<4x32x128xf32> to vector<1x32x128xf32>
    %27 = vector.shape_cast %26 : vector<1x32x128xf32> to vector<32x128xf32>
    %cst_13 = arith.constant dense<0.000000e+00> : vector<8x128xf32>
    %28 = tpu.matmul %24, %27, %cst_13 {dimension_numbers = #tpu.dot_dimension_numbers<[1], [0], [0], [1], [0, 0, 1, 1], [], []>, precision = #tpu.contract_precision<fp32>} : vector<8x32xf32>, vector<32x128xf32>, vector<8x128xf32> -> vector<8x128xf32>
    %29 = vector.extract_strided_slice %28 {offsets = [0, 0], sizes = [1, 128], strides = [1, 1]} : vector<8x128xf32> to vector<1x128xf32>
    %30 = vector.extract_strided_slice %21 {offsets = [1, 0, 0], sizes = [1, 32, 128], strides = [1, 1, 1]} : vector<4x32x128xf32> to vector<1x32x128xf32>
    %31 = vector.shape_cast %30 : vector<1x32x128xf32> to vector<32x128xf32>
    %cst_14 = arith.constant dense<0.000000e+00> : vector<8x128xf32>
    %32 = tpu.matmul %24, %31, %cst_14 {dimension_numbers = #tpu.dot_dimension_numbers<[1], [0], [0], [1], [0, 0, 1, 1], [], []>, precision = #tpu.contract_precision<fp32>} : vector<8x32xf32>, vector<32x128xf32>, vector<8x128xf32> -> vector<8x128xf32>
    %33 = vector.extract_strided_slice %32 {offsets = [0, 0], sizes = [1, 128], strides = [1, 1]} : vector<8x128xf32> to vector<1x128xf32>
    %34 = vector.extract_strided_slice %21 {offsets = [2, 0, 0], sizes = [1, 32, 128], strides = [1, 1, 1]} : vector<4x32x128xf32> to vector<1x32x128xf32>
    %35 = vector.shape_cast %34 : vector<1x32x128xf32> to vector<32x128xf32>
    %cst_15 = arith.constant dense<0.000000e+00> : vector<8x128xf32>
    %36 = tpu.matmul %24, %35, %cst_15 {dimension_numbers = #tpu.dot_dimension_numbers<[1], [0], [0], [1], [0, 0, 1, 1], [], []>, precision = #tpu.contract_precision<fp32>} : vector<8x32xf32>, vector<32x128xf32>, vector<8x128xf32> -> vector<8x128xf32>
    %37 = vector.extract_strided_slice %36 {offsets = [0, 0], sizes = [1, 128], strides = [1, 1]} : vector<8x128xf32> to vector<1x128xf32>
    %38 = vector.extract_strided_slice %21 {offsets = [3, 0, 0], sizes = [1, 32, 128], strides = [1, 1, 1]} : vector<4x32x128xf32> to vector<1x32x128xf32>
    %39 = vector.shape_cast %38 : vector<1x32x128xf32> to vector<32x128xf32>
    %cst_16 = arith.constant dense<0.000000e+00> : vector<8x128xf32>
    %40 = tpu.matmul %24, %39, %cst_16 {dimension_numbers = #tpu.dot_dimension_numbers<[1], [0], [0], [1], [0, 0, 1, 1], [], []>, precision = #tpu.contract_precision<fp32>} : vector<8x32xf32>, vector<32x128xf32>, vector<8x128xf32> -> vector<8x128xf32>
    %41 = vector.extract_strided_slice %40 {offsets = [0, 0], sizes = [1, 128], strides = [1, 1]} : vector<8x128xf32> to vector<1x128xf32>
    %42 = tpu.concatenate %29, %33, %37, %41 in 0 : vector<1x128xf32>, vector<1x128xf32>, vector<1x128xf32>, vector<1x128xf32> -> vector<4x128xf32>
    %43 = arith.addf %25, %42 : vector<4x128xf32>
    %c0_17 = arith.constant 0 : index
    %c0_18 = arith.constant 0 : index
    %44 = vector.load %arg5[%c0_17, %c0_18] : memref<4x128xf32, #tpu.memory_space<vmem>>, vector<4x128xf32>
    tpu.vector_store %arg5[%c0_17, %c0_18], %43 {strides = array<i32>} : memref<4x128xf32, #tpu.memory_space<vmem>>, vector<4x128xf32>,
    %c0_19 = arith.constant 0 : index
    %c0_20 = arith.constant 0 : index
    %45 = vector.load %arg6[%c0_19, %c0_20] : memref<4x128xf32, #tpu.memory_space<vmem>>, vector<4x128xf32>
    %46 = vector.extract_strided_slice %23 {offsets = [0, 0, 0], sizes = [1, 32, 128], strides = [1, 1, 1]} : vector<4x32x128xf32> to vector<1x32x128xf32>
    %47 = vector.shape_cast %46 : vector<1x32x128xf32> to vector<32x128xf32>
    %cst_21 = arith.constant dense<0.000000e+00> : vector<8x128xf32>
    %48 = tpu.matmul %24, %47, %cst_21 {dimension_numbers = #tpu.dot_dimension_numbers<[1], [0], [0], [1], [0, 0, 1, 1], [], []>, precision = #tpu.contract_precision<fp32>} : vector<8x32xf32>, vector<32x128xf32>, vector<8x128xf32> -> vector<8x128xf32>
    %49 = vector.extract_strided_slice %48 {offsets = [0, 0], sizes = [1, 128], strides = [1, 1]} : vector<8x128xf32> to vector<1x128xf32>
    %50 = vector.extract_strided_slice %23 {offsets = [1, 0, 0], sizes = [1, 32, 128], strides = [1, 1, 1]} : vector<4x32x128xf32> to vector<1x32x128xf32>
    %51 = vector.shape_cast %50 : vector<1x32x128xf32> to vector<32x128xf32>
    %cst_22 = arith.constant dense<0.000000e+00> : vector<8x128xf32>
    %52 = tpu.matmul %24, %51, %cst_22 {dimension_numbers = #tpu.dot_dimension_numbers<[1], [0], [0], [1], [0, 0, 1, 1], [], []>, precision = #tpu.contract_precision<fp32>} : vector<8x32xf32>, vector<32x128xf32>, vector<8x128xf32> -> vector<8x128xf32>
    %53 = vector.extract_strided_slice %52 {offsets = [0, 0], sizes = [1, 128], strides = [1, 1]} : vector<8x128xf32> to vector<1x128xf32>
    %54 = vector.extract_strided_slice %23 {offsets = [2, 0, 0], sizes = [1, 32, 128], strides = [1, 1, 1]} : vector<4x32x128xf32> to vector<1x32x128xf32>
    %55 = vector.shape_cast %54 : vector<1x32x128xf32> to vector<32x128xf32>
    %cst_23 = arith.constant dense<0.000000e+00> : vector<8x128xf32>
    %56 = tpu.matmul %24, %55, %cst_23 {dimension_numbers = #tpu.dot_dimension_numbers<[1], [0], [0], [1], [0, 0, 1, 1], [], []>, precision = #tpu.contract_precision<fp32>} : vector<8x32xf32>, vector<32x128xf32>, vector<8x128xf32> -> vector<8x128xf32>
    %57 = vector.extract_strided_slice %56 {offsets = [0, 0], sizes = [1, 128], strides = [1, 1]} : vector<8x128xf32> to vector<1x128xf32>
    %58 = vector.extract_strided_slice %23 {offsets = [3, 0, 0], sizes = [1, 32, 128], strides = [1, 1, 1]} : vector<4x32x128xf32> to vector<1x32x128xf32>
    %59 = vector.shape_cast %58 : vector<1x32x128xf32> to vector<32x128xf32>
    %cst_24 = arith.constant dense<0.000000e+00> : vector<8x128xf32>
    %60 = tpu.matmul %24, %59, %cst_24 {dimension_numbers = #tpu.dot_dimension_numbers<[1], [0], [0], [1], [0, 0, 1, 1], [], []>, precision = #tpu.contract_precision<fp32>} : vector<8x32xf32>, vector<32x128xf32>, vector<8x128xf32> -> vector<8x128xf32>
    %61 = vector.extract_strided_slice %60 {offsets = [0, 0], sizes = [1, 128], strides = [1, 1]} : vector<8x128xf32> to vector<1x128xf32>
    %62 = tpu.concatenate %49, %53, %57, %61 in 0 : vector<1x128xf32>, vector<1x128xf32>, vector<1x128xf32>, vector<1x128xf32> -> vector<4x128xf32>
    %63 = arith.addf %45, %62 : vector<4x128xf32>
    %c0_25 = arith.constant 0 : index
    %c0_26 = arith.constant 0 : index
    %64 = vector.load %arg6[%c0_25, %c0_26] : memref<4x128xf32, #tpu.memory_space<vmem>>, vector<4x128xf32>
    tpu.vector_store %arg6[%c0_25, %c0_26], %63 {strides = array<i32>} : memref<4x128xf32, #tpu.memory_space<vmem>>, vector<4x128xf32>,
    %c0_27 = arith.constant 0 : index
    %c0_28 = arith.constant 0 : index
    %65 = vector.load %arg7[%c0_27, %c0_28] : memref<4x128xf32, #tpu.memory_space<vmem>>, vector<4x128xf32>
    %66 = vector.extract_strided_slice %11 {offsets = [0, 0, 0], sizes = [1, 32, 128], strides = [1, 1, 1]} : vector<4x32x128xf32> to vector<1x32x128xf32>
    %67 = vector.shape_cast %66 : vector<1x32x128xf32> to vector<32x128xf32>
    %cst_29 = arith.constant dense<0.000000e+00> : vector<8x128xf32>
    %68 = tpu.matmul %24, %67, %cst_29 {dimension_numbers = #tpu.dot_dimension_numbers<[1], [0], [0], [1], [0, 0, 1, 1], [], []>, precision = #tpu.contract_precision<fp32>} : vector<8x32xf32>, vector<32x128xf32>, vector<8x128xf32> -> vector<8x128xf32>
    %69 = vector.extract_strided_slice %68 {offsets = [0, 0], sizes = [1, 128], strides = [1, 1]} : vector<8x128xf32> to vector<1x128xf32>
    %70 = vector.extract_strided_slice %11 {offsets = [1, 0, 0], sizes = [1, 32, 128], strides = [1, 1, 1]} : vector<4x32x128xf32> to vector<1x32x128xf32>
    %71 = vector.shape_cast %70 : vector<1x32x128xf32> to vector<32x128xf32>
    %cst_30 = arith.constant dense<0.000000e+00> : vector<8x128xf32>
    %72 = tpu.matmul %24, %71, %cst_30 {dimension_numbers = #tpu.dot_dimension_numbers<[1], [0], [0], [1], [0, 0, 1, 1], [], []>, precision = #tpu.contract_precision<fp32>} : vector<8x32xf32>, vector<32x128xf32>, vector<8x128xf32> -> vector<8x128xf32>
    %73 = vector.extract_strided_slice %72 {offsets = [0, 0], sizes = [1, 128], strides = [1, 1]} : vector<8x128xf32> to vector<1x128xf32>
    %74 = vector.extract_strided_slice %11 {offsets = [2, 0, 0], sizes = [1, 32, 128], strides = [1, 1, 1]} : vector<4x32x128xf32> to vector<1x32x128xf32>
    %75 = vector.shape_cast %74 : vector<1x32x128xf32> to vector<32x128xf32>
    %cst_31 = arith.constant dense<0.000000e+00> : vector<8x128xf32>
    %76 = tpu.matmul %24, %75, %cst_31 {dimension_numbers = #tpu.dot_dimension_numbers<[1], [0], [0], [1], [0, 0, 1, 1], [], []>, precision = #tpu.contract_precision<fp32>} : vector<8x32xf32>, vector<32x128xf32>, vector<8x128xf32> -> vector<8x128xf32>
    %77 = vector.extract_strided_slice %76 {offsets = [0, 0], sizes = [1, 128], strides = [1, 1]} : vector<8x128xf32> to vector<1x128xf32>
    %78 = vector.extract_strided_slice %11 {offsets = [3, 0, 0], sizes = [1, 32, 128], strides = [1, 1, 1]} : vector<4x32x128xf32> to vector<1x32x128xf32>
    %79 = vector.shape_cast %78 : vector<1x32x128xf32> to vector<32x128xf32>
    %cst_32 = arith.constant dense<0.000000e+00> : vector<8x128xf32>
    %80 = tpu.matmul %24, %79, %cst_32 {dimension_numbers = #tpu.dot_dimension_numbers<[1], [0], [0], [1], [0, 0, 1, 1], [], []>, precision = #tpu.contract_precision<fp32>} : vector<8x32xf32>, vector<32x128xf32>, vector<8x128xf32> -> vector<8x128xf32>
    %81 = vector.extract_strided_slice %80 {offsets = [0, 0], sizes = [1, 128], strides = [1, 1]} : vector<8x128xf32> to vector<1x128xf32>
    %82 = tpu.concatenate %69, %73, %77, %81 in 0 : vector<1x128xf32>, vector<1x128xf32>, vector<1x128xf32>, vector<1x128xf32> -> vector<4x128xf32>
    %83 = arith.addf %65, %82 : vector<4x128xf32>
    %c0_33 = arith.constant 0 : index
    %c0_34 = arith.constant 0 : index
    %84 = vector.load %arg7[%c0_33, %c0_34] : memref<4x128xf32, #tpu.memory_space<vmem>>, vector<4x128xf32>
    tpu.vector_store %arg7[%c0_33, %c0_34], %83 {strides = array<i32>} : memref<4x128xf32, #tpu.memory_space<vmem>>, vector<4x128xf32>,
    %c0_35 = arith.constant 0 : index
    %c0_36 = arith.constant 0 : index
    %85 = vector.load %arg8[%c0_35, %c0_36] : memref<1x128xf32, #tpu.memory_space<vmem>>, vector<1x128xf32>
    %86 = vector.shape_cast %4 : vector<1x32x128xf32> to vector<32x128xf32>
    %cst_37 = arith.constant dense<0.000000e+00> : vector<8x128xf32>
    %87 = tpu.matmul %24, %86, %cst_37 {dimension_numbers = #tpu.dot_dimension_numbers<[1], [0], [0], [1], [0, 0, 1, 1], [], []>, precision = #tpu.contract_precision<fp32>} : vector<8x32xf32>, vector<32x128xf32>, vector<8x128xf32> -> vector<8x128xf32>
    %88 = vector.extract_strided_slice %87 {offsets = [0, 0], sizes = [1, 128], strides = [1, 1]} : vector<8x128xf32> to vector<1x128xf32>
    %89 = arith.addf %85, %88 : vector<1x128xf32>
    %c0_38 = arith.constant 0 : index
    %c0_39 = arith.constant 0 : index
    %90 = vector.load %arg8[%c0_38, %c0_39] : memref<1x128xf32, #tpu.memory_space<vmem>>, vector<1x128xf32>
    tpu.vector_store %arg8[%c0_38, %c0_39], %89 {strides = array<i32>} : memref<1x128xf32, #tpu.memory_space<vmem>>, vector<1x128xf32>,
    %c0_i32_40 = arith.constant 0 : i32
    %91 = arith.cmpi eq, %arg1, %c0_i32_40 : i32
    %92 = arith.extui %91 : i1 to i32
    %c0_i32_41 = arith.constant 0 : i32
    %93 = arith.cmpi ne, %92, %c0_i32_41 : i32
    scf.if %93 {
      %c0_42 = arith.constant 0 : index
      %c0_43 = arith.constant 0 : index
      %94 = vector.load %arg5[%c0_42, %c0_43] : memref<4x128xf32, #tpu.memory_space<vmem>>, vector<4x128xf32>
      %c0_44 = arith.constant 0 : index
      %c0_45 = arith.constant 0 : index
      %c0_46 = arith.constant 0 : index
      %c0_47 = arith.constant 0 : index
      %95 = vector.load %arg4[%c0_44, %c0_45, %c0_46, %c0_47] : memref<1x4x4x128xf32, #tpu.memory_space<vmem>>, vector<1x1x4x128xf32>
      %96 = vector.shape_cast %95 : vector<1x1x4x128xf32> to vector<4x128xf32>
      %97 = vector.shape_cast %94 : vector<4x128xf32> to vector<1x1x4x128xf32>
      tpu.vector_store %arg4[%c0_44, %c0_45, %c0_46, %c0_47], %97 {strides = array<i32>} : memref<1x4x4x128xf32, #tpu.memory_space<vmem>>, vector<1x1x4x128xf32>,
      %c0_48 = arith.constant 0 : index
      %c0_49 = arith.constant 0 : index
      %98 = vector.load %arg6[%c0_48, %c0_49] : memref<4x128xf32, #tpu.memory_space<vmem>>, vector<4x128xf32>
      %c0_50 = arith.constant 0 : index
      %c1 = arith.constant 1 : index
      %c0_51 = arith.constant 0 : index
      %c0_52 = arith.constant 0 : index
      %99 = vector.load %arg4[%c0_50, %c1, %c0_51, %c0_52] : memref<1x4x4x128xf32, #tpu.memory_space<vmem>>, vector<1x1x4x128xf32>
      %100 = vector.shape_cast %99 : vector<1x1x4x128xf32> to vector<4x128xf32>
      %101 = vector.shape_cast %98 : vector<4x128xf32> to vector<1x1x4x128xf32>
      tpu.vector_store %arg4[%c0_50, %c1, %c0_51, %c0_52], %101 {strides = array<i32>} : memref<1x4x4x128xf32, #tpu.memory_space<vmem>>, vector<1x1x4x128xf32>,
      %c0_53 = arith.constant 0 : index
      %c0_54 = arith.constant 0 : index
      %102 = vector.load %arg7[%c0_53, %c0_54] : memref<4x128xf32, #tpu.memory_space<vmem>>, vector<4x128xf32>
      %c0_55 = arith.constant 0 : index
      %c2 = arith.constant 2 : index
      %c0_56 = arith.constant 0 : index
      %c0_57 = arith.constant 0 : index
      %103 = vector.load %arg4[%c0_55, %c2, %c0_56, %c0_57] : memref<1x4x4x128xf32, #tpu.memory_space<vmem>>, vector<1x1x4x128xf32>
      %104 = vector.shape_cast %103 : vector<1x1x4x128xf32> to vector<4x128xf32>
      %105 = vector.shape_cast %102 : vector<4x128xf32> to vector<1x1x4x128xf32>
      tpu.vector_store %arg4[%c0_55, %c2, %c0_56, %c0_57], %105 {strides = array<i32>} : memref<1x4x4x128xf32, #tpu.memory_space<vmem>>, vector<1x1x4x128xf32>,
      %c0_58 = arith.constant 0 : index
      %c0_59 = arith.constant 0 : index
      %106 = vector.load %arg8[%c0_58, %c0_59] : memref<1x128xf32, #tpu.memory_space<vmem>>, vector<1x128xf32>
      %107 = vector.shape_cast %106 : vector<1x128xf32> to vector<1x128xf32>
      %108 = vector.broadcast %107 : vector<1x128xf32> to vector<4x128xf32>
      %c0_60 = arith.constant 0 : index
      %c3 = arith.constant 3 : index
      %c0_61 = arith.constant 0 : index
      %c0_62 = arith.constant 0 : index
      %109 = vector.load %arg4[%c0_60, %c3, %c0_61, %c0_62] : memref<1x4x4x128xf32, #tpu.memory_space<vmem>>, vector<1x1x4x128xf32>
      %110 = vector.shape_cast %109 : vector<1x1x4x128xf32> to vector<4x128xf32>
      %111 = vector.shape_cast %108 : vector<4x128xf32> to vector<1x1x4x128xf32>
      tpu.vector_store %arg4[%c0_60, %c3, %c0_61, %c0_62], %111 {strides = array<i32>} : memref<1x4x4x128xf32, #tpu.memory_space<vmem>>, vector<1x1x4x128xf32>,
    } else {
    }
    return
  }
  func.func @transform_0(%arg0: i32, %arg1: i32) -> (i32, i32, i32) {
    %c1_i32 = arith.constant 1 : i32
    %0 = arith.muli %arg0, %c1_i32 : i32
    %1 = arith.addi %0, %arg1 : i32
    %c0_i32 = arith.constant 0 : i32
    %c0_i32_0 = arith.constant 0 : i32
    %c0_i32_1 = arith.constant 0 : i32
    return %c0_i32, %1, %c0_i32_0 : i32, i32, i32
  }
  func.func @transform_1(%arg0: i32, %arg1: i32) -> (i32, i32, i32) {
    %c1_i32 = arith.constant 1 : i32
    %0 = arith.muli %arg0, %c1_i32 : i32
    %1 = arith.addi %0, %arg1 : i32
    %c0_i32 = arith.constant 0 : i32
    %c0_i32_0 = arith.constant 0 : i32
    %c0_i32_1 = arith.constant 0 : i32
    return %c0_i32, %1, %c0_i32_0 : i32, i32, i32
  }
  func.func @transform_2(%arg0: i32, %arg1: i32) -> (i32, i32, i32, i32) {
    %c0_i32 = arith.constant 0 : i32
    %c0_i32_0 = arith.constant 0 : i32
    %c0_i32_1 = arith.constant 0 : i32
    %c0_i32_2 = arith.constant 0 : i32
    return %arg0, %c0_i32, %c0_i32_0, %c0_i32_1 : i32, i32, i32, i32
  }
}

</mosaic_0001>

<llo_original>
// kernel: tpu_custom_call.1
$region0: #{tpu_custom_call.1}
  #allocation0 [shape = 'u32[]', space=smem, size = 0x4, offset = 0x4, fixed_abs, tag = 'smem constant byte address 0x4 - core index']
  #allocation1 [shape = 'u32[144,128]{1,0:T(1,128)}', space=vmem, size = 0x12000, scoped, tag = 'internal scratch']
  #allocation2 [shape = 'f32[4,128]{1,0:T(4,128)}', space=vmem, size = 0x800, scoped, tag = 'scratch operand']
  #allocation3 [shape = 'f32[4,128]{1,0:T(4,128)}', space=vmem, size = 0x800, scoped, tag = 'scratch operand']
  #allocation4 [shape = 'f32[4,128]{1,0:T(4,128)}', space=vmem, size = 0x800, scoped, tag = 'scratch operand']
  #allocation5 [shape = 'f32[1,128]{1,0:T(1,128)}', space=vmem, size = 0x200, scoped, tag = 'scratch operand']
  %s0 = inlined_call_operand.hbm [shape: f32[4,32,128], index: 0, kind: input, shape index: {}]
  %s1 = inlined_call_operand.hbm [shape: f32[1,32,128], index: 1, kind: input, shape index: {}]
  %s2 = inlined_call_operand.hbm [shape: f32[1,4,4,128], index: 2, kind: output, shape index: {}]
  %s3 = sld [smem:[#allocation0]]
  $region34: #{tpu_custom_call.1} parent=0
    _
  %s5 = ssub.s32 1, %s3
  %s6 = scalar_select 0, %s5, %s3
  $region1: #{tpu_custom_call.1} parent=0
    #allocation6 [shape = 'u8[65536]{0}', space=vmem, size = 0x10000, scoped, tag = 'input window, operand 0, single buffered']
    #allocation7 [shape = 's32[1]{0}', space=sflag, size = 0x4, scoped, tag = 'scoped memory for tpu_custom_call.1']
    #allocation8 [shape = 's32[1]{0}', space=sflag, size = 0x4, scoped, tag = 'scoped memory for tpu_custom_call.1']
    #allocation9 [shape = 'u8[16384]{0}', space=vmem, size = 0x4000, scoped, tag = 'input window, operand 1, single buffered']
    #allocation10 [shape = 's32[1]{0}', space=sflag, size = 0x4, scoped, tag = 'scoped memory for tpu_custom_call.1']
    #allocation11 [shape = 'u8[8192]{0}', space=vmem, size = 0x2000, scoped, tag = 'output window, operand 0, single buffered']
    %7 = vsyncpa [#allocation7], 0
    %8 = vsyncpa [#allocation10], 0
    %9 = vsyncpa [#allocation8], 0
    // Predicated region
    $region2: #{tpu_custom_call.1} parent=1 // pred_check
      _
    $region3: #{tpu_custom_call.1} parent=1 // pred_check_branch
      %11 = sbr.rel (0) target = $region5
    $region4: #{tpu_custom_call.1} parent=1 // pred_region
      %s12 = sadd.s32 0, 0
      %s13 = smul.u32 4, %s12
      %s15 = ssub.s32 2048, 2048
      %16 = vsyncadd [#allocation7], %s15
      %s17 = smul.addr %s13, 128
      %s18 = scalar_lea.hbm %s0, %s17
      %s19 = sshll.u32 [#allocation6], 4
      %s20 = int_to_ptr.vmem [resolvable:$true] %s19
      %25 = dma.hbm_to_vmem [thread:$0]  %s18, 2048, %s20, [#allocation7], 128, 128, 8
    $region5: #{tpu_custom_call.1} parent=1 // pred_fallthru
      _
    // Predicated region
    $region6: #{tpu_custom_call.1} parent=1 // pred_check
      _
    $region7: #{tpu_custom_call.1} parent=1 // pred_check_branch
      %27 = sbr.rel (0) target = $region9
    $region8: #{tpu_custom_call.1} parent=1 // pred_region
      %s28 = sadd.s32 0, 0
      %s29 = smul.u32 4, %s28
      %s31 = ssub.s32 512, 512
      %32 = vsyncadd [#allocation10], %s31
      %s33 = smul.addr %s29, 128
      %s34 = scalar_lea.hbm %s1, %s33
      %s35 = sshll.u32 [#allocation9], 4
      %s36 = int_to_ptr.vmem [resolvable:$true] %s35
      %41 = dma.hbm_to_vmem [thread:$0]  %s34, 512, %s36, [#allocation10], 128, 128, 8
    $region9: #{tpu_custom_call.1} parent=1 // pred_fallthru
      _
    // Predicated region
    $region10: #{tpu_custom_call.1} parent=1 // pred_check
      _
    $region11: #{tpu_custom_call.1} parent=1 // pred_check_branch
      %43 = sbr.rel (0) target = $region13
    $region12: #{tpu_custom_call.1} parent=1 // pred_region
      %44 = dma.done [#allocation7], 2048
    $region13: #{tpu_custom_call.1} parent=1 // pred_fallthru
      _
    // Predicated region
    $region14: #{tpu_custom_call.1} parent=1 // pred_check
      _
    $region15: #{tpu_custom_call.1} parent=1 // pred_check_branch
      %46 = sbr.rel (0) target = $region17
    $region16: #{tpu_custom_call.1} parent=1 // pred_region
      %47 = dma.done [#allocation10], 512
    $region17: #{tpu_custom_call.1} parent=1 // pred_fallthru
      _
    %s48 = sadd.s32 0, 0
    %s49 = smul.u32 4, %s48
    %s50 = sadd.s32 0, 0
    %s51 = smul.u32 4, %s50
    %p52 = scmp.eq.s32.totalorder 0, 0
    // Predicated region
    $region18: #{tpu_custom_call.1} parent=1 // pred_check
      %p53 = pneg %p52
    $region19: #{tpu_custom_call.1} parent=1 // pred_check_branch
      %55 = sbr.rel (%p53) target = $region21
    $region20: #{tpu_custom_call.1} parent=1 // pred_region
      %56 = vst [vmem:[#allocation2] sm:$0xf] 0.0
      %57 = vst [vmem:[#allocation3] sm:$0xf] 0.0
      %58 = vst [vmem:[#allocation4] sm:$0xf] 0.0
      %59 = vst [vmem:[#allocation5] sm:$0x1] 0.0
    $region21: #{tpu_custom_call.1} parent=1 // pred_fallthru
      _
    %v60 = vld [vmem:[#allocation6] sm:$0xff]
    %v61 = vld [vmem:[#allocation6 + $0x8] sm:$0xff]
    %v62 = vld [vmem:[#allocation6 + $0x10] sm:$0xff]
    %v63 = vld [vmem:[#allocation6 + $0x18] sm:$0xff]
    %v64 = vld [vmem:[#allocation6 + $0x20] sm:$0xff]
    %v65 = vld [vmem:[#allocation6 + $0x28] sm:$0xff]
    %v66 = vld [vmem:[#allocation6 + $0x30] sm:$0xff]
    %v67 = vld [vmem:[#allocation6 + $0x38] sm:$0xff]
    %v68 = vld [vmem:[#allocation6 + $0x40] sm:$0xff]
    %v69 = vld [vmem:[#allocation6 + $0x48] sm:$0xff]
    %v70 = vld [vmem:[#allocation6 + $0x50] sm:$0xff]
    %v71 = vld [vmem:[#allocation6 + $0x58] sm:$0xff]
    %v72 = vld [vmem:[#allocation6 + $0x60] sm:$0xff]
    %v73 = vld [vmem:[#allocation6 + $0x68] sm:$0xff]
    %v74 = vld [vmem:[#allocation6 + $0x70] sm:$0xff]
    %v75 = vld [vmem:[#allocation6 + $0x78] sm:$0xff]
    %v76 = vld [vmem:[#allocation9] sm:$0xff]
    %v77 = vld [vmem:[#allocation9 + $0x8] sm:$0xff]
    %v78 = vld [vmem:[#allocation9 + $0x10] sm:$0xff]
    %v79 = vld [vmem:[#allocation9 + $0x18] sm:$0xff]
    %v80 = vmul.f32 %v60, 0.5
    %v81 = vmul.f32 %v61, 0.5
    %v82 = vmul.f32 %v62, 0.5
    %v83 = vmul.f32 %v63, 0.5
    %v84 = vmul.f32 %v64, 0.5
    %v85 = vmul.f32 %v65, 0.5
    %v86 = vmul.f32 %v66, 0.5
    %v87 = vmul.f32 %v67, 0.5
    %v88 = vmul.f32 %v68, 0.5
    %v89 = vmul.f32 %v69, 0.5
    %v90 = vmul.f32 %v70, 0.5
    %v91 = vmul.f32 %v71, 0.5
    %v92 = vmul.f32 %v72, 0.5
    %v93 = vmul.f32 %v73, 0.5
    %v94 = vmul.f32 %v74, 0.5
    %v95 = vmul.f32 %v75, 0.5
    %v96 = vtanh.pop %v80
    %v97 = vtanh.pop %v81
    %v98 = vtanh.pop %v82
    %v99 = vtanh.pop %v83
    %v100 = vtanh.pop %v84
    %v101 = vtanh.pop %v85
    %v102 = vtanh.pop %v86
    %v103 = vtanh.pop %v87
    %v104 = vtanh.pop %v88
    %v105 = vtanh.pop %v89
    %v106 = vtanh.pop %v90
    %v107 = vtanh.pop %v91
    %v108 = vtanh.pop %v92
    %v109 = vtanh.pop %v93
    %v110 = vtanh.pop %v94
    %v111 = vtanh.pop %v95
    %v112 = vmul.f32 %v96, 0.5
    %v113 = vmul.f32 %v97, 0.5
    %v114 = vmul.f32 %v98, 0.5
    %v115 = vmul.f32 %v99, 0.5
    %v116 = vmul.f32 %v100, 0.5
    %v117 = vmul.f32 %v101, 0.5
    %v118 = vmul.f32 %v102, 0.5
    %v119 = vmul.f32 %v103, 0.5
    %v120 = vmul.f32 %v104, 0.5
    %v121 = vmul.f32 %v105, 0.5
    %v122 = vmul.f32 %v106, 0.5
    %v123 = vmul.f32 %v107, 0.5
    %v124 = vmul.f32 %v108, 0.5
    %v125 = vmul.f32 %v109, 0.5
    %v126 = vmul.f32 %v110, 0.5
    %v127 = vmul.f32 %v111, 0.5
    %v128 = vadd.f32 %v112, 0.5
    %v129 = vadd.f32 %v113, 0.5
    %v130 = vadd.f32 %v114, 0.5
    %v131 = vadd.f32 %v115, 0.5
    %v132 = vadd.f32 %v116, 0.5
    %v133 = vadd.f32 %v117, 0.5
    %v134 = vadd.f32 %v118, 0.5
    %v135 = vadd.f32 %v119, 0.5
    %v136 = vadd.f32 %v120, 0.5
    %v137 = vadd.f32 %v121, 0.5
    %v138 = vadd.f32 %v122, 0.5
    %v139 = vadd.f32 %v123, 0.5
    %v140 = vadd.f32 %v124, 0.5
    %v141 = vadd.f32 %v125, 0.5
    %v142 = vadd.f32 %v126, 0.5
    %v143 = vadd.f32 %v127, 0.5
    %v144 = vmax.f32 %v60, 0.0
    %v145 = vmax.f32 %v61, 0.0
    %v146 = vmax.f32 %v62, 0.0
    %v147 = vmax.f32 %v63, 0.0
    %v148 = vmax.f32 %v64, 0.0
    %v149 = vmax.f32 %v65, 0.0
    %v150 = vmax.f32 %v66, 0.0
    %v151 = vmax.f32 %v67, 0.0
    %v152 = vmax.f32 %v68, 0.0
    %v153 = vmax.f32 %v69, 0.0
    %v154 = vmax.f32 %v70, 0.0
    %v155 = vmax.f32 %v71, 0.0
    %v156 = vmax.f32 %v72, 0.0
    %v157 = vmax.f32 %v73, 0.0
    %v158 = vmax.f32 %v74, 0.0
    %v159 = vmax.f32 %v75, 0.0
    %v160 = vmul.f32 %v60, %v76
    %v161 = vmul.f32 %v61, %v77
    %v162 = vmul.f32 %v62, %v78
    %v163 = vmul.f32 %v63, %v79
    %v164 = vmul.f32 %v64, %v76
    %v165 = vmul.f32 %v65, %v77
    %v166 = vmul.f32 %v66, %v78
    %v167 = vmul.f32 %v67, %v79
    %v168 = vmul.f32 %v68, %v76
    %v169 = vmul.f32 %v69, %v77
    %v170 = vmul.f32 %v70, %v78
    %v171 = vmul.f32 %v71, %v79
    %v172 = vmul.f32 %v72, %v76
    %v173 = vmul.f32 %v73, %v77
    %v174 = vmul.f32 %v74, %v78
    %v175 = vmul.f32 %v75, %v79
    %v176 = vsub.f32 %v144, %v160
    %v177 = vsub.f32 %v145, %v161
    %v178 = vsub.f32 %v146, %v162
    %v179 = vsub.f32 %v147, %v163
    %v180 = vsub.f32 %v148, %v164
    %v181 = vsub.f32 %v149, %v165
    %v182 = vsub.f32 %v150, %v166
    %v183 = vsub.f32 %v151, %v167
    %v184 = vsub.f32 %v152, %v168
    %v185 = vsub.f32 %v153, %v169
    %v186 = vsub.f32 %v154, %v170
    %v187 = vsub.f32 %v155, %v171
    %v188 = vsub.f32 %v156, %v172
    %v189 = vsub.f32 %v157, %v173
    %v190 = vsub.f32 %v158, %v174
    %v191 = vsub.f32 %v159, %v175
    %v192 = vsub.f32 1.0, %v128
    %v193 = vsub.f32 1.0, %v129
    %v194 = vsub.f32 1.0, %v130
    %v195 = vsub.f32 1.0, %v131
    %v196 = vsub.f32 1.0, %v132
    %v197 = vsub.f32 1.0, %v133
    %v198 = vsub.f32 1.0, %v134
    %v199 = vsub.f32 1.0, %v135
    %v200 = vsub.f32 1.0, %v136
    %v201 = vsub.f32 1.0, %v137
    %v202 = vsub.f32 1.0, %v138
    %v203 = vsub.f32 1.0, %v139
    %v204 = vsub.f32 1.0, %v140
    %v205 = vsub.f32 1.0, %v141
    %v206 = vsub.f32 1.0, %v142
    %v207 = vsub.f32 1.0, %v143
    %v208 = vmax.f32 %v128, %v192
    %v209 = vmax.f32 %v129, %v193
    %v210 = vmax.f32 %v130, %v194
    %v211 = vmax.f32 %v131, %v195
    %v212 = vmax.f32 %v132, %v196
    %v213 = vmax.f32 %v133, %v197
    %v214 = vmax.f32 %v134, %v198
    %v215 = vmax.f32 %v135, %v199
    %v216 = vmax.f32 %v136, %v200
    %v217 = vmax.f32 %v137, %v201
    %v218 = vmax.f32 %v138, %v202
    %v219 = vmax.f32 %v139, %v203
    %v220 = vmax.f32 %v140, %v204
    %v221 = vmax.f32 %v141, %v205
    %v222 = vmax.f32 %v142, %v206
    %v223 = vmax.f32 %v143, %v207
    %v224 = vlog2.pop %v208
    %v225 = vmul.f32 %v224, 0.6931472
    %v226 = vlog2.pop %v209
    %v227 = vmul.f32 %v226, 0.6931472
    %v228 = vlog2.pop %v210
    %v229 = vmul.f32 %v228, 0.6931472
    %v230 = vlog2.pop %v211
    %v231 = vmul.f32 %v230, 0.6931472
    %v232 = vlog2.pop %v212
    %v233 = vmul.f32 %v232, 0.6931472
    %v234 = vlog2.pop %v213
    %v235 = vmul.f32 %v234, 0.6931472
    %v236 = vlog2.pop %v214
    %v237 = vmul.f32 %v236, 0.6931472
    %v238 = vlog2.pop %v215
    %v239 = vmul.f32 %v238, 0.6931472
    %v240 = vlog2.pop %v216
    %v241 = vmul.f32 %v240, 0.6931472
    %v242 = vlog2.pop %v217
    %v243 = vmul.f32 %v242, 0.6931472
    %v244 = vlog2.pop %v218
    %v245 = vmul.f32 %v244, 0.6931472
    %v246 = vlog2.pop %v219
    %v247 = vmul.f32 %v246, 0.6931472
    %v248 = vlog2.pop %v220
    %v249 = vmul.f32 %v248, 0.6931472
    %v250 = vlog2.pop %v221
    %v251 = vmul.f32 %v250, 0.6931472
    %v252 = vlog2.pop %v222
    %v253 = vmul.f32 %v252, 0.6931472
    %v254 = vlog2.pop %v223
    %v255 = vmul.f32 %v254, 0.6931472
    %v256 = vsub.f32 %v176, %v225
    %v257 = vsub.f32 %v177, %v227
    %v258 = vsub.f32 %v178, %v229
    %v259 = vsub.f32 %v179, %v231
    %v260 = vsub.f32 %v180, %v233
    %v261 = vsub.f32 %v181, %v235
    %v262 = vsub.f32 %v182, %v237
    %v263 = vsub.f32 %v183, %v239
    %v264 = vsub.f32 %v184, %v241
    %v265 = vsub.f32 %v185, %v243
    %v266 = vsub.f32 %v186, %v245
    %v267 = vsub.f32 %v187, %v247
    %v268 = vsub.f32 %v188, %v249
    %v269 = vsub.f32 %v189, %v251
    %v270 = vsub.f32 %v190, %v253
    %v271 = vsub.f32 %v191, %v255
    %v272 = vmul.f32 %v128, %v76
    %v273 = vmul.f32 %v129, %v77
    %v274 = vmul.f32 %v130, %v78
    %v275 = vmul.f32 %v131, %v79
    %v276 = vmul.f32 %v132, %v76
    %v277 = vmul.f32 %v133, %v77
    %v278 = vmul.f32 %v134, %v78
    %v279 = vmul.f32 %v135, %v79
    %v280 = vmul.f32 %v136, %v76
    %v281 = vmul.f32 %v137, %v77
    %v282 = vmul.f32 %v138, %v78
    %v283 = vmul.f32 %v139, %v79
    %v284 = vmul.f32 %v140, %v76
    %v285 = vmul.f32 %v141, %v77
    %v286 = vmul.f32 %v142, %v78
    %v287 = vmul.f32 %v143, %v79
    %v288 = vld [vmem:[#allocation2] sm:$0xf]
    %vm289 = vcmask 261120
    %v291 = vsel %vm289, 1.0, 0
    %293 = vmatprep.subr.mxu0 0.0
    %v294 = vand.u32 %v256, 4294901760
    %295 = vmatpush1.msra.mxu0 %v294
    %296 = vmatprep.subr.mxu0 0.0
    %v297 = vand.u32 %v257, 4294901760
    %298 = vmatpush1.msra.mxu0 %v297
    %299 = vmatprep.subr.mxu0 0.0
    %v300 = vand.u32 %v258, 4294901760
    %301 = vmatpush1.msra.mxu0 %v300
    %302 = vmatprep.subr.mxu0 0.0
    %v303 = vand.u32 %v259, 4294901760
    %304 = vmatpush1.msra.mxu0 %v303
    %305 = vmatprep.subr.mxu0 0.0
    %306 = vmatpush1.msra.mxu0 0.0
    %307 = vmatprep.subr.mxu0 0.0
    %308 = vmatpush1.msra.mxu0 0.0
    %309 = vmatprep.subr.mxu0 0.0
    %310 = vmatpush1.msra.mxu0 0.0
    %311 = vmatprep.subr.mxu0 0.0
    %312 = vmatpush1.msra.mxu0 0.0
    %313 = vmatprep.subr.mxu0 0.0
    %314 = vmatpush1.msra.mxu0 0.0
    %315 = vmatprep.subr.mxu0 0.0
    %316 = vmatpush1.msra.mxu0 0.0
    %317 = vmatprep.subr.mxu0 0.0
    %318 = vmatpush1.msra.mxu0 0.0
    %319 = vmatprep.subr.mxu0 0.0
    %320 = vmatpush1.msra.mxu0 0.0
    %321 = vmatprep.subr.mxu0 0.0
    %322 = vmatpush1.msra.mxu0 0.0
    %323 = vmatprep.subr.mxu0 0.0
    %324 = vmatpush1.msra.mxu0 0.0
    %325 = vmatprep.subr.mxu0 0.0
    %326 = vmatpush1.msra.mxu0 0.0
    %327 = vmatprep.subr.mxu0 0.0
    %328 = vmatpush1.msra.mxu0 0.0
    %329 = vmatprep.subr.mxu0 0.0
    %330 = vmatpush1.msra.mxu0 0.0
    %331 = vmatprep.subr.mxu0 0.0
    %332 = vmatpush1.msra.mxu0 0.0
    %333 = vmatprep.subr.mxu0 0.0
    %334 = vmatpush1.msra.mxu0 0.0
    %335 = vmatprep.subr.mxu0 0.0
    %336 = vmatpush1.msra.mxu0 0.0
    %337 = vmatprep.subr.mxu0 0.0
    %338 = vmatpush1.msra.mxu0 0.0
    %339 = vmatprep.subr.mxu0 0.0
    %340 = vmatpush1.msra.mxu0 0.0
    %341 = vmatprep.subr.mxu0 0.0
    %342 = vmatpush1.msra.mxu0 0.0
    %343 = vmatprep.subr.mxu0 0.0
    %344 = vmatpush1.msra.mxu0 0.0
    %345 = vmatprep.subr.mxu0 0.0
    %346 = vmatpush1.msra.mxu0 0.0
    %347 = vmatprep.subr.mxu0 0.0
    %348 = vmatpush1.msra.mxu0 0.0
    %349 = vmatprep.subr.mxu0 0.0
    %350 = vmatpush1.msra.mxu0 0.0
    %351 = vmatprep.subr.mxu0 0.0
    %352 = vmatpush1.msra.mxu0 0.0
    %353 = vmatprep.subr.mxu0 0.0
    %354 = vmatpush1.msra.mxu0 0.0
    %355 = vmatprep.subr.mxu0 0.0
    %356 = vmatpush1.msra.mxu0 0.0
    %357 = vmatprep.subr.mxu0 0.0
    %358 = vmatpush1.msra.mxu0 0.0
    %359 = vmatprep.subr.mxu0 0.0
    %360 = vmatpush1.msra.mxu0 0.0
    %361 = vmatprep.mubr.f32.mxu0 0.0
    %v362 = vand.u32 %v291, 4294901760
    %v363 = vsub.f32 %v291, %v362
    %v364 = vand.u32 %v363, 4294901760
    %v365 = vsub.f32 %v363, %v364
    %v366 = vand.u32 %v365, 4294901760
    %367 = vmatmul.mubr.f32.gmra.mrb[0].mxu0 %v366
    %v368 = vpop.f32.mrb[0].mxu0
    %v369 = vadd.f32 0.0, %v368
    %v370 = vpop.f32.mrb[0].mxu0
    %371 = vdwg.mxu0
    %372 = vmatprep.subr.mxu0 0.0
    %v373 = vand.u32 %v256, 4294901760
    %v374 = vsub.f32 %v256, %v373
    %v375 = vand.u32 %v374, 4294901760
    %v376 = vsub.f32 %v374, %v375
    %v377 = vand.u32 %v376, 4294901760
    %378 = vmatpush1.msra.mxu0 %v377
    %379 = vmatprep.subr.mxu0 0.0
    %v380 = vand.u32 %v257, 4294901760
    %v381 = vsub.f32 %v257, %v380
    %v382 = vand.u32 %v381, 4294901760
    %v383 = vsub.f32 %v381, %v382
    %v384 = vand.u32 %v383, 4294901760
    %385 = vmatpush1.msra.mxu0 %v384
    %386 = vmatprep.subr.mxu0 0.0
    %v387 = vand.u32 %v258, 4294901760
    %v388 = vsub.f32 %v258, %v387
    %v389 = vand.u32 %v388, 4294901760
    %v390 = vsub.f32 %v388, %v389
    %v391 = vand.u32 %v390, 4294901760
    %392 = vmatpush1.msra.mxu0 %v391
    %393 = vmatprep.subr.mxu0 0.0
    %v394 = vand.u32 %v259, 4294901760
    %v395 = vsub.f32 %v259, %v394
    %v396 = vand.u32 %v395, 4294901760
    %v397 = vsub.f32 %v395, %v396
    %v398 = vand.u32 %v397, 4294901760
    %399 = vmatpush1.msra.mxu0 %v398
    %400 = vmatprep.subr.mxu0 0.0
    %401 = vmatpush1.msra.mxu0 0.0
    %402 = vmatprep.subr.mxu0 0.0
    %403 = vmatpush1.msra.mxu0 0.0
    %404 = vmatprep.subr.mxu0 0.0
    %405 = vmatpush1.msra.mxu0 0.0
    %406 = vmatprep.subr.mxu0 0.0
    %407 = vmatpush1.msra.mxu0 0.0
    %408 = vmatprep.subr.mxu0 0.0
    %409 = vmatpush1.msra.mxu0 0.0
    %410 = vmatprep.subr.mxu0 0.0
    %411 = vmatpush1.msra.mxu0 0.0
    %412 = vmatprep.subr.mxu0 0.0
    %413 = vmatpush1.msra.mxu0 0.0
    %414 = vmatprep.subr.mxu0 0.0
    %415 = vmatpush1.msra.mxu0 0.0
    %416 = vmatprep.subr.mxu0 0.0
    %417 = vmatpush1.msra.mxu0 0.0
    %418 = vmatprep.subr.mxu0 0.0
    %419 = vmatpush1.msra.mxu0 0.0
    %420 = vmatprep.subr.mxu0 0.0
    %421 = vmatpush1.msra.mxu0 0.0
    %422 = vmatprep.subr.mxu0 0.0
    %423 = vmatpush1.msra.mxu0 0.0
    %424 = vmatprep.subr.mxu0 0.0
    %425 = vmatpush1.msra.mxu0 0.0
    %426 = vmatprep.subr.mxu0 0.0
    %427 = vmatpush1.msra.mxu0 0.0
    %428 = vmatprep.subr.mxu0 0.0
    %429 = vmatpush1.msra.mxu0 0.0
    %430 = vmatprep.subr.mxu0 0.0
    %431 = vmatpush1.msra.mxu0 0.0
    %432 = vmatprep.subr.mxu0 0.0
    %433 = vmatpush1.msra.mxu0 0.0
    %434 = vmatprep.subr.mxu0 0.0
    %435 = vmatpush1.msra.mxu0 0.0
    %436 = vmatprep.subr.mxu0 0.0
    %437 = vmatpush1.msra.mxu0 0.0
    %438 = vmatprep.subr.mxu0 0.0
    %439 = vmatpush1.msra.mxu0 0.0
    %440 = vmatprep.subr.mxu0 0.0
    %441 = vmatpush1.msra.mxu0 0.0
    %442 = vmatprep.subr.mxu0 0.0
    %443 = vmatpush1.msra.mxu0 0.0
    %444 = vmatprep.subr.mxu0 0.0
    %445 = vmatpush1.msra.mxu0 0.0
    %446 = vmatprep.subr.mxu0 0.0
    %447 = vmatpush1.msra.mxu0 0.0
    %448 = vmatprep.subr.mxu0 0.0
    %449 = vmatpush1.msra.mxu0 0.0
    %450 = vmatprep.subr.mxu0 0.0
    %451 = vmatpush1.msra.mxu0 0.0
    %452 = vmatprep.subr.mxu0 0.0
    %453 = vmatpush1.msra.mxu0 0.0
    %454 = vmatprep.subr.mxu0 0.0
    %455 = vmatpush1.msra.mxu0 0.0
    %456 = vmatprep.mubr.f32.mxu0 0.0
    %v457 = vand.u32 %v291, 4294901760
    %458 = vmatmul.mubr.f32.gmra.mrb[0].mxu0 %v457
    %v459 = vpop.f32.mrb[0].mxu0
    %v460 = vadd.f32 %v369, %v459
    %v461 = vpop.f32.mrb[0].mxu0
    %462 = vdwg.mxu0
    %463 = vmatprep.subr.mxu0 0.0
    %v464 = vand.u32 %v256, 4294901760
    %v465 = vsub.f32 %v256, %v464
    %466 = vmatpush1.msra.mxu0 %v465
    %467 = vmatprep.subr.mxu0 0.0
    %v468 = vand.u32 %v257, 4294901760
    %v469 = vsub.f32 %v257, %v468
    %470 = vmatpush1.msra.mxu0 %v469
    %471 = vmatprep.subr.mxu0 0.0
    %v472 = vand.u32 %v258, 4294901760
    %v473 = vsub.f32 %v258, %v472
    %474 = vmatpush1.msra.mxu0 %v473
    %475 = vmatprep.subr.mxu0 0.0
    %v476 = vand.u32 %v259, 4294901760
    %v477 = vsub.f32 %v259, %v476
    %478 = vmatpush1.msra.mxu0 %v477
    %479 = vmatprep.subr.mxu0 0.0
    %480 = vmatpush1.msra.mxu0 0.0
    %481 = vmatprep.subr.mxu0 0.0
    %482 = vmatpush1.msra.mxu0 0.0
    %483 = vmatprep.subr.mxu0 0.0
    %484 = vmatpush1.msra.mxu0 0.0
    %485 = vmatprep.subr.mxu0 0.0
    %486 = vmatpush1.msra.mxu0 0.0
    %487 = vmatprep.subr.mxu0 0.0
    %488 = vmatpush1.msra.mxu0 0.0
    %489 = vmatprep.subr.mxu0 0.0
    %490 = vmatpush1.msra.mxu0 0.0
    %491 = vmatprep.subr.mxu0 0.0
    %492 = vmatpush1.msra.mxu0 0.0
    %493 = vmatprep.subr.mxu0 0.0
    %494 = vmatpush1.msra.mxu0 0.0
    %495 = vmatprep.subr.mxu0 0.0
    %496 = vmatpush1.msra.mxu0 0.0
    %497 = vmatprep.subr.mxu0 0.0
    %498 = vmatpush1.msra.mxu0 0.0
    %499 = vmatprep.subr.mxu0 0.0
    %500 = vmatpush1.msra.mxu0 0.0
    %501 = vmatprep.subr.mxu0 0.0
    %502 = vmatpush1.msra.mxu0 0.0
    %503 = vmatprep.subr.mxu0 0.0
    %504 = vmatpush1.msra.mxu0 0.0
    %505 = vmatprep.subr.mxu0 0.0
    %506 = vmatpush1.msra.mxu0 0.0
    %507 = vmatprep.subr.mxu0 0.0
    %508 = vmatpush1.msra.mxu0 0.0
    %509 = vmatprep.subr.mxu0 0.0
    %510 = vmatpush1.msra.mxu0 0.0
    %511 = vmatprep.subr.mxu0 0.0
    %512 = vmatpush1.msra.mxu0 0.0
    %513 = vmatprep.subr.mxu0 0.0
    %514 = vmatpush1.msra.mxu0 0.0
    %515 = vmatprep.subr.mxu0 0.0
    %516 = vmatpush1.msra.mxu0 0.0
    %517 = vmatprep.subr.mxu0 0.0
    %518 = vmatpush1.msra.mxu0 0.0
    %519 = vmatprep.subr.mxu0 0.0
    %520 = vmatpush1.msra.mxu0 0.0
    %521 = vmatprep.subr.mxu0 0.0
    %522 = vmatpush1.msra.mxu0 0.0
    %523 = vmatprep.subr.mxu0 0.0
    %524 = vmatpush1.msra.mxu0 0.0
    %525 = vmatprep.subr.mxu0 0.0
    %526 = vmatpush1.msra.mxu0 0.0
    %527 = vmatprep.subr.mxu0 0.0
    %528 = vmatpush1.msra.mxu0 0.0
    %529 = vmatprep.subr.mxu0 0.0
    %530 = vmatpush1.msra.mxu0 0.0
    %531 = vmatprep.subr.mxu0 0.0
    %532 = vmatpush1.msra.mxu0 0.0
    %533 = vmatprep.subr.mxu0 0.0
    %534 = vmatpush1.msra.mxu0 0.0
    %535 = vmatprep.mubr.f32.mxu0 0.0
    %v536 = vand.u32 %v291, 4294901760
    %v537 = vsub.f32 %v291, %v536
    %538 = vmatmul.mubr.f32.gmra.mrb[0].mxu0 %v537
    %v539 = vpop.f32.mrb[0].mxu0
    %v540 = vadd.f32 %v460, %v539
    %v541 = vpop.f32.mrb[0].mxu0
    %542 = vdwg.mxu0
    %543 = vmatprep.subr.mxu0 0.0
    %v544 = vand.u32 %v256, 4294901760
    %545 = vmatpush1.msra.mxu0 %v544
    %546 = vmatprep.subr.mxu0 0.0
    %v547 = vand.u32 %v257, 4294901760
    %548 = vmatpush1.msra.mxu0 %v547
    %549 = vmatprep.subr.mxu0 0.0
    %v550 = vand.u32 %v258, 4294901760
    %551 = vmatpush1.msra.mxu0 %v550
    %552 = vmatprep.subr.mxu0 0.0
    %v553 = vand.u32 %v259, 4294901760
    %554 = vmatpush1.msra.mxu0 %v553
    %555 = vmatprep.subr.mxu0 0.0
    %556 = vmatpush1.msra.mxu0 0.0
    %557 = vmatprep.subr.mxu0 0.0
    %558 = vmatpush1.msra.mxu0 0.0
    %559 = vmatprep.subr.mxu0 0.0
    %560 = vmatpush1.msra.mxu0 0.0
    %561 = vmatprep.subr.mxu0 0.0
    %562 = vmatpush1.msra.mxu0 0.0
    %563 = vmatprep.subr.mxu0 0.0
    %564 = vmatpush1.msra.mxu0 0.0
    %565 = vmatprep.subr.mxu0 0.0
    %566 = vmatpush1.msra.mxu0 0.0
    %567 = vmatprep.subr.mxu0 0.0
    %568 = vmatpush1.msra.mxu0 0.0
    %569 = vmatprep.subr.mxu0 0.0
    %570 = vmatpush1.msra.mxu0 0.0
    %571 = vmatprep.subr.mxu0 0.0
    %572 = vmatpush1.msra.mxu0 0.0
    %573 = vmatprep.subr.mxu0 0.0
    %574 = vmatpush1.msra.mxu0 0.0
    %575 = vmatprep.subr.mxu0 0.0
    %576 = vmatpush1.msra.mxu0 0.0
    %577 = vmatprep.subr.mxu0 0.0
    %578 = vmatpush1.msra.mxu0 0.0
    %579 = vmatprep.subr.mxu0 0.0
    %580 = vmatpush1.msra.mxu0 0.0
    %581 = vmatprep.subr.mxu0 0.0
    %582 = vmatpush1.msra.mxu0 0.0
    %583 = vmatprep.subr.mxu0 0.0
    %584 = vmatpush1.msra.mxu0 0.0
    %585 = vmatprep.subr.mxu0 0.0
    %586 = vmatpush1.msra.mxu0 0.0
    %587 = vmatprep.subr.mxu0 0.0
    %588 = vmatpush1.msra.mxu0 0.0
    %589 = vmatprep.subr.mxu0 0.0
    %590 = vmatpush1.msra.mxu0 0.0
    %591 = vmatprep.subr.mxu0 0.0
    %592 = vmatpush1.msra.mxu0 0.0
    %593 = vmatprep.subr.mxu0 0.0
    %594 = vmatpush1.msra.mxu0 0.0
    %595 = vmatprep.subr.mxu0 0.0
    %596 = vmatpush1.msra.mxu0 0.0
    %597 = vmatprep.subr.mxu0 0.0
    %598 = vmatpush1.msra.mxu0 0.0
    %599 = vmatprep.subr.mxu0 0.0
    %600 = vmatpush1.msra.mxu0 0.0
    %601 = vmatprep.subr.mxu0 0.0
    %602 = vmatpush1.msra.mxu0 0.0
    %603 = vmatprep.subr.mxu0 0.0
    %604 = vmatpush1.msra.mxu0 0.0
    %605 = vmatprep.subr.mxu0 0.0
    %606 = vmatpush1.msra.mxu0 0.0
    %607 = vmatprep.subr.mxu0 0.0
    %608 = vmatpush1.msra.mxu0 0.0
    %609 = vmatprep.subr.mxu0 0.0
    %610 = vmatpush1.msra.mxu0 0.0
    %611 = vmatprep.mubr.f32.mxu0 0.0
    %v612 = vand.u32 %v291, 4294901760
    %v613 = vsub.f32 %v291, %v612
    %v614 = vand.u32 %v613, 4294901760
    %615 = vmatmul.mubr.f32.gmra.mrb[0].mxu0 %v614
    %v616 = vpop.f32.mrb[0].mxu0
    %v617 = vadd.f32 %v540, %v616
    %v618 = vpop.f32.mrb[0].mxu0
    %619 = vdwg.mxu0
    %620 = vmatprep.subr.mxu0 0.0
    %v621 = vand.u32 %v256, 4294901760
    %v622 = vsub.f32 %v256, %v621
    %v623 = vand.u32 %v622, 4294901760
    %624 = vmatpush1.msra.mxu0 %v623
    %625 = vmatprep.subr.mxu0 0.0
    %v626 = vand.u32 %v257, 4294901760
    %v627 = vsub.f32 %v257, %v626
    %v628 = vand.u32 %v627, 4294901760
    %629 = vmatpush1.msra.mxu0 %v628
    %630 = vmatprep.subr.mxu0 0.0
    %v631 = vand.u32 %v258, 4294901760
    %v632 = vsub.f32 %v258, %v631
    %v633 = vand.u32 %v632, 4294901760
    %634 = vmatpush1.msra.mxu0 %v633
    %635 = vmatprep.subr.mxu0 0.0
    %v636 = vand.u32 %v259, 4294901760
    %v637 = vsub.f32 %v259, %v636
    %v638 = vand.u32 %v637, 4294901760
    %639 = vmatpush1.msra.mxu0 %v638
    %640 = vmatprep.subr.mxu0 0.0
    %641 = vmatpush1.msra.mxu0 0.0
    %642 = vmatprep.subr.mxu0 0.0
    %643 = vmatpush1.msra.mxu0 0.0
    %644 = vmatprep.subr.mxu0 0.0
    %645 = vmatpush1.msra.mxu0 0.0
    %646 = vmatprep.subr.mxu0 0.0
    %647 = vmatpush1.msra.mxu0 0.0
    %648 = vmatprep.subr.mxu0 0.0
    %649 = vmatpush1.msra.mxu0 0.0
    %650 = vmatprep.subr.mxu0 0.0
    %651 = vmatpush1.msra.mxu0 0.0
    %652 = vmatprep.subr.mxu0 0.0
    %653 = vmatpush1.msra.mxu0 0.0
    %654 = vmatprep.subr.mxu0 0.0
    %655 = vmatpush1.msra.mxu0 0.0
    %656 = vmatprep.subr.mxu0 0.0
    %657 = vmatpush1.msra.mxu0 0.0
    %658 = vmatprep.subr.mxu0 0.0
    %659 = vmatpush1.msra.mxu0 0.0
    %660 = vmatprep.subr.mxu0 0.0
    %661 = vmatpush1.msra.mxu0 0.0
    %662 = vmatprep.subr.mxu0 0.0
    %663 = vmatpush1.msra.mxu0 0.0
    %664 = vmatprep.subr.mxu0 0.0
    %665 = vmatpush1.msra.mxu0 0.0
    %666 = vmatprep.subr.mxu0 0.0
    %667 = vmatpush1.msra.mxu0 0.0
    %668 = vmatprep.subr.mxu0 0.0
    %669 = vmatpush1.msra.mxu0 0.0
    %670 = vmatprep.subr.mxu0 0.0
    %671 = vmatpush1.msra.mxu0 0.0
    %672 = vmatprep.subr.mxu0 0.0
    %673 = vmatpush1.msra.mxu0 0.0
    %674 = vmatprep.subr.mxu0 0.0
    %675 = vmatpush1.msra.mxu0 0.0
    %676 = vmatprep.subr.mxu0 0.0
    %677 = vmatpush1.msra.mxu0 0.0
    %678 = vmatprep.subr.mxu0 0.0
    %679 = vmatpush1.msra.mxu0 0.0
    %680 = vmatprep.subr.mxu0 0.0
    %681 = vmatpush1.msra.mxu0 0.0
    %682 = vmatprep.subr.mxu0 0.0
    %683 = vmatpush1.msra.mxu0 0.0
    %684 = vmatprep.subr.mxu0 0.0
    %685 = vmatpush1.msra.mxu0 0.0
    %686 = vmatprep.subr.mxu0 0.0
    %687 = vmatpush1.msra.mxu0 0.0
    %688 = vmatprep.subr.mxu0 0.0
    %689 = vmatpush1.msra.mxu0 0.0
    %690 = vmatprep.subr.mxu0 0.0
    %691 = vmatpush1.msra.mxu0 0.0
    %692 = vmatprep.subr.mxu0 0.0
    %693 = vmatpush1.msra.mxu0 0.0
    %694 = vmatprep.subr.mxu0 0.0
    %695 = vmatpush1.msra.mxu0 0.0
    %696 = vmatprep.mubr.f32.mxu0 0.0
    %v697 = vand.u32 %v291, 4294901760
    %698 = vmatmul.mubr.f32.gmra.mrb[0].mxu0 %v697
    %v699 = vpop.f32.mrb[0].mxu0
    %v700 = vadd.f32 %v617, %v699
    %v701 = vpop.f32.mrb[0].mxu0
    %702 = vdwg.mxu0
    %703 = vmatprep.subr.mxu0 0.0
    %v704 = vand.u32 %v256, 4294901760
    %705 = vmatpush1.msra.mxu0 %v704
    %706 = vmatprep.subr.mxu0 0.0
    %v707 = vand.u32 %v257, 4294901760
    %708 = vmatpush1.msra.mxu0 %v707
    %709 = vmatprep.subr.mxu0 0.0
    %v710 = vand.u32 %v258, 4294901760
    %711 = vmatpush1.msra.mxu0 %v710
    %712 = vmatprep.subr.mxu0 0.0
    %v713 = vand.u32 %v259, 4294901760
    %714 = vmatpush1.msra.mxu0 %v713
    %715 = vmatprep.subr.mxu0 0.0
    %716 = vmatpush1.msra.mxu0 0.0
    %717 = vmatprep.subr.mxu0 0.0
    %718 = vmatpush1.msra.mxu0 0.0
    %719 = vmatprep.subr.mxu0 0.0
    %720 = vmatpush1.msra.mxu0 0.0
    %721 = vmatprep.subr.mxu0 0.0
    %722 = vmatpush1.msra.mxu0 0.0
    %723 = vmatprep.subr.mxu0 0.0
    %724 = vmatpush1.msra.mxu0 0.0
    %725 = vmatprep.subr.mxu0 0.0
    %726 = vmatpush1.msra.mxu0 0.0
    %727 = vmatprep.subr.mxu0 0.0
    %728 = vmatpush1.msra.mxu0 0.0
    %729 = vmatprep.subr.mxu0 0.0
    %730 = vmatpush1.msra.mxu0 0.0
    %731 = vmatprep.subr.mxu0 0.0
    %732 = vmatpush1.msra.mxu0 0.0
    %733 = vmatprep.subr.mxu0 0.0
    %734 = vmatpush1.msra.mxu0 0.0
    %735 = vmatprep.subr.mxu0 0.0
    %736 = vmatpush1.msra.mxu0 0.0
    %737 = vmatprep.subr.mxu0 0.0
    %738 = vmatpush1.msra.mxu0 0.0
    %739 = vmatprep.subr.mxu0 0.0
    %740 = vmatpush1.msra.mxu0 0.0
    %741 = vmatprep.subr.mxu0 0.0
    %742 = vmatpush1.msra.mxu0 0.0
    %743 = vmatprep.subr.mxu0 0.0
    %744 = vmatpush1.msra.mxu0 0.0
    %745 = vmatprep.subr.mxu0 0.0
    %746 = vmatpush1.msra.mxu0 0.0
    %747 = vmatprep.subr.mxu0 0.0
    %748 = vmatpush1.msra.mxu0 0.0
    %749 = vmatprep.subr.mxu0 0.0
    %750 = vmatpush1.msra.mxu0 0.0
    %751 = vmatprep.subr.mxu0 0.0
    %752 = vmatpush1.msra.mxu0 0.0
    %753 = vmatprep.subr.mxu0 0.0
    %754 = vmatpush1.msra.mxu0 0.0
    %755 = vmatprep.subr.mxu0 0.0
    %756 = vmatpush1.msra.mxu0 0.0
    %757 = vmatprep.subr.mxu0 0.0
    %758 = vmatpush1.msra.mxu0 0.0
    %759 = vmatprep.subr.mxu0 0.0
    %760 = vmatpush1.msra.mxu0 0.0
    %761 = vmatprep.subr.mxu0 0.0
    %762 = vmatpush1.msra.mxu0 0.0
    %763 = vmatprep.subr.mxu0 0.0
    %764 = vmatpush1.msra.mxu0 0.0
    %765 = vmatprep.subr.mxu0 0.0
    %766 = vmatpush1.msra.mxu0 0.0
    %767 = vmatprep.subr.mxu0 0.0
    %768 = vmatpush1.msra.mxu0 0.0
    %769 = vmatprep.subr.mxu0 0.0
    %770 = vmatpush1.msra.mxu0 0.0
    %771 = vmatprep.mubr.f32.mxu0 0.0
    %v772 = vand.u32 %v291, 4294901760
    %773 = vmatmul.mubr.f32.gmra.mrb[0].mxu0 %v772
    %v774 = vpop.f32.mrb[0].mxu0
    %v775 = vadd.f32 %v700, %v774
    %v776 = vpop.f32.mrb[0].mxu0
    %777 = vdwg.mxu0
    %778 = vmatprep.subr.mxu0 0.0
    %v779 = vand.u32 %v260, 4294901760
    %780 = vmatpush1.msra.mxu0 %v779
    %781 = vmatprep.subr.mxu0 0.0
    %v782 = vand.u32 %v261, 4294901760
    %783 = vmatpush1.msra.mxu0 %v782
    %784 = vmatprep.subr.mxu0 0.0
    %v785 = vand.u32 %v262, 4294901760
    %786 = vmatpush1.msra.mxu0 %v785
    %787 = vmatprep.subr.mxu0 0.0
    %v788 = vand.u32 %v263, 4294901760
    %789 = vmatpush1.msra.mxu0 %v788
    %790 = vmatprep.subr.mxu0 0.0
    %791 = vmatpush1.msra.mxu0 0.0
    %792 = vmatprep.subr.mxu0 0.0
    %793 = vmatpush1.msra.mxu0 0.0
    %794 = vmatprep.subr.mxu0 0.0
    %795 = vmatpush1.msra.mxu0 0.0
    %796 = vmatprep.subr.mxu0 0.0
    %797 = vmatpush1.msra.mxu0 0.0
    %798 = vmatprep.subr.mxu0 0.0
    %799 = vmatpush1.msra.mxu0 0.0
    %800 = vmatprep.subr.mxu0 0.0
    %801 = vmatpush1.msra.mxu0 0.0
    %802 = vmatprep.subr.mxu0 0.0
    %803 = vmatpush1.msra.mxu0 0.0
    %804 = vmatprep.subr.mxu0 0.0
    %805 = vmatpush1.msra.mxu0 0.0
    %806 = vmatprep.subr.mxu0 0.0
    %807 = vmatpush1.msra.mxu0 0.0
    %808 = vmatprep.subr.mxu0 0.0
    %809 = vmatpush1.msra.mxu0 0.0
    %810 = vmatprep.subr.mxu0 0.0
    %811 = vmatpush1.msra.mxu0 0.0
    %812 = vmatprep.subr.mxu0 0.0
    %813 = vmatpush1.msra.mxu0 0.0
    %814 = vmatprep.subr.mxu0 0.0
    %815 = vmatpush1.msra.mxu0 0.0
    %816 = vmatprep.subr.mxu0 0.0
    %817 = vmatpush1.msra.mxu0 0.0
    %818 = vmatprep.subr.mxu0 0.0
    %819 = vmatpush1.msra.mxu0 0.0
    %820 = vmatprep.subr.mxu0 0.0
    %821 = vmatpush1.msra.mxu0 0.0
    %822 = vmatprep.subr.mxu0 0.0
    %823 = vmatpush1.msra.mxu0 0.0
    %824 = vmatprep.subr.mxu0 0.0
    %825 = vmatpush1.msra.mxu0 0.0
    %826 = vmatprep.subr.mxu0 0.0
    %827 = vmatpush1.msra.mxu0 0.0
    %828 = vmatprep.subr.mxu0 0.0
    %829 = vmatpush1.msra.mxu0 0.0
    %830 = vmatprep.subr.mxu0 0.0
    %831 = vmatpush1.msra.mxu0 0.0
    %832 = vmatprep.subr.mxu0 0.0
    %833 = vmatpush1.msra.mxu0 0.0
    %834 = vmatprep.subr.mxu0 0.0
    %835 = vmatpush1.msra.mxu0 0.0
    %836 = vmatprep.subr.mxu0 0.0
    %837 = vmatpush1.msra.mxu0 0.0
    %838 = vmatprep.subr.mxu0 0.0
    %839 = vmatpush1.msra.mxu0 0.0
    %840 = vmatprep.subr.mxu0 0.0
    %841 = vmatpush1.msra.mxu0 0.0
    %842 = vmatprep.subr.mxu0 0.0
    %843 = vmatpush1.msra.mxu0 0.0
    %844 = vmatprep.subr.mxu0 0.0
    %845 = vmatpush1.msra.mxu0 0.0
    %846 = vmatprep.mubr.f32.mxu0 0.0
    %v847 = vand.u32 %v291, 4294901760
    %v848 = vsub.f32 %v291, %v847
    %v849 = vand.u32 %v848, 4294901760
    %v850 = vsub.f32 %v848, %v849
    %v851 = vand.u32 %v850, 4294901760
    %852 = vmatmul.mubr.f32.gmra.mrb[0].mxu0 %v851
    %v853 = vpop.f32.mrb[0].mxu0
    %v854 = vadd.f32 0.0, %v853
    %v855 = vpop.f32.mrb[0].mxu0
    %856 = vdwg.mxu0
    %857 = vmatprep.subr.mxu0 0.0
    %v858 = vand.u32 %v260, 4294901760
    %v859 = vsub.f32 %v260, %v858
    %v860 = vand.u32 %v859, 4294901760
    %v861 = vsub.f32 %v859, %v860
    %v862 = vand.u32 %v861, 4294901760
    %863 = vmatpush1.msra.mxu0 %v862
    %864 = vmatprep.subr.mxu0 0.0
    %v865 = vand.u32 %v261, 4294901760
    %v866 = vsub.f32 %v261, %v865
    %v867 = vand.u32 %v866, 4294901760
    %v868 = vsub.f32 %v866, %v867
    %v869 = vand.u32 %v868, 4294901760
    %870 = vmatpush1.msra.mxu0 %v869
    %871 = vmatprep.subr.mxu0 0.0
    %v872 = vand.u32 %v262, 4294901760
    %v873 = vsub.f32 %v262, %v872
    %v874 = vand.u32 %v873, 4294901760
    %v875 = vsub.f32 %v873, %v874
    %v876 = vand.u32 %v875, 4294901760
    %877 = vmatpush1.msra.mxu0 %v876
    %878 = vmatprep.subr.mxu0 0.0
    %v879 = vand.u32 %v263, 4294901760
    %v880 = vsub.f32 %v263, %v879
    %v881 = vand.u32 %v880, 4294901760
    %v882 = vsub.f32 %v880, %v881
    %v883 = vand.u32 %v882, 4294901760
    %884 = vmatpush1.msra.mxu0 %v883
    %885 = vmatprep.subr.mxu0 0.0
    %886 = vmatpush1.msra.mxu0 0.0
    %887 = vmatprep.subr.mxu0 0.0
    %888 = vmatpush1.msra.mxu0 0.0
    %889 = vmatprep.subr.mxu0 0.0
    %890 = vmatpush1.msra.mxu0 0.0
    %891 = vmatprep.subr.mxu0 0.0
    %892 = vmatpush1.msra.mxu0 0.0
    %893 = vmatprep.subr.mxu0 0.0
    %894 = vmatpush1.msra.mxu0 0.0
    %895 = vmatprep.subr.mxu0 0.0
    %896 = vmatpush1.msra.mxu0 0.0
    %897 = vmatprep.subr.mxu0 0.0
    %898 = vmatpush1.msra.mxu0 0.0
    %899 = vmatprep.subr.mxu0 0.0
    %900 = vmatpush1.msra.mxu0 0.0
    %901 = vmatprep.subr.mxu0 0.0
    %902 = vmatpush1.msra.mxu0 0.0
    %903 = vmatprep.subr.mxu0 0.0
    %904 = vmatpush1.msra.mxu0 0.0
    %905 = vmatprep.subr.mxu0 0.0
    %906 = vmatpush1.msra.mxu0 0.0
    %907 = vmatprep.subr.mxu0 0.0
    %908 = vmatpush1.msra.mxu0 0.0
    %909 = vmatprep.subr.mxu0 0.0
    %910 = vmatpush1.msra.mxu0 0.0
    %911 = vmatprep.subr.mxu0 0.0
    %912 = vmatpush1.msra.mxu0 0.0
    %913 = vmatprep.subr.mxu0 0.0
    %914 = vmatpush1.msra.mxu0 0.0
    %915 = vmatprep.subr.mxu0 0.0
    %916 = vmatpush1.msra.mxu0 0.0
    %917 = vmatprep.subr.mxu0 0.0
    %918 = vmatpush1.msra.mxu0 0.0
    %919 = vmatprep.subr.mxu0 0.0
    %920 = vmatpush1.msra.mxu0 0.0
    %921 = vmatprep.subr.mxu0 0.0
    %922 = vmatpush1.msra.mxu0 0.0
    %923 = vmatprep.subr.mxu0 0.0
    %924 = vmatpush1.msra.mxu0 0.0
    %925 = vmatprep.subr.mxu0 0.0
    %926 = vmatpush1.msra.mxu0 0.0
    %927 = vmatprep.subr.mxu0 0.0
    %928 = vmatpush1.msra.mxu0 0.0
    %929 = vmatprep.subr.mxu0 0.0
    %930 = vmatpush1.msra.mxu0 0.0
    %931 = vmatprep.subr.mxu0 0.0
    %932 = vmatpush1.msra.mxu0 0.0
    %933 = vmatprep.subr.mxu0 0.0
    %934 = vmatpush1.msra.mxu0 0.0
    %935 = vmatprep.subr.mxu0 0.0
    %936 = vmatpush1.msra.mxu0 0.0
    %937 = vmatprep.subr.mxu0 0.0
    %938 = vmatpush1.msra.mxu0 0.0
    %939 = vmatprep.subr.mxu0 0.0
    %940 = vmatpush1.msra.mxu0 0.0
    %941 = vmatprep.mubr.f32.mxu0 0.0
    %v942 = vand.u32 %v291, 4294901760
    %943 = vmatmul.mubr.f32.gmra.mrb[0].mxu0 %v942
    %v944 = vpop.f32.mrb[0].mxu0
    %v945 = vadd.f32 %v854, %v944
    %v946 = vpop.f32.mrb[0].mxu0
    %947 = vdwg.mxu0
    %948 = vmatprep.subr.mxu0 0.0
    %v949 = vand.u32 %v260, 4294901760
    %v950 = vsub.f32 %v260, %v949
    %951 = vmatpush1.msra.mxu0 %v950
    %952 = vmatprep.subr.mxu0 0.0
    %v953 = vand.u32 %v261, 4294901760
    %v954 = vsub.f32 %v261, %v953
    %955 = vmatpush1.msra.mxu0 %v954
    %956 = vmatprep.subr.mxu0 0.0
    %v957 = vand.u32 %v262, 4294901760
    %v958 = vsub.f32 %v262, %v957
    %959 = vmatpush1.msra.mxu0 %v958
    %960 = vmatprep.subr.mxu0 0.0
    %v961 = vand.u32 %v263, 4294901760
    %v962 = vsub.f32 %v263, %v961
    %963 = vmatpush1.msra.mxu0 %v962
    %964 = vmatprep.subr.mxu0 0.0
    %965 = vmatpush1.msra.mxu0 0.0
    %966 = vmatprep.subr.mxu0 0.0
    %967 = vmatpush1.msra.mxu0 0.0
    %968 = vmatprep.subr.mxu0 0.0
    %969 = vmatpush1.msra.mxu0 0.0
    %970 = vmatprep.subr.mxu0 0.0
    %971 = vmatpush1.msra.mxu0 0.0
    %972 = vmatprep.subr.mxu0 0.0
    %973 = vmatpush1.msra.mxu0 0.0
    %974 = vmatprep.subr.mxu0 0.0
    %975 = vmatpush1.msra.mxu0 0.0
    %976 = vmatprep.subr.mxu0 0.0
    %977 = vmatpush1.msra.mxu0 0.0
    %978 = vmatprep.subr.mxu0 0.0
    %979 = vmatpush1.msra.mxu0 0.0
    %980 = vmatprep.subr.mxu0 0.0
    %981 = vmatpush1.msra.mxu0 0.0
    %982 = vmatprep.subr.mxu0 0.0
    %983 = vmatpush1.msra.mxu0 0.0
    %984 = vmatprep.subr.mxu0 0.0
    %985 = vmatpush1.msra.mxu0 0.0
    %986 = vmatprep.subr.mxu0 0.0
    %987 = vmatpush1.msra.mxu0 0.0
    %988 = vmatprep.subr.mxu0 0.0
    %989 = vmatpush1.msra.mxu0 0.0
    %990 = vmatprep.subr.mxu0 0.0
    %991 = vmatpush1.msra.mxu0 0.0
    %992 = vmatprep.subr.mxu0 0.0
    %993 = vmatpush1.msra.mxu0 0.0
    %994 = vmatprep.subr.mxu0 0.0
    %995 = vmatpush1.msra.mxu0 0.0
    %996 = vmatprep.subr.mxu0 0.0
    %997 = vmatpush1.msra.mxu0 0.0
    %998 = vmatprep.subr.mxu0 0.0
    %999 = vmatpush1.msra.mxu0 0.0
    %1000 = vmatprep.subr.mxu0 0.0
    %1001 = vmatpush1.msra.mxu0 0.0
    %1002 = vmatprep.subr.mxu0 0.0
    %1003 = vmatpush1.msra.mxu0 0.0
    %1004 = vmatprep.subr.mxu0 0.0
    %1005 = vmatpush1.msra.mxu0 0.0
    %1006 = vmatprep.subr.mxu0 0.0
    %1007 = vmatpush1.msra.mxu0 0.0
    %1008 = vmatprep.subr.mxu0 0.0
    %1009 = vmatpush1.msra.mxu0 0.0
    %1010 = vmatprep.subr.mxu0 0.0
    %1011 = vmatpush1.msra.mxu0 0.0
    %1012 = vmatprep.subr.mxu0 0.0
    %1013 = vmatpush1.msra.mxu0 0.0
    %1014 = vmatprep.subr.mxu0 0.0
    %1015 = vmatpush1.msra.mxu0 0.0
    %1016 = vmatprep.subr.mxu0 0.0
    %1017 = vmatpush1.msra.mxu0 0.0
    %1018 = vmatprep.subr.mxu0 0.0
    %1019 = vmatpush1.msra.mxu0 0.0
    %1020 = vmatprep.mubr.f32.mxu0 0.0
    %v1021 = vand.u32 %v291, 4294901760
    %v1022 = vsub.f32 %v291, %v1021
    %1023 = vmatmul.mubr.f32.gmra.mrb[0].mxu0 %v1022
    %v1024 = vpop.f32.mrb[0].mxu0
    %v1025 = vadd.f32 %v945, %v1024
    %v1026 = vpop.f32.mrb[0].mxu0
    %1027 = vdwg.mxu0
    %1028 = vmatprep.subr.mxu0 0.0
    %v1029 = vand.u32 %v260, 4294901760
    %1030 = vmatpush1.msra.mxu0 %v1029
    %1031 = vmatprep.subr.mxu0 0.0
    %v1032 = vand.u32 %v261, 4294901760
    %1033 = vmatpush1.msra.mxu0 %v1032
    %1034 = vmatprep.subr.mxu0 0.0
    %v1035 = vand.u32 %v262, 4294901760
    %1036 = vmatpush1.msra.mxu0 %v1035
    %1037 = vmatprep.subr.mxu0 0.0
    %v1038 = vand.u32 %v263, 4294901760
    %1039 = vmatpush1.msra.mxu0 %v1038
    %1040 = vmatprep.subr.mxu0 0.0
    %1041 = vmatpush1.msra.mxu0 0.0
    %1042 = vmatprep.subr.mxu0 0.0
    %1043 = vmatpush1.msra.mxu0 0.0
    %1044 = vmatprep.subr.mxu0 0.0
    %1045 = vmatpush1.msra.mxu0 0.0
    %1046 = vmatprep.subr.mxu0 0.0
    %1047 = vmatpush1.msra.mxu0 0.0
    %1048 = vmatprep.subr.mxu0 0.0
    %1049 = vmatpush1.msra.mxu0 0.0
    %1050 = vmatprep.subr.mxu0 0.0
    %1051 = vmatpush1.msra.mxu0 0.0
    %1052 = vmatprep.subr.mxu0 0.0
    %1053 = vmatpush1.msra.mxu0 0.0
    %1054 = vmatprep.subr.mxu0 0.0
    %1055 = vmatpush1.msra.mxu0 0.0
    %1056 = vmatprep.subr.mxu0 0.0
    %1057 = vmatpush1.msra.mxu0 0.0
    %1058 = vmatprep.subr.mxu0 0.0
    %1059 = vmatpush1.msra.mxu0 0.0
    %1060 = vmatprep.subr.mxu0 0.0
    %1061 = vmatpush1.msra.mxu0 0.0
    %1062 = vmatprep.subr.mxu0 0.0
    %1063 = vmatpush1.msra.mxu0 0.0
    %1064 = vmatprep.subr.mxu0 0.0
    %1065 = vmatpush1.msra.mxu0 0.0
    %1066 = vmatprep.subr.mxu0 0.0
    %1067 = vmatpush1.msra.mxu0 0.0
    %1068 = vmatprep.subr.mxu0 0.0
    %1069 = vmatpush1.msra.mxu0 0.0
    %1070 = vmatprep.subr.mxu0 0.0
    %1071 = vmatpush1.msra.mxu0 0.0
    %1072 = vmatprep.subr.mxu0 0.0
    %1073 = vmatpush1.msra.mxu0 0.0
    %1074 = vmatprep.subr.mxu0 0.0
    %1075 = vmatpush1.msra.mxu0 0.0
    %1076 = vmatprep.subr.mxu0 0.0
    %1077 = vmatpush1.msra.mxu0 0.0
    %1078 = vmatprep.subr.mxu0 0.0
    %1079 = vmatpush1.msra.mxu0 0.0
    %1080 = vmatprep.subr.mxu0 0.0
    %1081 = vmatpush1.msra.mxu0 0.0
    %1082 = vmatprep.subr.mxu0 0.0
    %1083 = vmatpush1.msra.mxu0 0.0
    %1084 = vmatprep.subr.mxu0 0.0
    %1085 = vmatpush1.msra.mxu0 0.0
    %1086 = vmatprep.subr.mxu0 0.0
    %1087 = vmatpush1.msra.mxu0 0.0
    %1088 = vmatprep.subr.mxu0 0.0
    %1089 = vmatpush1.msra.mxu0 0.0
    %1090 = vmatprep.subr.mxu0 0.0
    %1091 = vmatpush1.msra.mxu0 0.0
    %1092 = vmatprep.subr.mxu0 0.0
    %1093 = vmatpush1.msra.mxu0 0.0
    %1094 = vmatprep.subr.mxu0 0.0
    %1095 = vmatpush1.msra.mxu0 0.0
    %1096 = vmatprep.mubr.f32.mxu0 0.0
    %v1097 = vand.u32 %v291, 4294901760
    %v1098 = vsub.f32 %v291, %v1097
    %v1099 = vand.u32 %v1098, 4294901760
    %1100 = vmatmul.mubr.f32.gmra.mrb[0].mxu0 %v1099
    %v1101 = vpop.f32.mrb[0].mxu0
    %v1102 = vadd.f32 %v1025, %v1101
    %v1103 = vpop.f32.mrb[0].mxu0
    %1104 = vdwg.mxu0
    %1105 = vmatprep.subr.mxu0 0.0
    %v1106 = vand.u32 %v260, 4294901760
    %v1107 = vsub.f32 %v260, %v1106
    %v1108 = vand.u32 %v1107, 4294901760
    %1109 = vmatpush1.msra.mxu0 %v1108
    %1110 = vmatprep.subr.mxu0 0.0
    %v1111 = vand.u32 %v261, 4294901760
    %v1112 = vsub.f32 %v261, %v1111
    %v1113 = vand.u32 %v1112, 4294901760
    %1114 = vmatpush1.msra.mxu0 %v1113
    %1115 = vmatprep.subr.mxu0 0.0
    %v1116 = vand.u32 %v262, 4294901760
    %v1117 = vsub.f32 %v262, %v1116
    %v1118 = vand.u32 %v1117, 4294901760
    %1119 = vmatpush1.msra.mxu0 %v1118
    %1120 = vmatprep.subr.mxu0 0.0
    %v1121 = vand.u32 %v263, 4294901760
    %v1122 = vsub.f32 %v263, %v1121
    %v1123 = vand.u32 %v1122, 4294901760
    %1124 = vmatpush1.msra.mxu0 %v1123
    %1125 = vmatprep.subr.mxu0 0.0
    %1126 = vmatpush1.msra.mxu0 0.0
    %1127 = vmatprep.subr.mxu0 0.0
    %1128 = vmatpush1.msra.mxu0 0.0
    %1129 = vmatprep.subr.mxu0 0.0
    %1130 = vmatpush1.msra.mxu0 0.0
    %1131 = vmatprep.subr.mxu0 0.0
    %1132 = vmatpush1.msra.mxu0 0.0
    %1133 = vmatprep.subr.mxu0 0.0
    %1134 = vmatpush1.msra.mxu0 0.0
    %1135 = vmatprep.subr.mxu0 0.0
    %1136 = vmatpush1.msra.mxu0 0.0
    %1137 = vmatprep.subr.mxu0 0.0
    %1138 = vmatpush1.msra.mxu0 0.0
    %1139 = vmatprep.subr.mxu0 0.0
    %1140 = vmatpush1.msra.mxu0 0.0
    %1141 = vmatprep.subr.mxu0 0.0
    %1142 = vmatpush1.msra.mxu0 0.0
    %1143 = vmatprep.subr.mxu0 0.0
    %1144 = vmatpush1.msra.mxu0 0.0
    %1145 = vmatprep.subr.mxu0 0.0
    %1146 = vmatpush1.msra.mxu0 0.0
    %1147 = vmatprep.subr.mxu0 0.0
    %1148 = vmatpush1.msra.mxu0 0.0
    %1149 = vmatprep.subr.mxu0 0.0
    %1150 = vmatpush1.msra.mxu0 0.0
    %1151 = vmatprep.subr.mxu0 0.0
    %1152 = vmatpush1.msra.mxu0 0.0
    %1153 = vmatprep.subr.mxu0 0.0
    %1154 = vmatpush1.msra.mxu0 0.0
    %1155 = vmatprep.subr.mxu0 0.0
    %1156 = vmatpush1.msra.mxu0 0.0
    %1157 = vmatprep.subr.mxu0 0.0
    %1158 = vmatpush1.msra.mxu0 0.0
    %1159 = vmatprep.subr.mxu0 0.0
    %1160 = vmatpush1.msra.mxu0 0.0
    %1161 = vmatprep.subr.mxu0 0.0
    %1162 = vmatpush1.msra.mxu0 0.0
    %1163 = vmatprep.subr.mxu0 0.0
    %1164 = vmatpush1.msra.mxu0 0.0
    %1165 = vmatprep.subr.mxu0 0.0
    %1166 = vmatpush1.msra.mxu0 0.0
    %1167 = vmatprep.subr.mxu0 0.0
    %1168 = vmatpush1.msra.mxu0 0.0
    %1169 = vmatprep.subr.mxu0 0.0
    %1170 = vmatpush1.msra.mxu0 0.0
    %1171 = vmatprep.subr.mxu0 0.0
    %1172 = vmatpush1.msra.mxu0 0.0
    %1173 = vmatprep.subr.mxu0 0.0
    %1174 = vmatpush1.msra.mxu0 0.0
    %1175 = vmatprep.subr.mxu0 0.0
    %1176 = vmatpush1.msra.mxu0 0.0
    %1177 = vmatprep.subr.mxu0 0.0
    %1178 = vmatpush1.msra.mxu0 0.0
    %1179 = vmatprep.subr.mxu0 0.0
    %1180 = vmatpush1.msra.mxu0 0.0
    %1181 = vmatprep.mubr.f32.mxu0 0.0
    %v1182 = vand.u32 %v291, 4294901760
    %1183 = vmatmul.mubr.f32.gmra.mrb[0].mxu0 %v1182
    %v1184 = vpop.f32.mrb[0].mxu0
    %v1185 = vadd.f32 %v1102, %v1184
    %v1186 = vpop.f32.mrb[0].mxu0
    %1187 = vdwg.mxu0
    %1188 = vmatprep.subr.mxu0 0.0
    %v1189 = vand.u32 %v260, 4294901760
    %1190 = vmatpush1.msra.mxu0 %v1189
    %1191 = vmatprep.subr.mxu0 0.0
    %v1192 = vand.u32 %v261, 4294901760
    %1193 = vmatpush1.msra.mxu0 %v1192
    %1194 = vmatprep.subr.mxu0 0.0
    %v1195 = vand.u32 %v262, 4294901760
    %1196 = vmatpush1.msra.mxu0 %v1195
    %1197 = vmatprep.subr.mxu0 0.0
    %v1198 = vand.u32 %v263, 4294901760
    %1199 = vmatpush1.msra.mxu0 %v1198
    %1200 = vmatprep.subr.mxu0 0.0
    %1201 = vmatpush1.msra.mxu0 0.0
    %1202 = vmatprep.subr.mxu0 0.0
    %1203 = vmatpush1.msra.mxu0 0.0
    %1204 = vmatprep.subr.mxu0 0.0
    %1205 = vmatpush1.msra.mxu0 0.0
    %1206 = vmatprep.subr.mxu0 0.0
    %1207 = vmatpush1.msra.mxu0 0.0
    %1208 = vmatprep.subr.mxu0 0.0
    %1209 = vmatpush1.msra.mxu0 0.0
    %1210 = vmatprep.subr.mxu0 0.0
    %1211 = vmatpush1.msra.mxu0 0.0
    %1212 = vmatprep.subr.mxu0 0.0
    %1213 = vmatpush1.msra.mxu0 0.0
    %1214 = vmatprep.subr.mxu0 0.0
    %1215 = vmatpush1.msra.mxu0 0.0
    %1216 = vmatprep.subr.mxu0 0.0
    %1217 = vmatpush1.msra.mxu0 0.0
    %1218 = vmatprep.subr.mxu0 0.0
    %1219 = vmatpush1.msra.mxu0 0.0
    %1220 = vmatprep.subr.mxu0 0.0
    %1221 = vmatpush1.msra.mxu0 0.0
    %1222 = vmatprep.subr.mxu0 0.0
    %1223 = vmatpush1.msra.mxu0 0.0
    %1224 = vmatprep.subr.mxu0 0.0
    %1225 = vmatpush1.msra.mxu0 0.0
    %1226 = vmatprep.subr.mxu0 0.0
    %1227 = vmatpush1.msra.mxu0 0.0
    %1228 = vmatprep.subr.mxu0 0.0
    %1229 = vmatpush1.msra.mxu0 0.0
    %1230 = vmatprep.subr.mxu0 0.0
    %1231 = vmatpush1.msra.mxu0 0.0
    %1232 = vmatprep.subr.mxu0 0.0
    %1233 = vmatpush1.msra.mxu0 0.0
    %1234 = vmatprep.subr.mxu0 0.0
    %1235 = vmatpush1.msra.mxu0 0.0
    %1236 = vmatprep.subr.mxu0 0.0
    %1237 = vmatpush1.msra.mxu0 0.0
    %1238 = vmatprep.subr.mxu0 0.0
    %1239 = vmatpush1.msra.mxu0 0.0
    %1240 = vmatprep.subr.mxu0 0.0
    %1241 = vmatpush1.msra.mxu0 0.0
    %1242 = vmatprep.subr.mxu0 0.0
    %1243 = vmatpush1.msra.mxu0 0.0
    %1244 = vmatprep.subr.mxu0 0.0
    %1245 = vmatpush1.msra.mxu0 0.0
    %1246 = vmatprep.subr.mxu0 0.0
    %1247 = vmatpush1.msra.mxu0 0.0
    %1248 = vmatprep.subr.mxu0 0.0
    %1249 = vmatpush1.msra.mxu0 0.0
    %1250 = vmatprep.subr.mxu0 0.0
    %1251 = vmatpush1.msra.mxu0 0.0
    %1252 = vmatprep.subr.mxu0 0.0
    %1253 = vmatpush1.msra.mxu0 0.0
    %1254 = vmatprep.subr.mxu0 0.0
    %1255 = vmatpush1.msra.mxu0 0.0
    %1256 = vmatprep.mubr.f32.mxu0 0.0
    %v1257 = vand.u32 %v291, 4294901760
    %1258 = vmatmul.mubr.f32.gmra.mrb[0].mxu0 %v1257
    %v1259 = vpop.f32.mrb[0].mxu0
    %v1260 = vadd.f32 %v1185, %v1259
    %v1261 = vpop.f32.mrb[0].mxu0
    %1262 = vdwg.mxu0
    %1263 = vmatprep.subr.mxu0 0.0
    %v1264 = vand.u32 %v264, 4294901760
    %1265 = vmatpush1.msra.mxu0 %v1264
    %1266 = vmatprep.subr.mxu0 0.0
    %v1267 = vand.u32 %v265, 4294901760
    %1268 = vmatpush1.msra.mxu0 %v1267
    %1269 = vmatprep.subr.mxu0 0.0
    %v1270 = vand.u32 %v266, 4294901760
    %1271 = vmatpush1.msra.mxu0 %v1270
    %1272 = vmatprep.subr.mxu0 0.0
    %v1273 = vand.u32 %v267, 4294901760
    %1274 = vmatpush1.msra.mxu0 %v1273
    %1275 = vmatprep.subr.mxu0 0.0
    %1276 = vmatpush1.msra.mxu0 0.0
    %1277 = vmatprep.subr.mxu0 0.0
    %1278 = vmatpush1.msra.mxu0 0.0
    %1279 = vmatprep.subr.mxu0 0.0
    %1280 = vmatpush1.msra.mxu0 0.0
    %1281 = vmatprep.subr.mxu0 0.0
    %1282 = vmatpush1.msra.mxu0 0.0
    %1283 = vmatprep.subr.mxu0 0.0
    %1284 = vmatpush1.msra.mxu0 0.0
    %1285 = vmatprep.subr.mxu0 0.0
    %1286 = vmatpush1.msra.mxu0 0.0
    %1287 = vmatprep.subr.mxu0 0.0
    %1288 = vmatpush1.msra.mxu0 0.0
    %1289 = vmatprep.subr.mxu0 0.0
    %1290 = vmatpush1.msra.mxu0 0.0
    %1291 = vmatprep.subr.mxu0 0.0
    %1292 = vmatpush1.msra.mxu0 0.0
    %1293 = vmatprep.subr.mxu0 0.0
    %1294 = vmatpush1.msra.mxu0 0.0
    %1295 = vmatprep.subr.mxu0 0.0
    %1296 = vmatpush1.msra.mxu0 0.0
    %1297 = vmatprep.subr.mxu0 0.0
    %1298 = vmatpush1.msra.mxu0 0.0
    %1299 = vmatprep.subr.mxu0 0.0
    %1300 = vmatpush1.msra.mxu0 0.0
    %1301 = vmatprep.subr.mxu0 0.0
    %1302 = vmatpush1.msra.mxu0 0.0
    %1303 = vmatprep.subr.mxu0 0.0
    %1304 = vmatpush1.msra.mxu0 0.0
    %1305 = vmatprep.subr.mxu0 0.0
    %1306 = vmatpush1.msra.mxu0 0.0
    %1307 = vmatprep.subr.mxu0 0.0
    %1308 = vmatpush1.msra.mxu0 0.0
    %1309 = vmatprep.subr.mxu0 0.0
    %1310 = vmatpush1.msra.mxu0 0.0
    %1311 = vmatprep.subr.mxu0 0.0
    %1312 = vmatpush1.msra.mxu0 0.0
    %1313 = vmatprep.subr.mxu0 0.0
    %1314 = vmatpush1.msra.mxu0 0.0
    %1315 = vmatprep.subr.mxu0 0.0
    %1316 = vmatpush1.msra.mxu0 0.0
    %1317 = vmatprep.subr.mxu0 0.0
    %1318 = vmatpush1.msra.mxu0 0.0
    %1319 = vmatprep.subr.mxu0 0.0
    %1320 = vmatpush1.msra.mxu0 0.0
    %1321 = vmatprep.subr.mxu0 0.0
    %1322 = vmatpush1.msra.mxu0 0.0
    %1323 = vmatprep.subr.mxu0 0.0
    %1324 = vmatpush1.msra.mxu0 0.0
    %1325 = vmatprep.subr.mxu0 0.0
    %1326 = vmatpush1.msra.mxu0 0.0
    %1327 = vmatprep.subr.mxu0 0.0
    %1328 = vmatpush1.msra.mxu0 0.0
    %1329 = vmatprep.subr.mxu0 0.0
    %1330 = vmatpush1.msra.mxu0 0.0
    %1331 = vmatprep.mubr.f32.mxu0 0.0
    %v1332 = vand.u32 %v291, 4294901760
    %v1333 = vsub.f32 %v291, %v1332
    %v1334 = vand.u32 %v1333, 4294901760
    %v1335 = vsub.f32 %v1333, %v1334
    %v1336 = vand.u32 %v1335, 4294901760
    %1337 = vmatmul.mubr.f32.gmra.mrb[0].mxu0 %v1336
    %v1338 = vpop.f32.mrb[0].mxu0
    %v1339 = vadd.f32 0.0, %v1338
    %v1340 = vpop.f32.mrb[0].mxu0
    %1341 = vdwg.mxu0
    %1342 = vmatprep.subr.mxu0 0.0
    %v1343 = vand.u32 %v264, 4294901760
    %v1344 = vsub.f32 %v264, %v1343
    %v1345 = vand.u32 %v1344, 4294901760
    %v1346 = vsub.f32 %v1344, %v1345
    %v1347 = vand.u32 %v1346, 4294901760
    %1348 = vmatpush1.msra.mxu0 %v1347
    %1349 = vmatprep.subr.mxu0 0.0
    %v1350 = vand.u32 %v265, 4294901760
    %v1351 = vsub.f32 %v265, %v1350
    %v1352 = vand.u32 %v1351, 4294901760
    %v1353 = vsub.f32 %v1351, %v1352
    %v1354 = vand.u32 %v1353, 4294901760
    %1355 = vmatpush1.msra.mxu0 %v1354
    %1356 = vmatprep.subr.mxu0 0.0
    %v1357 = vand.u32 %v266, 4294901760
    %v1358 = vsub.f32 %v266, %v1357
    %v1359 = vand.u32 %v1358, 4294901760
    %v1360 = vsub.f32 %v1358, %v1359
    %v1361 = vand.u32 %v1360, 4294901760
    %1362 = vmatpush1.msra.mxu0 %v1361
    %1363 = vmatprep.subr.mxu0 0.0
    %v1364 = vand.u32 %v267, 4294901760
    %v1365 = vsub.f32 %v267, %v1364
    %v1366 = vand.u32 %v1365, 4294901760
    %v1367 = vsub.f32 %v1365, %v1366
    %v1368 = vand.u32 %v1367, 4294901760
    %1369 = vmatpush1.msra.mxu0 %v1368
    %1370 = vmatprep.subr.mxu0 0.0
    %1371 = vmatpush1.msra.mxu0 0.0
    %1372 = vmatprep.subr.mxu0 0.0
    %1373 = vmatpush1.msra.mxu0 0.0
    %1374 = vmatprep.subr.mxu0 0.0
    %1375 = vmatpush1.msra.mxu0 0.0
    %1376 = vmatprep.subr.mxu0 0.0
    %1377 = vmatpush1.msra.mxu0 0.0
    %1378 = vmatprep.subr.mxu0 0.0
    %1379 = vmatpush1.msra.mxu0 0.0
    %1380 = vmatprep.subr.mxu0 0.0
    %1381 = vmatpush1.msra.mxu0 0.0
    %1382 = vmatprep.subr.mxu0 0.0
    %1383 = vmatpush1.msra.mxu0 0.0
    %1384 = vmatprep.subr.mxu0 0.0
    %1385 = vmatpush1.msra.mxu0 0.0
    %1386 = vmatprep.subr.mxu0 0.0
    %1387 = vmatpush1.msra.mxu0 0.0
    %1388 = vmatprep.subr.mxu0 0.0
    %1389 = vmatpush1.msra.mxu0 0.0
    %1390 = vmatprep.subr.mxu0 0.0
    %1391 = vmatpush1.msra.mxu0 0.0
    %1392 = vmatprep.subr.mxu0 0.0
    %1393 = vmatpush1.msra.mxu0 0.0
    %1394 = vmatprep.subr.mxu0 0.0
    %1395 = vmatpush1.msra.mxu0 0.0
    %1396 = vmatprep.subr.mxu0 0.0
    %1397 = vmatpush1.msra.mxu0 0.0
    %1398 = vmatprep.subr.mxu0 0.0
    %1399 = vmatpush1.msra.mxu0 0.0
    %1400 = vmatprep.subr.mxu0 0.0
    %1401 = vmatpush1.msra.mxu0 0.0
    %1402 = vmatprep.subr.mxu0 0.0
    %1403 = vmatpush1.msra.mxu0 0.0
    %1404 = vmatprep.subr.mxu0 0.0
    %1405 = vmatpush1.msra.mxu0 0.0
    %1406 = vmatprep.subr.mxu0 0.0
    %1407 = vmatpush1.msra.mxu0 0.0
    %1408 = vmatprep.subr.mxu0 0.0
    %1409 = vmatpush1.msra.mxu0 0.0
    %1410 = vmatprep.subr.mxu0 0.0
    %1411 = vmatpush1.msra.mxu0 0.0
    %1412 = vmatprep.subr.mxu0 0.0
    %1413 = vmatpush1.msra.mxu0 0.0
    %1414 = vmatprep.subr.mxu0 0.0
    %1415 = vmatpush1.msra.mxu0 0.0
    %1416 = vmatprep.subr.mxu0 0.0
    %1417 = vmatpush1.msra.mxu0 0.0
    %1418 = vmatprep.subr.mxu0 0.0
    %1419 = vmatpush1.msra.mxu0 0.0
    %1420 = vmatprep.subr.mxu0 0.0
    %1421 = vmatpush1.msra.mxu0 0.0
    %1422 = vmatprep.subr.mxu0 0.0
    %1423 = vmatpush1.msra.mxu0 0.0
    %1424 = vmatprep.subr.mxu0 0.0
    %1425 = vmatpush1.msra.mxu0 0.0
    %1426 = vmatprep.mubr.f32.mxu0 0.0
    %v1427 = vand.u32 %v291, 4294901760
    %1428 = vmatmul.mubr.f32.gmra.mrb[0].mxu0 %v1427
    %v1429 = vpop.f32.mrb[0].mxu0
    %v1430 = vadd.f32 %v1339, %v1429
    %v1431 = vpop.f32.mrb[0].mxu0
    %1432 = vdwg.mxu0
    %1433 = vmatprep.subr.mxu0 0.0
    %v1434 = vand.u32 %v264, 4294901760
    %v1435 = vsub.f32 %v264, %v1434
    %1436 = vmatpush1.msra.mxu0 %v1435
    %1437 = vmatprep.subr.mxu0 0.0
    %v1438 = vand.u32 %v265, 4294901760
    %v1439 = vsub.f32 %v265, %v1438
    %1440 = vmatpush1.msra.mxu0 %v1439
    %1441 = vmatprep.subr.mxu0 0.0
    %v1442 = vand.u32 %v266, 4294901760
    %v1443 = vsub.f32 %v266, %v1442
    %1444 = vmatpush1.msra.mxu0 %v1443
    %1445 = vmatprep.subr.mxu0 0.0
    %v1446 = vand.u32 %v267, 4294901760
    %v1447 = vsub.f32 %v267, %v1446
    %1448 = vmatpush1.msra.mxu0 %v1447
    %1449 = vmatprep.subr.mxu0 0.0
    %1450 = vmatpush1.msra.mxu0 0.0
    %1451 = vmatprep.subr.mxu0 0.0
    %1452 = vmatpush1.msra.mxu0 0.0
    %1453 = vmatprep.subr.mxu0 0.0
    %1454 = vmatpush1.msra.mxu0 0.0
    %1455 = vmatprep.subr.mxu0 0.0
    %1456 = vmatpush1.msra.mxu0 0.0
    %1457 = vmatprep.subr.mxu0 0.0
    %1458 = vmatpush1.msra.mxu0 0.0
    %1459 = vmatprep.subr.mxu0 0.0
    %1460 = vmatpush1.msra.mxu0 0.0
    %1461 = vmatprep.subr.mxu0 0.0
    %1462 = vmatpush1.msra.mxu0 0.0
    %1463 = vmatprep.subr.mxu0 0.0
    %1464 = vmatpush1.msra.mxu0 0.0
    %1465 = vmatprep.subr.mxu0 0.0
    %1466 = vmatpush1.msra.mxu0 0.0
    %1467 = vmatprep.subr.mxu0 0.0
    %1468 = vmatpush1.msra.mxu0 0.0
    %1469 = vmatprep.subr.mxu0 0.0
    %1470 = vmatpush1.msra.mxu0 0.0
    %1471 = vmatprep.subr.mxu0 0.0
    %1472 = vmatpush1.msra.mxu0 0.0
    %1473 = vmatprep.subr.mxu0 0.0
    %1474 = vmatpush1.msra.mxu0 0.0
    %1475 = vmatprep.subr.mxu0 0.0
    %1476 = vmatpush1.msra.mxu0 0.0
    %1477 = vmatprep.subr.mxu0 0.0
    %1478 = vmatpush1.msra.mxu0 0.0
    %1479 = vmatprep.subr.mxu0 0.0
    %1480 = vmatpush1.msra.mxu0 0.0
    %1481 = vmatprep.subr.mxu0 0.0
    %1482 = vmatpush1.msra.mxu0 0.0
    %1483 = vmatprep.subr.mxu0 0.0
    %1484 = vmatpush1.msra.mxu0 0.0
    %1485 = vmatprep.subr.mxu0 0.0
    %1486 = vmatpush1.msra.mxu0 0.0
    %1487 = vmatprep.subr.mxu0 0.0
    %1488 = vmatpush1.msra.mxu0 0.0
    %1489 = vmatprep.subr.mxu0 0.0
    %1490 = vmatpush1.msra.mxu0 0.0
    %1491 = vmatprep.subr.mxu0 0.0
    %1492 = vmatpush1.msra.mxu0 0.0
    %1493 = vmatprep.subr.mxu0 0.0
    %1494 = vmatpush1.msra.mxu0 0.0
    %1495 = vmatprep.subr.mxu0 0.0
    %1496 = vmatpush1.msra.mxu0 0.0
    %1497 = vmatprep.subr.mxu0 0.0
    %1498 = vmatpush1.msra.mxu0 0.0
    %1499 = vmatprep.subr.mxu0 0.0
    %1500 = vmatpush1.msra.mxu0 0.0
    %1501 = vmatprep.subr.mxu0 0.0
    %1502 = vmatpush1.msra.mxu0 0.0
    %1503 = vmatprep.subr.mxu0 0.0
    %1504 = vmatpush1.msra.mxu0 0.0
    %1505 = vmatprep.mubr.f32.mxu0 0.0
    %v1506 = vand.u32 %v291, 4294901760
    %v1507 = vsub.f32 %v291, %v1506
    %1508 = vmatmul.mubr.f32.gmra.mrb[0].mxu0 %v1507
    %v1509 = vpop.f32.mrb[0].mxu0
    %v1510 = vadd.f32 %v1430, %v1509
    %v1511 = vpop.f32.mrb[0].mxu0
    %1512 = vdwg.mxu0
    %1513 = vmatprep.subr.mxu0 0.0
    %v1514 = vand.u32 %v264, 4294901760
    %1515 = vmatpush1.msra.mxu0 %v1514
    %1516 = vmatprep.subr.mxu0 0.0
    %v1517 = vand.u32 %v265, 4294901760
    %1518 = vmatpush1.msra.mxu0 %v1517
    %1519 = vmatprep.subr.mxu0 0.0
    %v1520 = vand.u32 %v266, 4294901760
    %1521 = vmatpush1.msra.mxu0 %v1520
    %1522 = vmatprep.subr.mxu0 0.0
    %v1523 = vand.u32 %v267, 4294901760
    %1524 = vmatpush1.msra.mxu0 %v1523
    %1525 = vmatprep.subr.mxu0 0.0
    %1526 = vmatpush1.msra.mxu0 0.0
    %1527 = vmatprep.subr.mxu0 0.0
    %1528 = vmatpush1.msra.mxu0 0.0
    %1529 = vmatprep.subr.mxu0 0.0
    %1530 = vmatpush1.msra.mxu0 0.0
    %1531 = vmatprep.subr.mxu0 0.0
    %1532 = vmatpush1.msra.mxu0 0.0
    %1533 = vmatprep.subr.mxu0 0.0
    %1534 = vmatpush1.msra.mxu0 0.0
    %1535 = vmatprep.subr.mxu0 0.0
    %1536 = vmatpush1.msra.mxu0 0.0
    %1537 = vmatprep.subr.mxu0 0.0
    %1538 = vmatpush1.msra.mxu0 0.0
    %1539 = vmatprep.subr.mxu0 0.0
    %1540 = vmatpush1.msra.mxu0 0.0
    %1541 = vmatprep.subr.mxu0 0.0
    %1542 = vmatpush1.msra.mxu0 0.0
    %1543 = vmatprep.subr.mxu0 0.0
    %1544 = vmatpush1.msra.mxu0 0.0
    %1545 = vmatprep.subr.mxu0 0.0
    %1546 = vmatpush1.msra.mxu0 0.0
    %1547 = vmatprep.subr.mxu0 0.0
    %1548 = vmatpush1.msra.mxu0 0.0
    %1549 = vmatprep.subr.mxu0 0.0
    %1550 = vmatpush1.msra.mxu0 0.0
    %1551 = vmatprep.subr.mxu0 0.0
    %1552 = vmatpush1.msra.mxu0 0.0
    %1553 = vmatprep.subr.mxu0 0.0
    %1554 = vmatpush1.msra.mxu0 0.0
    %1555 = vmatprep.subr.mxu0 0.0
    %1556 = vmatpush1.msra.mxu0 0.0
    %1557 = vmatprep.subr.mxu0 0.0
    %1558 = vmatpush1.msra.mxu0 0.0
    %1559 = vmatprep.subr.mxu0 0.0
    %1560 = vmatpush1.msra.mxu0 0.0
    %1561 = vmatprep.subr.mxu0 0.0
    %1562 = vmatpush1.msra.mxu0 0.0
    %1563 = vmatprep.subr.mxu0 0.0
    %1564 = vmatpush1.msra.mxu0 0.0
    %1565 = vmatprep.subr.mxu0 0.0
    %1566 = vmatpush1.msra.mxu0 0.0
    %1567 = vmatprep.subr.mxu0 0.0
    %1568 = vmatpush1.msra.mxu0 0.0
    %1569 = vmatprep.subr.mxu0 0.0
    %1570 = vmatpush1.msra.mxu0 0.0
    %1571 = vmatprep.subr.mxu0 0.0
    %1572 = vmatpush1.msra.mxu0 0.0
    %1573 = vmatprep.subr.mxu0 0.0
    %1574 = vmatpush1.msra.mxu0 0.0
    %1575 = vmatprep.subr.mxu0 0.0
    %1576 = vmatpush1.msra.mxu0 0.0
    %1577 = vmatprep.subr.mxu0 0.0
    %1578 = vmatpush1.msra.mxu0 0.0
    %1579 = vmatprep.subr.mxu0 0.0
    %1580 = vmatpush1.msra.mxu0 0.0
    %1581 = vmatprep.mubr.f32.mxu0 0.0
    %v1582 = vand.u32 %v291, 4294901760
    %v1583 = vsub.f32 %v291, %v1582
    %v1584 = vand.u32 %v1583, 4294901760
    %1585 = vmatmul.mubr.f32.gmra.mrb[0].mxu0 %v1584
    %v1586 = vpop.f32.mrb[0].mxu0
    %v1587 = vadd.f32 %v1510, %v1586
    %v1588 = vpop.f32.mrb[0].mxu0
    %1589 = vdwg.mxu0
    %1590 = vmatprep.subr.mxu0 0.0
    %v1591 = vand.u32 %v264, 4294901760
    %v1592 = vsub.f32 %v264, %v1591
    %v1593 = vand.u32 %v1592, 4294901760
    %1594 = vmatpush1.msra.mxu0 %v1593
    %1595 = vmatprep.subr.mxu0 0.0
    %v1596 = vand.u32 %v265, 4294901760
    %v1597 = vsub.f32 %v265, %v1596
    %v1598 = vand.u32 %v1597, 4294901760
    %1599 = vmatpush1.msra.mxu0 %v1598
    %1600 = vmatprep.subr.mxu0 0.0
    %v1601 = vand.u32 %v266, 4294901760
    %v1602 = vsub.f32 %v266, %v1601
    %v1603 = vand.u32 %v1602, 4294901760
    %1604 = vmatpush1.msra.mxu0 %v1603
    %1605 = vmatprep.subr.mxu0 0.0
    %v1606 = vand.u32 %v267, 4294901760
    %v1607 = vsub.f32 %v267, %v1606
    %v1608 = vand.u32 %v1607, 4294901760
    %1609 = vmatpush1.msra.mxu0 %v1608
    %1610 = vmatprep.subr.mxu0 0.0
    %1611 = vmatpush1.msra.mxu0 0.0
    %1612 = vmatprep.subr.mxu0 0.0
    %1613 = vmatpush1.msra.mxu0 0.0
    %1614 = vmatprep.subr.mxu0 0.0
    %1615 = vmatpush1.msra.mxu0 0.0
    %1616 = vmatprep.subr.mxu0 0.0
    %1617 = vmatpush1.msra.mxu0 0.0
    %1618 = vmatprep.subr.mxu0 0.0
    %1619 = vmatpush1.msra.mxu0 0.0
    %1620 = vmatprep.subr.mxu0 0.0
    %1621 = vmatpush1.msra.mxu0 0.0
    %1622 = vmatprep.subr.mxu0 0.0
    %1623 = vmatpush1.msra.mxu0 0.0
    %1624 = vmatprep.subr.mxu0 0.0
    %1625 = vmatpush1.msra.mxu0 0.0
    %1626 = vmatprep.subr.mxu0 0.0
    %1627 = vmatpush1.msra.mxu0 0.0
    %1628 = vmatprep.subr.mxu0 0.0
    %1629 = vmatpush1.msra.mxu0 0.0
    %1630 = vmatprep.subr.mxu0 0.0
    %1631 = vmatpush1.msra.mxu0 0.0
    %1632 = vmatprep.subr.mxu0 0.0
    %1633 = vmatpush1.msra.mxu0 0.0
    %1634 = vmatprep.subr.mxu0 0.0
    %1635 = vmatpush1.msra.mxu0 0.0
    %1636 = vmatprep.subr.mxu0 0.0
    %1637 = vmatpush1.msra.mxu0 0.0
    %1638 = vmatprep.subr.mxu0 0.0
    %1639 = vmatpush1.msra.mxu0 0.0
    %1640 = vmatprep.subr.mxu0 0.0
    %1641 = vmatpush1.msra.mxu0 0.0
    %1642 = vmatprep.subr.mxu0 0.0
    %1643 = vmatpush1.msra.mxu0 0.0
    %1644 = vmatprep.subr.mxu0 0.0
    %1645 = vmatpush1.msra.mxu0 0.0
    %1646 = vmatprep.subr.mxu0 0.0
    %1647 = vmatpush1.msra.mxu0 0.0
    %1648 = vmatprep.subr.mxu0 0.0
    %1649 = vmatpush1.msra.mxu0 0.0
    %1650 = vmatprep.subr.mxu0 0.0
    %1651 = vmatpush1.msra.mxu0 0.0
    %1652 = vmatprep.subr.mxu0 0.0
    %1653 = vmatpush1.msra.mxu0 0.0
    %1654 = vmatprep.subr.mxu0 0.0
    %1655 = vmatpush1.msra.mxu0 0.0
    %1656 = vmatprep.subr.mxu0 0.0
    %1657 = vmatpush1.msra.mxu0 0.0
    %1658 = vmatprep.subr.mxu0 0.0
    %1659 = vmatpush1.msra.mxu0 0.0
    %1660 = vmatprep.subr.mxu0 0.0
    %1661 = vmatpush1.msra.mxu0 0.0
    %1662 = vmatprep.subr.mxu0 0.0
    %1663 = vmatpush1.msra.mxu0 0.0
    %1664 = vmatprep.subr.mxu0 0.0
    %1665 = vmatpush1.msra.mxu0 0.0
    %1666 = vmatprep.mubr.f32.mxu0 0.0
    %v1667 = vand.u32 %v291, 4294901760
    %1668 = vmatmul.mubr.f32.gmra.mrb[0].mxu0 %v1667
    %v1669 = vpop.f32.mrb[0].mxu0
    %v1670 = vadd.f32 %v1587, %v1669
    %v1671 = vpop.f32.mrb[0].mxu0
    %1672 = vdwg.mxu0
    %1673 = vmatprep.subr.mxu0 0.0
    %v1674 = vand.u32 %v264, 4294901760
    %1675 = vmatpush1.msra.mxu0 %v1674
    %1676 = vmatprep.subr.mxu0 0.0
    %v1677 = vand.u32 %v265, 4294901760
    %1678 = vmatpush1.msra.mxu0 %v1677
    %1679 = vmatprep.subr.mxu0 0.0
    %v1680 = vand.u32 %v266, 4294901760
    %1681 = vmatpush1.msra.mxu0 %v1680
    %1682 = vmatprep.subr.mxu0 0.0
    %v1683 = vand.u32 %v267, 4294901760
    %1684 = vmatpush1.msra.mxu0 %v1683
    %1685 = vmatprep.subr.mxu0 0.0
    %1686 = vmatpush1.msra.mxu0 0.0
    %1687 = vmatprep.subr.mxu0 0.0
    %1688 = vmatpush1.msra.mxu0 0.0
    %1689 = vmatprep.subr.mxu0 0.0
    %1690 = vmatpush1.msra.mxu0 0.0
    %1691 = vmatprep.subr.mxu0 0.0
    %1692 = vmatpush1.msra.mxu0 0.0
    %1693 = vmatprep.subr.mxu0 0.0
    %1694 = vmatpush1.msra.mxu0 0.0
    %1695 = vmatprep.subr.mxu0 0.0
    %1696 = vmatpush1.msra.mxu0 0.0
    %1697 = vmatprep.subr.mxu0 0.0
    %1698 = vmatpush1.msra.mxu0 0.0
    %1699 = vmatprep.subr.mxu0 0.0
    %1700 = vmatpush1.msra.mxu0 0.0
    %1701 = vmatprep.subr.mxu0 0.0
    %1702 = vmatpush1.msra.mxu0 0.0
    %1703 = vmatprep.subr.mxu0 0.0
    %1704 = vmatpush1.msra.mxu0 0.0
    %1705 = vmatprep.subr.mxu0 0.0
    %1706 = vmatpush1.msra.mxu0 0.0
    %1707 = vmatprep.subr.mxu0 0.0
    %1708 = vmatpush1.msra.mxu0 0.0
    %1709 = vmatprep.subr.mxu0 0.0
    %1710 = vmatpush1.msra.mxu0 0.0
    %1711 = vmatprep.subr.mxu0 0.0
    %1712 = vmatpush1.msra.mxu0 0.0
    %1713 = vmatprep.subr.mxu0 0.0
    %1714 = vmatpush1.msra.mxu0 0.0
    %1715 = vmatprep.subr.mxu0 0.0
    %1716 = vmatpush1.msra.mxu0 0.0
    %1717 = vmatprep.subr.mxu0 0.0
    %1718 = vmatpush1.msra.mxu0 0.0
    %1719 = vmatprep.subr.mxu0 0.0
    %1720 = vmatpush1.msra.mxu0 0.0
    %1721 = vmatprep.subr.mxu0 0.0
    %1722 = vmatpush1.msra.mxu0 0.0
    %1723 = vmatprep.subr.mxu0 0.0
    %1724 = vmatpush1.msra.mxu0 0.0
    %1725 = vmatprep.subr.mxu0 0.0
    %1726 = vmatpush1.msra.mxu0 0.0
    %1727 = vmatprep.subr.mxu0 0.0
    %1728 = vmatpush1.msra.mxu0 0.0
    %1729 = vmatprep.subr.mxu0 0.0
    %1730 = vmatpush1.msra.mxu0 0.0
    %1731 = vmatprep.subr.mxu0 0.0
    %1732 = vmatpush1.msra.mxu0 0.0
    %1733 = vmatprep.subr.mxu0 0.0
    %1734 = vmatpush1.msra.mxu0 0.0
    %1735 = vmatprep.subr.mxu0 0.0
    %1736 = vmatpush1.msra.mxu0 0.0
    %1737 = vmatprep.subr.mxu0 0.0
    %1738 = vmatpush1.msra.mxu0 0.0
    %1739 = vmatprep.subr.mxu0 0.0
    %1740 = vmatpush1.msra.mxu0 0.0
    %1741 = vmatprep.mubr.f32.mxu0 0.0
    %v1742 = vand.u32 %v291, 4294901760
    %1743 = vmatmul.mubr.f32.gmra.mrb[0].mxu0 %v1742
    %v1744 = vpop.f32.mrb[0].mxu0
    %v1745 = vadd.f32 %v1670, %v1744
    %v1746 = vpop.f32.mrb[0].mxu0
    %1747 = vdwg.mxu0
    %1748 = vmatprep.subr.mxu0 0.0
    %v1749 = vand.u32 %v268, 4294901760
    %1750 = vmatpush1.msra.mxu0 %v1749
    %1751 = vmatprep.subr.mxu0 0.0
    %v1752 = vand.u32 %v269, 4294901760
    %1753 = vmatpush1.msra.mxu0 %v1752
    %1754 = vmatprep.subr.mxu0 0.0
    %v1755 = vand.u32 %v270, 4294901760
    %1756 = vmatpush1.msra.mxu0 %v1755
    %1757 = vmatprep.subr.mxu0 0.0
    %v1758 = vand.u32 %v271, 4294901760
    %1759 = vmatpush1.msra.mxu0 %v1758
    %1760 = vmatprep.subr.mxu0 0.0
    %1761 = vmatpush1.msra.mxu0 0.0
    %1762 = vmatprep.subr.mxu0 0.0
    %1763 = vmatpush1.msra.mxu0 0.0
    %1764 = vmatprep.subr.mxu0 0.0
    %1765 = vmatpush1.msra.mxu0 0.0
    %1766 = vmatprep.subr.mxu0 0.0
    %1767 = vmatpush1.msra.mxu0 0.0
    %1768 = vmatprep.subr.mxu0 0.0
    %1769 = vmatpush1.msra.mxu0 0.0
    %1770 = vmatprep.subr.mxu0 0.0
    %1771 = vmatpush1.msra.mxu0 0.0
    %1772 = vmatprep.subr.mxu0 0.0
    %1773 = vmatpush1.msra.mxu0 0.0
    %1774 = vmatprep.subr.mxu0 0.0
    %1775 = vmatpush1.msra.mxu0 0.0
    %1776 = vmatprep.subr.mxu0 0.0
    %1777 = vmatpush1.msra.mxu0 0.0
    %1778 = vmatprep.subr.mxu0 0.0
    %1779 = vmatpush1.msra.mxu0 0.0
    %1780 = vmatprep.subr.mxu0 0.0
    %1781 = vmatpush1.msra.mxu0 0.0
    %1782 = vmatprep.subr.mxu0 0.0
    %1783 = vmatpush1.msra.mxu0 0.0
    %1784 = vmatprep.subr.mxu0 0.0
    %1785 = vmatpush1.msra.mxu0 0.0
    %1786 = vmatprep.subr.mxu0 0.0
    %1787 = vmatpush1.msra.mxu0 0.0
    %1788 = vmatprep.subr.mxu0 0.0
    %1789 = vmatpush1.msra.mxu0 0.0
    %1790 = vmatprep.subr.mxu0 0.0
    %1791 = vmatpush1.msra.mxu0 0.0
    %1792 = vmatprep.subr.mxu0 0.0
    %1793 = vmatpush1.msra.mxu0 0.0
    %1794 = vmatprep.subr.mxu0 0.0
    %1795 = vmatpush1.msra.mxu0 0.0
    %1796 = vmatprep.subr.mxu0 0.0
    %1797 = vmatpush1.msra.mxu0 0.0
    %1798 = vmatprep.subr.mxu0 0.0
    %1799 = vmatpush1.msra.mxu0 0.0
    %1800 = vmatprep.subr.mxu0 0.0
    %1801 = vmatpush1.msra.mxu0 0.0
    %1802 = vmatprep.subr.mxu0 0.0
    %1803 = vmatpush1.msra.mxu0 0.0
    %1804 = vmatprep.subr.mxu0 0.0
    %1805 = vmatpush1.msra.mxu0 0.0
    %1806 = vmatprep.subr.mxu0 0.0
    %1807 = vmatpush1.msra.mxu0 0.0
    %1808 = vmatprep.subr.mxu0 0.0
    %1809 = vmatpush1.msra.mxu0 0.0
    %1810 = vmatprep.subr.mxu0 0.0
    %1811 = vmatpush1.msra.mxu0 0.0
    %1812 = vmatprep.subr.mxu0 0.0
    %1813 = vmatpush1.msra.mxu0 0.0
    %1814 = vmatprep.subr.mxu0 0.0
    %1815 = vmatpush1.msra.mxu0 0.0
    %1816 = vmatprep.mubr.f32.mxu0 0.0
    %v1817 = vand.u32 %v291, 4294901760
    %v1818 = vsub.f32 %v291, %v1817
    %v1819 = vand.u32 %v1818, 4294901760
    %v1820 = vsub.f32 %v1818, %v1819
    %v1821 = vand.u32 %v1820, 4294901760
    %1822 = vmatmul.mubr.f32.gmra.mrb[0].mxu0 %v1821
    %v1823 = vpop.f32.mrb[0].mxu0
    %v1824 = vadd.f32 0.0, %v1823
    %v1825 = vpop.f32.mrb[0].mxu0
    %1826 = vdwg.mxu0
    %1827 = vmatprep.subr.mxu0 0.0
    %v1828 = vand.u32 %v268, 4294901760
    %v1829 = vsub.f32 %v268, %v1828
    %v1830 = vand.u32 %v1829, 4294901760
    %v1831 = vsub.f32 %v1829, %v1830
    %v1832 = vand.u32 %v1831, 4294901760
    %1833 = vmatpush1.msra.mxu0 %v1832
    %1834 = vmatprep.subr.mxu0 0.0
    %v1835 = vand.u32 %v269, 4294901760
    %v1836 = vsub.f32 %v269, %v1835
    %v1837 = vand.u32 %v1836, 4294901760
    %v1838 = vsub.f32 %v1836, %v1837
    %v1839 = vand.u32 %v1838, 4294901760
    %1840 = vmatpush1.msra.mxu0 %v1839
    %1841 = vmatprep.subr.mxu0 0.0
    %v1842 = vand.u32 %v270, 4294901760
    %v1843 = vsub.f32 %v270, %v1842
    %v1844 = vand.u32 %v1843, 4294901760
    %v1845 = vsub.f32 %v1843, %v1844
    %v1846 = vand.u32 %v1845, 4294901760
    %1847 = vmatpush1.msra.mxu0 %v1846
    %1848 = vmatprep.subr.mxu0 0.0
    %v1849 = vand.u32 %v271, 4294901760
    %v1850 = vsub.f32 %v271, %v1849
    %v1851 = vand.u32 %v1850, 4294901760
    %v1852 = vsub.f32 %v1850, %v1851
    %v1853 = vand.u32 %v1852, 4294901760
    %1854 = vmatpush1.msra.mxu0 %v1853
    %1855 = vmatprep.subr.mxu0 0.0
    %1856 = vmatpush1.msra.mxu0 0.0
    %1857 = vmatprep.subr.mxu0 0.0
    %1858 = vmatpush1.msra.mxu0 0.0
    %1859 = vmatprep.subr.mxu0 0.0
    %1860 = vmatpush1.msra.mxu0 0.0
    %1861 = vmatprep.subr.mxu0 0.0
    %1862 = vmatpush1.msra.mxu0 0.0
    %1863 = vmatprep.subr.mxu0 0.0
    %1864 = vmatpush1.msra.mxu0 0.0
    %1865 = vmatprep.subr.mxu0 0.0
    %1866 = vmatpush1.msra.mxu0 0.0
    %1867 = vmatprep.subr.mxu0 0.0
    %1868 = vmatpush1.msra.mxu0 0.0
    %1869 = vmatprep.subr.mxu0 0.0
    %1870 = vmatpush1.msra.mxu0 0.0
    %1871 = vmatprep.subr.mxu0 0.0
    %1872 = vmatpush1.msra.mxu0 0.0
    %1873 = vmatprep.subr.mxu0 0.0
    %1874 = vmatpush1.msra.mxu0 0.0
    %1875 = vmatprep.subr.mxu0 0.0
    %1876 = vmatpush1.msra.mxu0 0.0
    %1877 = vmatprep.subr.mxu0 0.0
    %1878 = vmatpush1.msra.mxu0 0.0
    %1879 = vmatprep.subr.mxu0 0.0
    %1880 = vmatpush1.msra.mxu0 0.0
    %1881 = vmatprep.subr.mxu0 0.0
    %1882 = vmatpush1.msra.mxu0 0.0
    %1883 = vmatprep.subr.mxu0 0.0
    %1884 = vmatpush1.msra.mxu0 0.0
    %1885 = vmatprep.subr.mxu0 0.0
    %1886 = vmatpush1.msra.mxu0 0.0
    %1887 = vmatprep.subr.mxu0 0.0
    %1888 = vmatpush1.msra.mxu0 0.0
    %1889 = vmatprep.subr.mxu0 0.0
    %1890 = vmatpush1.msra.mxu0 0.0
    %1891 = vmatprep.subr.mxu0 0.0
    %1892 = vmatpush1.msra.mxu0 0.0
    %1893 = vmatprep.subr.mxu0 0.0
    %1894 = vmatpush1.msra.mxu0 0.0
    %1895 = vmatprep.subr.mxu0 0.0
    %1896 = vmatpush1.msra.mxu0 0.0
    %1897 = vmatprep.subr.mxu0 0.0
    %1898 = vmatpush1.msra.mxu0 0.0
    %1899 = vmatprep.subr.mxu0 0.0
    %1900 = vmatpush1.msra.mxu0 0.0
    %1901 = vmatprep.subr.mxu0 0.0
    %1902 = vmatpush1.msra.mxu0 0.0
    %1903 = vmatprep.subr.mxu0 0.0
    %1904 = vmatpush1.msra.mxu0 0.0
    %1905 = vmatprep.subr.mxu0 0.0
    %1906 = vmatpush1.msra.mxu0 0.0
    %1907 = vmatprep.subr.mxu0 0.0
    %1908 = vmatpush1.msra.mxu0 0.0
    %1909 = vmatprep.subr.mxu0 0.0
    %1910 = vmatpush1.msra.mxu0 0.0
    %1911 = vmatprep.mubr.f32.mxu0 0.0
    %v1912 = vand.u32 %v291, 4294901760
    %1913 = vmatmul.mubr.f32.gmra.mrb[0].mxu0 %v1912
    %v1914 = vpop.f32.mrb[0].mxu0
    %v1915 = vadd.f32 %v1824, %v1914
    %v1916 = vpop.f32.mrb[0].mxu0
    %1917 = vdwg.mxu0
    %1918 = vmatprep.subr.mxu0 0.0
    %v1919 = vand.u32 %v268, 4294901760
    %v1920 = vsub.f32 %v268, %v1919
    %1921 = vmatpush1.msra.mxu0 %v1920
    %1922 = vmatprep.subr.mxu0 0.0
    %v1923 = vand.u32 %v269, 4294901760
    %v1924 = vsub.f32 %v269, %v1923
    %1925 = vmatpush1.msra.mxu0 %v1924
    %1926 = vmatprep.subr.mxu0 0.0
    %v1927 = vand.u32 %v270, 4294901760
    %v1928 = vsub.f32 %v270, %v1927
    %1929 = vmatpush1.msra.mxu0 %v1928
    %1930 = vmatprep.subr.mxu0 0.0
    %v1931 = vand.u32 %v271, 4294901760
    %v1932 = vsub.f32 %v271, %v1931
    %1933 = vmatpush1.msra.mxu0 %v1932
    %1934 = vmatprep.subr.mxu0 0.0
    %1935 = vmatpush1.msra.mxu0 0.0
    %1936 = vmatprep.subr.mxu0 0.0
    %1937 = vmatpush1.msra.mxu0 0.0
    %1938 = vmatprep.subr.mxu0 0.0
    %1939 = vmatpush1.msra.mxu0 0.0
    %1940 = vmatprep.subr.mxu0 0.0
    %1941 = vmatpush1.msra.mxu0 0.0
    %1942 = vmatprep.subr.mxu0 0.0
    %1943 = vmatpush1.msra.mxu0 0.0
    %1944 = vmatprep.subr.mxu0 0.0
    %1945 = vmatpush1.msra.mxu0 0.0
    %1946 = vmatprep.subr.mxu0 0.0
    %1947 = vmatpush1.msra.mxu0 0.0
    %1948 = vmatprep.subr.mxu0 0.0
    %1949 = vmatpush1.msra.mxu0 0.0
    %1950 = vmatprep.subr.mxu0 0.0
    %1951 = vmatpush1.msra.mxu0 0.0
    %1952 = vmatprep.subr.mxu0 0.0
    %1953 = vmatpush1.msra.mxu0 0.0
    %1954 = vmatprep.subr.mxu0 0.0
    %1955 = vmatpush1.msra.mxu0 0.0
    %1956 = vmatprep.subr.mxu0 0.0
    %1957 = vmatpush1.msra.mxu0 0.0
    %1958 = vmatprep.subr.mxu0 0.0
    %1959 = vmatpush1.msra.mxu0 0.0
    %1960 = vmatprep.subr.mxu0 0.0
    %1961 = vmatpush1.msra.mxu0 0.0
    %1962 = vmatprep.subr.mxu0 0.0
    %1963 = vmatpush1.msra.mxu0 0.0
    %1964 = vmatprep.subr.mxu0 0.0
    %1965 = vmatpush1.msra.mxu0 0.0
    %1966 = vmatprep.subr.mxu0 0.0
    %1967 = vmatpush1.msra.mxu0 0.0
    %1968 = vmatprep.subr.mxu0 0.0
    %1969 = vmatpush1.msra.mxu0 0.0
    %1970 = vmatprep.subr.mxu0 0.0
    %1971 = vmatpush1.msra.mxu0 0.0
    %1972 = vmatprep.subr.mxu0 0.0
    %1973 = vmatpush1.msra.mxu0 0.0
    %1974 = vmatprep.subr.mxu0 0.0
    %1975 = vmatpush1.msra.mxu0 0.0
    %1976 = vmatprep.subr.mxu0 0.0
    %1977 = vmatpush1.msra.mxu0 0.0
    %1978 = vmatprep.subr.mxu0 0.0
    %1979 = vmatpush1.msra.mxu0 0.0
    %1980 = vmatprep.subr.mxu0 0.0
    %1981 = vmatpush1.msra.mxu0 0.0
    %1982 = vmatprep.subr.mxu0 0.0
    %1983 = vmatpush1.msra.mxu0 0.0
    %1984 = vmatprep.subr.mxu0 0.0
    %1985 = vmatpush1.msra.mxu0 0.0
    %1986 = vmatprep.subr.mxu0 0.0
    %1987 = vmatpush1.msra.mxu0 0.0
    %1988 = vmatprep.subr.mxu0 0.0
    %1989 = vmatpush1.msra.mxu0 0.0
    %1990 = vmatprep.mubr.f32.mxu0 0.0
    %v1991 = vand.u32 %v291, 4294901760
    %v1992 = vsub.f32 %v291, %v1991
    %1993 = vmatmul.mubr.f32.gmra.mrb[0].mxu0 %v1992
    %v1994 = vpop.f32.mrb[0].mxu0
    %v1995 = vadd.f32 %v1915, %v1994
    %v1996 = vpop.f32.mrb[0].mxu0
    %1997 = vdwg.mxu0
    %1998 = vmatprep.subr.mxu0 0.0
    %v1999 = vand.u32 %v268, 4294901760
    %2000 = vmatpush1.msra.mxu0 %v1999
    %2001 = vmatprep.subr.mxu0 0.0
    %v2002 = vand.u32 %v269, 4294901760
    %2003 = vmatpush1.msra.mxu0 %v2002
    %2004 = vmatprep.subr.mxu0 0.0
    %v2005 = vand.u32 %v270, 4294901760
    %2006 = vmatpush1.msra.mxu0 %v2005
    %2007 = vmatprep.subr.mxu0 0.0
    %v2008 = vand.u32 %v271, 4294901760
    %2009 = vmatpush1.msra.mxu0 %v2008
    %2010 = vmatprep.subr.mxu0 0.0
    %2011 = vmatpush1.msra.mxu0 0.0
    %2012 = vmatprep.subr.mxu0 0.0
    %2013 = vmatpush1.msra.mxu0 0.0
    %2014 = vmatprep.subr.mxu0 0.0
    %2015 = vmatpush1.msra.mxu0 0.0
    %2016 = vmatprep.subr.mxu0 0.0
    %2017 = vmatpush1.msra.mxu0 0.0
    %2018 = vmatprep.subr.mxu0 0.0
    %2019 = vmatpush1.msra.mxu0 0.0
    %2020 = vmatprep.subr.mxu0 0.0
    %2021 = vmatpush1.msra.mxu0 0.0
    %2022 = vmatprep.subr.mxu0 0.0
    %2023 = vmatpush1.msra.mxu0 0.0
    %2024 = vmatprep.subr.mxu0 0.0
    %2025 = vmatpush1.msra.mxu0 0.0
    %2026 = vmatprep.subr.mxu0 0.0
    %2027 = vmatpush1.msra.mxu0 0.0
    %2028 = vmatprep.subr.mxu0 0.0
    %2029 = vmatpush1.msra.mxu0 0.0
    %2030 = vmatprep.subr.mxu0 0.0
    %2031 = vmatpush1.msra.mxu0 0.0
    %2032 = vmatprep.subr.mxu0 0.0
    %2033 = vmatpush1.msra.mxu0 0.0
    %2034 = vmatprep.subr.mxu0 0.0
    %2035 = vmatpush1.msra.mxu0 0.0
    %2036 = vmatprep.subr.mxu0 0.0
    %2037 = vmatpush1.msra.mxu0 0.0
    %2038 = vmatprep.subr.mxu0 0.0
    %2039 = vmatpush1.msra.mxu0 0.0
    %2040 = vmatprep.subr.mxu0 0.0
    %2041 = vmatpush1.msra.mxu0 0.0
    %2042 = vmatprep.subr.mxu0 0.0
    %2043 = vmatpush1.msra.mxu0 0.0
    %2044 = vmatprep.subr.mxu0 0.0
    %2045 = vmatpush1.msra.mxu0 0.0
    %2046 = vmatprep.subr.mxu0 0.0
    %2047 = vmatpush1.msra.mxu0 0.0
    %2048 = vmatprep.subr.mxu0 0.0
    %2049 = vmatpush1.msra.mxu0 0.0
    %2050 = vmatprep.subr.mxu0 0.0
    %2051 = vmatpush1.msra.mxu0 0.0
    %2052 = vmatprep.subr.mxu0 0.0
    %2053 = vmatpush1.msra.mxu0 0.0
    %2054 = vmatprep.subr.mxu0 0.0
    %2055 = vmatpush1.msra.mxu0 0.0
    %2056 = vmatprep.subr.mxu0 0.0
    %2057 = vmatpush1.msra.mxu0 0.0
    %2058 = vmatprep.subr.mxu0 0.0
    %2059 = vmatpush1.msra.mxu0 0.0
    %2060 = vmatprep.subr.mxu0 0.0
    %2061 = vmatpush1.msra.mxu0 0.0
    %2062 = vmatprep.subr.mxu0 0.0
    %2063 = vmatpush1.msra.mxu0 0.0
    %2064 = vmatprep.subr.mxu0 0.0
    %2065 = vmatpush1.msra.mxu0 0.0
    %2066 = vmatprep.mubr.f32.mxu0 0.0
    %v2067 = vand.u32 %v291, 4294901760
    %v2068 = vsub.f32 %v291, %v2067
    %v2069 = vand.u32 %v2068, 4294901760
    %2070 = vmatmul.mubr.f32.gmra.mrb[0].mxu0 %v2069
    %v2071 = vpop.f32.mrb[0].mxu0
    %v2072 = vadd.f32 %v1995, %v2071
    %v2073 = vpop.f32.mrb[0].mxu0
    %2074 = vdwg.mxu0
    %2075 = vmatprep.subr.mxu0 0.0
    %v2076 = vand.u32 %v268, 4294901760
    %v2077 = vsub.f32 %v268, %v2076
    %v2078 = vand.u32 %v2077, 4294901760
    %2079 = vmatpush1.msra.mxu0 %v2078
    %2080 = vmatprep.subr.mxu0 0.0
    %v2081 = vand.u32 %v269, 4294901760
    %v2082 = vsub.f32 %v269, %v2081
    %v2083 = vand.u32 %v2082, 4294901760
    %2084 = vmatpush1.msra.mxu0 %v2083
    %2085 = vmatprep.subr.mxu0 0.0
    %v2086 = vand.u32 %v270, 4294901760
    %v2087 = vsub.f32 %v270, %v2086
    %v2088 = vand.u32 %v2087, 4294901760
    %2089 = vmatpush1.msra.mxu0 %v2088
    %2090 = vmatprep.subr.mxu0 0.0
    %v2091 = vand.u32 %v271, 4294901760
    %v2092 = vsub.f32 %v271, %v2091
    %v2093 = vand.u32 %v2092, 4294901760
    %2094 = vmatpush1.msra.mxu0 %v2093
    %2095 = vmatprep.subr.mxu0 0.0
    %2096 = vmatpush1.msra.mxu0 0.0
    %2097 = vmatprep.subr.mxu0 0.0
    %2098 = vmatpush1.msra.mxu0 0.0
    %2099 = vmatprep.subr.mxu0 0.0
    %2100 = vmatpush1.msra.mxu0 0.0
    %2101 = vmatprep.subr.mxu0 0.0
    %2102 = vmatpush1.msra.mxu0 0.0
    %2103 = vmatprep.subr.mxu0 0.0
    %2104 = vmatpush1.msra.mxu0 0.0
    %2105 = vmatprep.subr.mxu0 0.0
    %2106 = vmatpush1.msra.mxu0 0.0
    %2107 = vmatprep.subr.mxu0 0.0
    %2108 = vmatpush1.msra.mxu0 0.0
    %2109 = vmatprep.subr.mxu0 0.0
    %2110 = vmatpush1.msra.mxu0 0.0
    %2111 = vmatprep.subr.mxu0 0.0
    %2112 = vmatpush1.msra.mxu0 0.0
    %2113 = vmatprep.subr.mxu0 0.0
    %2114 = vmatpush1.msra.mxu0 0.0
    %2115 = vmatprep.subr.mxu0 0.0
    %2116 = vmatpush1.msra.mxu0 0.0
    %2117 = vmatprep.subr.mxu0 0.0
    %2118 = vmatpush1.msra.mxu0 0.0
    %2119 = vmatprep.subr.mxu0 0.0
    %2120 = vmatpush1.msra.mxu0 0.0
    %2121 = vmatprep.subr.mxu0 0.0
    %2122 = vmatpush1.msra.mxu0 0.0
    %2123 = vmatprep.subr.mxu0 0.0
    %2124 = vmatpush1.msra.mxu0 0.0
    %2125 = vmatprep.subr.mxu0 0.0
    %2126 = vmatpush1.msra.mxu0 0.0
    %2127 = vmatprep.subr.mxu0 0.0
    %2128 = vmatpush1.msra.mxu0 0.0
    %2129 = vmatprep.subr.mxu0 0.0
    %2130 = vmatpush1.msra.mxu0 0.0
    %2131 = vmatprep.subr.mxu0 0.0
    %2132 = vmatpush1.msra.mxu0 0.0
    %2133 = vmatprep.subr.mxu0 0.0
    %2134 = vmatpush1.msra.mxu0 0.0
    %2135 = vmatprep.subr.mxu0 0.0
    %2136 = vmatpush1.msra.mxu0 0.0
    %2137 = vmatprep.subr.mxu0 0.0
    %2138 = vmatpush1.msra.mxu0 0.0
    %2139 = vmatprep.subr.mxu0 0.0
    %2140 = vmatpush1.msra.mxu0 0.0
    %2141 = vmatprep.subr.mxu0 0.0
    %2142 = vmatpush1.msra.mxu0 0.0
    %2143 = vmatprep.subr.mxu0 0.0
    %2144 = vmatpush1.msra.mxu0 0.0
    %2145 = vmatprep.subr.mxu0 0.0
    %2146 = vmatpush1.msra.mxu0 0.0
    %2147 = vmatprep.subr.mxu0 0.0
    %2148 = vmatpush1.msra.mxu0 0.0
    %2149 = vmatprep.subr.mxu0 0.0
    %2150 = vmatpush1.msra.mxu0 0.0
    %2151 = vmatprep.mubr.f32.mxu0 0.0
    %v2152 = vand.u32 %v291, 4294901760
    %2153 = vmatmul.mubr.f32.gmra.mrb[0].mxu0 %v2152
    %v2154 = vpop.f32.mrb[0].mxu0
    %v2155 = vadd.f32 %v2072, %v2154
    %v2156 = vpop.f32.mrb[0].mxu0
    %2157 = vdwg.mxu0
    %2158 = vmatprep.subr.mxu0 0.0
    %v2159 = vand.u32 %v268, 4294901760
    %2160 = vmatpush1.msra.mxu0 %v2159
    %2161 = vmatprep.subr.mxu0 0.0
    %v2162 = vand.u32 %v269, 4294901760
    %2163 = vmatpush1.msra.mxu0 %v2162
    %2164 = vmatprep.subr.mxu0 0.0
    %v2165 = vand.u32 %v270, 4294901760
    %2166 = vmatpush1.msra.mxu0 %v2165
    %2167 = vmatprep.subr.mxu0 0.0
    %v2168 = vand.u32 %v271, 4294901760
    %2169 = vmatpush1.msra.mxu0 %v2168
    %2170 = vmatprep.subr.mxu0 0.0
    %2171 = vmatpush1.msra.mxu0 0.0
    %2172 = vmatprep.subr.mxu0 0.0
    %2173 = vmatpush1.msra.mxu0 0.0
    %2174 = vmatprep.subr.mxu0 0.0
    %2175 = vmatpush1.msra.mxu0 0.0
    %2176 = vmatprep.subr.mxu0 0.0
    %2177 = vmatpush1.msra.mxu0 0.0
    %2178 = vmatprep.subr.mxu0 0.0
    %2179 = vmatpush1.msra.mxu0 0.0
    %2180 = vmatprep.subr.mxu0 0.0
    %2181 = vmatpush1.msra.mxu0 0.0
    %2182 = vmatprep.subr.mxu0 0.0
    %2183 = vmatpush1.msra.mxu0 0.0
    %2184 = vmatprep.subr.mxu0 0.0
    %2185 = vmatpush1.msra.mxu0 0.0
    %2186 = vmatprep.subr.mxu0 0.0
    %2187 = vmatpush1.msra.mxu0 0.0
    %2188 = vmatprep.subr.mxu0 0.0
    %2189 = vmatpush1.msra.mxu0 0.0
    %2190 = vmatprep.subr.mxu0 0.0
    %2191 = vmatpush1.msra.mxu0 0.0
    %2192 = vmatprep.subr.mxu0 0.0
    %2193 = vmatpush1.msra.mxu0 0.0
    %2194 = vmatprep.subr.mxu0 0.0
    %2195 = vmatpush1.msra.mxu0 0.0
    %2196 = vmatprep.subr.mxu0 0.0
    %2197 = vmatpush1.msra.mxu0 0.0
    %2198 = vmatprep.subr.mxu0 0.0
    %2199 = vmatpush1.msra.mxu0 0.0
    %2200 = vmatprep.subr.mxu0 0.0
    %2201 = vmatpush1.msra.mxu0 0.0
    %2202 = vmatprep.subr.mxu0 0.0
    %2203 = vmatpush1.msra.mxu0 0.0
    %2204 = vmatprep.subr.mxu0 0.0
    %2205 = vmatpush1.msra.mxu0 0.0
    %2206 = vmatprep.subr.mxu0 0.0
    %2207 = vmatpush1.msra.mxu0 0.0
    %2208 = vmatprep.subr.mxu0 0.0
    %2209 = vmatpush1.msra.mxu0 0.0
    %2210 = vmatprep.subr.mxu0 0.0
    %2211 = vmatpush1.msra.mxu0 0.0
    %2212 = vmatprep.subr.mxu0 0.0
    %2213 = vmatpush1.msra.mxu0 0.0
    %2214 = vmatprep.subr.mxu0 0.0
    %2215 = vmatpush1.msra.mxu0 0.0
    %2216 = vmatprep.subr.mxu0 0.0
    %2217 = vmatpush1.msra.mxu0 0.0
    %2218 = vmatprep.subr.mxu0 0.0
    %2219 = vmatpush1.msra.mxu0 0.0
    %2220 = vmatprep.subr.mxu0 0.0
    %2221 = vmatpush1.msra.mxu0 0.0
    %2222 = vmatprep.subr.mxu0 0.0
    %2223 = vmatpush1.msra.mxu0 0.0
    %2224 = vmatprep.subr.mxu0 0.0
    %2225 = vmatpush1.msra.mxu0 0.0
    %2226 = vmatprep.mubr.f32.mxu0 0.0
    %v2227 = vand.u32 %v291, 4294901760
    %2228 = vmatmul.mubr.f32.gmra.mrb[0].mxu0 %v2227
    %v2229 = vpop.f32.mrb[0].mxu0
    %v2230 = vadd.f32 %v2155, %v2229
    %v2231 = vpop.f32.mrb[0].mxu0
    %2232 = vdwg.mxu0
    %v2234 = vrot.slane %v1260, 7
    %v2237 = vrot.slane %v1745, 6
    %v2240 = vrot.slane %v2230, 5
    %vm2242 = vcmask 1040384
    %v2243 = vsel %vm2242, %v775, %v2234
    %vm2244 = vcmask 1041408
    %v2245 = vsel %vm2244, %v2243, %v2237
    %vm2246 = vcmask 1042432
    %v2247 = vsel %vm2246, %v2245, %v2240
    %v2248 = vadd.f32 %v288, %v2247
    %2249 = vst [vmem:[#allocation2] sm:$0xf] %v2248
    %v2250 = vld [vmem:[#allocation3] sm:$0xf]
    %2251 = vmatprep.subr.mxu0 0.0
    %v2252 = vand.u32 %v272, 4294901760
    %2253 = vmatpush1.msra.mxu0 %v2252
    %2254 = vmatprep.subr.mxu0 0.0
    %v2255 = vand.u32 %v273, 4294901760
    %2256 = vmatpush1.msra.mxu0 %v2255
    %2257 = vmatprep.subr.mxu0 0.0
    %v2258 = vand.u32 %v274, 4294901760
    %2259 = vmatpush1.msra.mxu0 %v2258
    %2260 = vmatprep.subr.mxu0 0.0
    %v2261 = vand.u32 %v275, 4294901760
    %2262 = vmatpush1.msra.mxu0 %v2261
    %2263 = vmatprep.subr.mxu0 0.0
    %2264 = vmatpush1.msra.mxu0 0.0
    %2265 = vmatprep.subr.mxu0 0.0
    %2266 = vmatpush1.msra.mxu0 0.0
    %2267 = vmatprep.subr.mxu0 0.0
    %2268 = vmatpush1.msra.mxu0 0.0
    %2269 = vmatprep.subr.mxu0 0.0
    %2270 = vmatpush1.msra.mxu0 0.0
    %2271 = vmatprep.subr.mxu0 0.0
    %2272 = vmatpush1.msra.mxu0 0.0
    %2273 = vmatprep.subr.mxu0 0.0
    %2274 = vmatpush1.msra.mxu0 0.0
    %2275 = vmatprep.subr.mxu0 0.0
    %2276 = vmatpush1.msra.mxu0 0.0
    %2277 = vmatprep.subr.mxu0 0.0
    %2278 = vmatpush1.msra.mxu0 0.0
    %2279 = vmatprep.subr.mxu0 0.0
    %2280 = vmatpush1.msra.mxu0 0.0
    %2281 = vmatprep.subr.mxu0 0.0
    %2282 = vmatpush1.msra.mxu0 0.0
    %2283 = vmatprep.subr.mxu0 0.0
    %2284 = vmatpush1.msra.mxu0 0.0
    %2285 = vmatprep.subr.mxu0 0.0
    %2286 = vmatpush1.msra.mxu0 0.0
    %2287 = vmatprep.subr.mxu0 0.0
    %2288 = vmatpush1.msra.mxu0 0.0
    %2289 = vmatprep.subr.mxu0 0.0
    %2290 = vmatpush1.msra.mxu0 0.0
    %2291 = vmatprep.subr.mxu0 0.0
    %2292 = vmatpush1.msra.mxu0 0.0
    %2293 = vmatprep.subr.mxu0 0.0
    %2294 = vmatpush1.msra.mxu0 0.0
    %2295 = vmatprep.subr.mxu0 0.0
    %2296 = vmatpush1.msra.mxu0 0.0
    %2297 = vmatprep.subr.mxu0 0.0
    %2298 = vmatpush1.msra.mxu0 0.0
    %2299 = vmatprep.subr.mxu0 0.0
    %2300 = vmatpush1.msra.mxu0 0.0
    %2301 = vmatprep.subr.mxu0 0.0
    %2302 = vmatpush1.msra.mxu0 0.0
    %2303 = vmatprep.subr.mxu0 0.0
    %2304 = vmatpush1.msra.mxu0 0.0
    %2305 = vmatprep.subr.mxu0 0.0
    %2306 = vmatpush1.msra.mxu0 0.0
    %2307 = vmatprep.subr.mxu0 0.0
    %2308 = vmatpush1.msra.mxu0 0.0
    %2309 = vmatprep.subr.mxu0 0.0
    %2310 = vmatpush1.msra.mxu0 0.0
    %2311 = vmatprep.subr.mxu0 0.0
    %2312 = vmatpush1.msra.mxu0 0.0
    %2313 = vmatprep.subr.mxu0 0.0
    %2314 = vmatpush1.msra.mxu0 0.0
    %2315 = vmatprep.subr.mxu0 0.0
    %2316 = vmatpush1.msra.mxu0 0.0
    %2317 = vmatprep.subr.mxu0 0.0
    %2318 = vmatpush1.msra.mxu0 0.0
    %2319 = vmatprep.mubr.f32.mxu0 0.0
    %v2320 = vand.u32 %v291, 4294901760
    %v2321 = vsub.f32 %v291, %v2320
    %v2322 = vand.u32 %v2321, 4294901760
    %v2323 = vsub.f32 %v2321, %v2322
    %v2324 = vand.u32 %v2323, 4294901760
    %2325 = vmatmul.mubr.f32.gmra.mrb[0].mxu0 %v2324
    %v2326 = vpop.f32.mrb[0].mxu0
    %v2327 = vadd.f32 0.0, %v2326
    %v2328 = vpop.f32.mrb[0].mxu0
    %2329 = vdwg.mxu0
    %2330 = vmatprep.subr.mxu0 0.0
    %v2331 = vand.u32 %v272, 4294901760
    %v2332 = vsub.f32 %v272, %v2331
    %v2333 = vand.u32 %v2332, 4294901760
    %v2334 = vsub.f32 %v2332, %v2333
    %v2335 = vand.u32 %v2334, 4294901760
    %2336 = vmatpush1.msra.mxu0 %v2335
    %2337 = vmatprep.subr.mxu0 0.0
    %v2338 = vand.u32 %v273, 4294901760
    %v2339 = vsub.f32 %v273, %v2338
    %v2340 = vand.u32 %v2339, 4294901760
    %v2341 = vsub.f32 %v2339, %v2340
    %v2342 = vand.u32 %v2341, 4294901760
    %2343 = vmatpush1.msra.mxu0 %v2342
    %2344 = vmatprep.subr.mxu0 0.0
    %v2345 = vand.u32 %v274, 4294901760
    %v2346 = vsub.f32 %v274, %v2345
    %v2347 = vand.u32 %v2346, 4294901760
    %v2348 = vsub.f32 %v2346, %v2347
    %v2349 = vand.u32 %v2348, 4294901760
    %2350 = vmatpush1.msra.mxu0 %v2349
    %2351 = vmatprep.subr.mxu0 0.0
    %v2352 = vand.u32 %v275, 4294901760
    %v2353 = vsub.f32 %v275, %v2352
    %v2354 = vand.u32 %v2353, 4294901760
    %v2355 = vsub.f32 %v2353, %v2354
    %v2356 = vand.u32 %v2355, 4294901760
    %2357 = vmatpush1.msra.mxu0 %v2356
    %2358 = vmatprep.subr.mxu0 0.0
    %2359 = vmatpush1.msra.mxu0 0.0
    %2360 = vmatprep.subr.mxu0 0.0
    %2361 = vmatpush1.msra.mxu0 0.0
    %2362 = vmatprep.subr.mxu0 0.0
    %2363 = vmatpush1.msra.mxu0 0.0
    %2364 = vmatprep.subr.mxu0 0.0
    %2365 = vmatpush1.msra.mxu0 0.0
    %2366 = vmatprep.subr.mxu0 0.0
    %2367 = vmatpush1.msra.mxu0 0.0
    %2368 = vmatprep.subr.mxu0 0.0
    %2369 = vmatpush1.msra.mxu0 0.0
    %2370 = vmatprep.subr.mxu0 0.0
    %2371 = vmatpush1.msra.mxu0 0.0
    %2372 = vmatprep.subr.mxu0 0.0
    %2373 = vmatpush1.msra.mxu0 0.0
    %2374 = vmatprep.subr.mxu0 0.0
    %2375 = vmatpush1.msra.mxu0 0.0
    %2376 = vmatprep.subr.mxu0 0.0
    %2377 = vmatpush1.msra.mxu0 0.0
    %2378 = vmatprep.subr.mxu0 0.0
    %2379 = vmatpush1.msra.mxu0 0.0
    %2380 = vmatprep.subr.mxu0 0.0
    %2381 = vmatpush1.msra.mxu0 0.0
    %2382 = vmatprep.subr.mxu0 0.0
    %2383 = vmatpush1.msra.mxu0 0.0
    %2384 = vmatprep.subr.mxu0 0.0
    %2385 = vmatpush1.msra.mxu0 0.0
    %2386 = vmatprep.subr.mxu0 0.0
    %2387 = vmatpush1.msra.mxu0 0.0
    %2388 = vmatprep.subr.mxu0 0.0
    %2389 = vmatpush1.msra.mxu0 0.0
    %2390 = vmatprep.subr.mxu0 0.0
    %2391 = vmatpush1.msra.mxu0 0.0
    %2392 = vmatprep.subr.mxu0 0.0
    %2393 = vmatpush1.msra.mxu0 0.0
    %2394 = vmatprep.subr.mxu0 0.0
    %2395 = vmatpush1.msra.mxu0 0.0
    %2396 = vmatprep.subr.mxu0 0.0
    %2397 = vmatpush1.msra.mxu0 0.0
    %2398 = vmatprep.subr.mxu0 0.0
    %2399 = vmatpush1.msra.mxu0 0.0
    %2400 = vmatprep.subr.mxu0 0.0
    %2401 = vmatpush1.msra.mxu0 0.0
    %2402 = vmatprep.subr.mxu0 0.0
    %2403 = vmatpush1.msra.mxu0 0.0
    %2404 = vmatprep.subr.mxu0 0.0
    %2405 = vmatpush1.msra.mxu0 0.0
    %2406 = vmatprep.subr.mxu0 0.0
    %2407 = vmatpush1.msra.mxu0 0.0
    %2408 = vmatprep.subr.mxu0 0.0
    %2409 = vmatpush1.msra.mxu0 0.0
    %2410 = vmatprep.subr.mxu0 0.0
    %2411 = vmatpush1.msra.mxu0 0.0
    %2412 = vmatprep.subr.mxu0 0.0
    %2413 = vmatpush1.msra.mxu0 0.0
    %2414 = vmatprep.mubr.f32.mxu0 0.0
    %v2415 = vand.u32 %v291, 4294901760
    %2416 = vmatmul.mubr.f32.gmra.mrb[0].mxu0 %v2415
    %v2417 = vpop.f32.mrb[0].mxu0
    %v2418 = vadd.f32 %v2327, %v2417
    %v2419 = vpop.f32.mrb[0].mxu0
    %2420 = vdwg.mxu0
    %2421 = vmatprep.subr.mxu0 0.0
    %v2422 = vand.u32 %v272, 4294901760
    %v2423 = vsub.f32 %v272, %v2422
    %2424 = vmatpush1.msra.mxu0 %v2423
    %2425 = vmatprep.subr.mxu0 0.0
    %v2426 = vand.u32 %v273, 4294901760
    %v2427 = vsub.f32 %v273, %v2426
    %2428 = vmatpush1.msra.mxu0 %v2427
    %2429 = vmatprep.subr.mxu0 0.0
    %v2430 = vand.u32 %v274, 4294901760
    %v2431 = vsub.f32 %v274, %v2430
    %2432 = vmatpush1.msra.mxu0 %v2431
    %2433 = vmatprep.subr.mxu0 0.0
    %v2434 = vand.u32 %v275, 4294901760
    %v2435 = vsub.f32 %v275, %v2434
    %2436 = vmatpush1.msra.mxu0 %v2435
    %2437 = vmatprep.subr.mxu0 0.0
    %2438 = vmatpush1.msra.mxu0 0.0
    %2439 = vmatprep.subr.mxu0 0.0
    %2440 = vmatpush1.msra.mxu0 0.0
    %2441 = vmatprep.subr.mxu0 0.0
    %2442 = vmatpush1.msra.mxu0 0.0
    %2443 = vmatprep.subr.mxu0 0.0
    %2444 = vmatpush1.msra.mxu0 0.0
    %2445 = vmatprep.subr.mxu0 0.0
    %2446 = vmatpush1.msra.mxu0 0.0
    %2447 = vmatprep.subr.mxu0 0.0
    %2448 = vmatpush1.msra.mxu0 0.0
    %2449 = vmatprep.subr.mxu0 0.0
    %2450 = vmatpush1.msra.mxu0 0.0
    %2451 = vmatprep.subr.mxu0 0.0
    %2452 = vmatpush1.msra.mxu0 0.0
    %2453 = vmatprep.subr.mxu0 0.0
    %2454 = vmatpush1.msra.mxu0 0.0
    %2455 = vmatprep.subr.mxu0 0.0
    %2456 = vmatpush1.msra.mxu0 0.0
    %2457 = vmatprep.subr.mxu0 0.0
    %2458 = vmatpush1.msra.mxu0 0.0
    %2459 = vmatprep.subr.mxu0 0.0
    %2460 = vmatpush1.msra.mxu0 0.0
    %2461 = vmatprep.subr.mxu0 0.0
    %2462 = vmatpush1.msra.mxu0 0.0
    %2463 = vmatprep.subr.mxu0 0.0
    %2464 = vmatpush1.msra.mxu0 0.0
    %2465 = vmatprep.subr.mxu0 0.0
    %2466 = vmatpush1.msra.mxu0 0.0
    %2467 = vmatprep.subr.mxu0 0.0
    %2468 = vmatpush1.msra.mxu0 0.0
    %2469 = vmatprep.subr.mxu0 0.0
    %2470 = vmatpush1.msra.mxu0 0.0
    %2471 = vmatprep.subr.mxu0 0.0
    %2472 = vmatpush1.msra.mxu0 0.0
    %2473 = vmatprep.subr.mxu0 0.0
    %2474 = vmatpush1.msra.mxu0 0.0
    %2475 = vmatprep.subr.mxu0 0.0
    %2476 = vmatpush1.msra.mxu0 0.0
    %2477 = vmatprep.subr.mxu0 0.0
    %2478 = vmatpush1.msra.mxu0 0.0
    %2479 = vmatprep.subr.mxu0 0.0
    %2480 = vmatpush1.msra.mxu0 0.0
    %2481 = vmatprep.subr.mxu0 0.0
    %2482 = vmatpush1.msra.mxu0 0.0
    %2483 = vmatprep.subr.mxu0 0.0
    %2484 = vmatpush1.msra.mxu0 0.0
    %2485 = vmatprep.subr.mxu0 0.0
    %2486 = vmatpush1.msra.mxu0 0.0
    %2487 = vmatprep.subr.mxu0 0.0
    %2488 = vmatpush1.msra.mxu0 0.0
    %2489 = vmatprep.subr.mxu0 0.0
    %2490 = vmatpush1.msra.mxu0 0.0
    %2491 = vmatprep.subr.mxu0 0.0
    %2492 = vmatpush1.msra.mxu0 0.0
    %2493 = vmatprep.mubr.f32.mxu0 0.0
    %v2494 = vand.u32 %v291, 4294901760
    %v2495 = vsub.f32 %v291, %v2494
    %2496 = vmatmul.mubr.f32.gmra.mrb[0].mxu0 %v2495
    %v2497 = vpop.f32.mrb[0].mxu0
    %v2498 = vadd.f32 %v2418, %v2497
    %v2499 = vpop.f32.mrb[0].mxu0
    %2500 = vdwg.mxu0
    %2501 = vmatprep.subr.mxu0 0.0
    %v2502 = vand.u32 %v272, 4294901760
    %2503 = vmatpush1.msra.mxu0 %v2502
    %2504 = vmatprep.subr.mxu0 0.0
    %v2505 = vand.u32 %v273, 4294901760
    %2506 = vmatpush1.msra.mxu0 %v2505
    %2507 = vmatprep.subr.mxu0 0.0
    %v2508 = vand.u32 %v274, 4294901760
    %2509 = vmatpush1.msra.mxu0 %v2508
    %2510 = vmatprep.subr.mxu0 0.0
    %v2511 = vand.u32 %v275, 4294901760
    %2512 = vmatpush1.msra.mxu0 %v2511
    %2513 = vmatprep.subr.mxu0 0.0
    %2514 = vmatpush1.msra.mxu0 0.0
    %2515 = vmatprep.subr.mxu0 0.0
    %2516 = vmatpush1.msra.mxu0 0.0
    %2517 = vmatprep.subr.mxu0 0.0
    %2518 = vmatpush1.msra.mxu0 0.0
    %2519 = vmatprep.subr.mxu0 0.0
    %2520 = vmatpush1.msra.mxu0 0.0
    %2521 = vmatprep.subr.mxu0 0.0
    %2522 = vmatpush1.msra.mxu0 0.0
    %2523 = vmatprep.subr.mxu0 0.0
    %2524 = vmatpush1.msra.mxu0 0.0
    %2525 = vmatprep.subr.mxu0 0.0
    %2526 = vmatpush1.msra.mxu0 0.0
    %2527 = vmatprep.subr.mxu0 0.0
    %2528 = vmatpush1.msra.mxu0 0.0
    %2529 = vmatprep.subr.mxu0 0.0
    %2530 = vmatpush1.msra.mxu0 0.0
    %2531 = vmatprep.subr.mxu0 0.0
    %2532 = vmatpush1.msra.mxu0 0.0
    %2533 = vmatprep.subr.mxu0 0.0
    %2534 = vmatpush1.msra.mxu0 0.0
    %2535 = vmatprep.subr.mxu0 0.0
    %2536 = vmatpush1.msra.mxu0 0.0
    %2537 = vmatprep.subr.mxu0 0.0
    %2538 = vmatpush1.msra.mxu0 0.0
    %2539 = vmatprep.subr.mxu0 0.0
    %2540 = vmatpush1.msra.mxu0 0.0
    %2541 = vmatprep.subr.mxu0 0.0
    %2542 = vmatpush1.msra.mxu0 0.0
    %2543 = vmatprep.subr.mxu0 0.0
    %2544 = vmatpush1.msra.mxu0 0.0
    %2545 = vmatprep.subr.mxu0 0.0
    %2546 = vmatpush1.msra.mxu0 0.0
    %2547 = vmatprep.subr.mxu0 0.0
    %2548 = vmatpush1.msra.mxu0 0.0
    %2549 = vmatprep.subr.mxu0 0.0
    %2550 = vmatpush1.msra.mxu0 0.0
    %2551 = vmatprep.subr.mxu0 0.0
    %2552 = vmatpush1.msra.mxu0 0.0
    %2553 = vmatprep.subr.mxu0 0.0
    %2554 = vmatpush1.msra.mxu0 0.0
    %2555 = vmatprep.subr.mxu0 0.0
    %2556 = vmatpush1.msra.mxu0 0.0
    %2557 = vmatprep.subr.mxu0 0.0
    %2558 = vmatpush1.msra.mxu0 0.0
    %2559 = vmatprep.subr.mxu0 0.0
    %2560 = vmatpush1.msra.mxu0 0.0
    %2561 = vmatprep.subr.mxu0 0.0
    %2562 = vmatpush1.msra.mxu0 0.0
    %2563 = vmatprep.subr.mxu0 0.0
    %2564 = vmatpush1.msra.mxu0 0.0
    %2565 = vmatprep.subr.mxu0 0.0
    %2566 = vmatpush1.msra.mxu0 0.0
    %2567 = vmatprep.subr.mxu0 0.0
    %2568 = vmatpush1.msra.mxu0 0.0
    %2569 = vmatprep.mubr.f32.mxu0 0.0
    %v2570 = vand.u32 %v291, 4294901760
    %v2571 = vsub.f32 %v291, %v2570
    %v2572 = vand.u32 %v2571, 4294901760
    %2573 = vmatmul.mubr.f32.gmra.mrb[0].mxu0 %v2572
    %v2574 = vpop.f32.mrb[0].mxu0
    %v2575 = vadd.f32 %v2498, %v2574
    %v2576 = vpop.f32.mrb[0].mxu0
    %2577 = vdwg.mxu0
    %2578 = vmatprep.subr.mxu0 0.0
    %v2579 = vand.u32 %v272, 4294901760
    %v2580 = vsub.f32 %v272, %v2579
    %v2581 = vand.u32 %v2580, 4294901760
    %2582 = vmatpush1.msra.mxu0 %v2581
    %2583 = vmatprep.subr.mxu0 0.0
    %v2584 = vand.u32 %v273, 4294901760
    %v2585 = vsub.f32 %v273, %v2584
    %v2586 = vand.u32 %v2585, 4294901760
    %2587 = vmatpush1.msra.mxu0 %v2586
    %2588 = vmatprep.subr.mxu0 0.0
    %v2589 = vand.u32 %v274, 4294901760
    %v2590 = vsub.f32 %v274, %v2589
    %v2591 = vand.u32 %v2590, 4294901760
    %2592 = vmatpush1.msra.mxu0 %v2591
    %2593 = vmatprep.subr.mxu0 0.0
    %v2594 = vand.u32 %v275, 4294901760
    %v2595 = vsub.f32 %v275, %v2594
    %v2596 = vand.u32 %v2595, 4294901760
    %2597 = vmatpush1.msra.mxu0 %v2596
    %2598 = vmatprep.subr.mxu0 0.0
    %2599 = vmatpush1.msra.mxu0 0.0
    %2600 = vmatprep.subr.mxu0 0.0
    %2601 = vmatpush1.msra.mxu0 0.0
    %2602 = vmatprep.subr.mxu0 0.0
    %2603 = vmatpush1.msra.mxu0 0.0
    %2604 = vmatprep.subr.mxu0 0.0
    %2605 = vmatpush1.msra.mxu0 0.0
    %2606 = vmatprep.subr.mxu0 0.0
    %2607 = vmatpush1.msra.mxu0 0.0
    %2608 = vmatprep.subr.mxu0 0.0
    %2609 = vmatpush1.msra.mxu0 0.0
    %2610 = vmatprep.subr.mxu0 0.0
    %2611 = vmatpush1.msra.mxu0 0.0
    %2612 = vmatprep.subr.mxu0 0.0
    %2613 = vmatpush1.msra.mxu0 0.0
    %2614 = vmatprep.subr.mxu0 0.0
    %2615 = vmatpush1.msra.mxu0 0.0
    %2616 = vmatprep.subr.mxu0 0.0
    %2617 = vmatpush1.msra.mxu0 0.0
    %2618 = vmatprep.subr.mxu0 0.0
    %2619 = vmatpush1.msra.mxu0 0.0
    %2620 = vmatprep.subr.mxu0 0.0
    %2621 = vmatpush1.msra.mxu0 0.0
    %2622 = vmatprep.subr.mxu0 0.0
    %2623 = vmatpush1.msra.mxu0 0.0
    %2624 = vmatprep.subr.mxu0 0.0
    %2625 = vmatpush1.msra.mxu0 0.0
    %2626 = vmatprep.subr.mxu0 0.0
    %2627 = vmatpush1.msra.mxu0 0.0
    %2628 = vmatprep.subr.mxu0 0.0
    %2629 = vmatpush1.msra.mxu0 0.0
    %2630 = vmatprep.subr.mxu0 0.0
    %2631 = vmatpush1.msra.mxu0 0.0
    %2632 = vmatprep.subr.mxu0 0.0
    %2633 = vmatpush1.msra.mxu0 0.0
    %2634 = vmatprep.subr.mxu0 0.0
    %2635 = vmatpush1.msra.mxu0 0.0
    %2636 = vmatprep.subr.mxu0 0.0
    %2637 = vmatpush1.msra.mxu0 0.0
    %2638 = vmatprep.subr.mxu0 0.0
    %2639 = vmatpush1.msra.mxu0 0.0
    %2640 = vmatprep.subr.mxu0 0.0
    %2641 = vmatpush1.msra.mxu0 0.0
    %2642 = vmatprep.subr.mxu0 0.0
    %2643 = vmatpush1.msra.mxu0 0.0
    %2644 = vmatprep.subr.mxu0 0.0
    %2645 = vmatpush1.msra.mxu0 0.0
    %2646 = vmatprep.subr.mxu0 0.0
    %2647 = vmatpush1.msra.mxu0 0.0
    %2648 = vmatprep.subr.mxu0 0.0
    %2649 = vmatpush1.msra.mxu0 0.0
    %2650 = vmatprep.subr.mxu0 0.0
    %2651 = vmatpush1.msra.mxu0 0.0
    %2652 = vmatprep.subr.mxu0 0.0
    %2653 = vmatpush1.msra.mxu0 0.0
    %2654 = vmatprep.mubr.f32.mxu0 0.0
    %v2655 = vand.u32 %v291, 4294901760
    %2656 = vmatmul.mubr.f32.gmra.mrb[0].mxu0 %v2655
    %v2657 = vpop.f32.mrb[0].mxu0
    %v2658 = vadd.f32 %v2575, %v2657
    %v2659 = vpop.f32.mrb[0].mxu0
    %2660 = vdwg.mxu0
    %2661 = vmatprep.subr.mxu0 0.0
    %v2662 = vand.u32 %v272, 4294901760
    %2663 = vmatpush1.msra.mxu0 %v2662
    %2664 = vmatprep.subr.mxu0 0.0
    %v2665 = vand.u32 %v273, 4294901760
    %2666 = vmatpush1.msra.mxu0 %v2665
    %2667 = vmatprep.subr.mxu0 0.0
    %v2668 = vand.u32 %v274, 4294901760
    %2669 = vmatpush1.msra.mxu0 %v2668
    %2670 = vmatprep.subr.mxu0 0.0
    %v2671 = vand.u32 %v275, 4294901760
    %2672 = vmatpush1.msra.mxu0 %v2671
    %2673 = vmatprep.subr.mxu0 0.0
    %2674 = vmatpush1.msra.mxu0 0.0
    %2675 = vmatprep.subr.mxu0 0.0
    %2676 = vmatpush1.msra.mxu0 0.0
    %2677 = vmatprep.subr.mxu0 0.0
    %2678 = vmatpush1.msra.mxu0 0.0
    %2679 = vmatprep.subr.mxu0 0.0
    %2680 = vmatpush1.msra.mxu0 0.0
    %2681 = vmatprep.subr.mxu0 0.0
    %2682 = vmatpush1.msra.mxu0 0.0
    %2683 = vmatprep.subr.mxu0 0.0
    %2684 = vmatpush1.msra.mxu0 0.0
    %2685 = vmatprep.subr.mxu0 0.0
    %2686 = vmatpush1.msra.mxu0 0.0
    %2687 = vmatprep.subr.mxu0 0.0
    %2688 = vmatpush1.msra.mxu0 0.0
    %2689 = vmatprep.subr.mxu0 0.0
    %2690 = vmatpush1.msra.mxu0 0.0
    %2691 = vmatprep.subr.mxu0 0.0
    %2692 = vmatpush1.msra.mxu0 0.0
    %2693 = vmatprep.subr.mxu0 0.0
    %2694 = vmatpush1.msra.mxu0 0.0
    %2695 = vmatprep.subr.mxu0 0.0
    %2696 = vmatpush1.msra.mxu0 0.0
    %2697 = vmatprep.subr.mxu0 0.0
    %2698 = vmatpush1.msra.mxu0 0.0
    %2699 = vmatprep.subr.mxu0 0.0
    %2700 = vmatpush1.msra.mxu0 0.0
    %2701 = vmatprep.subr.mxu0 0.0
    %2702 = vmatpush1.msra.mxu0 0.0
    %2703 = vmatprep.subr.mxu0 0.0
    %2704 = vmatpush1.msra.mxu0 0.0
    %2705 = vmatprep.subr.mxu0 0.0
    %2706 = vmatpush1.msra.mxu0 0.0
    %2707 = vmatprep.subr.mxu0 0.0
    %2708 = vmatpush1.msra.mxu0 0.0
    %2709 = vmatprep.subr.mxu0 0.0
    %2710 = vmatpush1.msra.mxu0 0.0
    %2711 = vmatprep.subr.mxu0 0.0
    %2712 = vmatpush1.msra.mxu0 0.0
    %2713 = vmatprep.subr.mxu0 0.0
    %2714 = vmatpush1.msra.mxu0 0.0
    %2715 = vmatprep.subr.mxu0 0.0
    %2716 = vmatpush1.msra.mxu0 0.0
    %2717 = vmatprep.subr.mxu0 0.0
    %2718 = vmatpush1.msra.mxu0 0.0
    %2719 = vmatprep.subr.mxu0 0.0
    %2720 = vmatpush1.msra.mxu0 0.0
    %2721 = vmatprep.subr.mxu0 0.0
    %2722 = vmatpush1.msra.mxu0 0.0
    %2723 = vmatprep.subr.mxu0 0.0
    %2724 = vmatpush1.msra.mxu0 0.0
    %2725 = vmatprep.subr.mxu0 0.0
    %2726 = vmatpush1.msra.mxu0 0.0
    %2727 = vmatprep.subr.mxu0 0.0
    %2728 = vmatpush1.msra.mxu0 0.0
    %2729 = vmatprep.mubr.f32.mxu0 0.0
    %v2730 = vand.u32 %v291, 4294901760
    %2731 = vmatmul.mubr.f32.gmra.mrb[0].mxu0 %v2730
    %v2732 = vpop.f32.mrb[0].mxu0
    %v2733 = vadd.f32 %v2658, %v2732
    %v2734 = vpop.f32.mrb[0].mxu0
    %2735 = vdwg.mxu0
    %2736 = vmatprep.subr.mxu0 0.0
    %v2737 = vand.u32 %v276, 4294901760
    %2738 = vmatpush1.msra.mxu0 %v2737
    %2739 = vmatprep.subr.mxu0 0.0
    %v2740 = vand.u32 %v277, 4294901760
    %2741 = vmatpush1.msra.mxu0 %v2740
    %2742 = vmatprep.subr.mxu0 0.0
    %v2743 = vand.u32 %v278, 4294901760
    %2744 = vmatpush1.msra.mxu0 %v2743
    %2745 = vmatprep.subr.mxu0 0.0
    %v2746 = vand.u32 %v279, 4294901760
    %2747 = vmatpush1.msra.mxu0 %v2746
    %2748 = vmatprep.subr.mxu0 0.0
    %2749 = vmatpush1.msra.mxu0 0.0
    %2750 = vmatprep.subr.mxu0 0.0
    %2751 = vmatpush1.msra.mxu0 0.0
    %2752 = vmatprep.subr.mxu0 0.0
    %2753 = vmatpush1.msra.mxu0 0.0
    %2754 = vmatprep.subr.mxu0 0.0
    %2755 = vmatpush1.msra.mxu0 0.0
    %2756 = vmatprep.subr.mxu0 0.0
    %2757 = vmatpush1.msra.mxu0 0.0
    %2758 = vmatprep.subr.mxu0 0.0
    %2759 = vmatpush1.msra.mxu0 0.0
    %2760 = vmatprep.subr.mxu0 0.0
    %2761 = vmatpush1.msra.mxu0 0.0
    %2762 = vmatprep.subr.mxu0 0.0
    %2763 = vmatpush1.msra.mxu0 0.0
    %2764 = vmatprep.subr.mxu0 0.0
    %2765 = vmatpush1.msra.mxu0 0.0
    %2766 = vmatprep.subr.mxu0 0.0
    %2767 = vmatpush1.msra.mxu0 0.0
    %2768 = vmatprep.subr.mxu0 0.0
    %2769 = vmatpush1.msra.mxu0 0.0
    %2770 = vmatprep.subr.mxu0 0.0
    %2771 = vmatpush1.msra.mxu0 0.0
    %2772 = vmatprep.subr.mxu0 0.0
    %2773 = vmatpush1.msra.mxu0 0.0
    %2774 = vmatprep.subr.mxu0 0.0
    %2775 = vmatpush1.msra.mxu0 0.0
    %2776 = vmatprep.subr.mxu0 0.0
    %2777 = vmatpush1.msra.mxu0 0.0
    %2778 = vmatprep.subr.mxu0 0.0
    %2779 = vmatpush1.msra.mxu0 0.0
    %2780 = vmatprep.subr.mxu0 0.0
    %2781 = vmatpush1.msra.mxu0 0.0
    %2782 = vmatprep.subr.mxu0 0.0
    %2783 = vmatpush1.msra.mxu0 0.0
    %2784 = vmatprep.subr.mxu0 0.0
    %2785 = vmatpush1.msra.mxu0 0.0
    %2786 = vmatprep.subr.mxu0 0.0
    %2787 = vmatpush1.msra.mxu0 0.0
    %2788 = vmatprep.subr.mxu0 0.0
    %2789 = vmatpush1.msra.mxu0 0.0
    %2790 = vmatprep.subr.mxu0 0.0
    %2791 = vmatpush1.msra.mxu0 0.0
    %2792 = vmatprep.subr.mxu0 0.0
    %2793 = vmatpush1.msra.mxu0 0.0
    %2794 = vmatprep.subr.mxu0 0.0
    %2795 = vmatpush1.msra.mxu0 0.0
    %2796 = vmatprep.subr.mxu0 0.0
    %2797 = vmatpush1.msra.mxu0 0.0
    %2798 = vmatprep.subr.mxu0 0.0
    %2799 = vmatpush1.msra.mxu0 0.0
    %2800 = vmatprep.subr.mxu0 0.0
    %2801 = vmatpush1.msra.mxu0 0.0
    %2802 = vmatprep.subr.mxu0 0.0
    %2803 = vmatpush1.msra.mxu0 0.0
    %2804 = vmatprep.mubr.f32.mxu0 0.0
    %v2805 = vand.u32 %v291, 4294901760
    %v2806 = vsub.f32 %v291, %v2805
    %v2807 = vand.u32 %v2806, 4294901760
    %v2808 = vsub.f32 %v2806, %v2807
    %v2809 = vand.u32 %v2808, 4294901760
    %2810 = vmatmul.mubr.f32.gmra.mrb[0].mxu0 %v2809
    %v2811 = vpop.f32.mrb[0].mxu0
    %v2812 = vadd.f32 0.0, %v2811
    %v2813 = vpop.f32.mrb[0].mxu0
    %2814 = vdwg.mxu0
    %2815 = vmatprep.subr.mxu0 0.0
    %v2816 = vand.u32 %v276, 4294901760
    %v2817 = vsub.f32 %v276, %v2816
    %v2818 = vand.u32 %v2817, 4294901760
    %v2819 = vsub.f32 %v2817, %v2818
    %v2820 = vand.u32 %v2819, 4294901760
    %2821 = vmatpush1.msra.mxu0 %v2820
    %2822 = vmatprep.subr.mxu0 0.0
    %v2823 = vand.u32 %v277, 4294901760
    %v2824 = vsub.f32 %v277, %v2823
    %v2825 = vand.u32 %v2824, 4294901760
    %v2826 = vsub.f32 %v2824, %v2825
    %v2827 = vand.u32 %v2826, 4294901760
    %2828 = vmatpush1.msra.mxu0 %v2827
    %2829 = vmatprep.subr.mxu0 0.0
    %v2830 = vand.u32 %v278, 4294901760
    %v2831 = vsub.f32 %v278, %v2830
    %v2832 = vand.u32 %v2831, 4294901760
    %v2833 = vsub.f32 %v2831, %v2832
    %v2834 = vand.u32 %v2833, 4294901760
    %2835 = vmatpush1.msra.mxu0 %v2834
    %2836 = vmatprep.subr.mxu0 0.0
    %v2837 = vand.u32 %v279, 4294901760
    %v2838 = vsub.f32 %v279, %v2837
    %v2839 = vand.u32 %v2838, 4294901760
    %v2840 = vsub.f32 %v2838, %v2839
    %v2841 = vand.u32 %v2840, 4294901760
    %2842 = vmatpush1.msra.mxu0 %v2841
    %2843 = vmatprep.subr.mxu0 0.0
    %2844 = vmatpush1.msra.mxu0 0.0
    %2845 = vmatprep.subr.mxu0 0.0
    %2846 = vmatpush1.msra.mxu0 0.0
    %2847 = vmatprep.subr.mxu0 0.0
    %2848 = vmatpush1.msra.mxu0 0.0
    %2849 = vmatprep.subr.mxu0 0.0
    %2850 = vmatpush1.msra.mxu0 0.0
    %2851 = vmatprep.subr.mxu0 0.0
    %2852 = vmatpush1.msra.mxu0 0.0
    %2853 = vmatprep.subr.mxu0 0.0
    %2854 = vmatpush1.msra.mxu0 0.0
    %2855 = vmatprep.subr.mxu0 0.0
    %2856 = vmatpush1.msra.mxu0 0.0
    %2857 = vmatprep.subr.mxu0 0.0
    %2858 = vmatpush1.msra.mxu0 0.0
    %2859 = vmatprep.subr.mxu0 0.0
    %2860 = vmatpush1.msra.mxu0 0.0
    %2861 = vmatprep.subr.mxu0 0.0
    %2862 = vmatpush1.msra.mxu0 0.0
    %2863 = vmatprep.subr.mxu0 0.0
    %2864 = vmatpush1.msra.mxu0 0.0
    %2865 = vmatprep.subr.mxu0 0.0
    %2866 = vmatpush1.msra.mxu0 0.0
    %2867 = vmatprep.subr.mxu0 0.0
    %2868 = vmatpush1.msra.mxu0 0.0
    %2869 = vmatprep.subr.mxu0 0.0
    %2870 = vmatpush1.msra.mxu0 0.0
    %2871 = vmatprep.subr.mxu0 0.0
    %2872 = vmatpush1.msra.mxu0 0.0
    %2873 = vmatprep.subr.mxu0 0.0
    %2874 = vmatpush1.msra.mxu0 0.0
    %2875 = vmatprep.subr.mxu0 0.0
    %2876 = vmatpush1.msra.mxu0 0.0
    %2877 = vmatprep.subr.mxu0 0.0
    %2878 = vmatpush1.msra.mxu0 0.0
    %2879 = vmatprep.subr.mxu0 0.0
    %2880 = vmatpush1.msra.mxu0 0.0
    %2881 = vmatprep.subr.mxu0 0.0
    %2882 = vmatpush1.msra.mxu0 0.0
    %2883 = vmatprep.subr.mxu0 0.0
    %2884 = vmatpush1.msra.mxu0 0.0
    %2885 = vmatprep.subr.mxu0 0.0
    %2886 = vmatpush1.msra.mxu0 0.0
    %2887 = vmatprep.subr.mxu0 0.0
    %2888 = vmatpush1.msra.mxu0 0.0
    %2889 = vmatprep.subr.mxu0 0.0
    %2890 = vmatpush1.msra.mxu0 0.0
    %2891 = vmatprep.subr.mxu0 0.0
    %2892 = vmatpush1.msra.mxu0 0.0
    %2893 = vmatprep.subr.mxu0 0.0
    %2894 = vmatpush1.msra.mxu0 0.0
    %2895 = vmatprep.subr.mxu0 0.0
    %2896 = vmatpush1.msra.mxu0 0.0
    %2897 = vmatprep.subr.mxu0 0.0
    %2898 = vmatpush1.msra.mxu0 0.0
    %2899 = vmatprep.mubr.f32.mxu0 0.0
    %v2900 = vand.u32 %v291, 4294901760
    %2901 = vmatmul.mubr.f32.gmra.mrb[0].mxu0 %v2900
    %v2902 = vpop.f32.mrb[0].mxu0
    %v2903 = vadd.f32 %v2812, %v2902
    %v2904 = vpop.f32.mrb[0].mxu0
    %2905 = vdwg.mxu0
    %2906 = vmatprep.subr.mxu0 0.0
    %v2907 = vand.u32 %v276, 4294901760
    %v2908 = vsub.f32 %v276, %v2907
    %2909 = vmatpush1.msra.mxu0 %v2908
    %2910 = vmatprep.subr.mxu0 0.0
    %v2911 = vand.u32 %v277, 4294901760
    %v2912 = vsub.f32 %v277, %v2911
    %2913 = vmatpush1.msra.mxu0 %v2912
    %2914 = vmatprep.subr.mxu0 0.0
    %v2915 = vand.u32 %v278, 4294901760
    %v2916 = vsub.f32 %v278, %v2915
    %2917 = vmatpush1.msra.mxu0 %v2916
    %2918 = vmatprep.subr.mxu0 0.0
    %v2919 = vand.u32 %v279, 4294901760
    %v2920 = vsub.f32 %v279, %v2919
    %2921 = vmatpush1.msra.mxu0 %v2920
    %2922 = vmatprep.subr.mxu0 0.0
    %2923 = vmatpush1.msra.mxu0 0.0
    %2924 = vmatprep.subr.mxu0 0.0
    %2925 = vmatpush1.msra.mxu0 0.0
    %2926 = vmatprep.subr.mxu0 0.0
    %2927 = vmatpush1.msra.mxu0 0.0
    %2928 = vmatprep.subr.mxu0 0.0
    %2929 = vmatpush1.msra.mxu0 0.0
    %2930 = vmatprep.subr.mxu0 0.0
    %2931 = vmatpush1.msra.mxu0 0.0
    %2932 = vmatprep.subr.mxu0 0.0
    %2933 = vmatpush1.msra.mxu0 0.0
    %2934 = vmatprep.subr.mxu0 0.0
    %2935 = vmatpush1.msra.mxu0 0.0
    %2936 = vmatprep.subr.mxu0 0.0
    %2937 = vmatpush1.msra.mxu0 0.0
    %2938 = vmatprep.subr.mxu0 0.0
    %2939 = vmatpush1.msra.mxu0 0.0
    %2940 = vmatprep.subr.mxu0 0.0
    %2941 = vmatpush1.msra.mxu0 0.0
    %2942 = vmatprep.subr.mxu0 0.0
    %2943 = vmatpush1.msra.mxu0 0.0
    %2944 = vmatprep.subr.mxu0 0.0
    %2945 = vmatpush1.msra.mxu0 0.0
    %2946 = vmatprep.subr.mxu0 0.0
    %2947 = vmatpush1.msra.mxu0 0.0
    %2948 = vmatprep.subr.mxu0 0.0
    %2949 = vmatpush1.msra.mxu0 0.0
    %2950 = vmatprep.subr.mxu0 0.0
    %2951 = vmatpush1.msra.mxu0 0.0
    %2952 = vmatprep.subr.mxu0 0.0
    %2953 = vmatpush1.msra.mxu0 0.0
    %2954 = vmatprep.subr.mxu0 0.0
    %2955 = vmatpush1.msra.mxu0 0.0
    %2956 = vmatprep.subr.mxu0 0.0
    %2957 = vmatpush1.msra.mxu0 0.0
    %2958 = vmatprep.subr.mxu0 0.0
    %2959 = vmatpush1.msra.mxu0 0.0
    %2960 = vmatprep.subr.mxu0 0.0
    %2961 = vmatpush1.msra.mxu0 0.0
    %2962 = vmatprep.subr.mxu0 0.0
    %2963 = vmatpush1.msra.mxu0 0.0
    %2964 = vmatprep.subr.mxu0 0.0
    %2965 = vmatpush1.msra.mxu0 0.0
    %2966 = vmatprep.subr.mxu0 0.0
    %2967 = vmatpush1.msra.mxu0 0.0
    %2968 = vmatprep.subr.mxu0 0.0
    %2969 = vmatpush1.msra.mxu0 0.0
    %2970 = vmatprep.subr.mxu0 0.0
    %2971 = vmatpush1.msra.mxu0 0.0
    %2972 = vmatprep.subr.mxu0 0.0
    %2973 = vmatpush1.msra.mxu0 0.0
    %2974 = vmatprep.subr.mxu0 0.0
    %2975 = vmatpush1.msra.mxu0 0.0
    %2976 = vmatprep.subr.mxu0 0.0
    %2977 = vmatpush1.msra.mxu0 0.0
    %2978 = vmatprep.mubr.f32.mxu0 0.0
    %v2979 = vand.u32 %v291, 4294901760
    %v2980 = vsub.f32 %v291, %v2979
    %2981 = vmatmul.mubr.f32.gmra.mrb[0].mxu0 %v2980
    %v2982 = vpop.f32.mrb[0].mxu0
    %v2983 = vadd.f32 %v2903, %v2982
    %v2984 = vpop.f32.mrb[0].mxu0
    %2985 = vdwg.mxu0
    %2986 = vmatprep.subr.mxu0 0.0
    %v2987 = vand.u32 %v276, 4294901760
    %2988 = vmatpush1.msra.mxu0 %v2987
    %2989 = vmatprep.subr.mxu0 0.0
    %v2990 = vand.u32 %v277, 4294901760
    %2991 = vmatpush1.msra.mxu0 %v2990
    %2992 = vmatprep.subr.mxu0 0.0
    %v2993 = vand.u32 %v278, 4294901760
    %2994 = vmatpush1.msra.mxu0 %v2993
    %2995 = vmatprep.subr.mxu0 0.0
    %v2996 = vand.u32 %v279, 4294901760
    %2997 = vmatpush1.msra.mxu0 %v2996
    %2998 = vmatprep.subr.mxu0 0.0
    %2999 = vmatpush1.msra.mxu0 0.0
    %3000 = vmatprep.subr.mxu0 0.0
    %3001 = vmatpush1.msra.mxu0 0.0
    %3002 = vmatprep.subr.mxu0 0.0
    %3003 = vmatpush1.msra.mxu0 0.0
    %3004 = vmatprep.subr.mxu0 0.0
    %3005 = vmatpush1.msra.mxu0 0.0
    %3006 = vmatprep.subr.mxu0 0.0
    %3007 = vmatpush1.msra.mxu0 0.0
    %3008 = vmatprep.subr.mxu0 0.0
    %3009 = vmatpush1.msra.mxu0 0.0
    %3010 = vmatprep.subr.mxu0 0.0
    %3011 = vmatpush1.msra.mxu0 0.0
    %3012 = vmatprep.subr.mxu0 0.0
    %3013 = vmatpush1.msra.mxu0 0.0
    %3014 = vmatprep.subr.mxu0 0.0
    %3015 = vmatpush1.msra.mxu0 0.0
    %3016 = vmatprep.subr.mxu0 0.0
    %3017 = vmatpush1.msra.mxu0 0.0
    %3018 = vmatprep.subr.mxu0 0.0
    %3019 = vmatpush1.msra.mxu0 0.0
    %3020 = vmatprep.subr.mxu0 0.0
    %3021 = vmatpush1.msra.mxu0 0.0
    %3022 = vmatprep.subr.mxu0 0.0
    %3023 = vmatpush1.msra.mxu0 0.0
    %3024 = vmatprep.subr.mxu0 0.0
    %3025 = vmatpush1.msra.mxu0 0.0
    %3026 = vmatprep.subr.mxu0 0.0
    %3027 = vmatpush1.msra.mxu0 0.0
    %3028 = vmatprep.subr.mxu0 0.0
    %3029 = vmatpush1.msra.mxu0 0.0
    %3030 = vmatprep.subr.mxu0 0.0
    %3031 = vmatpush1.msra.mxu0 0.0
    %3032 = vmatprep.subr.mxu0 0.0
    %3033 = vmatpush1.msra.mxu0 0.0
    %3034 = vmatprep.subr.mxu0 0.0
    %3035 = vmatpush1.msra.mxu0 0.0
    %3036 = vmatprep.subr.mxu0 0.0
    %3037 = vmatpush1.msra.mxu0 0.0
    %3038 = vmatprep.subr.mxu0 0.0
    %3039 = vmatpush1.msra.mxu0 0.0
    %3040 = vmatprep.subr.mxu0 0.0
    %3041 = vmatpush1.msra.mxu0 0.0
    %3042 = vmatprep.subr.mxu0 0.0
    %3043 = vmatpush1.msra.mxu0 0.0
    %3044 = vmatprep.subr.mxu0 0.0
    %3045 = vmatpush1.msra.mxu0 0.0
    %3046 = vmatprep.subr.mxu0 0.0
    %3047 = vmatpush1.msra.mxu0 0.0
    %3048 = vmatprep.subr.mxu0 0.0
    %3049 = vmatpush1.msra.mxu0 0.0
    %3050 = vmatprep.subr.mxu0 0.0
    %3051 = vmatpush1.msra.mxu0 0.0
    %3052 = vmatprep.subr.mxu0 0.0
    %3053 = vmatpush1.msra.mxu0 0.0
    %3054 = vmatprep.mubr.f32.mxu0 0.0
    %v3055 = vand.u32 %v291, 4294901760
    %v3056 = vsub.f32 %v291, %v3055
    %v3057 = vand.u32 %v3056, 4294901760
    %3058 = vmatmul.mubr.f32.gmra.mrb[0].mxu0 %v3057
    %v3059 = vpop.f32.mrb[0].mxu0
    %v3060 = vadd.f32 %v2983, %v3059
    %v3061 = vpop.f32.mrb[0].mxu0
    %3062 = vdwg.mxu0
    %3063 = vmatprep.subr.mxu0 0.0
    %v3064 = vand.u32 %v276, 4294901760
    %v3065 = vsub.f32 %v276, %v3064
    %v3066 = vand.u32 %v3065, 4294901760
    %3067 = vmatpush1.msra.mxu0 %v3066
    %3068 = vmatprep.subr.mxu0 0.0
    %v3069 = vand.u32 %v277, 4294901760
    %v3070 = vsub.f32 %v277, %v3069
    %v3071 = vand.u32 %v3070, 4294901760
    %3072 = vmatpush1.msra.mxu0 %v3071
    %3073 = vmatprep.subr.mxu0 0.0
    %v3074 = vand.u32 %v278, 4294901760
    %v3075 = vsub.f32 %v278, %v3074
    %v3076 = vand.u32 %v3075, 4294901760
    %3077 = vmatpush1.msra.mxu0 %v3076
    %3078 = vmatprep.subr.mxu0 0.0
    %v3079 = vand.u32 %v279, 4294901760
    %v3080 = vsub.f32 %v279, %v3079
    %v3081 = vand.u32 %v3080, 4294901760
    %3082 = vmatpush1.msra.mxu0 %v3081
    %3083 = vmatprep.subr.mxu0 0.0
    %3084 = vmatpush1.msra.mxu0 0.0
    %3085 = vmatprep.subr.mxu0 0.0
    %3086 = vmatpush1.msra.mxu0 0.0
    %3087 = vmatprep.subr.mxu0 0.0
    %3088 = vmatpush1.msra.mxu0 0.0
    %3089 = vmatprep.subr.mxu0 0.0
    %3090 = vmatpush1.msra.mxu0 0.0
    %3091 = vmatprep.subr.mxu0 0.0
    %3092 = vmatpush1.msra.mxu0 0.0
    %3093 = vmatprep.subr.mxu0 0.0
    %3094 = vmatpush1.msra.mxu0 0.0
    %3095 = vmatprep.subr.mxu0 0.0
    %3096 = vmatpush1.msra.mxu0 0.0
    %3097 = vmatprep.subr.mxu0 0.0
    %3098 = vmatpush1.msra.mxu0 0.0
    %3099 = vmatprep.subr.mxu0 0.0
    %3100 = vmatpush1.msra.mxu0 0.0
    %3101 = vmatprep.subr.mxu0 0.0
    %3102 = vmatpush1.msra.mxu0 0.0
    %3103 = vmatprep.subr.mxu0 0.0
    %3104 = vmatpush1.msra.mxu0 0.0
    %3105 = vmatprep.subr.mxu0 0.0
    %3106 = vmatpush1.msra.mxu0 0.0
    %3107 = vmatprep.subr.mxu0 0.0
    %3108 = vmatpush1.msra.mxu0 0.0
    %3109 = vmatprep.subr.mxu0 0.0
    %3110 = vmatpush1.msra.mxu0 0.0
    %3111 = vmatprep.subr.mxu0 0.0
    %3112 = vmatpush1.msra.mxu0 0.0
    %3113 = vmatprep.subr.mxu0 0.0
    %3114 = vmatpush1.msra.mxu0 0.0
    %3115 = vmatprep.subr.mxu0 0.0
    %3116 = vmatpush1.msra.mxu0 0.0
    %3117 = vmatprep.subr.mxu0 0.0
    %3118 = vmatpush1.msra.mxu0 0.0
    %3119 = vmatprep.subr.mxu0 0.0
    %3120 = vmatpush1.msra.mxu0 0.0
    %3121 = vmatprep.subr.mxu0 0.0
    %3122 = vmatpush1.msra.mxu0 0.0
    %3123 = vmatprep.subr.mxu0 0.0
    %3124 = vmatpush1.msra.mxu0 0.0
    %3125 = vmatprep.subr.mxu0 0.0
    %3126 = vmatpush1.msra.mxu0 0.0
    %3127 = vmatprep.subr.mxu0 0.0
    %3128 = vmatpush1.msra.mxu0 0.0
    %3129 = vmatprep.subr.mxu0 0.0
    %3130 = vmatpush1.msra.mxu0 0.0
    %3131 = vmatprep.subr.mxu0 0.0
    %3132 = vmatpush1.msra.mxu0 0.0
    %3133 = vmatprep.subr.mxu0 0.0
    %3134 = vmatpush1.msra.mxu0 0.0
    %3135 = vmatprep.subr.mxu0 0.0
    %3136 = vmatpush1.msra.mxu0 0.0
    %3137 = vmatprep.subr.mxu0 0.0
    %3138 = vmatpush1.msra.mxu0 0.0
    %3139 = vmatprep.mubr.f32.mxu0 0.0
    %v3140 = vand.u32 %v291, 4294901760
    %3141 = vmatmul.mubr.f32.gmra.mrb[0].mxu0 %v3140
    %v3142 = vpop.f32.mrb[0].mxu0
    %v3143 = vadd.f32 %v3060, %v3142
    %v3144 = vpop.f32.mrb[0].mxu0
    %3145 = vdwg.mxu0
    %3146 = vmatprep.subr.mxu0 0.0
    %v3147 = vand.u32 %v276, 4294901760
    %3148 = vmatpush1.msra.mxu0 %v3147
    %3149 = vmatprep.subr.mxu0 0.0
    %v3150 = vand.u32 %v277, 4294901760
    %3151 = vmatpush1.msra.mxu0 %v3150
    %3152 = vmatprep.subr.mxu0 0.0
    %v3153 = vand.u32 %v278, 4294901760
    %3154 = vmatpush1.msra.mxu0 %v3153
    %3155 = vmatprep.subr.mxu0 0.0
    %v3156 = vand.u32 %v279, 4294901760
    %3157 = vmatpush1.msra.mxu0 %v3156
    %3158 = vmatprep.subr.mxu0 0.0
    %3159 = vmatpush1.msra.mxu0 0.0
    %3160 = vmatprep.subr.mxu0 0.0
    %3161 = vmatpush1.msra.mxu0 0.0
    %3162 = vmatprep.subr.mxu0 0.0
    %3163 = vmatpush1.msra.mxu0 0.0
    %3164 = vmatprep.subr.mxu0 0.0
    %3165 = vmatpush1.msra.mxu0 0.0
    %3166 = vmatprep.subr.mxu0 0.0
    %3167 = vmatpush1.msra.mxu0 0.0
    %3168 = vmatprep.subr.mxu0 0.0
    %3169 = vmatpush1.msra.mxu0 0.0
    %3170 = vmatprep.subr.mxu0 0.0
    %3171 = vmatpush1.msra.mxu0 0.0
    %3172 = vmatprep.subr.mxu0 0.0
    %3173 = vmatpush1.msra.mxu0 0.0
    %3174 = vmatprep.subr.mxu0 0.0
    %3175 = vmatpush1.msra.mxu0 0.0
    %3176 = vmatprep.subr.mxu0 0.0
    %3177 = vmatpush1.msra.mxu0 0.0
    %3178 = vmatprep.subr.mxu0 0.0
    %3179 = vmatpush1.msra.mxu0 0.0
    %3180 = vmatprep.subr.mxu0 0.0
    %3181 = vmatpush1.msra.mxu0 0.0
    %3182 = vmatprep.subr.mxu0 0.0
    %3183 = vmatpush1.msra.mxu0 0.0
    %3184 = vmatprep.subr.mxu0 0.0
    %3185 = vmatpush1.msra.mxu0 0.0
    %3186 = vmatprep.subr.mxu0 0.0
    %3187 = vmatpush1.msra.mxu0 0.0
    %3188 = vmatprep.subr.mxu0 0.0
    %3189 = vmatpush1.msra.mxu0 0.0
    %3190 = vmatprep.subr.mxu0 0.0
    %3191 = vmatpush1.msra.mxu0 0.0
    %3192 = vmatprep.subr.mxu0 0.0
    %3193 = vmatpush1.msra.mxu0 0.0
    %3194 = vmatprep.subr.mxu0 0.0
    %3195 = vmatpush1.msra.mxu0 0.0
    %3196 = vmatprep.subr.mxu0 0.0
    %3197 = vmatpush1.msra.mxu0 0.0
    %3198 = vmatprep.subr.mxu0 0.0
    %3199 = vmatpush1.msra.mxu0 0.0
    %3200 = vmatprep.subr.mxu0 0.0
    %3201 = vmatpush1.msra.mxu0 0.0
    %3202 = vmatprep.subr.mxu0 0.0
    %3203 = vmatpush1.msra.mxu0 0.0
    %3204 = vmatprep.subr.mxu0 0.0
    %3205 = vmatpush1.msra.mxu0 0.0
    %3206 = vmatprep.subr.mxu0 0.0
    %3207 = vmatpush1.msra.mxu0 0.0
    %3208 = vmatprep.subr.mxu0 0.0
    %3209 = vmatpush1.msra.mxu0 0.0
    %3210 = vmatprep.subr.mxu0 0.0
    %3211 = vmatpush1.msra.mxu0 0.0
    %3212 = vmatprep.subr.mxu0 0.0
    %3213 = vmatpush1.msra.mxu0 0.0
    %3214 = vmatprep.mubr.f32.mxu0 0.0
    %v3215 = vand.u32 %v291, 4294901760
    %3216 = vmatmul.mubr.f32.gmra.mrb[0].mxu0 %v3215
    %v3217 = vpop.f32.mrb[0].mxu0
    %v3218 = vadd.f32 %v3143, %v3217
    %v3219 = vpop.f32.mrb[0].mxu0
    %3220 = vdwg.mxu0
    %3221 = vmatprep.subr.mxu0 0.0
    %v3222 = vand.u32 %v280, 4294901760
    %3223 = vmatpush1.msra.mxu0 %v3222
    %3224 = vmatprep.subr.mxu0 0.0
    %v3225 = vand.u32 %v281, 4294901760
    %3226 = vmatpush1.msra.mxu0 %v3225
    %3227 = vmatprep.subr.mxu0 0.0
    %v3228 = vand.u32 %v282, 4294901760
    %3229 = vmatpush1.msra.mxu0 %v3228
    %3230 = vmatprep.subr.mxu0 0.0
    %v3231 = vand.u32 %v283, 4294901760
    %3232 = vmatpush1.msra.mxu0 %v3231
    %3233 = vmatprep.subr.mxu0 0.0
    %3234 = vmatpush1.msra.mxu0 0.0
    %3235 = vmatprep.subr.mxu0 0.0
    %3236 = vmatpush1.msra.mxu0 0.0
    %3237 = vmatprep.subr.mxu0 0.0
    %3238 = vmatpush1.msra.mxu0 0.0
    %3239 = vmatprep.subr.mxu0 0.0
    %3240 = vmatpush1.msra.mxu0 0.0
    %3241 = vmatprep.subr.mxu0 0.0
    %3242 = vmatpush1.msra.mxu0 0.0
    %3243 = vmatprep.subr.mxu0 0.0
    %3244 = vmatpush1.msra.mxu0 0.0
    %3245 = vmatprep.subr.mxu0 0.0
    %3246 = vmatpush1.msra.mxu0 0.0
    %3247 = vmatprep.subr.mxu0 0.0
    %3248 = vmatpush1.msra.mxu0 0.0
    %3249 = vmatprep.subr.mxu0 0.0
    %3250 = vmatpush1.msra.mxu0 0.0
    %3251 = vmatprep.subr.mxu0 0.0
    %3252 = vmatpush1.msra.mxu0 0.0
    %3253 = vmatprep.subr.mxu0 0.0
    %3254 = vmatpush1.msra.mxu0 0.0
    %3255 = vmatprep.subr.mxu0 0.0
    %3256 = vmatpush1.msra.mxu0 0.0
    %3257 = vmatprep.subr.mxu0 0.0
    %3258 = vmatpush1.msra.mxu0 0.0
    %3259 = vmatprep.subr.mxu0 0.0
    %3260 = vmatpush1.msra.mxu0 0.0
    %3261 = vmatprep.subr.mxu0 0.0
    %3262 = vmatpush1.msra.mxu0 0.0
    %3263 = vmatprep.subr.mxu0 0.0
    %3264 = vmatpush1.msra.mxu0 0.0
    %3265 = vmatprep.subr.mxu0 0.0
    %3266 = vmatpush1.msra.mxu0 0.0
    %3267 = vmatprep.subr.mxu0 0.0
    %3268 = vmatpush1.msra.mxu0 0.0
    %3269 = vmatprep.subr.mxu0 0.0
    %3270 = vmatpush1.msra.mxu0 0.0
    %3271 = vmatprep.subr.mxu0 0.0
    %3272 = vmatpush1.msra.mxu0 0.0
    %3273 = vmatprep.subr.mxu0 0.0
    %3274 = vmatpush1.msra.mxu0 0.0
    %3275 = vmatprep.subr.mxu0 0.0
    %3276 = vmatpush1.msra.mxu0 0.0
    %3277 = vmatprep.subr.mxu0 0.0
    %3278 = vmatpush1.msra.mxu0 0.0
    %3279 = vmatprep.subr.mxu0 0.0
    %3280 = vmatpush1.msra.mxu0 0.0
    %3281 = vmatprep.subr.mxu0 0.0
    %3282 = vmatpush1.msra.mxu0 0.0
    %3283 = vmatprep.subr.mxu0 0.0
    %3284 = vmatpush1.msra.mxu0 0.0
    %3285 = vmatprep.subr.mxu0 0.0
    %3286 = vmatpush1.msra.mxu0 0.0
    %3287 = vmatprep.subr.mxu0 0.0
    %3288 = vmatpush1.msra.mxu0 0.0
    %3289 = vmatprep.mubr.f32.mxu0 0.0
    %v3290 = vand.u32 %v291, 4294901760
    %v3291 = vsub.f32 %v291, %v3290
    %v3292 = vand.u32 %v3291, 4294901760
    %v3293 = vsub.f32 %v3291, %v3292
    %v3294 = vand.u32 %v3293, 4294901760
    %3295 = vmatmul.mubr.f32.gmra.mrb[0].mxu0 %v3294
    %v3296 = vpop.f32.mrb[0].mxu0
    %v3297 = vadd.f32 0.0, %v3296
    %v3298 = vpop.f32.mrb[0].mxu0
    %3299 = vdwg.mxu0
    %3300 = vmatprep.subr.mxu0 0.0
    %v3301 = vand.u32 %v280, 4294901760
    %v3302 = vsub.f32 %v280, %v3301
    %v3303 = vand.u32 %v3302, 4294901760
    %v3304 = vsub.f32 %v3302, %v3303
    %v3305 = vand.u32 %v3304, 4294901760
    %3306 = vmatpush1.msra.mxu0 %v3305
    %3307 = vmatprep.subr.mxu0 0.0
    %v3308 = vand.u32 %v281, 4294901760
    %v3309 = vsub.f32 %v281, %v3308
    %v3310 = vand.u32 %v3309, 4294901760
    %v3311 = vsub.f32 %v3309, %v3310
    %v3312 = vand.u32 %v3311, 4294901760
    %3313 = vmatpush1.msra.mxu0 %v3312
    %3314 = vmatprep.subr.mxu0 0.0
    %v3315 = vand.u32 %v282, 4294901760
    %v3316 = vsub.f32 %v282, %v3315
    %v3317 = vand.u32 %v3316, 4294901760
    %v3318 = vsub.f32 %v3316, %v3317
    %v3319 = vand.u32 %v3318, 4294901760
    %3320 = vmatpush1.msra.mxu0 %v3319
    %3321 = vmatprep.subr.mxu0 0.0
    %v3322 = vand.u32 %v283, 4294901760
    %v3323 = vsub.f32 %v283, %v3322
    %v3324 = vand.u32 %v3323, 4294901760
    %v3325 = vsub.f32 %v3323, %v3324
    %v3326 = vand.u32 %v3325, 4294901760
    %3327 = vmatpush1.msra.mxu0 %v3326
    %3328 = vmatprep.subr.mxu0 0.0
    %3329 = vmatpush1.msra.mxu0 0.0
    %3330 = vmatprep.subr.mxu0 0.0
    %3331 = vmatpush1.msra.mxu0 0.0
    %3332 = vmatprep.subr.mxu0 0.0
    %3333 = vmatpush1.msra.mxu0 0.0
    %3334 = vmatprep.subr.mxu0 0.0
    %3335 = vmatpush1.msra.mxu0 0.0
    %3336 = vmatprep.subr.mxu0 0.0
    %3337 = vmatpush1.msra.mxu0 0.0
    %3338 = vmatprep.subr.mxu0 0.0
    %3339 = vmatpush1.msra.mxu0 0.0
    %3340 = vmatprep.subr.mxu0 0.0
    %3341 = vmatpush1.msra.mxu0 0.0
    %3342 = vmatprep.subr.mxu0 0.0
    %3343 = vmatpush1.msra.mxu0 0.0
    %3344 = vmatprep.subr.mxu0 0.0
    %3345 = vmatpush1.msra.mxu0 0.0
    %3346 = vmatprep.subr.mxu0 0.0
    %3347 = vmatpush1.msra.mxu0 0.0
    %3348 = vmatprep.subr.mxu0 0.0
    %3349 = vmatpush1.msra.mxu0 0.0
    %3350 = vmatprep.subr.mxu0 0.0
    %3351 = vmatpush1.msra.mxu0 0.0
    %3352 = vmatprep.subr.mxu0 0.0
    %3353 = vmatpush1.msra.mxu0 0.0
    %3354 = vmatprep.subr.mxu0 0.0
    %3355 = vmatpush1.msra.mxu0 0.0
    %3356 = vmatprep.subr.mxu0 0.0
    %3357 = vmatpush1.msra.mxu0 0.0
    %3358 = vmatprep.subr.mxu0 0.0
    %3359 = vmatpush1.msra.mxu0 0.0
    %3360 = vmatprep.subr.mxu0 0.0
    %3361 = vmatpush1.msra.mxu0 0.0
    %3362 = vmatprep.subr.mxu0 0.0
    %3363 = vmatpush1.msra.mxu0 0.0
    %3364 = vmatprep.subr.mxu0 0.0
    %3365 = vmatpush1.msra.mxu0 0.0
    %3366 = vmatprep.subr.mxu0 0.0
    %3367 = vmatpush1.msra.mxu0 0.0
    %3368 = vmatprep.subr.mxu0 0.0
    %3369 = vmatpush1.msra.mxu0 0.0
    %3370 = vmatprep.subr.mxu0 0.0
    %3371 = vmatpush1.msra.mxu0 0.0
    %3372 = vmatprep.subr.mxu0 0.0
    %3373 = vmatpush1.msra.mxu0 0.0
    %3374 = vmatprep.subr.mxu0 0.0
    %3375 = vmatpush1.msra.mxu0 0.0
    %3376 = vmatprep.subr.mxu0 0.0
    %3377 = vmatpush1.msra.mxu0 0.0
    %3378 = vmatprep.subr.mxu0 0.0
    %3379 = vmatpush1.msra.mxu0 0.0
    %3380 = vmatprep.subr.mxu0 0.0
    %3381 = vmatpush1.msra.mxu0 0.0
    %3382 = vmatprep.subr.mxu0 0.0
    %3383 = vmatpush1.msra.mxu0 0.0
    %3384 = vmatprep.mubr.f32.mxu0 0.0
    %v3385 = vand.u32 %v291, 4294901760
    %3386 = vmatmul.mubr.f32.gmra.mrb[0].mxu0 %v3385
    %v3387 = vpop.f32.mrb[0].mxu0
    %v3388 = vadd.f32 %v3297, %v3387
    %v3389 = vpop.f32.mrb[0].mxu0
    %3390 = vdwg.mxu0
    %3391 = vmatprep.subr.mxu0 0.0
    %v3392 = vand.u32 %v280, 4294901760
    %v3393 = vsub.f32 %v280, %v3392
    %3394 = vmatpush1.msra.mxu0 %v3393
    %3395 = vmatprep.subr.mxu0 0.0
    %v3396 = vand.u32 %v281, 4294901760
    %v3397 = vsub.f32 %v281, %v3396
    %3398 = vmatpush1.msra.mxu0 %v3397
    %3399 = vmatprep.subr.mxu0 0.0
    %v3400 = vand.u32 %v282, 4294901760
    %v3401 = vsub.f32 %v282, %v3400
    %3402 = vmatpush1.msra.mxu0 %v3401
    %3403 = vmatprep.subr.mxu0 0.0
    %v3404 = vand.u32 %v283, 4294901760
    %v3405 = vsub.f32 %v283, %v3404
    %3406 = vmatpush1.msra.mxu0 %v3405
    %3407 = vmatprep.subr.mxu0 0.0
    %3408 = vmatpush1.msra.mxu0 0.0
    %3409 = vmatprep.subr.mxu0 0.0
    %3410 = vmatpush1.msra.mxu0 0.0
    %3411 = vmatprep.subr.mxu0 0.0
    %3412 = vmatpush1.msra.mxu0 0.0
    %3413 = vmatprep.subr.mxu0 0.0
    %3414 = vmatpush1.msra.mxu0 0.0
    %3415 = vmatprep.subr.mxu0 0.0
    %3416 = vmatpush1.msra.mxu0 0.0
    %3417 = vmatprep.subr.mxu0 0.0
    %3418 = vmatpush1.msra.mxu0 0.0
    %3419 = vmatprep.subr.mxu0 0.0
    %3420 = vmatpush1.msra.mxu0 0.0
    %3421 = vmatprep.subr.mxu0 0.0
    %3422 = vmatpush1.msra.mxu0 0.0
    %3423 = vmatprep.subr.mxu0 0.0
    %3424 = vmatpush1.msra.mxu0 0.0
    %3425 = vmatprep.subr.mxu0 0.0
    %3426 = vmatpush1.msra.mxu0 0.0
    %3427 = vmatprep.subr.mxu0 0.0
    %3428 = vmatpush1.msra.mxu0 0.0
    %3429 = vmatprep.subr.mxu0 0.0
    %3430 = vmatpush1.msra.mxu0 0.0
    %3431 = vmatprep.subr.mxu0 0.0
    %3432 = vmatpush1.msra.mxu0 0.0
    %3433 = vmatprep.subr.mxu0 0.0
    %3434 = vmatpush1.msra.mxu0 0.0
    %3435 = vmatprep.subr.mxu0 0.0
    %3436 = vmatpush1.msra.mxu0 0.0
    %3437 = vmatprep.subr.mxu0 0.0
    %3438 = vmatpush1.msra.mxu0 0.0
    %3439 = vmatprep.subr.mxu0 0.0
    %3440 = vmatpush1.msra.mxu0 0.0
    %3441 = vmatprep.subr.mxu0 0.0
    %3442 = vmatpush1.msra.mxu0 0.0
    %3443 = vmatprep.subr.mxu0 0.0
    %3444 = vmatpush1.msra.mxu0 0.0
    %3445 = vmatprep.subr.mxu0 0.0
    %3446 = vmatpush1.msra.mxu0 0.0
    %3447 = vmatprep.subr.mxu0 0.0
    %3448 = vmatpush1.msra.mxu0 0.0
    %3449 = vmatprep.subr.mxu0 0.0
    %3450 = vmatpush1.msra.mxu0 0.0
    %3451 = vmatprep.subr.mxu0 0.0
    %3452 = vmatpush1.msra.mxu0 0.0
    %3453 = vmatprep.subr.mxu0 0.0
    %3454 = vmatpush1.msra.mxu0 0.0
    %3455 = vmatprep.subr.mxu0 0.0
    %3456 = vmatpush1.msra.mxu0 0.0
    %3457 = vmatprep.subr.mxu0 0.0
    %3458 = vmatpush1.msra.mxu0 0.0
    %3459 = vmatprep.subr.mxu0 0.0
    %3460 = vmatpush1.msra.mxu0 0.0
    %3461 = vmatprep.subr.mxu0 0.0
    %3462 = vmatpush1.msra.mxu0 0.0
    %3463 = vmatprep.mubr.f32.mxu0 0.0
    %v3464 = vand.u32 %v291, 4294901760
    %v3465 = vsub.f32 %v291, %v3464
    %3466 = vmatmul.mubr.f32.gmra.mrb[0].mxu0 %v3465
    %v3467 = vpop.f32.mrb[0].mxu0
    %v3468 = vadd.f32 %v3388, %v3467
    %v3469 = vpop.f32.mrb[0].mxu0
    %3470 = vdwg.mxu0
    %3471 = vmatprep.subr.mxu0 0.0
    %v3472 = vand.u32 %v280, 4294901760
    %3473 = vmatpush1.msra.mxu0 %v3472
    %3474 = vmatprep.subr.mxu0 0.0
    %v3475 = vand.u32 %v281, 4294901760
    %3476 = vmatpush1.msra.mxu0 %v3475
    %3477 = vmatprep.subr.mxu0 0.0
    %v3478 = vand.u32 %v282, 4294901760
    %3479 = vmatpush1.msra.mxu0 %v3478
    %3480 = vmatprep.subr.mxu0 0.0
    %v3481 = vand.u32 %v283, 4294901760
    %3482 = vmatpush1.msra.mxu0 %v3481
    %3483 = vmatprep.subr.mxu0 0.0
    %3484 = vmatpush1.msra.mxu0 0.0
    %3485 = vmatprep.subr.mxu0 0.0
    %3486 = vmatpush1.msra.mxu0 0.0
    %3487 = vmatprep.subr.mxu0 0.0
    %3488 = vmatpush1.msra.mxu0 0.0
    %3489 = vmatprep.subr.mxu0 0.0
    %3490 = vmatpush1.msra.mxu0 0.0
    %3491 = vmatprep.subr.mxu0 0.0
    %3492 = vmatpush1.msra.mxu0 0.0
    %3493 = vmatprep.subr.mxu0 0.0
    %3494 = vmatpush1.msra.mxu0 0.0
    %3495 = vmatprep.subr.mxu0 0.0
    %3496 = vmatpush1.msra.mxu0 0.0
    %3497 = vmatprep.subr.mxu0 0.0
    %3498 = vmatpush1.msra.mxu0 0.0
    %3499 = vmatprep.subr.mxu0 0.0
    %3500 = vmatpush1.msra.mxu0 0.0
    %3501 = vmatprep.subr.mxu0 0.0
    %3502 = vmatpush1.msra.mxu0 0.0
    %3503 = vmatprep.subr.mxu0 0.0
    %3504 = vmatpush1.msra.mxu0 0.0
    %3505 = vmatprep.subr.mxu0 0.0
    %3506 = vmatpush1.msra.mxu0 0.0
    %3507 = vmatprep.subr.mxu0 0.0
    %3508 = vmatpush1.msra.mxu0 0.0
    %3509 = vmatprep.subr.mxu0 0.0
    %3510 = vmatpush1.msra.mxu0 0.0
    %3511 = vmatprep.subr.mxu0 0.0
    %3512 = vmatpush1.msra.mxu0 0.0
    %3513 = vmatprep.subr.mxu0 0.0
    %3514 = vmatpush1.msra.mxu0 0.0
    %3515 = vmatprep.subr.mxu0 0.0
    %3516 = vmatpush1.msra.mxu0 0.0
    %3517 = vmatprep.subr.mxu0 0.0
    %3518 = vmatpush1.msra.mxu0 0.0
    %3519 = vmatprep.subr.mxu0 0.0
    %3520 = vmatpush1.msra.mxu0 0.0
    %3521 = vmatprep.subr.mxu0 0.0
    %3522 = vmatpush1.msra.mxu0 0.0
    %3523 = vmatprep.subr.mxu0 0.0
    %3524 = vmatpush1.msra.mxu0 0.0
    %3525 = vmatprep.subr.mxu0 0.0
    %3526 = vmatpush1.msra.mxu0 0.0
    %3527 = vmatprep.subr.mxu0 0.0
    %3528 = vmatpush1.msra.mxu0 0.0
    %3529 = vmatprep.subr.mxu0 0.0
    %3530 = vmatpush1.msra.mxu0 0.0
    %3531 = vmatprep.subr.mxu0 0.0
    %3532 = vmatpush1.msra.mxu0 0.0
    %3533 = vmatprep.subr.mxu0 0.0
    %3534 = vmatpush1.msra.mxu0 0.0
    %3535 = vmatprep.subr.mxu0 0.0
    %3536 = vmatpush1.msra.mxu0 0.0
    %3537 = vmatprep.subr.mxu0 0.0
    %3538 = vmatpush1.msra.mxu0 0.0
    %3539 = vmatprep.mubr.f32.mxu0 0.0
    %v3540 = vand.u32 %v291, 4294901760
    %v3541 = vsub.f32 %v291, %v3540
    %v3542 = vand.u32 %v3541, 4294901760
    %3543 = vmatmul.mubr.f32.gmra.mrb[0].mxu0 %v3542
    %v3544 = vpop.f32.mrb[0].mxu0
    %v3545 = vadd.f32 %v3468, %v3544
    %v3546 = vpop.f32.mrb[0].mxu0
    %3547 = vdwg.mxu0
    %3548 = vmatprep.subr.mxu0 0.0
    %v3549 = vand.u32 %v280, 4294901760
    %v3550 = vsub.f32 %v280, %v3549
    %v3551 = vand.u32 %v3550, 4294901760
    %3552 = vmatpush1.msra.mxu0 %v3551
    %3553 = vmatprep.subr.mxu0 0.0
    %v3554 = vand.u32 %v281, 4294901760
    %v3555 = vsub.f32 %v281, %v3554
    %v3556 = vand.u32 %v3555, 4294901760
    %3557 = vmatpush1.msra.mxu0 %v3556
    %3558 = vmatprep.subr.mxu0 0.0
    %v3559 = vand.u32 %v282, 4294901760
    %v3560 = vsub.f32 %v282, %v3559
    %v3561 = vand.u32 %v3560, 4294901760
    %3562 = vmatpush1.msra.mxu0 %v3561
    %3563 = vmatprep.subr.mxu0 0.0
    %v3564 = vand.u32 %v283, 4294901760
    %v3565 = vsub.f32 %v283, %v3564
    %v3566 = vand.u32 %v3565, 4294901760
    %3567 = vmatpush1.msra.mxu0 %v3566
    %3568 = vmatprep.subr.mxu0 0.0
    %3569 = vmatpush1.msra.mxu0 0.0
    %3570 = vmatprep.subr.mxu0 0.0
    %3571 = vmatpush1.msra.mxu0 0.0
    %3572 = vmatprep.subr.mxu0 0.0
    %3573 = vmatpush1.msra.mxu0 0.0
    %3574 = vmatprep.subr.mxu0 0.0
    %3575 = vmatpush1.msra.mxu0 0.0
    %3576 = vmatprep.subr.mxu0 0.0
    %3577 = vmatpush1.msra.mxu0 0.0
    %3578 = vmatprep.subr.mxu0 0.0
    %3579 = vmatpush1.msra.mxu0 0.0
    %3580 = vmatprep.subr.mxu0 0.0
    %3581 = vmatpush1.msra.mxu0 0.0
    %3582 = vmatprep.subr.mxu0 0.0
    %3583 = vmatpush1.msra.mxu0 0.0
    %3584 = vmatprep.subr.mxu0 0.0
    %3585 = vmatpush1.msra.mxu0 0.0
    %3586 = vmatprep.subr.mxu0 0.0
    %3587 = vmatpush1.msra.mxu0 0.0
    %3588 = vmatprep.subr.mxu0 0.0
    %3589 = vmatpush1.msra.mxu0 0.0
    %3590 = vmatprep.subr.mxu0 0.0
    %3591 = vmatpush1.msra.mxu0 0.0
    %3592 = vmatprep.subr.mxu0 0.0
    %3593 = vmatpush1.msra.mxu0 0.0
    %3594 = vmatprep.subr.mxu0 0.0
    %3595 = vmatpush1.msra.mxu0 0.0
    %3596 = vmatprep.subr.mxu0 0.0
    %3597 = vmatpush1.msra.mxu0 0.0
    %3598 = vmatprep.subr.mxu0 0.0
    %3599 = vmatpush1.msra.mxu0 0.0
    %3600 = vmatprep.subr.mxu0 0.0
    %3601 = vmatpush1.msra.mxu0 0.0
    %3602 = vmatprep.subr.mxu0 0.0
    %3603 = vmatpush1.msra.mxu0 0.0
    %3604 = vmatprep.subr.mxu0 0.0
    %3605 = vmatpush1.msra.mxu0 0.0
    %3606 = vmatprep.subr.mxu0 0.0
    %3607 = vmatpush1.msra.mxu0 0.0
    %3608 = vmatprep.subr.mxu0 0.0
    %3609 = vmatpush1.msra.mxu0 0.0
    %3610 = vmatprep.subr.mxu0 0.0
    %3611 = vmatpush1.msra.mxu0 0.0
    %3612 = vmatprep.subr.mxu0 0.0
    %3613 = vmatpush1.msra.mxu0 0.0
    %3614 = vmatprep.subr.mxu0 0.0
    %3615 = vmatpush1.msra.mxu0 0.0
    %3616 = vmatprep.subr.mxu0 0.0
    %3617 = vmatpush1.msra.mxu0 0.0
    %3618 = vmatprep.subr.mxu0 0.0
    %3619 = vmatpush1.msra.mxu0 0.0
    %3620 = vmatprep.subr.mxu0 0.0
    %3621 = vmatpush1.msra.mxu0 0.0
    %3622 = vmatprep.subr.mxu0 0.0
    %3623 = vmatpush1.msra.mxu0 0.0
    %3624 = vmatprep.mubr.f32.mxu0 0.0
    %v3625 = vand.u32 %v291, 4294901760
    %3626 = vmatmul.mubr.f32.gmra.mrb[0].mxu0 %v3625
    %v3627 = vpop.f32.mrb[0].mxu0
    %v3628 = vadd.f32 %v3545, %v3627
    %v3629 = vpop.f32.mrb[0].mxu0
    %3630 = vdwg.mxu0
    %3631 = vmatprep.subr.mxu0 0.0
    %v3632 = vand.u32 %v280, 4294901760
    %3633 = vmatpush1.msra.mxu0 %v3632
    %3634 = vmatprep.subr.mxu0 0.0
    %v3635 = vand.u32 %v281, 4294901760
    %3636 = vmatpush1.msra.mxu0 %v3635
    %3637 = vmatprep.subr.mxu0 0.0
    %v3638 = vand.u32 %v282, 4294901760
    %3639 = vmatpush1.msra.mxu0 %v3638
    %3640 = vmatprep.subr.mxu0 0.0
    %v3641 = vand.u32 %v283, 4294901760
    %3642 = vmatpush1.msra.mxu0 %v3641
    %3643 = vmatprep.subr.mxu0 0.0
    %3644 = vmatpush1.msra.mxu0 0.0
    %3645 = vmatprep.subr.mxu0 0.0
    %3646 = vmatpush1.msra.mxu0 0.0
    %3647 = vmatprep.subr.mxu0 0.0
    %3648 = vmatpush1.msra.mxu0 0.0
    %3649 = vmatprep.subr.mxu0 0.0
    %3650 = vmatpush1.msra.mxu0 0.0
    %3651 = vmatprep.subr.mxu0 0.0
    %3652 = vmatpush1.msra.mxu0 0.0
    %3653 = vmatprep.subr.mxu0 0.0
    %3654 = vmatpush1.msra.mxu0 0.0
    %3655 = vmatprep.subr.mxu0 0.0
    %3656 = vmatpush1.msra.mxu0 0.0
    %3657 = vmatprep.subr.mxu0 0.0
    %3658 = vmatpush1.msra.mxu0 0.0
    %3659 = vmatprep.subr.mxu0 0.0
    %3660 = vmatpush1.msra.mxu0 0.0
    %3661 = vmatprep.subr.mxu0 0.0
    %3662 = vmatpush1.msra.mxu0 0.0
    %3663 = vmatprep.subr.mxu0 0.0
    %3664 = vmatpush1.msra.mxu0 0.0
    %3665 = vmatprep.subr.mxu0 0.0
    %3666 = vmatpush1.msra.mxu0 0.0
    %3667 = vmatprep.subr.mxu0 0.0
    %3668 = vmatpush1.msra.mxu0 0.0
    %3669 = vmatprep.subr.mxu0 0.0
    %3670 = vmatpush1.msra.mxu0 0.0
    %3671 = vmatprep.subr.mxu0 0.0
    %3672 = vmatpush1.msra.mxu0 0.0
    %3673 = vmatprep.subr.mxu0 0.0
    %3674 = vmatpush1.msra.mxu0 0.0
    %3675 = vmatprep.subr.mxu0 0.0
    %3676 = vmatpush1.msra.mxu0 0.0
    %3677 = vmatprep.subr.mxu0 0.0
    %3678 = vmatpush1.msra.mxu0 0.0
    %3679 = vmatprep.subr.mxu0 0.0
    %3680 = vmatpush1.msra.mxu0 0.0
    %3681 = vmatprep.subr.mxu0 0.0
    %3682 = vmatpush1.msra.mxu0 0.0
    %3683 = vmatprep.subr.mxu0 0.0
    %3684 = vmatpush1.msra.mxu0 0.0
    %3685 = vmatprep.subr.mxu0 0.0
    %3686 = vmatpush1.msra.mxu0 0.0
    %3687 = vmatprep.subr.mxu0 0.0
    %3688 = vmatpush1.msra.mxu0 0.0
    %3689 = vmatprep.subr.mxu0 0.0
    %3690 = vmatpush1.msra.mxu0 0.0
    %3691 = vmatprep.subr.mxu0 0.0
    %3692 = vmatpush1.msra.mxu0 0.0
    %3693 = vmatprep.subr.mxu0 0.0
    %3694 = vmatpush1.msra.mxu0 0.0
    %3695 = vmatprep.subr.mxu0 0.0
    %3696 = vmatpush1.msra.mxu0 0.0
    %3697 = vmatprep.subr.mxu0 0.0
    %3698 = vmatpush1.msra.mxu0 0.0
    %3699 = vmatprep.mubr.f32.mxu0 0.0
    %v3700 = vand.u32 %v291, 4294901760
    %3701 = vmatmul.mubr.f32.gmra.mrb[0].mxu0 %v3700
    %v3702 = vpop.f32.mrb[0].mxu0
    %v3703 = vadd.f32 %v3628, %v3702
    %v3704 = vpop.f32.mrb[0].mxu0
    %3705 = vdwg.mxu0
    %3706 = vmatprep.subr.mxu0 0.0
    %v3707 = vand.u32 %v284, 4294901760
    %3708 = vmatpush1.msra.mxu0 %v3707
    %3709 = vmatprep.subr.mxu0 0.0
    %v3710 = vand.u32 %v285, 4294901760
    %3711 = vmatpush1.msra.mxu0 %v3710
    %3712 = vmatprep.subr.mxu0 0.0
    %v3713 = vand.u32 %v286, 4294901760
    %3714 = vmatpush1.msra.mxu0 %v3713
    %3715 = vmatprep.subr.mxu0 0.0
    %v3716 = vand.u32 %v287, 4294901760
    %3717 = vmatpush1.msra.mxu0 %v3716
    %3718 = vmatprep.subr.mxu0 0.0
    %3719 = vmatpush1.msra.mxu0 0.0
    %3720 = vmatprep.subr.mxu0 0.0
    %3721 = vmatpush1.msra.mxu0 0.0
    %3722 = vmatprep.subr.mxu0 0.0
    %3723 = vmatpush1.msra.mxu0 0.0
    %3724 = vmatprep.subr.mxu0 0.0
    %3725 = vmatpush1.msra.mxu0 0.0
    %3726 = vmatprep.subr.mxu0 0.0
    %3727 = vmatpush1.msra.mxu0 0.0
    %3728 = vmatprep.subr.mxu0 0.0
    %3729 = vmatpush1.msra.mxu0 0.0
    %3730 = vmatprep.subr.mxu0 0.0
    %3731 = vmatpush1.msra.mxu0 0.0
    %3732 = vmatprep.subr.mxu0 0.0
    %3733 = vmatpush1.msra.mxu0 0.0
    %3734 = vmatprep.subr.mxu0 0.0
    %3735 = vmatpush1.msra.mxu0 0.0
    %3736 = vmatprep.subr.mxu0 0.0
    %3737 = vmatpush1.msra.mxu0 0.0
    %3738 = vmatprep.subr.mxu0 0.0
    %3739 = vmatpush1.msra.mxu0 0.0
    %3740 = vmatprep.subr.mxu0 0.0
    %3741 = vmatpush1.msra.mxu0 0.0
    %3742 = vmatprep.subr.mxu0 0.0
    %3743 = vmatpush1.msra.mxu0 0.0
    %3744 = vmatprep.subr.mxu0 0.0
    %3745 = vmatpush1.msra.mxu0 0.0
    %3746 = vmatprep.subr.mxu0 0.0
    %3747 = vmatpush1.msra.mxu0 0.0
    %3748 = vmatprep.subr.mxu0 0.0
    %3749 = vmatpush1.msra.mxu0 0.0
    %3750 = vmatprep.subr.mxu0 0.0
    %3751 = vmatpush1.msra.mxu0 0.0
    %3752 = vmatprep.subr.mxu0 0.0
    %3753 = vmatpush1.msra.mxu0 0.0
    %3754 = vmatprep.subr.mxu0 0.0
    %3755 = vmatpush1.msra.mxu0 0.0
    %3756 = vmatprep.subr.mxu0 0.0
    %3757 = vmatpush1.msra.mxu0 0.0
    %3758 = vmatprep.subr.mxu0 0.0
    %3759 = vmatpush1.msra.mxu0 0.0
    %3760 = vmatprep.subr.mxu0 0.0
    %3761 = vmatpush1.msra.mxu0 0.0
    %3762 = vmatprep.subr.mxu0 0.0
    %3763 = vmatpush1.msra.mxu0 0.0
    %3764 = vmatprep.subr.mxu0 0.0
    %3765 = vmatpush1.msra.mxu0 0.0
    %3766 = vmatprep.subr.mxu0 0.0
    %3767 = vmatpush1.msra.mxu0 0.0
    %3768 = vmatprep.subr.mxu0 0.0
    %3769 = vmatpush1.msra.mxu0 0.0
    %3770 = vmatprep.subr.mxu0 0.0
    %3771 = vmatpush1.msra.mxu0 0.0
    %3772 = vmatprep.subr.mxu0 0.0
    %3773 = vmatpush1.msra.mxu0 0.0
    %3774 = vmatprep.mubr.f32.mxu0 0.0
    %v3775 = vand.u32 %v291, 4294901760
    %v3776 = vsub.f32 %v291, %v3775
    %v3777 = vand.u32 %v3776, 4294901760
    %v3778 = vsub.f32 %v3776, %v3777
    %v3779 = vand.u32 %v3778, 4294901760
    %3780 = vmatmul.mubr.f32.gmra.mrb[0].mxu0 %v3779
    %v3781 = vpop.f32.mrb[0].mxu0
    %v3782 = vadd.f32 0.0, %v3781
    %v3783 = vpop.f32.mrb[0].mxu0
    %3784 = vdwg.mxu0
    %3785 = vmatprep.subr.mxu0 0.0
    %v3786 = vand.u32 %v284, 4294901760
    %v3787 = vsub.f32 %v284, %v3786
    %v3788 = vand.u32 %v3787, 4294901760
    %v3789 = vsub.f32 %v3787, %v3788
    %v3790 = vand.u32 %v3789, 4294901760
    %3791 = vmatpush1.msra.mxu0 %v3790
    %3792 = vmatprep.subr.mxu0 0.0
    %v3793 = vand.u32 %v285, 4294901760
    %v3794 = vsub.f32 %v285, %v3793
    %v3795 = vand.u32 %v3794, 4294901760
    %v3796 = vsub.f32 %v3794, %v3795
    %v3797 = vand.u32 %v3796, 4294901760
    %3798 = vmatpush1.msra.mxu0 %v3797
    %3799 = vmatprep.subr.mxu0 0.0
    %v3800 = vand.u32 %v286, 4294901760
    %v3801 = vsub.f32 %v286, %v3800
    %v3802 = vand.u32 %v3801, 4294901760
    %v3803 = vsub.f32 %v3801, %v3802
    %v3804 = vand.u32 %v3803, 4294901760
    %3805 = vmatpush1.msra.mxu0 %v3804
    %3806 = vmatprep.subr.mxu0 0.0
    %v3807 = vand.u32 %v287, 4294901760
    %v3808 = vsub.f32 %v287, %v3807
    %v3809 = vand.u32 %v3808, 4294901760
    %v3810 = vsub.f32 %v3808, %v3809
    %v3811 = vand.u32 %v3810, 4294901760
    %3812 = vmatpush1.msra.mxu0 %v3811
    %3813 = vmatprep.subr.mxu0 0.0
    %3814 = vmatpush1.msra.mxu0 0.0
    %3815 = vmatprep.subr.mxu0 0.0
    %3816 = vmatpush1.msra.mxu0 0.0
    %3817 = vmatprep.subr.mxu0 0.0
    %3818 = vmatpush1.msra.mxu0 0.0
    %3819 = vmatprep.subr.mxu0 0.0
    %3820 = vmatpush1.msra.mxu0 0.0
    %3821 = vmatprep.subr.mxu0 0.0
    %3822 = vmatpush1.msra.mxu0 0.0
    %3823 = vmatprep.subr.mxu0 0.0
    %3824 = vmatpush1.msra.mxu0 0.0
    %3825 = vmatprep.subr.mxu0 0.0
    %3826 = vmatpush1.msra.mxu0 0.0
    %3827 = vmatprep.subr.mxu0 0.0
    %3828 = vmatpush1.msra.mxu0 0.0
    %3829 = vmatprep.subr.mxu0 0.0
    %3830 = vmatpush1.msra.mxu0 0.0
    %3831 = vmatprep.subr.mxu0 0.0
    %3832 = vmatpush1.msra.mxu0 0.0
    %3833 = vmatprep.subr.mxu0 0.0
    %3834 = vmatpush1.msra.mxu0 0.0
    %3835 = vmatprep.subr.mxu0 0.0
    %3836 = vmatpush1.msra.mxu0 0.0
    %3837 = vmatprep.subr.mxu0 0.0
    %3838 = vmatpush1.msra.mxu0 0.0
    %3839 = vmatprep.subr.mxu0 0.0
    %3840 = vmatpush1.msra.mxu0 0.0
    %3841 = vmatprep.subr.mxu0 0.0
    %3842 = vmatpush1.msra.mxu0 0.0
    %3843 = vmatprep.subr.mxu0 0.0
    %3844 = vmatpush1.msra.mxu0 0.0
    %3845 = vmatprep.subr.mxu0 0.0
    %3846 = vmatpush1.msra.mxu0 0.0
    %3847 = vmatprep.subr.mxu0 0.0
    %3848 = vmatpush1.msra.mxu0 0.0
    %3849 = vmatprep.subr.mxu0 0.0
    %3850 = vmatpush1.msra.mxu0 0.0
    %3851 = vmatprep.subr.mxu0 0.0
    %3852 = vmatpush1.msra.mxu0 0.0
    %3853 = vmatprep.subr.mxu0 0.0
    %3854 = vmatpush1.msra.mxu0 0.0
    %3855 = vmatprep.subr.mxu0 0.0
    %3856 = vmatpush1.msra.mxu0 0.0
    %3857 = vmatprep.subr.mxu0 0.0
    %3858 = vmatpush1.msra.mxu0 0.0
    %3859 = vmatprep.subr.mxu0 0.0
    %3860 = vmatpush1.msra.mxu0 0.0
    %3861 = vmatprep.subr.mxu0 0.0
    %3862 = vmatpush1.msra.mxu0 0.0
    %3863 = vmatprep.subr.mxu0 0.0
    %3864 = vmatpush1.msra.mxu0 0.0
    %3865 = vmatprep.subr.mxu0 0.0
    %3866 = vmatpush1.msra.mxu0 0.0
    %3867 = vmatprep.subr.mxu0 0.0
    %3868 = vmatpush1.msra.mxu0 0.0
    %3869 = vmatprep.mubr.f32.mxu0 0.0
    %v3870 = vand.u32 %v291, 4294901760
    %3871 = vmatmul.mubr.f32.gmra.mrb[0].mxu0 %v3870
    %v3872 = vpop.f32.mrb[0].mxu0
    %v3873 = vadd.f32 %v3782, %v3872
    %v3874 = vpop.f32.mrb[0].mxu0
    %3875 = vdwg.mxu0
    %3876 = vmatprep.subr.mxu0 0.0
    %v3877 = vand.u32 %v284, 4294901760
    %v3878 = vsub.f32 %v284, %v3877
    %3879 = vmatpush1.msra.mxu0 %v3878
    %3880 = vmatprep.subr.mxu0 0.0
    %v3881 = vand.u32 %v285, 4294901760
    %v3882 = vsub.f32 %v285, %v3881
    %3883 = vmatpush1.msra.mxu0 %v3882
    %3884 = vmatprep.subr.mxu0 0.0
    %v3885 = vand.u32 %v286, 4294901760
    %v3886 = vsub.f32 %v286, %v3885
    %3887 = vmatpush1.msra.mxu0 %v3886
    %3888 = vmatprep.subr.mxu0 0.0
    %v3889 = vand.u32 %v287, 4294901760
    %v3890 = vsub.f32 %v287, %v3889
    %3891 = vmatpush1.msra.mxu0 %v3890
    %3892 = vmatprep.subr.mxu0 0.0
    %3893 = vmatpush1.msra.mxu0 0.0
    %3894 = vmatprep.subr.mxu0 0.0
    %3895 = vmatpush1.msra.mxu0 0.0
    %3896 = vmatprep.subr.mxu0 0.0
    %3897 = vmatpush1.msra.mxu0 0.0
    %3898 = vmatprep.subr.mxu0 0.0
    %3899 = vmatpush1.msra.mxu0 0.0
    %3900 = vmatprep.subr.mxu0 0.0
    %3901 = vmatpush1.msra.mxu0 0.0
    %3902 = vmatprep.subr.mxu0 0.0
    %3903 = vmatpush1.msra.mxu0 0.0
    %3904 = vmatprep.subr.mxu0 0.0
    %3905 = vmatpush1.msra.mxu0 0.0
    %3906 = vmatprep.subr.mxu0 0.0
    %3907 = vmatpush1.msra.mxu0 0.0
    %3908 = vmatprep.subr.mxu0 0.0
    %3909 = vmatpush1.msra.mxu0 0.0
    %3910 = vmatprep.subr.mxu0 0.0
    %3911 = vmatpush1.msra.mxu0 0.0
    %3912 = vmatprep.subr.mxu0 0.0
    %3913 = vmatpush1.msra.mxu0 0.0
    %3914 = vmatprep.subr.mxu0 0.0
    %3915 = vmatpush1.msra.mxu0 0.0
    %3916 = vmatprep.subr.mxu0 0.0
    %3917 = vmatpush1.msra.mxu0 0.0
    %3918 = vmatprep.subr.mxu0 0.0
    %3919 = vmatpush1.msra.mxu0 0.0
    %3920 = vmatprep.subr.mxu0 0.0
    %3921 = vmatpush1.msra.mxu0 0.0
    %3922 = vmatprep.subr.mxu0 0.0
    %3923 = vmatpush1.msra.mxu0 0.0
    %3924 = vmatprep.subr.mxu0 0.0
    %3925 = vmatpush1.msra.mxu0 0.0
    %3926 = vmatprep.subr.mxu0 0.0
    %3927 = vmatpush1.msra.mxu0 0.0
    %3928 = vmatprep.subr.mxu0 0.0
    %3929 = vmatpush1.msra.mxu0 0.0
    %3930 = vmatprep.subr.mxu0 0.0
    %3931 = vmatpush1.msra.mxu0 0.0
    %3932 = vmatprep.subr.mxu0 0.0
    %3933 = vmatpush1.msra.mxu0 0.0
    %3934 = vmatprep.subr.mxu0 0.0
    %3935 = vmatpush1.msra.mxu0 0.0
    %3936 = vmatprep.subr.mxu0 0.0
    %3937 = vmatpush1.msra.mxu0 0.0
    %3938 = vmatprep.subr.mxu0 0.0
    %3939 = vmatpush1.msra.mxu0 0.0
    %3940 = vmatprep.subr.mxu0 0.0
    %3941 = vmatpush1.msra.mxu0 0.0
    %3942 = vmatprep.subr.mxu0 0.0
    %3943 = vmatpush1.msra.mxu0 0.0
    %3944 = vmatprep.subr.mxu0 0.0
    %3945 = vmatpush1.msra.mxu0 0.0
    %3946 = vmatprep.subr.mxu0 0.0
    %3947 = vmatpush1.msra.mxu0 0.0
    %3948 = vmatprep.mubr.f32.mxu0 0.0
    %v3949 = vand.u32 %v291, 4294901760
    %v3950 = vsub.f32 %v291, %v3949
    %3951 = vmatmul.mubr.f32.gmra.mrb[0].mxu0 %v3950
    %v3952 = vpop.f32.mrb[0].mxu0
    %v3953 = vadd.f32 %v3873, %v3952
    %v3954 = vpop.f32.mrb[0].mxu0
    %3955 = vdwg.mxu0
    %3956 = vmatprep.subr.mxu0 0.0
    %v3957 = vand.u32 %v284, 4294901760
    %3958 = vmatpush1.msra.mxu0 %v3957
    %3959 = vmatprep.subr.mxu0 0.0
    %v3960 = vand.u32 %v285, 4294901760
    %3961 = vmatpush1.msra.mxu0 %v3960
    %3962 = vmatprep.subr.mxu0 0.0
    %v3963 = vand.u32 %v286, 4294901760
    %3964 = vmatpush1.msra.mxu0 %v3963
    %3965 = vmatprep.subr.mxu0 0.0
    %v3966 = vand.u32 %v287, 4294901760
    %3967 = vmatpush1.msra.mxu0 %v3966
    %3968 = vmatprep.subr.mxu0 0.0
    %3969 = vmatpush1.msra.mxu0 0.0
    %3970 = vmatprep.subr.mxu0 0.0
    %3971 = vmatpush1.msra.mxu0 0.0
    %3972 = vmatprep.subr.mxu0 0.0
    %3973 = vmatpush1.msra.mxu0 0.0
    %3974 = vmatprep.subr.mxu0 0.0
    %3975 = vmatpush1.msra.mxu0 0.0
    %3976 = vmatprep.subr.mxu0 0.0
    %3977 = vmatpush1.msra.mxu0 0.0
    %3978 = vmatprep.subr.mxu0 0.0
    %3979 = vmatpush1.msra.mxu0 0.0
    %3980 = vmatprep.subr.mxu0 0.0
    %3981 = vmatpush1.msra.mxu0 0.0
    %3982 = vmatprep.subr.mxu0 0.0
    %3983 = vmatpush1.msra.mxu0 0.0
    %3984 = vmatprep.subr.mxu0 0.0
    %3985 = vmatpush1.msra.mxu0 0.0
    %3986 = vmatprep.subr.mxu0 0.0
    %3987 = vmatpush1.msra.mxu0 0.0
    %3988 = vmatprep.subr.mxu0 0.0
    %3989 = vmatpush1.msra.mxu0 0.0
    %3990 = vmatprep.subr.mxu0 0.0
    %3991 = vmatpush1.msra.mxu0 0.0
    %3992 = vmatprep.subr.mxu0 0.0
    %3993 = vmatpush1.msra.mxu0 0.0
    %3994 = vmatprep.subr.mxu0 0.0
    %3995 = vmatpush1.msra.mxu0 0.0
    %3996 = vmatprep.subr.mxu0 0.0
    %3997 = vmatpush1.msra.mxu0 0.0
    %3998 = vmatprep.subr.mxu0 0.0
    %3999 = vmatpush1.msra.mxu0 0.0
    %4000 = vmatprep.subr.mxu0 0.0
    %4001 = vmatpush1.msra.mxu0 0.0
    %4002 = vmatprep.subr.mxu0 0.0
    %4003 = vmatpush1.msra.mxu0 0.0
    %4004 = vmatprep.subr.mxu0 0.0
    %4005 = vmatpush1.msra.mxu0 0.0
    %4006 = vmatprep.subr.mxu0 0.0
    %4007 = vmatpush1.msra.mxu0 0.0
    %4008 = vmatprep.subr.mxu0 0.0
    %4009 = vmatpush1.msra.mxu0 0.0
    %4010 = vmatprep.subr.mxu0 0.0
    %4011 = vmatpush1.msra.mxu0 0.0
    %4012 = vmatprep.subr.mxu0 0.0
    %4013 = vmatpush1.msra.mxu0 0.0
    %4014 = vmatprep.subr.mxu0 0.0
    %4015 = vmatpush1.msra.mxu0 0.0
    %4016 = vmatprep.subr.mxu0 0.0
    %4017 = vmatpush1.msra.mxu0 0.0
    %4018 = vmatprep.subr.mxu0 0.0
    %4019 = vmatpush1.msra.mxu0 0.0
    %4020 = vmatprep.subr.mxu0 0.0
    %4021 = vmatpush1.msra.mxu0 0.0
    %4022 = vmatprep.subr.mxu0 0.0
    %4023 = vmatpush1.msra.mxu0 0.0
    %4024 = vmatprep.mubr.f32.mxu0 0.0
    %v4025 = vand.u32 %v291, 4294901760
    %v4026 = vsub.f32 %v291, %v4025
    %v4027 = vand.u32 %v4026, 4294901760
    %4028 = vmatmul.mubr.f32.gmra.mrb[0].mxu0 %v4027
    %v4029 = vpop.f32.mrb[0].mxu0
    %v4030 = vadd.f32 %v3953, %v4029
    %v4031 = vpop.f32.mrb[0].mxu0
    %4032 = vdwg.mxu0
    %4033 = vmatprep.subr.mxu0 0.0
    %v4034 = vand.u32 %v284, 4294901760
    %v4035 = vsub.f32 %v284, %v4034
    %v4036 = vand.u32 %v4035, 4294901760
    %4037 = vmatpush1.msra.mxu0 %v4036
    %4038 = vmatprep.subr.mxu0 0.0
    %v4039 = vand.u32 %v285, 4294901760
    %v4040 = vsub.f32 %v285, %v4039
    %v4041 = vand.u32 %v4040, 4294901760
    %4042 = vmatpush1.msra.mxu0 %v4041
    %4043 = vmatprep.subr.mxu0 0.0
    %v4044 = vand.u32 %v286, 4294901760
    %v4045 = vsub.f32 %v286, %v4044
    %v4046 = vand.u32 %v4045, 4294901760
    %4047 = vmatpush1.msra.mxu0 %v4046
    %4048 = vmatprep.subr.mxu0 0.0
    %v4049 = vand.u32 %v287, 4294901760
    %v4050 = vsub.f32 %v287, %v4049
    %v4051 = vand.u32 %v4050, 4294901760
    %4052 = vmatpush1.msra.mxu0 %v4051
    %4053 = vmatprep.subr.mxu0 0.0
    %4054 = vmatpush1.msra.mxu0 0.0
    %4055 = vmatprep.subr.mxu0 0.0
    %4056 = vmatpush1.msra.mxu0 0.0
    %4057 = vmatprep.subr.mxu0 0.0
    %4058 = vmatpush1.msra.mxu0 0.0
    %4059 = vmatprep.subr.mxu0 0.0
    %4060 = vmatpush1.msra.mxu0 0.0
    %4061 = vmatprep.subr.mxu0 0.0
    %4062 = vmatpush1.msra.mxu0 0.0
    %4063 = vmatprep.subr.mxu0 0.0
    %4064 = vmatpush1.msra.mxu0 0.0
    %4065 = vmatprep.subr.mxu0 0.0
    %4066 = vmatpush1.msra.mxu0 0.0
    %4067 = vmatprep.subr.mxu0 0.0
    %4068 = vmatpush1.msra.mxu0 0.0
    %4069 = vmatprep.subr.mxu0 0.0
    %4070 = vmatpush1.msra.mxu0 0.0
    %4071 = vmatprep.subr.mxu0 0.0
    %4072 = vmatpush1.msra.mxu0 0.0
    %4073 = vmatprep.subr.mxu0 0.0
    %4074 = vmatpush1.msra.mxu0 0.0
    %4075 = vmatprep.subr.mxu0 0.0
    %4076 = vmatpush1.msra.mxu0 0.0
    %4077 = vmatprep.subr.mxu0 0.0
    %4078 = vmatpush1.msra.mxu0 0.0
    %4079 = vmatprep.subr.mxu0 0.0
    %4080 = vmatpush1.msra.mxu0 0.0
    %4081 = vmatprep.subr.mxu0 0.0
    %4082 = vmatpush1.msra.mxu0 0.0
    %4083 = vmatprep.subr.mxu0 0.0
    %4084 = vmatpush1.msra.mxu0 0.0
    %4085 = vmatprep.subr.mxu0 0.0
    %4086 = vmatpush1.msra.mxu0 0.0
    %4087 = vmatprep.subr.mxu0 0.0
    %4088 = vmatpush1.msra.mxu0 0.0
    %4089 = vmatprep.subr.mxu0 0.0
    %4090 = vmatpush1.msra.mxu0 0.0
    %4091 = vmatprep.subr.mxu0 0.0
    %4092 = vmatpush1.msra.mxu0 0.0
    %4093 = vmatprep.subr.mxu0 0.0
    %4094 = vmatpush1.msra.mxu0 0.0
    %4095 = vmatprep.subr.mxu0 0.0
    %4096 = vmatpush1.msra.mxu0 0.0
    %4097 = vmatprep.subr.mxu0 0.0
    %4098 = vmatpush1.msra.mxu0 0.0
    %4099 = vmatprep.subr.mxu0 0.0
    %4100 = vmatpush1.msra.mxu0 0.0
    %4101 = vmatprep.subr.mxu0 0.0
    %4102 = vmatpush1.msra.mxu0 0.0
    %4103 = vmatprep.subr.mxu0 0.0
    %4104 = vmatpush1.msra.mxu0 0.0
    %4105 = vmatprep.subr.mxu0 0.0
    %4106 = vmatpush1.msra.mxu0 0.0
    %4107 = vmatprep.subr.mxu0 0.0
    %4108 = vmatpush1.msra.mxu0 0.0
    %4109 = vmatprep.mubr.f32.mxu0 0.0
    %v4110 = vand.u32 %v291, 4294901760
    %4111 = vmatmul.mubr.f32.gmra.mrb[0].mxu0 %v4110
    %v4112 = vpop.f32.mrb[0].mxu0
    %v4113 = vadd.f32 %v4030, %v4112
    %v4114 = vpop.f32.mrb[0].mxu0
    %4115 = vdwg.mxu0
    %4116 = vmatprep.subr.mxu0 0.0
    %v4117 = vand.u32 %v284, 4294901760
    %4118 = vmatpush1.msra.mxu0 %v4117
    %4119 = vmatprep.subr.mxu0 0.0
    %v4120 = vand.u32 %v285, 4294901760
    %4121 = vmatpush1.msra.mxu0 %v4120
    %4122 = vmatprep.subr.mxu0 0.0
    %v4123 = vand.u32 %v286, 4294901760
    %4124 = vmatpush1.msra.mxu0 %v4123
    %4125 = vmatprep.subr.mxu0 0.0
    %v4126 = vand.u32 %v287, 4294901760
    %4127 = vmatpush1.msra.mxu0 %v4126
    %4128 = vmatprep.subr.mxu0 0.0
    %4129 = vmatpush1.msra.mxu0 0.0
    %4130 = vmatprep.subr.mxu0 0.0
    %4131 = vmatpush1.msra.mxu0 0.0
    %4132 = vmatprep.subr.mxu0 0.0
    %4133 = vmatpush1.msra.mxu0 0.0
    %4134 = vmatprep.subr.mxu0 0.0
    %4135 = vmatpush1.msra.mxu0 0.0
    %4136 = vmatprep.subr.mxu0 0.0
    %4137 = vmatpush1.msra.mxu0 0.0
    %4138 = vmatprep.subr.mxu0 0.0
    %4139 = vmatpush1.msra.mxu0 0.0
    %4140 = vmatprep.subr.mxu0 0.0
    %4141 = vmatpush1.msra.mxu0 0.0
    %4142 = vmatprep.subr.mxu0 0.0
    %4143 = vmatpush1.msra.mxu0 0.0
    %4144 = vmatprep.subr.mxu0 0.0
    %4145 = vmatpush1.msra.mxu0 0.0
    %4146 = vmatprep.subr.mxu0 0.0
    %4147 = vmatpush1.msra.mxu0 0.0
    %4148 = vmatprep.subr.mxu0 0.0
    %4149 = vmatpush1.msra.mxu0 0.0
    %4150 = vmatprep.subr.mxu0 0.0
    %4151 = vmatpush1.msra.mxu0 0.0
    %4152 = vmatprep.subr.mxu0 0.0
    %4153 = vmatpush1.msra.mxu0 0.0
    %4154 = vmatprep.subr.mxu0 0.0
    %4155 = vmatpush1.msra.mxu0 0.0
    %4156 = vmatprep.subr.mxu0 0.0
    %4157 = vmatpush1.msra.mxu0 0.0
    %4158 = vmatprep.subr.mxu0 0.0
    %4159 = vmatpush1.msra.mxu0 0.0
    %4160 = vmatprep.subr.mxu0 0.0
    %4161 = vmatpush1.msra.mxu0 0.0
    %4162 = vmatprep.subr.mxu0 0.0
    %4163 = vmatpush1.msra.mxu0 0.0
    %4164 = vmatprep.subr.mxu0 0.0
    %4165 = vmatpush1.msra.mxu0 0.0
    %4166 = vmatprep.subr.mxu0 0.0
    %4167 = vmatpush1.msra.mxu0 0.0
    %4168 = vmatprep.subr.mxu0 0.0
    %4169 = vmatpush1.msra.mxu0 0.0
    %4170 = vmatprep.subr.mxu0 0.0
    %4171 = vmatpush1.msra.mxu0 0.0
    %4172 = vmatprep.subr.mxu0 0.0
    %4173 = vmatpush1.msra.mxu0 0.0
    %4174 = vmatprep.subr.mxu0 0.0
    %4175 = vmatpush1.msra.mxu0 0.0
    %4176 = vmatprep.subr.mxu0 0.0
    %4177 = vmatpush1.msra.mxu0 0.0
    %4178 = vmatprep.subr.mxu0 0.0
    %4179 = vmatpush1.msra.mxu0 0.0
    %4180 = vmatprep.subr.mxu0 0.0
    %4181 = vmatpush1.msra.mxu0 0.0
    %4182 = vmatprep.subr.mxu0 0.0
    %4183 = vmatpush1.msra.mxu0 0.0
    %4184 = vmatprep.mubr.f32.mxu0 0.0
    %v4185 = vand.u32 %v291, 4294901760
    %4186 = vmatmul.mubr.f32.gmra.mrb[0].mxu0 %v4185
    %v4187 = vpop.f32.mrb[0].mxu0
    %v4188 = vadd.f32 %v4113, %v4187
    %v4189 = vpop.f32.mrb[0].mxu0
    %4190 = vdwg.mxu0
    %v4192 = vrot.slane %v3218, 7
    %v4195 = vrot.slane %v3703, 6
    %v4198 = vrot.slane %v4188, 5
    %v4200 = vsel %vm2242, %v2733, %v4192
    %v4201 = vsel %vm2244, %v4200, %v4195
    %v4202 = vsel %vm2246, %v4201, %v4198
    %v4203 = vadd.f32 %v2250, %v4202
    %4204 = vst [vmem:[#allocation3] sm:$0xf] %v4203
    %v4205 = vld [vmem:[#allocation4] sm:$0xf]
    %4206 = vmatprep.subr.mxu0 0.0
    %v4207 = vand.u32 %v128, 4294901760
    %4208 = vmatpush1.msra.mxu0 %v4207
    %4209 = vmatprep.subr.mxu0 0.0
    %v4210 = vand.u32 %v129, 4294901760
    %4211 = vmatpush1.msra.mxu0 %v4210
    %4212 = vmatprep.subr.mxu0 0.0
    %v4213 = vand.u32 %v130, 4294901760
    %4214 = vmatpush1.msra.mxu0 %v4213
    %4215 = vmatprep.subr.mxu0 0.0
    %v4216 = vand.u32 %v131, 4294901760
    %4217 = vmatpush1.msra.mxu0 %v4216
    %4218 = vmatprep.subr.mxu0 0.0
    %4219 = vmatpush1.msra.mxu0 0.0
    %4220 = vmatprep.subr.mxu0 0.0
    %4221 = vmatpush1.msra.mxu0 0.0
    %4222 = vmatprep.subr.mxu0 0.0
    %4223 = vmatpush1.msra.mxu0 0.0
    %4224 = vmatprep.subr.mxu0 0.0
    %4225 = vmatpush1.msra.mxu0 0.0
    %4226 = vmatprep.subr.mxu0 0.0
    %4227 = vmatpush1.msra.mxu0 0.0
    %4228 = vmatprep.subr.mxu0 0.0
    %4229 = vmatpush1.msra.mxu0 0.0
    %4230 = vmatprep.subr.mxu0 0.0
    %4231 = vmatpush1.msra.mxu0 0.0
    %4232 = vmatprep.subr.mxu0 0.0
    %4233 = vmatpush1.msra.mxu0 0.0
    %4234 = vmatprep.subr.mxu0 0.0
    %4235 = vmatpush1.msra.mxu0 0.0
    %4236 = vmatprep.subr.mxu0 0.0
    %4237 = vmatpush1.msra.mxu0 0.0
    %4238 = vmatprep.subr.mxu0 0.0
    %4239 = vmatpush1.msra.mxu0 0.0
    %4240 = vmatprep.subr.mxu0 0.0
    %4241 = vmatpush1.msra.mxu0 0.0
    %4242 = vmatprep.subr.mxu0 0.0
    %4243 = vmatpush1.msra.mxu0 0.0
    %4244 = vmatprep.subr.mxu0 0.0
    %4245 = vmatpush1.msra.mxu0 0.0
    %4246 = vmatprep.subr.mxu0 0.0
    %4247 = vmatpush1.msra.mxu0 0.0
    %4248 = vmatprep.subr.mxu0 0.0
    %4249 = vmatpush1.msra.mxu0 0.0
    %4250 = vmatprep.subr.mxu0 0.0
    %4251 = vmatpush1.msra.mxu0 0.0
    %4252 = vmatprep.subr.mxu0 0.0
    %4253 = vmatpush1.msra.mxu0 0.0
    %4254 = vmatprep.subr.mxu0 0.0
    %4255 = vmatpush1.msra.mxu0 0.0
    %4256 = vmatprep.subr.mxu0 0.0
    %4257 = vmatpush1.msra.mxu0 0.0
    %4258 = vmatprep.subr.mxu0 0.0
    %4259 = vmatpush1.msra.mxu0 0.0
    %4260 = vmatprep.subr.mxu0 0.0
    %4261 = vmatpush1.msra.mxu0 0.0
    %4262 = vmatprep.subr.mxu0 0.0
    %4263 = vmatpush1.msra.mxu0 0.0
    %4264 = vmatprep.subr.mxu0 0.0
    %4265 = vmatpush1.msra.mxu0 0.0
    %4266 = vmatprep.subr.mxu0 0.0
    %4267 = vmatpush1.msra.mxu0 0.0
    %4268 = vmatprep.subr.mxu0 0.0
    %4269 = vmatpush1.msra.mxu0 0.0
    %4270 = vmatprep.subr.mxu0 0.0
    %4271 = vmatpush1.msra.mxu0 0.0
    %4272 = vmatprep.subr.mxu0 0.0
    %4273 = vmatpush1.msra.mxu0 0.0
    %4274 = vmatprep.mubr.f32.mxu0 0.0
    %v4275 = vand.u32 %v291, 4294901760
    %v4276 = vsub.f32 %v291, %v4275
    %v4277 = vand.u32 %v4276, 4294901760
    %v4278 = vsub.f32 %v4276, %v4277
    %v4279 = vand.u32 %v4278, 4294901760
    %4280 = vmatmul.mubr.f32.gmra.mrb[0].mxu0 %v4279
    %v4281 = vpop.f32.mrb[0].mxu0
    %v4282 = vadd.f32 0.0, %v4281
    %v4283 = vpop.f32.mrb[0].mxu0
    %4284 = vdwg.mxu0
    %4285 = vmatprep.subr.mxu0 0.0
    %v4286 = vand.u32 %v128, 4294901760
    %v4287 = vsub.f32 %v128, %v4286
    %v4288 = vand.u32 %v4287, 4294901760
    %v4289 = vsub.f32 %v4287, %v4288
    %v4290 = vand.u32 %v4289, 4294901760
    %4291 = vmatpush1.msra.mxu0 %v4290
    %4292 = vmatprep.subr.mxu0 0.0
    %v4293 = vand.u32 %v129, 4294901760
    %v4294 = vsub.f32 %v129, %v4293
    %v4295 = vand.u32 %v4294, 4294901760
    %v4296 = vsub.f32 %v4294, %v4295
    %v4297 = vand.u32 %v4296, 4294901760
    %4298 = vmatpush1.msra.mxu0 %v4297
    %4299 = vmatprep.subr.mxu0 0.0
    %v4300 = vand.u32 %v130, 4294901760
    %v4301 = vsub.f32 %v130, %v4300
    %v4302 = vand.u32 %v4301, 4294901760
    %v4303 = vsub.f32 %v4301, %v4302
    %v4304 = vand.u32 %v4303, 4294901760
    %4305 = vmatpush1.msra.mxu0 %v4304
    %4306 = vmatprep.subr.mxu0 0.0
    %v4307 = vand.u32 %v131, 4294901760
    %v4308 = vsub.f32 %v131, %v4307
    %v4309 = vand.u32 %v4308, 4294901760
    %v4310 = vsub.f32 %v4308, %v4309
    %v4311 = vand.u32 %v4310, 4294901760
    %4312 = vmatpush1.msra.mxu0 %v4311
    %4313 = vmatprep.subr.mxu0 0.0
    %4314 = vmatpush1.msra.mxu0 0.0
    %4315 = vmatprep.subr.mxu0 0.0
    %4316 = vmatpush1.msra.mxu0 0.0
    %4317 = vmatprep.subr.mxu0 0.0
    %4318 = vmatpush1.msra.mxu0 0.0
    %4319 = vmatprep.subr.mxu0 0.0
    %4320 = vmatpush1.msra.mxu0 0.0
    %4321 = vmatprep.subr.mxu0 0.0
    %4322 = vmatpush1.msra.mxu0 0.0
    %4323 = vmatprep.subr.mxu0 0.0
    %4324 = vmatpush1.msra.mxu0 0.0
    %4325 = vmatprep.subr.mxu0 0.0
    %4326 = vmatpush1.msra.mxu0 0.0
    %4327 = vmatprep.subr.mxu0 0.0
    %4328 = vmatpush1.msra.mxu0 0.0
    %4329 = vmatprep.subr.mxu0 0.0
    %4330 = vmatpush1.msra.mxu0 0.0
    %4331 = vmatprep.subr.mxu0 0.0
    %4332 = vmatpush1.msra.mxu0 0.0
    %4333 = vmatprep.subr.mxu0 0.0
    %4334 = vmatpush1.msra.mxu0 0.0
    %4335 = vmatprep.subr.mxu0 0.0
    %4336 = vmatpush1.msra.mxu0 0.0
    %4337 = vmatprep.subr.mxu0 0.0
    %4338 = vmatpush1.msra.mxu0 0.0
    %4339 = vmatprep.subr.mxu0 0.0
    %4340 = vmatpush1.msra.mxu0 0.0
    %4341 = vmatprep.subr.mxu0 0.0
    %4342 = vmatpush1.msra.mxu0 0.0
    %4343 = vmatprep.subr.mxu0 0.0
    %4344 = vmatpush1.msra.mxu0 0.0
    %4345 = vmatprep.subr.mxu0 0.0
    %4346 = vmatpush1.msra.mxu0 0.0
    %4347 = vmatprep.subr.mxu0 0.0
    %4348 = vmatpush1.msra.mxu0 0.0
    %4349 = vmatprep.subr.mxu0 0.0
    %4350 = vmatpush1.msra.mxu0 0.0
    %4351 = vmatprep.subr.mxu0 0.0
    %4352 = vmatpush1.msra.mxu0 0.0
    %4353 = vmatprep.subr.mxu0 0.0
    %4354 = vmatpush1.msra.mxu0 0.0
    %4355 = vmatprep.subr.mxu0 0.0
    %4356 = vmatpush1.msra.mxu0 0.0
    %4357 = vmatprep.subr.mxu0 0.0
    %4358 = vmatpush1.msra.mxu0 0.0
    %4359 = vmatprep.subr.mxu0 0.0
    %4360 = vmatpush1.msra.mxu0 0.0
    %4361 = vmatprep.subr.mxu0 0.0
    %4362 = vmatpush1.msra.mxu0 0.0
    %4363 = vmatprep.subr.mxu0 0.0
    %4364 = vmatpush1.msra.mxu0 0.0
    %4365 = vmatprep.subr.mxu0 0.0
    %4366 = vmatpush1.msra.mxu0 0.0
    %4367 = vmatprep.subr.mxu0 0.0
    %4368 = vmatpush1.msra.mxu0 0.0
    %4369 = vmatprep.mubr.f32.mxu0 0.0
    %v4370 = vand.u32 %v291, 4294901760
    %4371 = vmatmul.mubr.f32.gmra.mrb[0].mxu0 %v4370
    %v4372 = vpop.f32.mrb[0].mxu0
    %v4373 = vadd.f32 %v4282, %v4372
    %v4374 = vpop.f32.mrb[0].mxu0
    %4375 = vdwg.mxu0
    %4376 = vmatprep.subr.mxu0 0.0
    %v4377 = vand.u32 %v128, 4294901760
    %v4378 = vsub.f32 %v128, %v4377
    %4379 = vmatpush1.msra.mxu0 %v4378
    %4380 = vmatprep.subr.mxu0 0.0
    %v4381 = vand.u32 %v129, 4294901760
    %v4382 = vsub.f32 %v129, %v4381
    %4383 = vmatpush1.msra.mxu0 %v4382
    %4384 = vmatprep.subr.mxu0 0.0
    %v4385 = vand.u32 %v130, 4294901760
    %v4386 = vsub.f32 %v130, %v4385
    %4387 = vmatpush1.msra.mxu0 %v4386
    %4388 = vmatprep.subr.mxu0 0.0
    %v4389 = vand.u32 %v131, 4294901760
    %v4390 = vsub.f32 %v131, %v4389
    %4391 = vmatpush1.msra.mxu0 %v4390
    %4392 = vmatprep.subr.mxu0 0.0
    %4393 = vmatpush1.msra.mxu0 0.0
    %4394 = vmatprep.subr.mxu0 0.0
    %4395 = vmatpush1.msra.mxu0 0.0
    %4396 = vmatprep.subr.mxu0 0.0
    %4397 = vmatpush1.msra.mxu0 0.0
    %4398 = vmatprep.subr.mxu0 0.0
    %4399 = vmatpush1.msra.mxu0 0.0
    %4400 = vmatprep.subr.mxu0 0.0
    %4401 = vmatpush1.msra.mxu0 0.0
    %4402 = vmatprep.subr.mxu0 0.0
    %4403 = vmatpush1.msra.mxu0 0.0
    %4404 = vmatprep.subr.mxu0 0.0
    %4405 = vmatpush1.msra.mxu0 0.0
    %4406 = vmatprep.subr.mxu0 0.0
    %4407 = vmatpush1.msra.mxu0 0.0
    %4408 = vmatprep.subr.mxu0 0.0
    %4409 = vmatpush1.msra.mxu0 0.0
    %4410 = vmatprep.subr.mxu0 0.0
    %4411 = vmatpush1.msra.mxu0 0.0
    %4412 = vmatprep.subr.mxu0 0.0
    %4413 = vmatpush1.msra.mxu0 0.0
    %4414 = vmatprep.subr.mxu0 0.0
    %4415 = vmatpush1.msra.mxu0 0.0
    %4416 = vmatprep.subr.mxu0 0.0
    %4417 = vmatpush1.msra.mxu0 0.0
    %4418 = vmatprep.subr.mxu0 0.0
    %4419 = vmatpush1.msra.mxu0 0.0
    %4420 = vmatprep.subr.mxu0 0.0
    %4421 = vmatpush1.msra.mxu0 0.0
    %4422 = vmatprep.subr.mxu0 0.0
    %4423 = vmatpush1.msra.mxu0 0.0
    %4424 = vmatprep.subr.mxu0 0.0
    %4425 = vmatpush1.msra.mxu0 0.0
    %4426 = vmatprep.subr.mxu0 0.0
    %4427 = vmatpush1.msra.mxu0 0.0
    %4428 = vmatprep.subr.mxu0 0.0
    %4429 = vmatpush1.msra.mxu0 0.0
    %4430 = vmatprep.subr.mxu0 0.0
    %4431 = vmatpush1.msra.mxu0 0.0
    %4432 = vmatprep.subr.mxu0 0.0
    %4433 = vmatpush1.msra.mxu0 0.0
    %4434 = vmatprep.subr.mxu0 0.0
    %4435 = vmatpush1.msra.mxu0 0.0
    %4436 = vmatprep.subr.mxu0 0.0
    %4437 = vmatpush1.msra.mxu0 0.0
    %4438 = vmatprep.subr.mxu0 0.0
    %4439 = vmatpush1.msra.mxu0 0.0
    %4440 = vmatprep.subr.mxu0 0.0
    %4441 = vmatpush1.msra.mxu0 0.0
    %4442 = vmatprep.subr.mxu0 0.0
    %4443 = vmatpush1.msra.mxu0 0.0
    %4444 = vmatprep.subr.mxu0 0.0
    %4445 = vmatpush1.msra.mxu0 0.0
    %4446 = vmatprep.subr.mxu0 0.0
    %4447 = vmatpush1.msra.mxu0 0.0
    %4448 = vmatprep.mubr.f32.mxu0 0.0
    %v4449 = vand.u32 %v291, 4294901760
    %v4450 = vsub.f32 %v291, %v4449
    %4451 = vmatmul.mubr.f32.gmra.mrb[0].mxu0 %v4450
    %v4452 = vpop.f32.mrb[0].mxu0
    %v4453 = vadd.f32 %v4373, %v4452
    %v4454 = vpop.f32.mrb[0].mxu0
    %4455 = vdwg.mxu0
    %4456 = vmatprep.subr.mxu0 0.0
    %v4457 = vand.u32 %v128, 4294901760
    %4458 = vmatpush1.msra.mxu0 %v4457
    %4459 = vmatprep.subr.mxu0 0.0
    %v4460 = vand.u32 %v129, 4294901760
    %4461 = vmatpush1.msra.mxu0 %v4460
    %4462 = vmatprep.subr.mxu0 0.0
    %v4463 = vand.u32 %v130, 4294901760
    %4464 = vmatpush1.msra.mxu0 %v4463
    %4465 = vmatprep.subr.mxu0 0.0
    %v4466 = vand.u32 %v131, 4294901760
    %4467 = vmatpush1.msra.mxu0 %v4466
    %4468 = vmatprep.subr.mxu0 0.0
    %4469 = vmatpush1.msra.mxu0 0.0
    %4470 = vmatprep.subr.mxu0 0.0
    %4471 = vmatpush1.msra.mxu0 0.0
    %4472 = vmatprep.subr.mxu0 0.0
    %4473 = vmatpush1.msra.mxu0 0.0
    %4474 = vmatprep.subr.mxu0 0.0
    %4475 = vmatpush1.msra.mxu0 0.0
    %4476 = vmatprep.subr.mxu0 0.0
    %4477 = vmatpush1.msra.mxu0 0.0
    %4478 = vmatprep.subr.mxu0 0.0
    %4479 = vmatpush1.msra.mxu0 0.0
    %4480 = vmatprep.subr.mxu0 0.0
    %4481 = vmatpush1.msra.mxu0 0.0
    %4482 = vmatprep.subr.mxu0 0.0
    %4483 = vmatpush1.msra.mxu0 0.0
    %4484 = vmatprep.subr.mxu0 0.0
    %4485 = vmatpush1.msra.mxu0 0.0
    %4486 = vmatprep.subr.mxu0 0.0
    %4487 = vmatpush1.msra.mxu0 0.0
    %4488 = vmatprep.subr.mxu0 0.0
    %4489 = vmatpush1.msra.mxu0 0.0
    %4490 = vmatprep.subr.mxu0 0.0
    %4491 = vmatpush1.msra.mxu0 0.0
    %4492 = vmatprep.subr.mxu0 0.0
    %4493 = vmatpush1.msra.mxu0 0.0
    %4494 = vmatprep.subr.mxu0 0.0
    %4495 = vmatpush1.msra.mxu0 0.0
    %4496 = vmatprep.subr.mxu0 0.0
    %4497 = vmatpush1.msra.mxu0 0.0
    %4498 = vmatprep.subr.mxu0 0.0
    %4499 = vmatpush1.msra.mxu0 0.0
    %4500 = vmatprep.subr.mxu0 0.0
    %4501 = vmatpush1.msra.mxu0 0.0
    %4502 = vmatprep.subr.mxu0 0.0
    %4503 = vmatpush1.msra.mxu0 0.0
    %4504 = vmatprep.subr.mxu0 0.0
    %4505 = vmatpush1.msra.mxu0 0.0
    %4506 = vmatprep.subr.mxu0 0.0
    %4507 = vmatpush1.msra.mxu0 0.0
    %4508 = vmatprep.subr.mxu0 0.0
    %4509 = vmatpush1.msra.mxu0 0.0
    %4510 = vmatprep.subr.mxu0 0.0
    %4511 = vmatpush1.msra.mxu0 0.0
    %4512 = vmatprep.subr.mxu0 0.0
    %4513 = vmatpush1.msra.mxu0 0.0
    %4514 = vmatprep.subr.mxu0 0.0
    %4515 = vmatpush1.msra.mxu0 0.0
    %4516 = vmatprep.subr.mxu0 0.0
    %4517 = vmatpush1.msra.mxu0 0.0
    %4518 = vmatprep.subr.mxu0 0.0
    %4519 = vmatpush1.msra.mxu0 0.0
    %4520 = vmatprep.subr.mxu0 0.0
    %4521 = vmatpush1.msra.mxu0 0.0
    %4522 = vmatprep.subr.mxu0 0.0
    %4523 = vmatpush1.msra.mxu0 0.0
    %4524 = vmatprep.mubr.f32.mxu0 0.0
    %v4525 = vand.u32 %v291, 4294901760
    %v4526 = vsub.f32 %v291, %v4525
    %v4527 = vand.u32 %v4526, 4294901760
    %4528 = vmatmul.mubr.f32.gmra.mrb[0].mxu0 %v4527
    %v4529 = vpop.f32.mrb[0].mxu0
    %v4530 = vadd.f32 %v4453, %v4529
    %v4531 = vpop.f32.mrb[0].mxu0
    %4532 = vdwg.mxu0
    %4533 = vmatprep.subr.mxu0 0.0
    %v4534 = vand.u32 %v128, 4294901760
    %v4535 = vsub.f32 %v128, %v4534
    %v4536 = vand.u32 %v4535, 4294901760
    %4537 = vmatpush1.msra.mxu0 %v4536
    %4538 = vmatprep.subr.mxu0 0.0
    %v4539 = vand.u32 %v129, 4294901760
    %v4540 = vsub.f32 %v129, %v4539
    %v4541 = vand.u32 %v4540, 4294901760
    %4542 = vmatpush1.msra.mxu0 %v4541
    %4543 = vmatprep.subr.mxu0 0.0
    %v4544 = vand.u32 %v130, 4294901760
    %v4545 = vsub.f32 %v130, %v4544
    %v4546 = vand.u32 %v4545, 4294901760
    %4547 = vmatpush1.msra.mxu0 %v4546
    %4548 = vmatprep.subr.mxu0 0.0
    %v4549 = vand.u32 %v131, 4294901760
    %v4550 = vsub.f32 %v131, %v4549
    %v4551 = vand.u32 %v4550, 4294901760
    %4552 = vmatpush1.msra.mxu0 %v4551
    %4553 = vmatprep.subr.mxu0 0.0
    %4554 = vmatpush1.msra.mxu0 0.0
    %4555 = vmatprep.subr.mxu0 0.0
    %4556 = vmatpush1.msra.mxu0 0.0
    %4557 = vmatprep.subr.mxu0 0.0
    %4558 = vmatpush1.msra.mxu0 0.0
    %4559 = vmatprep.subr.mxu0 0.0
    %4560 = vmatpush1.msra.mxu0 0.0
    %4561 = vmatprep.subr.mxu0 0.0
    %4562 = vmatpush1.msra.mxu0 0.0
    %4563 = vmatprep.subr.mxu0 0.0
    %4564 = vmatpush1.msra.mxu0 0.0
    %4565 = vmatprep.subr.mxu0 0.0
    %4566 = vmatpush1.msra.mxu0 0.0
    %4567 = vmatprep.subr.mxu0 0.0
    %4568 = vmatpush1.msra.mxu0 0.0
    %4569 = vmatprep.subr.mxu0 0.0
    %4570 = vmatpush1.msra.mxu0 0.0
    %4571 = vmatprep.subr.mxu0 0.0
    %4572 = vmatpush1.msra.mxu0 0.0
    %4573 = vmatprep.subr.mxu0 0.0
    %4574 = vmatpush1.msra.mxu0 0.0
    %4575 = vmatprep.subr.mxu0 0.0
    %4576 = vmatpush1.msra.mxu0 0.0
    %4577 = vmatprep.subr.mxu0 0.0
    %4578 = vmatpush1.msra.mxu0 0.0
    %4579 = vmatprep.subr.mxu0 0.0
    %4580 = vmatpush1.msra.mxu0 0.0
    %4581 = vmatprep.subr.mxu0 0.0
    %4582 = vmatpush1.msra.mxu0 0.0
    %4583 = vmatprep.subr.mxu0 0.0
    %4584 = vmatpush1.msra.mxu0 0.0
    %4585 = vmatprep.subr.mxu0 0.0
    %4586 = vmatpush1.msra.mxu0 0.0
    %4587 = vmatprep.subr.mxu0 0.0
    %4588 = vmatpush1.msra.mxu0 0.0
    %4589 = vmatprep.subr.mxu0 0.0
    %4590 = vmatpush1.msra.mxu0 0.0
    %4591 = vmatprep.subr.mxu0 0.0
    %4592 = vmatpush1.msra.mxu0 0.0
    %4593 = vmatprep.subr.mxu0 0.0
    %4594 = vmatpush1.msra.mxu0 0.0
    %4595 = vmatprep.subr.mxu0 0.0
    %4596 = vmatpush1.msra.mxu0 0.0
    %4597 = vmatprep.subr.mxu0 0.0
    %4598 = vmatpush1.msra.mxu0 0.0
    %4599 = vmatprep.subr.mxu0 0.0
    %4600 = vmatpush1.msra.mxu0 0.0
    %4601 = vmatprep.subr.mxu0 0.0
    %4602 = vmatpush1.msra.mxu0 0.0
    %4603 = vmatprep.subr.mxu0 0.0
    %4604 = vmatpush1.msra.mxu0 0.0
    %4605 = vmatprep.subr.mxu0 0.0
    %4606 = vmatpush1.msra.mxu0 0.0
    %4607 = vmatprep.subr.mxu0 0.0
    %4608 = vmatpush1.msra.mxu0 0.0
    %4609 = vmatprep.mubr.f32.mxu0 0.0
    %v4610 = vand.u32 %v291, 4294901760
    %4611 = vmatmul.mubr.f32.gmra.mrb[0].mxu0 %v4610
    %v4612 = vpop.f32.mrb[0].mxu0
    %v4613 = vadd.f32 %v4530, %v4612
    %v4614 = vpop.f32.mrb[0].mxu0
    %4615 = vdwg.mxu0
    %4616 = vmatprep.subr.mxu0 0.0
    %v4617 = vand.u32 %v128, 4294901760
    %4618 = vmatpush1.msra.mxu0 %v4617
    %4619 = vmatprep.subr.mxu0 0.0
    %v4620 = vand.u32 %v129, 4294901760
    %4621 = vmatpush1.msra.mxu0 %v4620
    %4622 = vmatprep.subr.mxu0 0.0
    %v4623 = vand.u32 %v130, 4294901760
    %4624 = vmatpush1.msra.mxu0 %v4623
    %4625 = vmatprep.subr.mxu0 0.0
    %v4626 = vand.u32 %v131, 4294901760
    %4627 = vmatpush1.msra.mxu0 %v4626
    %4628 = vmatprep.subr.mxu0 0.0
    %4629 = vmatpush1.msra.mxu0 0.0
    %4630 = vmatprep.subr.mxu0 0.0
    %4631 = vmatpush1.msra.mxu0 0.0
    %4632 = vmatprep.subr.mxu0 0.0
    %4633 = vmatpush1.msra.mxu0 0.0
    %4634 = vmatprep.subr.mxu0 0.0
    %4635 = vmatpush1.msra.mxu0 0.0
    %4636 = vmatprep.subr.mxu0 0.0
    %4637 = vmatpush1.msra.mxu0 0.0
    %4638 = vmatprep.subr.mxu0 0.0
    %4639 = vmatpush1.msra.mxu0 0.0
    %4640 = vmatprep.subr.mxu0 0.0
    %4641 = vmatpush1.msra.mxu0 0.0
    %4642 = vmatprep.subr.mxu0 0.0
    %4643 = vmatpush1.msra.mxu0 0.0
    %4644 = vmatprep.subr.mxu0 0.0
    %4645 = vmatpush1.msra.mxu0 0.0
    %4646 = vmatprep.subr.mxu0 0.0
    %4647 = vmatpush1.msra.mxu0 0.0
    %4648 = vmatprep.subr.mxu0 0.0
    %4649 = vmatpush1.msra.mxu0 0.0
    %4650 = vmatprep.subr.mxu0 0.0
    %4651 = vmatpush1.msra.mxu0 0.0
    %4652 = vmatprep.subr.mxu0 0.0
    %4653 = vmatpush1.msra.mxu0 0.0
    %4654 = vmatprep.subr.mxu0 0.0
    %4655 = vmatpush1.msra.mxu0 0.0
    %4656 = vmatprep.subr.mxu0 0.0
    %4657 = vmatpush1.msra.mxu0 0.0
    %4658 = vmatprep.subr.mxu0 0.0
    %4659 = vmatpush1.msra.mxu0 0.0
    %4660 = vmatprep.subr.mxu0 0.0
    %4661 = vmatpush1.msra.mxu0 0.0
    %4662 = vmatprep.subr.mxu0 0.0
    %4663 = vmatpush1.msra.mxu0 0.0
    %4664 = vmatprep.subr.mxu0 0.0
    %4665 = vmatpush1.msra.mxu0 0.0
    %4666 = vmatprep.subr.mxu0 0.0
    %4667 = vmatpush1.msra.mxu0 0.0
    %4668 = vmatprep.subr.mxu0 0.0
    %4669 = vmatpush1.msra.mxu0 0.0
    %4670 = vmatprep.subr.mxu0 0.0
    %4671 = vmatpush1.msra.mxu0 0.0
    %4672 = vmatprep.subr.mxu0 0.0
    %4673 = vmatpush1.msra.mxu0 0.0
    %4674 = vmatprep.subr.mxu0 0.0
    %4675 = vmatpush1.msra.mxu0 0.0
    %4676 = vmatprep.subr.mxu0 0.0
    %4677 = vmatpush1.msra.mxu0 0.0
    %4678 = vmatprep.subr.mxu0 0.0
    %4679 = vmatpush1.msra.mxu0 0.0
    %4680 = vmatprep.subr.mxu0 0.0
    %4681 = vmatpush1.msra.mxu0 0.0
    %4682 = vmatprep.subr.mxu0 0.0
    %4683 = vmatpush1.msra.mxu0 0.0
    %4684 = vmatprep.mubr.f32.mxu0 0.0
    %v4685 = vand.u32 %v291, 4294901760
    %4686 = vmatmul.mubr.f32.gmra.mrb[0].mxu0 %v4685
    %v4687 = vpop.f32.mrb[0].mxu0
    %v4688 = vadd.f32 %v4613, %v4687
    %v4689 = vpop.f32.mrb[0].mxu0
    %4690 = vdwg.mxu0
    %4691 = vmatprep.subr.mxu0 0.0
    %v4692 = vand.u32 %v132, 4294901760
    %4693 = vmatpush1.msra.mxu0 %v4692
    %4694 = vmatprep.subr.mxu0 0.0
    %v4695 = vand.u32 %v133, 4294901760
    %4696 = vmatpush1.msra.mxu0 %v4695
    %4697 = vmatprep.subr.mxu0 0.0
    %v4698 = vand.u32 %v134, 4294901760
    %4699 = vmatpush1.msra.mxu0 %v4698
    %4700 = vmatprep.subr.mxu0 0.0
    %v4701 = vand.u32 %v135, 4294901760
    %4702 = vmatpush1.msra.mxu0 %v4701
    %4703 = vmatprep.subr.mxu0 0.0
    %4704 = vmatpush1.msra.mxu0 0.0
    %4705 = vmatprep.subr.mxu0 0.0
    %4706 = vmatpush1.msra.mxu0 0.0
    %4707 = vmatprep.subr.mxu0 0.0
    %4708 = vmatpush1.msra.mxu0 0.0
    %4709 = vmatprep.subr.mxu0 0.0
    %4710 = vmatpush1.msra.mxu0 0.0
    %4711 = vmatprep.subr.mxu0 0.0
    %4712 = vmatpush1.msra.mxu0 0.0
    %4713 = vmatprep.subr.mxu0 0.0
    %4714 = vmatpush1.msra.mxu0 0.0
    %4715 = vmatprep.subr.mxu0 0.0
    %4716 = vmatpush1.msra.mxu0 0.0
    %4717 = vmatprep.subr.mxu0 0.0
    %4718 = vmatpush1.msra.mxu0 0.0
    %4719 = vmatprep.subr.mxu0 0.0
    %4720 = vmatpush1.msra.mxu0 0.0
    %4721 = vmatprep.subr.mxu0 0.0
    %4722 = vmatpush1.msra.mxu0 0.0
    %4723 = vmatprep.subr.mxu0 0.0
    %4724 = vmatpush1.msra.mxu0 0.0
    %4725 = vmatprep.subr.mxu0 0.0
    %4726 = vmatpush1.msra.mxu0 0.0
    %4727 = vmatprep.subr.mxu0 0.0
    %4728 = vmatpush1.msra.mxu0 0.0
    %4729 = vmatprep.subr.mxu0 0.0
    %4730 = vmatpush1.msra.mxu0 0.0
    %4731 = vmatprep.subr.mxu0 0.0
    %4732 = vmatpush1.msra.mxu0 0.0
    %4733 = vmatprep.subr.mxu0 0.0
    %4734 = vmatpush1.msra.mxu0 0.0
    %4735 = vmatprep.subr.mxu0 0.0
    %4736 = vmatpush1.msra.mxu0 0.0
    %4737 = vmatprep.subr.mxu0 0.0
    %4738 = vmatpush1.msra.mxu0 0.0
    %4739 = vmatprep.subr.mxu0 0.0
    %4740 = vmatpush1.msra.mxu0 0.0
    %4741 = vmatprep.subr.mxu0 0.0
    %4742 = vmatpush1.msra.mxu0 0.0
    %4743 = vmatprep.subr.mxu0 0.0
    %4744 = vmatpush1.msra.mxu0 0.0
    %4745 = vmatprep.subr.mxu0 0.0
    %4746 = vmatpush1.msra.mxu0 0.0
    %4747 = vmatprep.subr.mxu0 0.0
    %4748 = vmatpush1.msra.mxu0 0.0
    %4749 = vmatprep.subr.mxu0 0.0
    %4750 = vmatpush1.msra.mxu0 0.0
    %4751 = vmatprep.subr.mxu0 0.0
    %4752 = vmatpush1.msra.mxu0 0.0
    %4753 = vmatprep.subr.mxu0 0.0
    %4754 = vmatpush1.msra.mxu0 0.0
    %4755 = vmatprep.subr.mxu0 0.0
    %4756 = vmatpush1.msra.mxu0 0.0
    %4757 = vmatprep.subr.mxu0 0.0
    %4758 = vmatpush1.msra.mxu0 0.0
    %4759 = vmatprep.mubr.f32.mxu0 0.0
    %v4760 = vand.u32 %v291, 4294901760
    %v4761 = vsub.f32 %v291, %v4760
    %v4762 = vand.u32 %v4761, 4294901760
    %v4763 = vsub.f32 %v4761, %v4762
    %v4764 = vand.u32 %v4763, 4294901760
    %4765 = vmatmul.mubr.f32.gmra.mrb[0].mxu0 %v4764
    %v4766 = vpop.f32.mrb[0].mxu0
    %v4767 = vadd.f32 0.0, %v4766
    %v4768 = vpop.f32.mrb[0].mxu0
    %4769 = vdwg.mxu0
    %4770 = vmatprep.subr.mxu0 0.0
    %v4771 = vand.u32 %v132, 4294901760
    %v4772 = vsub.f32 %v132, %v4771
    %v4773 = vand.u32 %v4772, 4294901760
    %v4774 = vsub.f32 %v4772, %v4773
    %v4775 = vand.u32 %v4774, 4294901760
    %4776 = vmatpush1.msra.mxu0 %v4775
    %4777 = vmatprep.subr.mxu0 0.0
    %v4778 = vand.u32 %v133, 4294901760
    %v4779 = vsub.f32 %v133, %v4778
    %v4780 = vand.u32 %v4779, 4294901760
    %v4781 = vsub.f32 %v4779, %v4780
    %v4782 = vand.u32 %v4781, 4294901760
    %4783 = vmatpush1.msra.mxu0 %v4782
    %4784 = vmatprep.subr.mxu0 0.0
    %v4785 = vand.u32 %v134, 4294901760
    %v4786 = vsub.f32 %v134, %v4785
    %v4787 = vand.u32 %v4786, 4294901760
    %v4788 = vsub.f32 %v4786, %v4787
    %v4789 = vand.u32 %v4788, 4294901760
    %4790 = vmatpush1.msra.mxu0 %v4789
    %4791 = vmatprep.subr.mxu0 0.0
    %v4792 = vand.u32 %v135, 4294901760
    %v4793 = vsub.f32 %v135, %v4792
    %v4794 = vand.u32 %v4793, 4294901760
    %v4795 = vsub.f32 %v4793, %v4794
    %v4796 = vand.u32 %v4795, 4294901760
    %4797 = vmatpush1.msra.mxu0 %v4796
    %4798 = vmatprep.subr.mxu0 0.0
    %4799 = vmatpush1.msra.mxu0 0.0
    %4800 = vmatprep.subr.mxu0 0.0
    %4801 = vmatpush1.msra.mxu0 0.0
    %4802 = vmatprep.subr.mxu0 0.0
    %4803 = vmatpush1.msra.mxu0 0.0
    %4804 = vmatprep.subr.mxu0 0.0
    %4805 = vmatpush1.msra.mxu0 0.0
    %4806 = vmatprep.subr.mxu0 0.0
    %4807 = vmatpush1.msra.mxu0 0.0
    %4808 = vmatprep.subr.mxu0 0.0
    %4809 = vmatpush1.msra.mxu0 0.0
    %4810 = vmatprep.subr.mxu0 0.0
    %4811 = vmatpush1.msra.mxu0 0.0
    %4812 = vmatprep.subr.mxu0 0.0
    %4813 = vmatpush1.msra.mxu0 0.0
    %4814 = vmatprep.subr.mxu0 0.0
    %4815 = vmatpush1.msra.mxu0 0.0
    %4816 = vmatprep.subr.mxu0 0.0
    %4817 = vmatpush1.msra.mxu0 0.0
    %4818 = vmatprep.subr.mxu0 0.0
    %4819 = vmatpush1.msra.mxu0 0.0
    %4820 = vmatprep.subr.mxu0 0.0
    %4821 = vmatpush1.msra.mxu0 0.0
    %4822 = vmatprep.subr.mxu0 0.0
    %4823 = vmatpush1.msra.mxu0 0.0
    %4824 = vmatprep.subr.mxu0 0.0
    %4825 = vmatpush1.msra.mxu0 0.0
    %4826 = vmatprep.subr.mxu0 0.0
    %4827 = vmatpush1.msra.mxu0 0.0
    %4828 = vmatprep.subr.mxu0 0.0
    %4829 = vmatpush1.msra.mxu0 0.0
    %4830 = vmatprep.subr.mxu0 0.0
    %4831 = vmatpush1.msra.mxu0 0.0
    %4832 = vmatprep.subr.mxu0 0.0
    %4833 = vmatpush1.msra.mxu0 0.0
    %4834 = vmatprep.subr.mxu0 0.0
    %4835 = vmatpush1.msra.mxu0 0.0
    %4836 = vmatprep.subr.mxu0 0.0
    %4837 = vmatpush1.msra.mxu0 0.0
    %4838 = vmatprep.subr.mxu0 0.0
    %4839 = vmatpush1.msra.mxu0 0.0
    %4840 = vmatprep.subr.mxu0 0.0
    %4841 = vmatpush1.msra.mxu0 0.0
    %4842 = vmatprep.subr.mxu0 0.0
    %4843 = vmatpush1.msra.mxu0 0.0
    %4844 = vmatprep.subr.mxu0 0.0
    %4845 = vmatpush1.msra.mxu0 0.0
    %4846 = vmatprep.subr.mxu0 0.0
    %4847 = vmatpush1.msra.mxu0 0.0
    %4848 = vmatprep.subr.mxu0 0.0
    %4849 = vmatpush1.msra.mxu0 0.0
    %4850 = vmatprep.subr.mxu0 0.0
    %4851 = vmatpush1.msra.mxu0 0.0
    %4852 = vmatprep.subr.mxu0 0.0
    %4853 = vmatpush1.msra.mxu0 0.0
    %4854 = vmatprep.mubr.f32.mxu0 0.0
    %v4855 = vand.u32 %v291, 4294901760
    %4856 = vmatmul.mubr.f32.gmra.mrb[0].mxu0 %v4855
    %v4857 = vpop.f32.mrb[0].mxu0
    %v4858 = vadd.f32 %v4767, %v4857
    %v4859 = vpop.f32.mrb[0].mxu0
    %4860 = vdwg.mxu0
    %4861 = vmatprep.subr.mxu0 0.0
    %v4862 = vand.u32 %v132, 4294901760
    %v4863 = vsub.f32 %v132, %v4862
    %4864 = vmatpush1.msra.mxu0 %v4863
    %4865 = vmatprep.subr.mxu0 0.0
    %v4866 = vand.u32 %v133, 4294901760
    %v4867 = vsub.f32 %v133, %v4866
    %4868 = vmatpush1.msra.mxu0 %v4867
    %4869 = vmatprep.subr.mxu0 0.0
    %v4870 = vand.u32 %v134, 4294901760
    %v4871 = vsub.f32 %v134, %v4870
    %4872 = vmatpush1.msra.mxu0 %v4871
    %4873 = vmatprep.subr.mxu0 0.0
    %v4874 = vand.u32 %v135, 4294901760
    %v4875 = vsub.f32 %v135, %v4874
    %4876 = vmatpush1.msra.mxu0 %v4875
    %4877 = vmatprep.subr.mxu0 0.0
    %4878 = vmatpush1.msra.mxu0 0.0
    %4879 = vmatprep.subr.mxu0 0.0
    %4880 = vmatpush1.msra.mxu0 0.0
    %4881 = vmatprep.subr.mxu0 0.0
    %4882 = vmatpush1.msra.mxu0 0.0
    %4883 = vmatprep.subr.mxu0 0.0
    %4884 = vmatpush1.msra.mxu0 0.0
    %4885 = vmatprep.subr.mxu0 0.0
    %4886 = vmatpush1.msra.mxu0 0.0
    %4887 = vmatprep.subr.mxu0 0.0
    %4888 = vmatpush1.msra.mxu0 0.0
    %4889 = vmatprep.subr.mxu0 0.0
    %4890 = vmatpush1.msra.mxu0 0.0
    %4891 = vmatprep.subr.mxu0 0.0
    %4892 = vmatpush1.msra.mxu0 0.0
    %4893 = vmatprep.subr.mxu0 0.0
    %4894 = vmatpush1.msra.mxu0 0.0
    %4895 = vmatprep.subr.mxu0 0.0
    %4896 = vmatpush1.msra.mxu0 0.0
    %4897 = vmatprep.subr.mxu0 0.0
    %4898 = vmatpush1.msra.mxu0 0.0
    %4899 = vmatprep.subr.mxu0 0.0
    %4900 = vmatpush1.msra.mxu0 0.0
    %4901 = vmatprep.subr.mxu0 0.0
    %4902 = vmatpush1.msra.mxu0 0.0
    %4903 = vmatprep.subr.mxu0 0.0
    %4904 = vmatpush1.msra.mxu0 0.0
    %4905 = vmatprep.subr.mxu0 0.0
    %4906 = vmatpush1.msra.mxu0 0.0
    %4907 = vmatprep.subr.mxu0 0.0
    %4908 = vmatpush1.msra.mxu0 0.0
    %4909 = vmatprep.subr.mxu0 0.0
    %4910 = vmatpush1.msra.mxu0 0.0
    %4911 = vmatprep.subr.mxu0 0.0
    %4912 = vmatpush1.msra.mxu0 0.0
    %4913 = vmatprep.subr.mxu0 0.0
    %4914 = vmatpush1.msra.mxu0 0.0
    %4915 = vmatprep.subr.mxu0 0.0
    %4916 = vmatpush1.msra.mxu0 0.0
    %4917 = vmatprep.subr.mxu0 0.0
    %4918 = vmatpush1.msra.mxu0 0.0
    %4919 = vmatprep.subr.mxu0 0.0
    %4920 = vmatpush1.msra.mxu0 0.0
    %4921 = vmatprep.subr.mxu0 0.0
    %4922 = vmatpush1.msra.mxu0 0.0
    %4923 = vmatprep.subr.mxu0 0.0
    %4924 = vmatpush1.msra.mxu0 0.0
    %4925 = vmatprep.subr.mxu0 0.0
    %4926 = vmatpush1.msra.mxu0 0.0
    %4927 = vmatprep.subr.mxu0 0.0
    %4928 = vmatpush1.msra.mxu0 0.0
    %4929 = vmatprep.subr.mxu0 0.0
    %4930 = vmatpush1.msra.mxu0 0.0
    %4931 = vmatprep.subr.mxu0 0.0
    %4932 = vmatpush1.msra.mxu0 0.0
    %4933 = vmatprep.mubr.f32.mxu0 0.0
    %v4934 = vand.u32 %v291, 4294901760
    %v4935 = vsub.f32 %v291, %v4934
    %4936 = vmatmul.mubr.f32.gmra.mrb[0].mxu0 %v4935
    %v4937 = vpop.f32.mrb[0].mxu0
    %v4938 = vadd.f32 %v4858, %v4937
    %v4939 = vpop.f32.mrb[0].mxu0
    %4940 = vdwg.mxu0
    %4941 = vmatprep.subr.mxu0 0.0
    %v4942 = vand.u32 %v132, 4294901760
    %4943 = vmatpush1.msra.mxu0 %v4942
    %4944 = vmatprep.subr.mxu0 0.0
    %v4945 = vand.u32 %v133, 4294901760
    %4946 = vmatpush1.msra.mxu0 %v4945
    %4947 = vmatprep.subr.mxu0 0.0
    %v4948 = vand.u32 %v134, 4294901760
    %4949 = vmatpush1.msra.mxu0 %v4948
    %4950 = vmatprep.subr.mxu0 0.0
    %v4951 = vand.u32 %v135, 4294901760
    %4952 = vmatpush1.msra.mxu0 %v4951
    %4953 = vmatprep.subr.mxu0 0.0
    %4954 = vmatpush1.msra.mxu0 0.0
    %4955 = vmatprep.subr.mxu0 0.0
    %4956 = vmatpush1.msra.mxu0 0.0
    %4957 = vmatprep.subr.mxu0 0.0
    %4958 = vmatpush1.msra.mxu0 0.0
    %4959 = vmatprep.subr.mxu0 0.0
    %4960 = vmatpush1.msra.mxu0 0.0
    %4961 = vmatprep.subr.mxu0 0.0
    %4962 = vmatpush1.msra.mxu0 0.0
    %4963 = vmatprep.subr.mxu0 0.0
    %4964 = vmatpush1.msra.mxu0 0.0
    %4965 = vmatprep.subr.mxu0 0.0
    %4966 = vmatpush1.msra.mxu0 0.0
    %4967 = vmatprep.subr.mxu0 0.0
    %4968 = vmatpush1.msra.mxu0 0.0
    %4969 = vmatprep.subr.mxu0 0.0
    %4970 = vmatpush1.msra.mxu0 0.0
    %4971 = vmatprep.subr.mxu0 0.0
    %4972 = vmatpush1.msra.mxu0 0.0
    %4973 = vmatprep.subr.mxu0 0.0
    %4974 = vmatpush1.msra.mxu0 0.0
    %4975 = vmatprep.subr.mxu0 0.0
    %4976 = vmatpush1.msra.mxu0 0.0
    %4977 = vmatprep.subr.mxu0 0.0
    %4978 = vmatpush1.msra.mxu0 0.0
    %4979 = vmatprep.subr.mxu0 0.0
    %4980 = vmatpush1.msra.mxu0 0.0
    %4981 = vmatprep.subr.mxu0 0.0
    %4982 = vmatpush1.msra.mxu0 0.0
    %4983 = vmatprep.subr.mxu0 0.0
    %4984 = vmatpush1.msra.mxu0 0.0
    %4985 = vmatprep.subr.mxu0 0.0
    %4986 = vmatpush1.msra.mxu0 0.0
    %4987 = vmatprep.subr.mxu0 0.0
    %4988 = vmatpush1.msra.mxu0 0.0
    %4989 = vmatprep.subr.mxu0 0.0
    %4990 = vmatpush1.msra.mxu0 0.0
    %4991 = vmatprep.subr.mxu0 0.0
    %4992 = vmatpush1.msra.mxu0 0.0
    %4993 = vmatprep.subr.mxu0 0.0
    %4994 = vmatpush1.msra.mxu0 0.0
    %4995 = vmatprep.subr.mxu0 0.0
    %4996 = vmatpush1.msra.mxu0 0.0
    %4997 = vmatprep.subr.mxu0 0.0
    %4998 = vmatpush1.msra.mxu0 0.0
    %4999 = vmatprep.subr.mxu0 0.0
    %5000 = vmatpush1.msra.mxu0 0.0
    %5001 = vmatprep.subr.mxu0 0.0
    %5002 = vmatpush1.msra.mxu0 0.0
    %5003 = vmatprep.subr.mxu0 0.0
    %5004 = vmatpush1.msra.mxu0 0.0
    %5005 = vmatprep.subr.mxu0 0.0
    %5006 = vmatpush1.msra.mxu0 0.0
    %5007 = vmatprep.subr.mxu0 0.0
    %5008 = vmatpush1.msra.mxu0 0.0
    %5009 = vmatprep.mubr.f32.mxu0 0.0
    %v5010 = vand.u32 %v291, 4294901760
    %v5011 = vsub.f32 %v291, %v5010
    %v5012 = vand.u32 %v5011, 4294901760
    %5013 = vmatmul.mubr.f32.gmra.mrb[0].mxu0 %v5012
    %v5014 = vpop.f32.mrb[0].mxu0
    %v5015 = vadd.f32 %v4938, %v5014
    %v5016 = vpop.f32.mrb[0].mxu0
    %5017 = vdwg.mxu0
    %5018 = vmatprep.subr.mxu0 0.0
    %v5019 = vand.u32 %v132, 4294901760
    %v5020 = vsub.f32 %v132, %v5019
    %v5021 = vand.u32 %v5020, 4294901760
    %5022 = vmatpush1.msra.mxu0 %v5021
    %5023 = vmatprep.subr.mxu0 0.0
    %v5024 = vand.u32 %v133, 4294901760
    %v5025 = vsub.f32 %v133, %v5024
    %v5026 = vand.u32 %v5025, 4294901760
    %5027 = vmatpush1.msra.mxu0 %v5026
    %5028 = vmatprep.subr.mxu0 0.0
    %v5029 = vand.u32 %v134, 4294901760
    %v5030 = vsub.f32 %v134, %v5029
    %v5031 = vand.u32 %v5030, 4294901760
    %5032 = vmatpush1.msra.mxu0 %v5031
    %5033 = vmatprep.subr.mxu0 0.0
    %v5034 = vand.u32 %v135, 4294901760
    %v5035 = vsub.f32 %v135, %v5034
    %v5036 = vand.u32 %v5035, 4294901760
    %5037 = vmatpush1.msra.mxu0 %v5036
    %5038 = vmatprep.subr.mxu0 0.0
    %5039 = vmatpush1.msra.mxu0 0.0
    %5040 = vmatprep.subr.mxu0 0.0
    %5041 = vmatpush1.msra.mxu0 0.0
    %5042 = vmatprep.subr.mxu0 0.0
    %5043 = vmatpush1.msra.mxu0 0.0
    %5044 = vmatprep.subr.mxu0 0.0
    %5045 = vmatpush1.msra.mxu0 0.0
    %5046 = vmatprep.subr.mxu0 0.0
    %5047 = vmatpush1.msra.mxu0 0.0
    %5048 = vmatprep.subr.mxu0 0.0
    %5049 = vmatpush1.msra.mxu0 0.0
    %5050 = vmatprep.subr.mxu0 0.0
    %5051 = vmatpush1.msra.mxu0 0.0
    %5052 = vmatprep.subr.mxu0 0.0
    %5053 = vmatpush1.msra.mxu0 0.0
    %5054 = vmatprep.subr.mxu0 0.0
    %5055 = vmatpush1.msra.mxu0 0.0
    %5056 = vmatprep.subr.mxu0 0.0
    %5057 = vmatpush1.msra.mxu0 0.0
    %5058 = vmatprep.subr.mxu0 0.0
    %5059 = vmatpush1.msra.mxu0 0.0
    %5060 = vmatprep.subr.mxu0 0.0
    %5061 = vmatpush1.msra.mxu0 0.0
    %5062 = vmatprep.subr.mxu0 0.0
    %5063 = vmatpush1.msra.mxu0 0.0
    %5064 = vmatprep.subr.mxu0 0.0
    %5065 = vmatpush1.msra.mxu0 0.0
    %5066 = vmatprep.subr.mxu0 0.0
    %5067 = vmatpush1.msra.mxu0 0.0
    %5068 = vmatprep.subr.mxu0 0.0
    %5069 = vmatpush1.msra.mxu0 0.0
    %5070 = vmatprep.subr.mxu0 0.0
    %5071 = vmatpush1.msra.mxu0 0.0
    %5072 = vmatprep.subr.mxu0 0.0
    %5073 = vmatpush1.msra.mxu0 0.0
    %5074 = vmatprep.subr.mxu0 0.0
    %5075 = vmatpush1.msra.mxu0 0.0
    %5076 = vmatprep.subr.mxu0 0.0
    %5077 = vmatpush1.msra.mxu0 0.0
    %5078 = vmatprep.subr.mxu0 0.0
    %5079 = vmatpush1.msra.mxu0 0.0
    %5080 = vmatprep.subr.mxu0 0.0
    %5081 = vmatpush1.msra.mxu0 0.0
    %5082 = vmatprep.subr.mxu0 0.0
    %5083 = vmatpush1.msra.mxu0 0.0
    %5084 = vmatprep.subr.mxu0 0.0
    %5085 = vmatpush1.msra.mxu0 0.0
    %5086 = vmatprep.subr.mxu0 0.0
    %5087 = vmatpush1.msra.mxu0 0.0
    %5088 = vmatprep.subr.mxu0 0.0
    %5089 = vmatpush1.msra.mxu0 0.0
    %5090 = vmatprep.subr.mxu0 0.0
    %5091 = vmatpush1.msra.mxu0 0.0
    %5092 = vmatprep.subr.mxu0 0.0
    %5093 = vmatpush1.msra.mxu0 0.0
    %5094 = vmatprep.mubr.f32.mxu0 0.0
    %v5095 = vand.u32 %v291, 4294901760
    %5096 = vmatmul.mubr.f32.gmra.mrb[0].mxu0 %v5095
    %v5097 = vpop.f32.mrb[0].mxu0
    %v5098 = vadd.f32 %v5015, %v5097
    %v5099 = vpop.f32.mrb[0].mxu0
    %5100 = vdwg.mxu0
    %5101 = vmatprep.subr.mxu0 0.0
    %v5102 = vand.u32 %v132, 4294901760
    %5103 = vmatpush1.msra.mxu0 %v5102
    %5104 = vmatprep.subr.mxu0 0.0
    %v5105 = vand.u32 %v133, 4294901760
    %5106 = vmatpush1.msra.mxu0 %v5105
    %5107 = vmatprep.subr.mxu0 0.0
    %v5108 = vand.u32 %v134, 4294901760
    %5109 = vmatpush1.msra.mxu0 %v5108
    %5110 = vmatprep.subr.mxu0 0.0
    %v5111 = vand.u32 %v135, 4294901760
    %5112 = vmatpush1.msra.mxu0 %v5111
    %5113 = vmatprep.subr.mxu0 0.0
    %5114 = vmatpush1.msra.mxu0 0.0
    %5115 = vmatprep.subr.mxu0 0.0
    %5116 = vmatpush1.msra.mxu0 0.0
    %5117 = vmatprep.subr.mxu0 0.0
    %5118 = vmatpush1.msra.mxu0 0.0
    %5119 = vmatprep.subr.mxu0 0.0
    %5120 = vmatpush1.msra.mxu0 0.0
    %5121 = vmatprep.subr.mxu0 0.0
    %5122 = vmatpush1.msra.mxu0 0.0
    %5123 = vmatprep.subr.mxu0 0.0
    %5124 = vmatpush1.msra.mxu0 0.0
    %5125 = vmatprep.subr.mxu0 0.0
    %5126 = vmatpush1.msra.mxu0 0.0
    %5127 = vmatprep.subr.mxu0 0.0
    %5128 = vmatpush1.msra.mxu0 0.0
    %5129 = vmatprep.subr.mxu0 0.0
    %5130 = vmatpush1.msra.mxu0 0.0
    %5131 = vmatprep.subr.mxu0 0.0
    %5132 = vmatpush1.msra.mxu0 0.0
    %5133 = vmatprep.subr.mxu0 0.0
    %5134 = vmatpush1.msra.mxu0 0.0
    %5135 = vmatprep.subr.mxu0 0.0
    %5136 = vmatpush1.msra.mxu0 0.0
    %5137 = vmatprep.subr.mxu0 0.0
    %5138 = vmatpush1.msra.mxu0 0.0
    %5139 = vmatprep.subr.mxu0 0.0
    %5140 = vmatpush1.msra.mxu0 0.0
    %5141 = vmatprep.subr.mxu0 0.0
    %5142 = vmatpush1.msra.mxu0 0.0
    %5143 = vmatprep.subr.mxu0 0.0
    %5144 = vmatpush1.msra.mxu0 0.0
    %5145 = vmatprep.subr.mxu0 0.0
    %5146 = vmatpush1.msra.mxu0 0.0
    %5147 = vmatprep.subr.mxu0 0.0
    %5148 = vmatpush1.msra.mxu0 0.0
    %5149 = vmatprep.subr.mxu0 0.0
    %5150 = vmatpush1.msra.mxu0 0.0
    %5151 = vmatprep.subr.mxu0 0.0
    %5152 = vmatpush1.msra.mxu0 0.0
    %5153 = vmatprep.subr.mxu0 0.0
    %5154 = vmatpush1.msra.mxu0 0.0
    %5155 = vmatprep.subr.mxu0 0.0
    %5156 = vmatpush1.msra.mxu0 0.0
    %5157 = vmatprep.subr.mxu0 0.0
    %5158 = vmatpush1.msra.mxu0 0.0
    %5159 = vmatprep.subr.mxu0 0.0
    %5160 = vmatpush1.msra.mxu0 0.0
    %5161 = vmatprep.subr.mxu0 0.0
    %5162 = vmatpush1.msra.mxu0 0.0
    %5163 = vmatprep.subr.mxu0 0.0
    %5164 = vmatpush1.msra.mxu0 0.0
    %5165 = vmatprep.subr.mxu0 0.0
    %5166 = vmatpush1.msra.mxu0 0.0
    %5167 = vmatprep.subr.mxu0 0.0
    %5168 = vmatpush1.msra.mxu0 0.0
    %5169 = vmatprep.mubr.f32.mxu0 0.0
    %v5170 = vand.u32 %v291, 4294901760
    %5171 = vmatmul.mubr.f32.gmra.mrb[0].mxu0 %v5170
    %v5172 = vpop.f32.mrb[0].mxu0
    %v5173 = vadd.f32 %v5098, %v5172
    %v5174 = vpop.f32.mrb[0].mxu0
    %5175 = vdwg.mxu0
    %5176 = vmatprep.subr.mxu0 0.0
    %v5177 = vand.u32 %v136, 4294901760
    %5178 = vmatpush1.msra.mxu0 %v5177
    %5179 = vmatprep.subr.mxu0 0.0
    %v5180 = vand.u32 %v137, 4294901760
    %5181 = vmatpush1.msra.mxu0 %v5180
    %5182 = vmatprep.subr.mxu0 0.0
    %v5183 = vand.u32 %v138, 4294901760
    %5184 = vmatpush1.msra.mxu0 %v5183
    %5185 = vmatprep.subr.mxu0 0.0
    %v5186 = vand.u32 %v139, 4294901760
    %5187 = vmatpush1.msra.mxu0 %v5186
    %5188 = vmatprep.subr.mxu0 0.0
    %5189 = vmatpush1.msra.mxu0 0.0
    %5190 = vmatprep.subr.mxu0 0.0
    %5191 = vmatpush1.msra.mxu0 0.0
    %5192 = vmatprep.subr.mxu0 0.0
    %5193 = vmatpush1.msra.mxu0 0.0
    %5194 = vmatprep.subr.mxu0 0.0
    %5195 = vmatpush1.msra.mxu0 0.0
    %5196 = vmatprep.subr.mxu0 0.0
    %5197 = vmatpush1.msra.mxu0 0.0
    %5198 = vmatprep.subr.mxu0 0.0
    %5199 = vmatpush1.msra.mxu0 0.0
    %5200 = vmatprep.subr.mxu0 0.0
    %5201 = vmatpush1.msra.mxu0 0.0
    %5202 = vmatprep.subr.mxu0 0.0
    %5203 = vmatpush1.msra.mxu0 0.0
    %5204 = vmatprep.subr.mxu0 0.0
    %5205 = vmatpush1.msra.mxu0 0.0
    %5206 = vmatprep.subr.mxu0 0.0
    %5207 = vmatpush1.msra.mxu0 0.0
    %5208 = vmatprep.subr.mxu0 0.0
    %5209 = vmatpush1.msra.mxu0 0.0
    %5210 = vmatprep.subr.mxu0 0.0
    %5211 = vmatpush1.msra.mxu0 0.0
    %5212 = vmatprep.subr.mxu0 0.0
    %5213 = vmatpush1.msra.mxu0 0.0
    %5214 = vmatprep.subr.mxu0 0.0
    %5215 = vmatpush1.msra.mxu0 0.0
    %5216 = vmatprep.subr.mxu0 0.0
    %5217 = vmatpush1.msra.mxu0 0.0
    %5218 = vmatprep.subr.mxu0 0.0
    %5219 = vmatpush1.msra.mxu0 0.0
    %5220 = vmatprep.subr.mxu0 0.0
    %5221 = vmatpush1.msra.mxu0 0.0
    %5222 = vmatprep.subr.mxu0 0.0
    %5223 = vmatpush1.msra.mxu0 0.0
    %5224 = vmatprep.subr.mxu0 0.0
    %5225 = vmatpush1.msra.mxu0 0.0
    %5226 = vmatprep.subr.mxu0 0.0
    %5227 = vmatpush1.msra.mxu0 0.0
    %5228 = vmatprep.subr.mxu0 0.0
    %5229 = vmatpush1.msra.mxu0 0.0
    %5230 = vmatprep.subr.mxu0 0.0
    %5231 = vmatpush1.msra.mxu0 0.0
    %5232 = vmatprep.subr.mxu0 0.0
    %5233 = vmatpush1.msra.mxu0 0.0
    %5234 = vmatprep.subr.mxu0 0.0
    %5235 = vmatpush1.msra.mxu0 0.0
    %5236 = vmatprep.subr.mxu0 0.0
    %5237 = vmatpush1.msra.mxu0 0.0
    %5238 = vmatprep.subr.mxu0 0.0
    %5239 = vmatpush1.msra.mxu0 0.0
    %5240 = vmatprep.subr.mxu0 0.0
    %5241 = vmatpush1.msra.mxu0 0.0
    %5242 = vmatprep.subr.mxu0 0.0
    %5243 = vmatpush1.msra.mxu0 0.0
    %5244 = vmatprep.mubr.f32.mxu0 0.0
    %v5245 = vand.u32 %v291, 4294901760
    %v5246 = vsub.f32 %v291, %v5245
    %v5247 = vand.u32 %v5246, 4294901760
    %v5248 = vsub.f32 %v5246, %v5247
    %v5249 = vand.u32 %v5248, 4294901760
    %5250 = vmatmul.mubr.f32.gmra.mrb[0].mxu0 %v5249
    %v5251 = vpop.f32.mrb[0].mxu0
    %v5252 = vadd.f32 0.0, %v5251
    %v5253 = vpop.f32.mrb[0].mxu0
    %5254 = vdwg.mxu0
    %5255 = vmatprep.subr.mxu0 0.0
    %v5256 = vand.u32 %v136, 4294901760
    %v5257 = vsub.f32 %v136, %v5256
    %v5258 = vand.u32 %v5257, 4294901760
    %v5259 = vsub.f32 %v5257, %v5258
    %v5260 = vand.u32 %v5259, 4294901760
    %5261 = vmatpush1.msra.mxu0 %v5260
    %5262 = vmatprep.subr.mxu0 0.0
    %v5263 = vand.u32 %v137, 4294901760
    %v5264 = vsub.f32 %v137, %v5263
    %v5265 = vand.u32 %v5264, 4294901760
    %v5266 = vsub.f32 %v5264, %v5265
    %v5267 = vand.u32 %v5266, 4294901760
    %5268 = vmatpush1.msra.mxu0 %v5267
    %5269 = vmatprep.subr.mxu0 0.0
    %v5270 = vand.u32 %v138, 4294901760
    %v5271 = vsub.f32 %v138, %v5270
    %v5272 = vand.u32 %v5271, 4294901760
    %v5273 = vsub.f32 %v5271, %v5272
    %v5274 = vand.u32 %v5273, 4294901760
    %5275 = vmatpush1.msra.mxu0 %v5274
    %5276 = vmatprep.subr.mxu0 0.0
    %v5277 = vand.u32 %v139, 4294901760
    %v5278 = vsub.f32 %v139, %v5277
    %v5279 = vand.u32 %v5278, 4294901760
    %v5280 = vsub.f32 %v5278, %v5279
    %v5281 = vand.u32 %v5280, 4294901760
    %5282 = vmatpush1.msra.mxu0 %v5281
    %5283 = vmatprep.subr.mxu0 0.0
    %5284 = vmatpush1.msra.mxu0 0.0
    %5285 = vmatprep.subr.mxu0 0.0
    %5286 = vmatpush1.msra.mxu0 0.0
    %5287 = vmatprep.subr.mxu0 0.0
    %5288 = vmatpush1.msra.mxu0 0.0
    %5289 = vmatprep.subr.mxu0 0.0
    %5290 = vmatpush1.msra.mxu0 0.0
    %5291 = vmatprep.subr.mxu0 0.0
    %5292 = vmatpush1.msra.mxu0 0.0
    %5293 = vmatprep.subr.mxu0 0.0
    %5294 = vmatpush1.msra.mxu0 0.0
    %5295 = vmatprep.subr.mxu0 0.0
    %5296 = vmatpush1.msra.mxu0 0.0
    %5297 = vmatprep.subr.mxu0 0.0
    %5298 = vmatpush1.msra.mxu0 0.0
    %5299 = vmatprep.subr.mxu0 0.0
    %5300 = vmatpush1.msra.mxu0 0.0
    %5301 = vmatprep.subr.mxu0 0.0
    %5302 = vmatpush1.msra.mxu0 0.0
    %5303 = vmatprep.subr.mxu0 0.0
    %5304 = vmatpush1.msra.mxu0 0.0
    %5305 = vmatprep.subr.mxu0 0.0
    %5306 = vmatpush1.msra.mxu0 0.0
    %5307 = vmatprep.subr.mxu0 0.0
    %5308 = vmatpush1.msra.mxu0 0.0
    %5309 = vmatprep.subr.mxu0 0.0
    %5310 = vmatpush1.msra.mxu0 0.0
    %5311 = vmatprep.subr.mxu0 0.0
    %5312 = vmatpush1.msra.mxu0 0.0
    %5313 = vmatprep.subr.mxu0 0.0
    %5314 = vmatpush1.msra.mxu0 0.0
    %5315 = vmatprep.subr.mxu0 0.0
    %5316 = vmatpush1.msra.mxu0 0.0
    %5317 = vmatprep.subr.mxu0 0.0
    %5318 = vmatpush1.msra.mxu0 0.0
    %5319 = vmatprep.subr.mxu0 0.0
    %5320 = vmatpush1.msra.mxu0 0.0
    %5321 = vmatprep.subr.mxu0 0.0
    %5322 = vmatpush1.msra.mxu0 0.0
    %5323 = vmatprep.subr.mxu0 0.0
    %5324 = vmatpush1.msra.mxu0 0.0
    %5325 = vmatprep.subr.mxu0 0.0
    %5326 = vmatpush1.msra.mxu0 0.0
    %5327 = vmatprep.subr.mxu0 0.0
    %5328 = vmatpush1.msra.mxu0 0.0
    %5329 = vmatprep.subr.mxu0 0.0
    %5330 = vmatpush1.msra.mxu0 0.0
    %5331 = vmatprep.subr.mxu0 0.0
    %5332 = vmatpush1.msra.mxu0 0.0
    %5333 = vmatprep.subr.mxu0 0.0
    %5334 = vmatpush1.msra.mxu0 0.0
    %5335 = vmatprep.subr.mxu0 0.0
    %5336 = vmatpush1.msra.mxu0 0.0
    %5337 = vmatprep.subr.mxu0 0.0
    %5338 = vmatpush1.msra.mxu0 0.0
    %5339 = vmatprep.mubr.f32.mxu0 0.0
    %v5340 = vand.u32 %v291, 4294901760
    %5341 = vmatmul.mubr.f32.gmra.mrb[0].mxu0 %v5340
    %v5342 = vpop.f32.mrb[0].mxu0
    %v5343 = vadd.f32 %v5252, %v5342
    %v5344 = vpop.f32.mrb[0].mxu0
    %5345 = vdwg.mxu0
    %5346 = vmatprep.subr.mxu0 0.0
    %v5347 = vand.u32 %v136, 4294901760
    %v5348 = vsub.f32 %v136, %v5347
    %5349 = vmatpush1.msra.mxu0 %v5348
    %5350 = vmatprep.subr.mxu0 0.0
    %v5351 = vand.u32 %v137, 4294901760
    %v5352 = vsub.f32 %v137, %v5351
    %5353 = vmatpush1.msra.mxu0 %v5352
    %5354 = vmatprep.subr.mxu0 0.0
    %v5355 = vand.u32 %v138, 4294901760
    %v5356 = vsub.f32 %v138, %v5355
    %5357 = vmatpush1.msra.mxu0 %v5356
    %5358 = vmatprep.subr.mxu0 0.0
    %v5359 = vand.u32 %v139, 4294901760
    %v5360 = vsub.f32 %v139, %v5359
    %5361 = vmatpush1.msra.mxu0 %v5360
    %5362 = vmatprep.subr.mxu0 0.0
    %5363 = vmatpush1.msra.mxu0 0.0
    %5364 = vmatprep.subr.mxu0 0.0
    %5365 = vmatpush1.msra.mxu0 0.0
    %5366 = vmatprep.subr.mxu0 0.0
    %5367 = vmatpush1.msra.mxu0 0.0
    %5368 = vmatprep.subr.mxu0 0.0
    %5369 = vmatpush1.msra.mxu0 0.0
    %5370 = vmatprep.subr.mxu0 0.0
    %5371 = vmatpush1.msra.mxu0 0.0
    %5372 = vmatprep.subr.mxu0 0.0
    %5373 = vmatpush1.msra.mxu0 0.0
    %5374 = vmatprep.subr.mxu0 0.0
    %5375 = vmatpush1.msra.mxu0 0.0
    %5376 = vmatprep.subr.mxu0 0.0
    %5377 = vmatpush1.msra.mxu0 0.0
    %5378 = vmatprep.subr.mxu0 0.0
    %5379 = vmatpush1.msra.mxu0 0.0
    %5380 = vmatprep.subr.mxu0 0.0
    %5381 = vmatpush1.msra.mxu0 0.0
    %5382 = vmatprep.subr.mxu0 0.0
    %5383 = vmatpush1.msra.mxu0 0.0
    %5384 = vmatprep.subr.mxu0 0.0
    %5385 = vmatpush1.msra.mxu0 0.0
    %5386 = vmatprep.subr.mxu0 0.0
    %5387 = vmatpush1.msra.mxu0 0.0
    %5388 = vmatprep.subr.mxu0 0.0
    %5389 = vmatpush1.msra.mxu0 0.0
    %5390 = vmatprep.subr.mxu0 0.0
    %5391 = vmatpush1.msra.mxu0 0.0
    %5392 = vmatprep.subr.mxu0 0.0
    %5393 = vmatpush1.msra.mxu0 0.0
    %5394 = vmatprep.subr.mxu0 0.0
    %5395 = vmatpush1.msra.mxu0 0.0
    %5396 = vmatprep.subr.mxu0 0.0
    %5397 = vmatpush1.msra.mxu0 0.0
    %5398 = vmatprep.subr.mxu0 0.0
    %5399 = vmatpush1.msra.mxu0 0.0
    %5400 = vmatprep.subr.mxu0 0.0
    %5401 = vmatpush1.msra.mxu0 0.0
    %5402 = vmatprep.subr.mxu0 0.0
    %5403 = vmatpush1.msra.mxu0 0.0
    %5404 = vmatprep.subr.mxu0 0.0
    %5405 = vmatpush1.msra.mxu0 0.0
    %5406 = vmatprep.subr.mxu0 0.0
    %5407 = vmatpush1.msra.mxu0 0.0
    %5408 = vmatprep.subr.mxu0 0.0
    %5409 = vmatpush1.msra.mxu0 0.0
    %5410 = vmatprep.subr.mxu0 0.0
    %5411 = vmatpush1.msra.mxu0 0.0
    %5412 = vmatprep.subr.mxu0 0.0
    %5413 = vmatpush1.msra.mxu0 0.0
    %5414 = vmatprep.subr.mxu0 0.0
    %5415 = vmatpush1.msra.mxu0 0.0
    %5416 = vmatprep.subr.mxu0 0.0
    %5417 = vmatpush1.msra.mxu0 0.0
    %5418 = vmatprep.mubr.f32.mxu0 0.0
    %v5419 = vand.u32 %v291, 4294901760
    %v5420 = vsub.f32 %v291, %v5419
    %5421 = vmatmul.mubr.f32.gmra.mrb[0].mxu0 %v5420
    %v5422 = vpop.f32.mrb[0].mxu0
    %v5423 = vadd.f32 %v5343, %v5422
    %v5424 = vpop.f32.mrb[0].mxu0
    %5425 = vdwg.mxu0
    %5426 = vmatprep.subr.mxu0 0.0
    %v5427 = vand.u32 %v136, 4294901760
    %5428 = vmatpush1.msra.mxu0 %v5427
    %5429 = vmatprep.subr.mxu0 0.0
    %v5430 = vand.u32 %v137, 4294901760
    %5431 = vmatpush1.msra.mxu0 %v5430
    %5432 = vmatprep.subr.mxu0 0.0
    %v5433 = vand.u32 %v138, 4294901760
    %5434 = vmatpush1.msra.mxu0 %v5433
    %5435 = vmatprep.subr.mxu0 0.0
    %v5436 = vand.u32 %v139, 4294901760
    %5437 = vmatpush1.msra.mxu0 %v5436
    %5438 = vmatprep.subr.mxu0 0.0
    %5439 = vmatpush1.msra.mxu0 0.0
    %5440 = vmatprep.subr.mxu0 0.0
    %5441 = vmatpush1.msra.mxu0 0.0
    %5442 = vmatprep.subr.mxu0 0.0
    %5443 = vmatpush1.msra.mxu0 0.0
    %5444 = vmatprep.subr.mxu0 0.0
    %5445 = vmatpush1.msra.mxu0 0.0
    %5446 = vmatprep.subr.mxu0 0.0
    %5447 = vmatpush1.msra.mxu0 0.0
    %5448 = vmatprep.subr.mxu0 0.0
    %5449 = vmatpush1.msra.mxu0 0.0
    %5450 = vmatprep.subr.mxu0 0.0
    %5451 = vmatpush1.msra.mxu0 0.0
    %5452 = vmatprep.subr.mxu0 0.0
    %5453 = vmatpush1.msra.mxu0 0.0
    %5454 = vmatprep.subr.mxu0 0.0
    %5455 = vmatpush1.msra.mxu0 0.0
    %5456 = vmatprep.subr.mxu0 0.0
    %5457 = vmatpush1.msra.mxu0 0.0
    %5458 = vmatprep.subr.mxu0 0.0
    %5459 = vmatpush1.msra.mxu0 0.0
    %5460 = vmatprep.subr.mxu0 0.0
    %5461 = vmatpush1.msra.mxu0 0.0
    %5462 = vmatprep.subr.mxu0 0.0
    %5463 = vmatpush1.msra.mxu0 0.0
    %5464 = vmatprep.subr.mxu0 0.0
    %5465 = vmatpush1.msra.mxu0 0.0
    %5466 = vmatprep.subr.mxu0 0.0
    %5467 = vmatpush1.msra.mxu0 0.0
    %5468 = vmatprep.subr.mxu0 0.0
    %5469 = vmatpush1.msra.mxu0 0.0
    %5470 = vmatprep.subr.mxu0 0.0
    %5471 = vmatpush1.msra.mxu0 0.0
    %5472 = vmatprep.subr.mxu0 0.0
    %5473 = vmatpush1.msra.mxu0 0.0
    %5474 = vmatprep.subr.mxu0 0.0
    %5475 = vmatpush1.msra.mxu0 0.0
    %5476 = vmatprep.subr.mxu0 0.0
    %5477 = vmatpush1.msra.mxu0 0.0
    %5478 = vmatprep.subr.mxu0 0.0
    %5479 = vmatpush1.msra.mxu0 0.0
    %5480 = vmatprep.subr.mxu0 0.0
    %5481 = vmatpush1.msra.mxu0 0.0
    %5482 = vmatprep.subr.mxu0 0.0
    %5483 = vmatpush1.msra.mxu0 0.0
    %5484 = vmatprep.subr.mxu0 0.0
    %5485 = vmatpush1.msra.mxu0 0.0
    %5486 = vmatprep.subr.mxu0 0.0
    %5487 = vmatpush1.msra.mxu0 0.0
    %5488 = vmatprep.subr.mxu0 0.0
    %5489 = vmatpush1.msra.mxu0 0.0
    %5490 = vmatprep.subr.mxu0 0.0
    %5491 = vmatpush1.msra.mxu0 0.0
    %5492 = vmatprep.subr.mxu0 0.0
    %5493 = vmatpush1.msra.mxu0 0.0
    %5494 = vmatprep.mubr.f32.mxu0 0.0
    %v5495 = vand.u32 %v291, 4294901760
    %v5496 = vsub.f32 %v291, %v5495
    %v5497 = vand.u32 %v5496, 4294901760
    %5498 = vmatmul.mubr.f32.gmra.mrb[0].mxu0 %v5497
    %v5499 = vpop.f32.mrb[0].mxu0
    %v5500 = vadd.f32 %v5423, %v5499
    %v5501 = vpop.f32.mrb[0].mxu0
    %5502 = vdwg.mxu0
    %5503 = vmatprep.subr.mxu0 0.0
    %v5504 = vand.u32 %v136, 4294901760
    %v5505 = vsub.f32 %v136, %v5504
    %v5506 = vand.u32 %v5505, 4294901760
    %5507 = vmatpush1.msra.mxu0 %v5506
    %5508 = vmatprep.subr.mxu0 0.0
    %v5509 = vand.u32 %v137, 4294901760
    %v5510 = vsub.f32 %v137, %v5509
    %v5511 = vand.u32 %v5510, 4294901760
    %5512 = vmatpush1.msra.mxu0 %v5511
    %5513 = vmatprep.subr.mxu0 0.0
    %v5514 = vand.u32 %v138, 4294901760
    %v5515 = vsub.f32 %v138, %v5514
    %v5516 = vand.u32 %v5515, 4294901760
    %5517 = vmatpush1.msra.mxu0 %v5516
    %5518 = vmatprep.subr.mxu0 0.0
    %v5519 = vand.u32 %v139, 4294901760
    %v5520 = vsub.f32 %v139, %v5519
    %v5521 = vand.u32 %v5520, 4294901760
    %5522 = vmatpush1.msra.mxu0 %v5521
    %5523 = vmatprep.subr.mxu0 0.0
    %5524 = vmatpush1.msra.mxu0 0.0
    %5525 = vmatprep.subr.mxu0 0.0
    %5526 = vmatpush1.msra.mxu0 0.0
    %5527 = vmatprep.subr.mxu0 0.0
    %5528 = vmatpush1.msra.mxu0 0.0
    %5529 = vmatprep.subr.mxu0 0.0
    %5530 = vmatpush1.msra.mxu0 0.0
    %5531 = vmatprep.subr.mxu0 0.0
    %5532 = vmatpush1.msra.mxu0 0.0
    %5533 = vmatprep.subr.mxu0 0.0
    %5534 = vmatpush1.msra.mxu0 0.0
    %5535 = vmatprep.subr.mxu0 0.0
    %5536 = vmatpush1.msra.mxu0 0.0
    %5537 = vmatprep.subr.mxu0 0.0
    %5538 = vmatpush1.msra.mxu0 0.0
    %5539 = vmatprep.subr.mxu0 0.0
    %5540 = vmatpush1.msra.mxu0 0.0
    %5541 = vmatprep.subr.mxu0 0.0
    %5542 = vmatpush1.msra.mxu0 0.0
    %5543 = vmatprep.subr.mxu0 0.0
    %5544 = vmatpush1.msra.mxu0 0.0
    %5545 = vmatprep.subr.mxu0 0.0
    %5546 = vmatpush1.msra.mxu0 0.0
    %5547 = vmatprep.subr.mxu0 0.0
    %5548 = vmatpush1.msra.mxu0 0.0
    %5549 = vmatprep.subr.mxu0 0.0
    %5550 = vmatpush1.msra.mxu0 0.0
    %5551 = vmatprep.subr.mxu0 0.0
    %5552 = vmatpush1.msra.mxu0 0.0
    %5553 = vmatprep.subr.mxu0 0.0
    %5554 = vmatpush1.msra.mxu0 0.0
    %5555 = vmatprep.subr.mxu0 0.0
    %5556 = vmatpush1.msra.mxu0 0.0
    %5557 = vmatprep.subr.mxu0 0.0
    %5558 = vmatpush1.msra.mxu0 0.0
    %5559 = vmatprep.subr.mxu0 0.0
    %5560 = vmatpush1.msra.mxu0 0.0
    %5561 = vmatprep.subr.mxu0 0.0
    %5562 = vmatpush1.msra.mxu0 0.0
    %5563 = vmatprep.subr.mxu0 0.0
    %5564 = vmatpush1.msra.mxu0 0.0
    %5565 = vmatprep.subr.mxu0 0.0
    %5566 = vmatpush1.msra.mxu0 0.0
    %5567 = vmatprep.subr.mxu0 0.0
    %5568 = vmatpush1.msra.mxu0 0.0
    %5569 = vmatprep.subr.mxu0 0.0
    %5570 = vmatpush1.msra.mxu0 0.0
    %5571 = vmatprep.subr.mxu0 0.0
    %5572 = vmatpush1.msra.mxu0 0.0
    %5573 = vmatprep.subr.mxu0 0.0
    %5574 = vmatpush1.msra.mxu0 0.0
    %5575 = vmatprep.subr.mxu0 0.0
    %5576 = vmatpush1.msra.mxu0 0.0
    %5577 = vmatprep.subr.mxu0 0.0
    %5578 = vmatpush1.msra.mxu0 0.0
    %5579 = vmatprep.mubr.f32.mxu0 0.0
    %v5580 = vand.u32 %v291, 4294901760
    %5581 = vmatmul.mubr.f32.gmra.mrb[0].mxu0 %v5580
    %v5582 = vpop.f32.mrb[0].mxu0
    %v5583 = vadd.f32 %v5500, %v5582
    %v5584 = vpop.f32.mrb[0].mxu0
    %5585 = vdwg.mxu0
    %5586 = vmatprep.subr.mxu0 0.0
    %v5587 = vand.u32 %v136, 4294901760
    %5588 = vmatpush1.msra.mxu0 %v5587
    %5589 = vmatprep.subr.mxu0 0.0
    %v5590 = vand.u32 %v137, 4294901760
    %5591 = vmatpush1.msra.mxu0 %v5590
    %5592 = vmatprep.subr.mxu0 0.0
    %v5593 = vand.u32 %v138, 4294901760
    %5594 = vmatpush1.msra.mxu0 %v5593
    %5595 = vmatprep.subr.mxu0 0.0
    %v5596 = vand.u32 %v139, 4294901760
    %5597 = vmatpush1.msra.mxu0 %v5596
    %5598 = vmatprep.subr.mxu0 0.0
    %5599 = vmatpush1.msra.mxu0 0.0
    %5600 = vmatprep.subr.mxu0 0.0
    %5601 = vmatpush1.msra.mxu0 0.0
    %5602 = vmatprep.subr.mxu0 0.0
    %5603 = vmatpush1.msra.mxu0 0.0
    %5604 = vmatprep.subr.mxu0 0.0
    %5605 = vmatpush1.msra.mxu0 0.0
    %5606 = vmatprep.subr.mxu0 0.0
    %5607 = vmatpush1.msra.mxu0 0.0
    %5608 = vmatprep.subr.mxu0 0.0
    %5609 = vmatpush1.msra.mxu0 0.0
    %5610 = vmatprep.subr.mxu0 0.0
    %5611 = vmatpush1.msra.mxu0 0.0
    %5612 = vmatprep.subr.mxu0 0.0
    %5613 = vmatpush1.msra.mxu0 0.0
    %5614 = vmatprep.subr.mxu0 0.0
    %5615 = vmatpush1.msra.mxu0 0.0
    %5616 = vmatprep.subr.mxu0 0.0
    %5617 = vmatpush1.msra.mxu0 0.0
    %5618 = vmatprep.subr.mxu0 0.0
    %5619 = vmatpush1.msra.mxu0 0.0
    %5620 = vmatprep.subr.mxu0 0.0
    %5621 = vmatpush1.msra.mxu0 0.0
    %5622 = vmatprep.subr.mxu0 0.0
    %5623 = vmatpush1.msra.mxu0 0.0
    %5624 = vmatprep.subr.mxu0 0.0
    %5625 = vmatpush1.msra.mxu0 0.0
    %5626 = vmatprep.subr.mxu0 0.0
    %5627 = vmatpush1.msra.mxu0 0.0
    %5628 = vmatprep.subr.mxu0 0.0
    %5629 = vmatpush1.msra.mxu0 0.0
    %5630 = vmatprep.subr.mxu0 0.0
    %5631 = vmatpush1.msra.mxu0 0.0
    %5632 = vmatprep.subr.mxu0 0.0
    %5633 = vmatpush1.msra.mxu0 0.0
    %5634 = vmatprep.subr.mxu0 0.0
    %5635 = vmatpush1.msra.mxu0 0.0
    %5636 = vmatprep.subr.mxu0 0.0
    %5637 = vmatpush1.msra.mxu0 0.0
    %5638 = vmatprep.subr.mxu0 0.0
    %5639 = vmatpush1.msra.mxu0 0.0
    %5640 = vmatprep.subr.mxu0 0.0
    %5641 = vmatpush1.msra.mxu0 0.0
    %5642 = vmatprep.subr.mxu0 0.0
    %5643 = vmatpush1.msra.mxu0 0.0
    %5644 = vmatprep.subr.mxu0 0.0
    %5645 = vmatpush1.msra.mxu0 0.0
    %5646 = vmatprep.subr.mxu0 0.0
    %5647 = vmatpush1.msra.mxu0 0.0
    %5648 = vmatprep.subr.mxu0 0.0
    %5649 = vmatpush1.msra.mxu0 0.0
    %5650 = vmatprep.subr.mxu0 0.0
    %5651 = vmatpush1.msra.mxu0 0.0
    %5652 = vmatprep.subr.mxu0 0.0
    %5653 = vmatpush1.msra.mxu0 0.0
    %5654 = vmatprep.mubr.f32.mxu0 0.0
    %v5655 = vand.u32 %v291, 4294901760
    %5656 = vmatmul.mubr.f32.gmra.mrb[0].mxu0 %v5655
    %v5657 = vpop.f32.mrb[0].mxu0
    %v5658 = vadd.f32 %v5583, %v5657
    %v5659 = vpop.f32.mrb[0].mxu0
    %5660 = vdwg.mxu0
    %5661 = vmatprep.subr.mxu0 0.0
    %v5662 = vand.u32 %v140, 4294901760
    %5663 = vmatpush1.msra.mxu0 %v5662
    %5664 = vmatprep.subr.mxu0 0.0
    %v5665 = vand.u32 %v141, 4294901760
    %5666 = vmatpush1.msra.mxu0 %v5665
    %5667 = vmatprep.subr.mxu0 0.0
    %v5668 = vand.u32 %v142, 4294901760
    %5669 = vmatpush1.msra.mxu0 %v5668
    %5670 = vmatprep.subr.mxu0 0.0
    %v5671 = vand.u32 %v143, 4294901760
    %5672 = vmatpush1.msra.mxu0 %v5671
    %5673 = vmatprep.subr.mxu0 0.0
    %5674 = vmatpush1.msra.mxu0 0.0
    %5675 = vmatprep.subr.mxu0 0.0
    %5676 = vmatpush1.msra.mxu0 0.0
    %5677 = vmatprep.subr.mxu0 0.0
    %5678 = vmatpush1.msra.mxu0 0.0
    %5679 = vmatprep.subr.mxu0 0.0
    %5680 = vmatpush1.msra.mxu0 0.0
    %5681 = vmatprep.subr.mxu0 0.0
    %5682 = vmatpush1.msra.mxu0 0.0
    %5683 = vmatprep.subr.mxu0 0.0
    %5684 = vmatpush1.msra.mxu0 0.0
    %5685 = vmatprep.subr.mxu0 0.0
    %5686 = vmatpush1.msra.mxu0 0.0
    %5687 = vmatprep.subr.mxu0 0.0
    %5688 = vmatpush1.msra.mxu0 0.0
    %5689 = vmatprep.subr.mxu0 0.0
    %5690 = vmatpush1.msra.mxu0 0.0
    %5691 = vmatprep.subr.mxu0 0.0
    %5692 = vmatpush1.msra.mxu0 0.0
    %5693 = vmatprep.subr.mxu0 0.0
    %5694 = vmatpush1.msra.mxu0 0.0
    %5695 = vmatprep.subr.mxu0 0.0
    %5696 = vmatpush1.msra.mxu0 0.0
    %5697 = vmatprep.subr.mxu0 0.0
    %5698 = vmatpush1.msra.mxu0 0.0
    %5699 = vmatprep.subr.mxu0 0.0
    %5700 = vmatpush1.msra.mxu0 0.0
    %5701 = vmatprep.subr.mxu0 0.0
    %5702 = vmatpush1.msra.mxu0 0.0
    %5703 = vmatprep.subr.mxu0 0.0
    %5704 = vmatpush1.msra.mxu0 0.0
    %5705 = vmatprep.subr.mxu0 0.0
    %5706 = vmatpush1.msra.mxu0 0.0
    %5707 = vmatprep.subr.mxu0 0.0
    %5708 = vmatpush1.msra.mxu0 0.0
    %5709 = vmatprep.subr.mxu0 0.0
    %5710 = vmatpush1.msra.mxu0 0.0
    %5711 = vmatprep.subr.mxu0 0.0
    %5712 = vmatpush1.msra.mxu0 0.0
    %5713 = vmatprep.subr.mxu0 0.0
    %5714 = vmatpush1.msra.mxu0 0.0
    %5715 = vmatprep.subr.mxu0 0.0
    %5716 = vmatpush1.msra.mxu0 0.0
    %5717 = vmatprep.subr.mxu0 0.0
    %5718 = vmatpush1.msra.mxu0 0.0
    %5719 = vmatprep.subr.mxu0 0.0
    %5720 = vmatpush1.msra.mxu0 0.0
    %5721 = vmatprep.subr.mxu0 0.0
    %5722 = vmatpush1.msra.mxu0 0.0
    %5723 = vmatprep.subr.mxu0 0.0
    %5724 = vmatpush1.msra.mxu0 0.0
    %5725 = vmatprep.subr.mxu0 0.0
    %5726 = vmatpush1.msra.mxu0 0.0
    %5727 = vmatprep.subr.mxu0 0.0
    %5728 = vmatpush1.msra.mxu0 0.0
    %5729 = vmatprep.mubr.f32.mxu0 0.0
    %v5730 = vand.u32 %v291, 4294901760
    %v5731 = vsub.f32 %v291, %v5730
    %v5732 = vand.u32 %v5731, 4294901760
    %v5733 = vsub.f32 %v5731, %v5732
    %v5734 = vand.u32 %v5733, 4294901760
    %5735 = vmatmul.mubr.f32.gmra.mrb[0].mxu0 %v5734
    %v5736 = vpop.f32.mrb[0].mxu0
    %v5737 = vadd.f32 0.0, %v5736
    %v5738 = vpop.f32.mrb[0].mxu0
    %5739 = vdwg.mxu0
    %5740 = vmatprep.subr.mxu0 0.0
    %v5741 = vand.u32 %v140, 4294901760
    %v5742 = vsub.f32 %v140, %v5741
    %v5743 = vand.u32 %v5742, 4294901760
    %v5744 = vsub.f32 %v5742, %v5743
    %v5745 = vand.u32 %v5744, 4294901760
    %5746 = vmatpush1.msra.mxu0 %v5745
    %5747 = vmatprep.subr.mxu0 0.0
    %v5748 = vand.u32 %v141, 4294901760
    %v5749 = vsub.f32 %v141, %v5748
    %v5750 = vand.u32 %v5749, 4294901760
    %v5751 = vsub.f32 %v5749, %v5750
    %v5752 = vand.u32 %v5751, 4294901760
    %5753 = vmatpush1.msra.mxu0 %v5752
    %5754 = vmatprep.subr.mxu0 0.0
    %v5755 = vand.u32 %v142, 4294901760
    %v5756 = vsub.f32 %v142, %v5755
    %v5757 = vand.u32 %v5756, 4294901760
    %v5758 = vsub.f32 %v5756, %v5757
    %v5759 = vand.u32 %v5758, 4294901760
    %5760 = vmatpush1.msra.mxu0 %v5759
    %5761 = vmatprep.subr.mxu0 0.0
    %v5762 = vand.u32 %v143, 4294901760
    %v5763 = vsub.f32 %v143, %v5762
    %v5764 = vand.u32 %v5763, 4294901760
    %v5765 = vsub.f32 %v5763, %v5764
    %v5766 = vand.u32 %v5765, 4294901760
    %5767 = vmatpush1.msra.mxu0 %v5766
    %5768 = vmatprep.subr.mxu0 0.0
    %5769 = vmatpush1.msra.mxu0 0.0
    %5770 = vmatprep.subr.mxu0 0.0
    %5771 = vmatpush1.msra.mxu0 0.0
    %5772 = vmatprep.subr.mxu0 0.0
    %5773 = vmatpush1.msra.mxu0 0.0
    %5774 = vmatprep.subr.mxu0 0.0
    %5775 = vmatpush1.msra.mxu0 0.0
    %5776 = vmatprep.subr.mxu0 0.0
    %5777 = vmatpush1.msra.mxu0 0.0
    %5778 = vmatprep.subr.mxu0 0.0
    %5779 = vmatpush1.msra.mxu0 0.0
    %5780 = vmatprep.subr.mxu0 0.0
    %5781 = vmatpush1.msra.mxu0 0.0
    %5782 = vmatprep.subr.mxu0 0.0
    %5783 = vmatpush1.msra.mxu0 0.0
    %5784 = vmatprep.subr.mxu0 0.0
    %5785 = vmatpush1.msra.mxu0 0.0
    %5786 = vmatprep.subr.mxu0 0.0
    %5787 = vmatpush1.msra.mxu0 0.0
    %5788 = vmatprep.subr.mxu0 0.0
    %5789 = vmatpush1.msra.mxu0 0.0
    %5790 = vmatprep.subr.mxu0 0.0
    %5791 = vmatpush1.msra.mxu0 0.0
    %5792 = vmatprep.subr.mxu0 0.0
    %5793 = vmatpush1.msra.mxu0 0.0
    %5794 = vmatprep.subr.mxu0 0.0
    %5795 = vmatpush1.msra.mxu0 0.0
    %5796 = vmatprep.subr.mxu0 0.0
    %5797 = vmatpush1.msra.mxu0 0.0
    %5798 = vmatprep.subr.mxu0 0.0
    %5799 = vmatpush1.msra.mxu0 0.0
    %5800 = vmatprep.subr.mxu0 0.0
    %5801 = vmatpush1.msra.mxu0 0.0
    %5802 = vmatprep.subr.mxu0 0.0
    %5803 = vmatpush1.msra.mxu0 0.0
    %5804 = vmatprep.subr.mxu0 0.0
    %5805 = vmatpush1.msra.mxu0 0.0
    %5806 = vmatprep.subr.mxu0 0.0
    %5807 = vmatpush1.msra.mxu0 0.0
    %5808 = vmatprep.subr.mxu0 0.0
    %5809 = vmatpush1.msra.mxu0 0.0
    %5810 = vmatprep.subr.mxu0 0.0
    %5811 = vmatpush1.msra.mxu0 0.0
    %5812 = vmatprep.subr.mxu0 0.0
    %5813 = vmatpush1.msra.mxu0 0.0
    %5814 = vmatprep.subr.mxu0 0.0
    %5815 = vmatpush1.msra.mxu0 0.0
    %5816 = vmatprep.subr.mxu0 0.0
    %5817 = vmatpush1.msra.mxu0 0.0
    %5818 = vmatprep.subr.mxu0 0.0
    %5819 = vmatpush1.msra.mxu0 0.0
    %5820 = vmatprep.subr.mxu0 0.0
    %5821 = vmatpush1.msra.mxu0 0.0
    %5822 = vmatprep.subr.mxu0 0.0
    %5823 = vmatpush1.msra.mxu0 0.0
    %5824 = vmatprep.mubr.f32.mxu0 0.0
    %v5825 = vand.u32 %v291, 4294901760
    %5826 = vmatmul.mubr.f32.gmra.mrb[0].mxu0 %v5825
    %v5827 = vpop.f32.mrb[0].mxu0
    %v5828 = vadd.f32 %v5737, %v5827
    %v5829 = vpop.f32.mrb[0].mxu0
    %5830 = vdwg.mxu0
    %5831 = vmatprep.subr.mxu0 0.0
    %v5832 = vand.u32 %v140, 4294901760
    %v5833 = vsub.f32 %v140, %v5832
    %5834 = vmatpush1.msra.mxu0 %v5833
    %5835 = vmatprep.subr.mxu0 0.0
    %v5836 = vand.u32 %v141, 4294901760
    %v5837 = vsub.f32 %v141, %v5836
    %5838 = vmatpush1.msra.mxu0 %v5837
    %5839 = vmatprep.subr.mxu0 0.0
    %v5840 = vand.u32 %v142, 4294901760
    %v5841 = vsub.f32 %v142, %v5840
    %5842 = vmatpush1.msra.mxu0 %v5841
    %5843 = vmatprep.subr.mxu0 0.0
    %v5844 = vand.u32 %v143, 4294901760
    %v5845 = vsub.f32 %v143, %v5844
    %5846 = vmatpush1.msra.mxu0 %v5845
    %5847 = vmatprep.subr.mxu0 0.0
    %5848 = vmatpush1.msra.mxu0 0.0
    %5849 = vmatprep.subr.mxu0 0.0
    %5850 = vmatpush1.msra.mxu0 0.0
    %5851 = vmatprep.subr.mxu0 0.0
    %5852 = vmatpush1.msra.mxu0 0.0
    %5853 = vmatprep.subr.mxu0 0.0
    %5854 = vmatpush1.msra.mxu0 0.0
    %5855 = vmatprep.subr.mxu0 0.0
    %5856 = vmatpush1.msra.mxu0 0.0
    %5857 = vmatprep.subr.mxu0 0.0
    %5858 = vmatpush1.msra.mxu0 0.0
    %5859 = vmatprep.subr.mxu0 0.0
    %5860 = vmatpush1.msra.mxu0 0.0
    %5861 = vmatprep.subr.mxu0 0.0
    %5862 = vmatpush1.msra.mxu0 0.0
    %5863 = vmatprep.subr.mxu0 0.0
    %5864 = vmatpush1.msra.mxu0 0.0
    %5865 = vmatprep.subr.mxu0 0.0
    %5866 = vmatpush1.msra.mxu0 0.0
    %5867 = vmatprep.subr.mxu0 0.0
    %5868 = vmatpush1.msra.mxu0 0.0
    %5869 = vmatprep.subr.mxu0 0.0
    %5870 = vmatpush1.msra.mxu0 0.0
    %5871 = vmatprep.subr.mxu0 0.0
    %5872 = vmatpush1.msra.mxu0 0.0
    %5873 = vmatprep.subr.mxu0 0.0
    %5874 = vmatpush1.msra.mxu0 0.0
    %5875 = vmatprep.subr.mxu0 0.0
    %5876 = vmatpush1.msra.mxu0 0.0
    %5877 = vmatprep.subr.mxu0 0.0
    %5878 = vmatpush1.msra.mxu0 0.0
    %5879 = vmatprep.subr.mxu0 0.0
    %5880 = vmatpush1.msra.mxu0 0.0
    %5881 = vmatprep.subr.mxu0 0.0
    %5882 = vmatpush1.msra.mxu0 0.0
    %5883 = vmatprep.subr.mxu0 0.0
    %5884 = vmatpush1.msra.mxu0 0.0
    %5885 = vmatprep.subr.mxu0 0.0
    %5886 = vmatpush1.msra.mxu0 0.0
    %5887 = vmatprep.subr.mxu0 0.0
    %5888 = vmatpush1.msra.mxu0 0.0
    %5889 = vmatprep.subr.mxu0 0.0
    %5890 = vmatpush1.msra.mxu0 0.0
    %5891 = vmatprep.subr.mxu0 0.0
    %5892 = vmatpush1.msra.mxu0 0.0
    %5893 = vmatprep.subr.mxu0 0.0
    %5894 = vmatpush1.msra.mxu0 0.0
    %5895 = vmatprep.subr.mxu0 0.0
    %5896 = vmatpush1.msra.mxu0 0.0
    %5897 = vmatprep.subr.mxu0 0.0
    %5898 = vmatpush1.msra.mxu0 0.0
    %5899 = vmatprep.subr.mxu0 0.0
    %5900 = vmatpush1.msra.mxu0 0.0
    %5901 = vmatprep.subr.mxu0 0.0
    %5902 = vmatpush1.msra.mxu0 0.0
    %5903 = vmatprep.mubr.f32.mxu0 0.0
    %v5904 = vand.u32 %v291, 4294901760
    %v5905 = vsub.f32 %v291, %v5904
    %5906 = vmatmul.mubr.f32.gmra.mrb[0].mxu0 %v5905
    %v5907 = vpop.f32.mrb[0].mxu0
    %v5908 = vadd.f32 %v5828, %v5907
    %v5909 = vpop.f32.mrb[0].mxu0
    %5910 = vdwg.mxu0
    %5911 = vmatprep.subr.mxu0 0.0
    %v5912 = vand.u32 %v140, 4294901760
    %5913 = vmatpush1.msra.mxu0 %v5912
    %5914 = vmatprep.subr.mxu0 0.0
    %v5915 = vand.u32 %v141, 4294901760
    %5916 = vmatpush1.msra.mxu0 %v5915
    %5917 = vmatprep.subr.mxu0 0.0
    %v5918 = vand.u32 %v142, 4294901760
    %5919 = vmatpush1.msra.mxu0 %v5918
    %5920 = vmatprep.subr.mxu0 0.0
    %v5921 = vand.u32 %v143, 4294901760
    %5922 = vmatpush1.msra.mxu0 %v5921
    %5923 = vmatprep.subr.mxu0 0.0
    %5924 = vmatpush1.msra.mxu0 0.0
    %5925 = vmatprep.subr.mxu0 0.0
    %5926 = vmatpush1.msra.mxu0 0.0
    %5927 = vmatprep.subr.mxu0 0.0
    %5928 = vmatpush1.msra.mxu0 0.0
    %5929 = vmatprep.subr.mxu0 0.0
    %5930 = vmatpush1.msra.mxu0 0.0
    %5931 = vmatprep.subr.mxu0 0.0
    %5932 = vmatpush1.msra.mxu0 0.0
    %5933 = vmatprep.subr.mxu0 0.0
    %5934 = vmatpush1.msra.mxu0 0.0
    %5935 = vmatprep.subr.mxu0 0.0
    %5936 = vmatpush1.msra.mxu0 0.0
    %5937 = vmatprep.subr.mxu0 0.0
    %5938 = vmatpush1.msra.mxu0 0.0
    %5939 = vmatprep.subr.mxu0 0.0
    %5940 = vmatpush1.msra.mxu0 0.0
    %5941 = vmatprep.subr.mxu0 0.0
    %5942 = vmatpush1.msra.mxu0 0.0
    %5943 = vmatprep.subr.mxu0 0.0
    %5944 = vmatpush1.msra.mxu0 0.0
    %5945 = vmatprep.subr.mxu0 0.0
    %5946 = vmatpush1.msra.mxu0 0.0
    %5947 = vmatprep.subr.mxu0 0.0
    %5948 = vmatpush1.msra.mxu0 0.0
    %5949 = vmatprep.subr.mxu0 0.0
    %5950 = vmatpush1.msra.mxu0 0.0
    %5951 = vmatprep.subr.mxu0 0.0
    %5952 = vmatpush1.msra.mxu0 0.0
    %5953 = vmatprep.subr.mxu0 0.0
    %5954 = vmatpush1.msra.mxu0 0.0
    %5955 = vmatprep.subr.mxu0 0.0
    %5956 = vmatpush1.msra.mxu0 0.0
    %5957 = vmatprep.subr.mxu0 0.0
    %5958 = vmatpush1.msra.mxu0 0.0
    %5959 = vmatprep.subr.mxu0 0.0
    %5960 = vmatpush1.msra.mxu0 0.0
    %5961 = vmatprep.subr.mxu0 0.0
    %5962 = vmatpush1.msra.mxu0 0.0
    %5963 = vmatprep.subr.mxu0 0.0
    %5964 = vmatpush1.msra.mxu0 0.0
    %5965 = vmatprep.subr.mxu0 0.0
    %5966 = vmatpush1.msra.mxu0 0.0
    %5967 = vmatprep.subr.mxu0 0.0
    %5968 = vmatpush1.msra.mxu0 0.0
    %5969 = vmatprep.subr.mxu0 0.0
    %5970 = vmatpush1.msra.mxu0 0.0
    %5971 = vmatprep.subr.mxu0 0.0
    %5972 = vmatpush1.msra.mxu0 0.0
    %5973 = vmatprep.subr.mxu0 0.0
    %5974 = vmatpush1.msra.mxu0 0.0
    %5975 = vmatprep.subr.mxu0 0.0
    %5976 = vmatpush1.msra.mxu0 0.0
    %5977 = vmatprep.subr.mxu0 0.0
    %5978 = vmatpush1.msra.mxu0 0.0
    %5979 = vmatprep.mubr.f32.mxu0 0.0
    %v5980 = vand.u32 %v291, 4294901760
    %v5981 = vsub.f32 %v291, %v5980
    %v5982 = vand.u32 %v5981, 4294901760
    %5983 = vmatmul.mubr.f32.gmra.mrb[0].mxu0 %v5982
    %v5984 = vpop.f32.mrb[0].mxu0
    %v5985 = vadd.f32 %v5908, %v5984
    %v5986 = vpop.f32.mrb[0].mxu0
    %5987 = vdwg.mxu0
    %5988 = vmatprep.subr.mxu0 0.0
    %v5989 = vand.u32 %v140, 4294901760
    %v5990 = vsub.f32 %v140, %v5989
    %v5991 = vand.u32 %v5990, 4294901760
    %5992 = vmatpush1.msra.mxu0 %v5991
    %5993 = vmatprep.subr.mxu0 0.0
    %v5994 = vand.u32 %v141, 4294901760
    %v5995 = vsub.f32 %v141, %v5994
    %v5996 = vand.u32 %v5995, 4294901760
    %5997 = vmatpush1.msra.mxu0 %v5996
    %5998 = vmatprep.subr.mxu0 0.0
    %v5999 = vand.u32 %v142, 4294901760
    %v6000 = vsub.f32 %v142, %v5999
    %v6001 = vand.u32 %v6000, 4294901760
    %6002 = vmatpush1.msra.mxu0 %v6001
    %6003 = vmatprep.subr.mxu0 0.0
    %v6004 = vand.u32 %v143, 4294901760
    %v6005 = vsub.f32 %v143, %v6004
    %v6006 = vand.u32 %v6005, 4294901760
    %6007 = vmatpush1.msra.mxu0 %v6006
    %6008 = vmatprep.subr.mxu0 0.0
    %6009 = vmatpush1.msra.mxu0 0.0
    %6010 = vmatprep.subr.mxu0 0.0
    %6011 = vmatpush1.msra.mxu0 0.0
    %6012 = vmatprep.subr.mxu0 0.0
    %6013 = vmatpush1.msra.mxu0 0.0
    %6014 = vmatprep.subr.mxu0 0.0
    %6015 = vmatpush1.msra.mxu0 0.0
    %6016 = vmatprep.subr.mxu0 0.0
    %6017 = vmatpush1.msra.mxu0 0.0
    %6018 = vmatprep.subr.mxu0 0.0
    %6019 = vmatpush1.msra.mxu0 0.0
    %6020 = vmatprep.subr.mxu0 0.0
    %6021 = vmatpush1.msra.mxu0 0.0
    %6022 = vmatprep.subr.mxu0 0.0
    %6023 = vmatpush1.msra.mxu0 0.0
    %6024 = vmatprep.subr.mxu0 0.0
    %6025 = vmatpush1.msra.mxu0 0.0
    %6026 = vmatprep.subr.mxu0 0.0
    %6027 = vmatpush1.msra.mxu0 0.0
    %6028 = vmatprep.subr.mxu0 0.0
    %6029 = vmatpush1.msra.mxu0 0.0
    %6030 = vmatprep.subr.mxu0 0.0
    %6031 = vmatpush1.msra.mxu0 0.0
    %6032 = vmatprep.subr.mxu0 0.0
    %6033 = vmatpush1.msra.mxu0 0.0
    %6034 = vmatprep.subr.mxu0 0.0
    %6035 = vmatpush1.msra.mxu0 0.0
    %6036 = vmatprep.subr.mxu0 0.0
    %6037 = vmatpush1.msra.mxu0 0.0
    %6038 = vmatprep.subr.mxu0 0.0
    %6039 = vmatpush1.msra.mxu0 0.0
    %6040 = vmatprep.subr.mxu0 0.0
    %6041 = vmatpush1.msra.mxu0 0.0
    %6042 = vmatprep.subr.mxu0 0.0
    %6043 = vmatpush1.msra.mxu0 0.0
    %6044 = vmatprep.subr.mxu0 0.0
    %6045 = vmatpush1.msra.mxu0 0.0
    %6046 = vmatprep.subr.mxu0 0.0
    %6047 = vmatpush1.msra.mxu0 0.0
    %6048 = vmatprep.subr.mxu0 0.0
    %6049 = vmatpush1.msra.mxu0 0.0
    %6050 = vmatprep.subr.mxu0 0.0
    %6051 = vmatpush1.msra.mxu0 0.0
    %6052 = vmatprep.subr.mxu0 0.0
    %6053 = vmatpush1.msra.mxu0 0.0
    %6054 = vmatprep.subr.mxu0 0.0
    %6055 = vmatpush1.msra.mxu0 0.0
    %6056 = vmatprep.subr.mxu0 0.0
    %6057 = vmatpush1.msra.mxu0 0.0
    %6058 = vmatprep.subr.mxu0 0.0
    %6059 = vmatpush1.msra.mxu0 0.0
    %6060 = vmatprep.subr.mxu0 0.0
    %6061 = vmatpush1.msra.mxu0 0.0
    %6062 = vmatprep.subr.mxu0 0.0
    %6063 = vmatpush1.msra.mxu0 0.0
    %6064 = vmatprep.mubr.f32.mxu0 0.0
    %v6065 = vand.u32 %v291, 4294901760
    %6066 = vmatmul.mubr.f32.gmra.mrb[0].mxu0 %v6065
    %v6067 = vpop.f32.mrb[0].mxu0
    %v6068 = vadd.f32 %v5985, %v6067
    %v6069 = vpop.f32.mrb[0].mxu0
    %6070 = vdwg.mxu0
    %6071 = vmatprep.subr.mxu0 0.0
    %v6072 = vand.u32 %v140, 4294901760
    %6073 = vmatpush1.msra.mxu0 %v6072
    %6074 = vmatprep.subr.mxu0 0.0
    %v6075 = vand.u32 %v141, 4294901760
    %6076 = vmatpush1.msra.mxu0 %v6075
    %6077 = vmatprep.subr.mxu0 0.0
    %v6078 = vand.u32 %v142, 4294901760
    %6079 = vmatpush1.msra.mxu0 %v6078
    %6080 = vmatprep.subr.mxu0 0.0
    %v6081 = vand.u32 %v143, 4294901760
    %6082 = vmatpush1.msra.mxu0 %v6081
    %6083 = vmatprep.subr.mxu0 0.0
    %6084 = vmatpush1.msra.mxu0 0.0
    %6085 = vmatprep.subr.mxu0 0.0
    %6086 = vmatpush1.msra.mxu0 0.0
    %6087 = vmatprep.subr.mxu0 0.0
    %6088 = vmatpush1.msra.mxu0 0.0
    %6089 = vmatprep.subr.mxu0 0.0
    %6090 = vmatpush1.msra.mxu0 0.0
    %6091 = vmatprep.subr.mxu0 0.0
    %6092 = vmatpush1.msra.mxu0 0.0
    %6093 = vmatprep.subr.mxu0 0.0
    %6094 = vmatpush1.msra.mxu0 0.0
    %6095 = vmatprep.subr.mxu0 0.0
    %6096 = vmatpush1.msra.mxu0 0.0
    %6097 = vmatprep.subr.mxu0 0.0
    %6098 = vmatpush1.msra.mxu0 0.0
    %6099 = vmatprep.subr.mxu0 0.0
    %6100 = vmatpush1.msra.mxu0 0.0
    %6101 = vmatprep.subr.mxu0 0.0
    %6102 = vmatpush1.msra.mxu0 0.0
    %6103 = vmatprep.subr.mxu0 0.0
    %6104 = vmatpush1.msra.mxu0 0.0
    %6105 = vmatprep.subr.mxu0 0.0
    %6106 = vmatpush1.msra.mxu0 0.0
    %6107 = vmatprep.subr.mxu0 0.0
    %6108 = vmatpush1.msra.mxu0 0.0
    %6109 = vmatprep.subr.mxu0 0.0
    %6110 = vmatpush1.msra.mxu0 0.0
    %6111 = vmatprep.subr.mxu0 0.0
    %6112 = vmatpush1.msra.mxu0 0.0
    %6113 = vmatprep.subr.mxu0 0.0
    %6114 = vmatpush1.msra.mxu0 0.0
    %6115 = vmatprep.subr.mxu0 0.0
    %6116 = vmatpush1.msra.mxu0 0.0
    %6117 = vmatprep.subr.mxu0 0.0
    %6118 = vmatpush1.msra.mxu0 0.0
    %6119 = vmatprep.subr.mxu0 0.0
    %6120 = vmatpush1.msra.mxu0 0.0
    %6121 = vmatprep.subr.mxu0 0.0
    %6122 = vmatpush1.msra.mxu0 0.0
    %6123 = vmatprep.subr.mxu0 0.0
    %6124 = vmatpush1.msra.mxu0 0.0
    %6125 = vmatprep.subr.mxu0 0.0
    %6126 = vmatpush1.msra.mxu0 0.0
    %6127 = vmatprep.subr.mxu0 0.0
    %6128 = vmatpush1.msra.mxu0 0.0
    %6129 = vmatprep.subr.mxu0 0.0
    %6130 = vmatpush1.msra.mxu0 0.0
    %6131 = vmatprep.subr.mxu0 0.0
    %6132 = vmatpush1.msra.mxu0 0.0
    %6133 = vmatprep.subr.mxu0 0.0
    %6134 = vmatpush1.msra.mxu0 0.0
    %6135 = vmatprep.subr.mxu0 0.0
    %6136 = vmatpush1.msra.mxu0 0.0
    %6137 = vmatprep.subr.mxu0 0.0
    %6138 = vmatpush1.msra.mxu0 0.0
    %6139 = vmatprep.mubr.f32.mxu0 0.0
    %v6140 = vand.u32 %v291, 4294901760
    %6141 = vmatmul.mubr.f32.gmra.mrb[0].mxu0 %v6140
    %v6142 = vpop.f32.mrb[0].mxu0
    %v6143 = vadd.f32 %v6068, %v6142
    %v6144 = vpop.f32.mrb[0].mxu0
    %6145 = vdwg.mxu0
    %v6147 = vrot.slane %v5173, 7
    %v6150 = vrot.slane %v5658, 6
    %v6153 = vrot.slane %v6143, 5
    %v6155 = vsel %vm2242, %v4688, %v6147
    %v6156 = vsel %vm2244, %v6155, %v6150
    %v6157 = vsel %vm2246, %v6156, %v6153
    %v6158 = vadd.f32 %v4205, %v6157
    %6159 = vst [vmem:[#allocation4] sm:$0xf] %v6158
    %v6160 = vld [vmem:[#allocation5] sm:$0x1]
    %6161 = vmatprep.subr.mxu0 0.0
    %v6162 = vand.u32 %v76, 4294901760
    %6163 = vmatpush1.msra.mxu0 %v6162
    %6164 = vmatprep.subr.mxu0 0.0
    %v6165 = vand.u32 %v77, 4294901760
    %6166 = vmatpush1.msra.mxu0 %v6165
    %6167 = vmatprep.subr.mxu0 0.0
    %v6168 = vand.u32 %v78, 4294901760
    %6169 = vmatpush1.msra.mxu0 %v6168
    %6170 = vmatprep.subr.mxu0 0.0
    %v6171 = vand.u32 %v79, 4294901760
    %6172 = vmatpush1.msra.mxu0 %v6171
    %6173 = vmatprep.subr.mxu0 0.0
    %6174 = vmatpush1.msra.mxu0 0.0
    %6175 = vmatprep.subr.mxu0 0.0
    %6176 = vmatpush1.msra.mxu0 0.0
    %6177 = vmatprep.subr.mxu0 0.0
    %6178 = vmatpush1.msra.mxu0 0.0
    %6179 = vmatprep.subr.mxu0 0.0
    %6180 = vmatpush1.msra.mxu0 0.0
    %6181 = vmatprep.subr.mxu0 0.0
    %6182 = vmatpush1.msra.mxu0 0.0
    %6183 = vmatprep.subr.mxu0 0.0
    %6184 = vmatpush1.msra.mxu0 0.0
    %6185 = vmatprep.subr.mxu0 0.0
    %6186 = vmatpush1.msra.mxu0 0.0
    %6187 = vmatprep.subr.mxu0 0.0
    %6188 = vmatpush1.msra.mxu0 0.0
    %6189 = vmatprep.subr.mxu0 0.0
    %6190 = vmatpush1.msra.mxu0 0.0
    %6191 = vmatprep.subr.mxu0 0.0
    %6192 = vmatpush1.msra.mxu0 0.0
    %6193 = vmatprep.subr.mxu0 0.0
    %6194 = vmatpush1.msra.mxu0 0.0
    %6195 = vmatprep.subr.mxu0 0.0
    %6196 = vmatpush1.msra.mxu0 0.0
    %6197 = vmatprep.subr.mxu0 0.0
    %6198 = vmatpush1.msra.mxu0 0.0
    %6199 = vmatprep.subr.mxu0 0.0
    %6200 = vmatpush1.msra.mxu0 0.0
    %6201 = vmatprep.subr.mxu0 0.0
    %6202 = vmatpush1.msra.mxu0 0.0
    %6203 = vmatprep.subr.mxu0 0.0
    %6204 = vmatpush1.msra.mxu0 0.0
    %6205 = vmatprep.subr.mxu0 0.0
    %6206 = vmatpush1.msra.mxu0 0.0
    %6207 = vmatprep.subr.mxu0 0.0
    %6208 = vmatpush1.msra.mxu0 0.0
    %6209 = vmatprep.subr.mxu0 0.0
    %6210 = vmatpush1.msra.mxu0 0.0
    %6211 = vmatprep.subr.mxu0 0.0
    %6212 = vmatpush1.msra.mxu0 0.0
    %6213 = vmatprep.subr.mxu0 0.0
    %6214 = vmatpush1.msra.mxu0 0.0
    %6215 = vmatprep.subr.mxu0 0.0
    %6216 = vmatpush1.msra.mxu0 0.0
    %6217 = vmatprep.subr.mxu0 0.0
    %6218 = vmatpush1.msra.mxu0 0.0
    %6219 = vmatprep.subr.mxu0 0.0
    %6220 = vmatpush1.msra.mxu0 0.0
    %6221 = vmatprep.subr.mxu0 0.0
    %6222 = vmatpush1.msra.mxu0 0.0
    %6223 = vmatprep.subr.mxu0 0.0
    %6224 = vmatpush1.msra.mxu0 0.0
    %6225 = vmatprep.subr.mxu0 0.0
    %6226 = vmatpush1.msra.mxu0 0.0
    %6227 = vmatprep.subr.mxu0 0.0
    %6228 = vmatpush1.msra.mxu0 0.0
    %6229 = vmatprep.mubr.f32.mxu0 0.0
    %v6230 = vand.u32 %v291, 4294901760
    %v6231 = vsub.f32 %v291, %v6230
    %v6232 = vand.u32 %v6231, 4294901760
    %v6233 = vsub.f32 %v6231, %v6232
    %v6234 = vand.u32 %v6233, 4294901760
    %6235 = vmatmul.mubr.f32.gmra.mrb[0].mxu0 %v6234
    %v6236 = vpop.f32.mrb[0].mxu0
    %v6237 = vadd.f32 0.0, %v6236
    %v6238 = vpop.f32.mrb[0].mxu0
    %6239 = vdwg.mxu0
    %6240 = vmatprep.subr.mxu0 0.0
    %v6241 = vand.u32 %v76, 4294901760
    %v6242 = vsub.f32 %v76, %v6241
    %v6243 = vand.u32 %v6242, 4294901760
    %v6244 = vsub.f32 %v6242, %v6243
    %v6245 = vand.u32 %v6244, 4294901760
    %6246 = vmatpush1.msra.mxu0 %v6245
    %6247 = vmatprep.subr.mxu0 0.0
    %v6248 = vand.u32 %v77, 4294901760
    %v6249 = vsub.f32 %v77, %v6248
    %v6250 = vand.u32 %v6249, 4294901760
    %v6251 = vsub.f32 %v6249, %v6250
    %v6252 = vand.u32 %v6251, 4294901760
    %6253 = vmatpush1.msra.mxu0 %v6252
    %6254 = vmatprep.subr.mxu0 0.0
    %v6255 = vand.u32 %v78, 4294901760
    %v6256 = vsub.f32 %v78, %v6255
    %v6257 = vand.u32 %v6256, 4294901760
    %v6258 = vsub.f32 %v6256, %v6257
    %v6259 = vand.u32 %v6258, 4294901760
    %6260 = vmatpush1.msra.mxu0 %v6259
    %6261 = vmatprep.subr.mxu0 0.0
    %v6262 = vand.u32 %v79, 4294901760
    %v6263 = vsub.f32 %v79, %v6262
    %v6264 = vand.u32 %v6263, 4294901760
    %v6265 = vsub.f32 %v6263, %v6264
    %v6266 = vand.u32 %v6265, 4294901760
    %6267 = vmatpush1.msra.mxu0 %v6266
    %6268 = vmatprep.subr.mxu0 0.0
    %6269 = vmatpush1.msra.mxu0 0.0
    %6270 = vmatprep.subr.mxu0 0.0
    %6271 = vmatpush1.msra.mxu0 0.0
    %6272 = vmatprep.subr.mxu0 0.0
    %6273 = vmatpush1.msra.mxu0 0.0
    %6274 = vmatprep.subr.mxu0 0.0
    %6275 = vmatpush1.msra.mxu0 0.0
    %6276 = vmatprep.subr.mxu0 0.0
    %6277 = vmatpush1.msra.mxu0 0.0
    %6278 = vmatprep.subr.mxu0 0.0
    %6279 = vmatpush1.msra.mxu0 0.0
    %6280 = vmatprep.subr.mxu0 0.0
    %6281 = vmatpush1.msra.mxu0 0.0
    %6282 = vmatprep.subr.mxu0 0.0
    %6283 = vmatpush1.msra.mxu0 0.0
    %6284 = vmatprep.subr.mxu0 0.0
    %6285 = vmatpush1.msra.mxu0 0.0
    %6286 = vmatprep.subr.mxu0 0.0
    %6287 = vmatpush1.msra.mxu0 0.0
    %6288 = vmatprep.subr.mxu0 0.0
    %6289 = vmatpush1.msra.mxu0 0.0
    %6290 = vmatprep.subr.mxu0 0.0
    %6291 = vmatpush1.msra.mxu0 0.0
    %6292 = vmatprep.subr.mxu0 0.0
    %6293 = vmatpush1.msra.mxu0 0.0
    %6294 = vmatprep.subr.mxu0 0.0
    %6295 = vmatpush1.msra.mxu0 0.0
    %6296 = vmatprep.subr.mxu0 0.0
    %6297 = vmatpush1.msra.mxu0 0.0
    %6298 = vmatprep.subr.mxu0 0.0
    %6299 = vmatpush1.msra.mxu0 0.0
    %6300 = vmatprep.subr.mxu0 0.0
    %6301 = vmatpush1.msra.mxu0 0.0
    %6302 = vmatprep.subr.mxu0 0.0
    %6303 = vmatpush1.msra.mxu0 0.0
    %6304 = vmatprep.subr.mxu0 0.0
    %6305 = vmatpush1.msra.mxu0 0.0
    %6306 = vmatprep.subr.mxu0 0.0
    %6307 = vmatpush1.msra.mxu0 0.0
    %6308 = vmatprep.subr.mxu0 0.0
    %6309 = vmatpush1.msra.mxu0 0.0
    %6310 = vmatprep.subr.mxu0 0.0
    %6311 = vmatpush1.msra.mxu0 0.0
    %6312 = vmatprep.subr.mxu0 0.0
    %6313 = vmatpush1.msra.mxu0 0.0
    %6314 = vmatprep.subr.mxu0 0.0
    %6315 = vmatpush1.msra.mxu0 0.0
    %6316 = vmatprep.subr.mxu0 0.0
    %6317 = vmatpush1.msra.mxu0 0.0
    %6318 = vmatprep.subr.mxu0 0.0
    %6319 = vmatpush1.msra.mxu0 0.0
    %6320 = vmatprep.subr.mxu0 0.0
    %6321 = vmatpush1.msra.mxu0 0.0
    %6322 = vmatprep.subr.mxu0 0.0
    %6323 = vmatpush1.msra.mxu0 0.0
    %6324 = vmatprep.mubr.f32.mxu0 0.0
    %v6325 = vand.u32 %v291, 4294901760
    %6326 = vmatmul.mubr.f32.gmra.mrb[0].mxu0 %v6325
    %v6327 = vpop.f32.mrb[0].mxu0
    %v6328 = vadd.f32 %v6237, %v6327
    %v6329 = vpop.f32.mrb[0].mxu0
    %6330 = vdwg.mxu0
    %6331 = vmatprep.subr.mxu0 0.0
    %v6332 = vand.u32 %v76, 4294901760
    %v6333 = vsub.f32 %v76, %v6332
    %6334 = vmatpush1.msra.mxu0 %v6333
    %6335 = vmatprep.subr.mxu0 0.0
    %v6336 = vand.u32 %v77, 4294901760
    %v6337 = vsub.f32 %v77, %v6336
    %6338 = vmatpush1.msra.mxu0 %v6337
    %6339 = vmatprep.subr.mxu0 0.0
    %v6340 = vand.u32 %v78, 4294901760
    %v6341 = vsub.f32 %v78, %v6340
    %6342 = vmatpush1.msra.mxu0 %v6341
    %6343 = vmatprep.subr.mxu0 0.0
    %v6344 = vand.u32 %v79, 4294901760
    %v6345 = vsub.f32 %v79, %v6344
    %6346 = vmatpush1.msra.mxu0 %v6345
    %6347 = vmatprep.subr.mxu0 0.0
    %6348 = vmatpush1.msra.mxu0 0.0
    %6349 = vmatprep.subr.mxu0 0.0
    %6350 = vmatpush1.msra.mxu0 0.0
    %6351 = vmatprep.subr.mxu0 0.0
    %6352 = vmatpush1.msra.mxu0 0.0
    %6353 = vmatprep.subr.mxu0 0.0
    %6354 = vmatpush1.msra.mxu0 0.0
    %6355 = vmatprep.subr.mxu0 0.0
    %6356 = vmatpush1.msra.mxu0 0.0
    %6357 = vmatprep.subr.mxu0 0.0
    %6358 = vmatpush1.msra.mxu0 0.0
    %6359 = vmatprep.subr.mxu0 0.0
    %6360 = vmatpush1.msra.mxu0 0.0
    %6361 = vmatprep.subr.mxu0 0.0
    %6362 = vmatpush1.msra.mxu0 0.0
    %6363 = vmatprep.subr.mxu0 0.0
    %6364 = vmatpush1.msra.mxu0 0.0
    %6365 = vmatprep.subr.mxu0 0.0
    %6366 = vmatpush1.msra.mxu0 0.0
    %6367 = vmatprep.subr.mxu0 0.0
    %6368 = vmatpush1.msra.mxu0 0.0
    %6369 = vmatprep.subr.mxu0 0.0
    %6370 = vmatpush1.msra.mxu0 0.0
    %6371 = vmatprep.subr.mxu0 0.0
    %6372 = vmatpush1.msra.mxu0 0.0
    %6373 = vmatprep.subr.mxu0 0.0
    %6374 = vmatpush1.msra.mxu0 0.0
    %6375 = vmatprep.subr.mxu0 0.0
    %6376 = vmatpush1.msra.mxu0 0.0
    %6377 = vmatprep.subr.mxu0 0.0
    %6378 = vmatpush1.msra.mxu0 0.0
    %6379 = vmatprep.subr.mxu0 0.0
    %6380 = vmatpush1.msra.mxu0 0.0
    %6381 = vmatprep.subr.mxu0 0.0
    %6382 = vmatpush1.msra.mxu0 0.0
    %6383 = vmatprep.subr.mxu0 0.0
    %6384 = vmatpush1.msra.mxu0 0.0
    %6385 = vmatprep.subr.mxu0 0.0
    %6386 = vmatpush1.msra.mxu0 0.0
    %6387 = vmatprep.subr.mxu0 0.0
    %6388 = vmatpush1.msra.mxu0 0.0
    %6389 = vmatprep.subr.mxu0 0.0
    %6390 = vmatpush1.msra.mxu0 0.0
    %6391 = vmatprep.subr.mxu0 0.0
    %6392 = vmatpush1.msra.mxu0 0.0
    %6393 = vmatprep.subr.mxu0 0.0
    %6394 = vmatpush1.msra.mxu0 0.0
    %6395 = vmatprep.subr.mxu0 0.0
    %6396 = vmatpush1.msra.mxu0 0.0
    %6397 = vmatprep.subr.mxu0 0.0
    %6398 = vmatpush1.msra.mxu0 0.0
    %6399 = vmatprep.subr.mxu0 0.0
    %6400 = vmatpush1.msra.mxu0 0.0
    %6401 = vmatprep.subr.mxu0 0.0
    %6402 = vmatpush1.msra.mxu0 0.0
    %6403 = vmatprep.mubr.f32.mxu0 0.0
    %v6404 = vand.u32 %v291, 4294901760
    %v6405 = vsub.f32 %v291, %v6404
    %6406 = vmatmul.mubr.f32.gmra.mrb[0].mxu0 %v6405
    %v6407 = vpop.f32.mrb[0].mxu0
    %v6408 = vadd.f32 %v6328, %v6407
    %v6409 = vpop.f32.mrb[0].mxu0
    %6410 = vdwg.mxu0
    %6411 = vmatprep.subr.mxu0 0.0
    %v6412 = vand.u32 %v76, 4294901760
    %6413 = vmatpush1.msra.mxu0 %v6412
    %6414 = vmatprep.subr.mxu0 0.0
    %v6415 = vand.u32 %v77, 4294901760
    %6416 = vmatpush1.msra.mxu0 %v6415
    %6417 = vmatprep.subr.mxu0 0.0
    %v6418 = vand.u32 %v78, 4294901760
    %6419 = vmatpush1.msra.mxu0 %v6418
    %6420 = vmatprep.subr.mxu0 0.0
    %v6421 = vand.u32 %v79, 4294901760
    %6422 = vmatpush1.msra.mxu0 %v6421
    %6423 = vmatprep.subr.mxu0 0.0
    %6424 = vmatpush1.msra.mxu0 0.0
    %6425 = vmatprep.subr.mxu0 0.0
    %6426 = vmatpush1.msra.mxu0 0.0
    %6427 = vmatprep.subr.mxu0 0.0
    %6428 = vmatpush1.msra.mxu0 0.0
    %6429 = vmatprep.subr.mxu0 0.0
    %6430 = vmatpush1.msra.mxu0 0.0
    %6431 = vmatprep.subr.mxu0 0.0
    %6432 = vmatpush1.msra.mxu0 0.0
    %6433 = vmatprep.subr.mxu0 0.0
    %6434 = vmatpush1.msra.mxu0 0.0
    %6435 = vmatprep.subr.mxu0 0.0
    %6436 = vmatpush1.msra.mxu0 0.0
    %6437 = vmatprep.subr.mxu0 0.0
    %6438 = vmatpush1.msra.mxu0 0.0
    %6439 = vmatprep.subr.mxu0 0.0
    %6440 = vmatpush1.msra.mxu0 0.0
    %6441 = vmatprep.subr.mxu0 0.0
    %6442 = vmatpush1.msra.mxu0 0.0
    %6443 = vmatprep.subr.mxu0 0.0
    %6444 = vmatpush1.msra.mxu0 0.0
    %6445 = vmatprep.subr.mxu0 0.0
    %6446 = vmatpush1.msra.mxu0 0.0
    %6447 = vmatprep.subr.mxu0 0.0
    %6448 = vmatpush1.msra.mxu0 0.0
    %6449 = vmatprep.subr.mxu0 0.0
    %6450 = vmatpush1.msra.mxu0 0.0
    %6451 = vmatprep.subr.mxu0 0.0
    %6452 = vmatpush1.msra.mxu0 0.0
    %6453 = vmatprep.subr.mxu0 0.0
    %6454 = vmatpush1.msra.mxu0 0.0
    %6455 = vmatprep.subr.mxu0 0.0
    %6456 = vmatpush1.msra.mxu0 0.0
    %6457 = vmatprep.subr.mxu0 0.0
    %6458 = vmatpush1.msra.mxu0 0.0
    %6459 = vmatprep.subr.mxu0 0.0
    %6460 = vmatpush1.msra.mxu0 0.0
    %6461 = vmatprep.subr.mxu0 0.0
    %6462 = vmatpush1.msra.mxu0 0.0
    %6463 = vmatprep.subr.mxu0 0.0
    %6464 = vmatpush1.msra.mxu0 0.0
    %6465 = vmatprep.subr.mxu0 0.0
    %6466 = vmatpush1.msra.mxu0 0.0
    %6467 = vmatprep.subr.mxu0 0.0
    %6468 = vmatpush1.msra.mxu0 0.0
    %6469 = vmatprep.subr.mxu0 0.0
    %6470 = vmatpush1.msra.mxu0 0.0
    %6471 = vmatprep.subr.mxu0 0.0
    %6472 = vmatpush1.msra.mxu0 0.0
    %6473 = vmatprep.subr.mxu0 0.0
    %6474 = vmatpush1.msra.mxu0 0.0
    %6475 = vmatprep.subr.mxu0 0.0
    %6476 = vmatpush1.msra.mxu0 0.0
    %6477 = vmatprep.subr.mxu0 0.0
    %6478 = vmatpush1.msra.mxu0 0.0
    %6479 = vmatprep.mubr.f32.mxu0 0.0
    %v6480 = vand.u32 %v291, 4294901760
    %v6481 = vsub.f32 %v291, %v6480
    %v6482 = vand.u32 %v6481, 4294901760
    %6483 = vmatmul.mubr.f32.gmra.mrb[0].mxu0 %v6482
    %v6484 = vpop.f32.mrb[0].mxu0
    %v6485 = vadd.f32 %v6408, %v6484
    %v6486 = vpop.f32.mrb[0].mxu0
    %6487 = vdwg.mxu0
    %6488 = vmatprep.subr.mxu0 0.0
    %v6489 = vand.u32 %v76, 4294901760
    %v6490 = vsub.f32 %v76, %v6489
    %v6491 = vand.u32 %v6490, 4294901760
    %6492 = vmatpush1.msra.mxu0 %v6491
    %6493 = vmatprep.subr.mxu0 0.0
    %v6494 = vand.u32 %v77, 4294901760
    %v6495 = vsub.f32 %v77, %v6494
    %v6496 = vand.u32 %v6495, 4294901760
    %6497 = vmatpush1.msra.mxu0 %v6496
    %6498 = vmatprep.subr.mxu0 0.0
    %v6499 = vand.u32 %v78, 4294901760
    %v6500 = vsub.f32 %v78, %v6499
    %v6501 = vand.u32 %v6500, 4294901760
    %6502 = vmatpush1.msra.mxu0 %v6501
    %6503 = vmatprep.subr.mxu0 0.0
    %v6504 = vand.u32 %v79, 4294901760
    %v6505 = vsub.f32 %v79, %v6504
    %v6506 = vand.u32 %v6505, 4294901760
    %6507 = vmatpush1.msra.mxu0 %v6506
    %6508 = vmatprep.subr.mxu0 0.0
    %6509 = vmatpush1.msra.mxu0 0.0
    %6510 = vmatprep.subr.mxu0 0.0
    %6511 = vmatpush1.msra.mxu0 0.0
    %6512 = vmatprep.subr.mxu0 0.0
    %6513 = vmatpush1.msra.mxu0 0.0
    %6514 = vmatprep.subr.mxu0 0.0
    %6515 = vmatpush1.msra.mxu0 0.0
    %6516 = vmatprep.subr.mxu0 0.0
    %6517 = vmatpush1.msra.mxu0 0.0
    %6518 = vmatprep.subr.mxu0 0.0
    %6519 = vmatpush1.msra.mxu0 0.0
    %6520 = vmatprep.subr.mxu0 0.0
    %6521 = vmatpush1.msra.mxu0 0.0
    %6522 = vmatprep.subr.mxu0 0.0
    %6523 = vmatpush1.msra.mxu0 0.0
    %6524 = vmatprep.subr.mxu0 0.0
    %6525 = vmatpush1.msra.mxu0 0.0
    %6526 = vmatprep.subr.mxu0 0.0
    %6527 = vmatpush1.msra.mxu0 0.0
    %6528 = vmatprep.subr.mxu0 0.0
    %6529 = vmatpush1.msra.mxu0 0.0
    %6530 = vmatprep.subr.mxu0 0.0
    %6531 = vmatpush1.msra.mxu0 0.0
    %6532 = vmatprep.subr.mxu0 0.0
    %6533 = vmatpush1.msra.mxu0 0.0
    %6534 = vmatprep.subr.mxu0 0.0
    %6535 = vmatpush1.msra.mxu0 0.0
    %6536 = vmatprep.subr.mxu0 0.0
    %6537 = vmatpush1.msra.mxu0 0.0
    %6538 = vmatprep.subr.mxu0 0.0
    %6539 = vmatpush1.msra.mxu0 0.0
    %6540 = vmatprep.subr.mxu0 0.0
    %6541 = vmatpush1.msra.mxu0 0.0
    %6542 = vmatprep.subr.mxu0 0.0
    %6543 = vmatpush1.msra.mxu0 0.0
    %6544 = vmatprep.subr.mxu0 0.0
    %6545 = vmatpush1.msra.mxu0 0.0
    %6546 = vmatprep.subr.mxu0 0.0
    %6547 = vmatpush1.msra.mxu0 0.0
    %6548 = vmatprep.subr.mxu0 0.0
    %6549 = vmatpush1.msra.mxu0 0.0
    %6550 = vmatprep.subr.mxu0 0.0
    %6551 = vmatpush1.msra.mxu0 0.0
    %6552 = vmatprep.subr.mxu0 0.0
    %6553 = vmatpush1.msra.mxu0 0.0
    %6554 = vmatprep.subr.mxu0 0.0
    %6555 = vmatpush1.msra.mxu0 0.0
    %6556 = vmatprep.subr.mxu0 0.0
    %6557 = vmatpush1.msra.mxu0 0.0
    %6558 = vmatprep.subr.mxu0 0.0
    %6559 = vmatpush1.msra.mxu0 0.0
    %6560 = vmatprep.subr.mxu0 0.0
    %6561 = vmatpush1.msra.mxu0 0.0
    %6562 = vmatprep.subr.mxu0 0.0
    %6563 = vmatpush1.msra.mxu0 0.0
    %6564 = vmatprep.mubr.f32.mxu0 0.0
    %v6565 = vand.u32 %v291, 4294901760
    %6566 = vmatmul.mubr.f32.gmra.mrb[0].mxu0 %v6565
    %v6567 = vpop.f32.mrb[0].mxu0
    %v6568 = vadd.f32 %v6485, %v6567
    %v6569 = vpop.f32.mrb[0].mxu0
    %6570 = vdwg.mxu0
    %6571 = vmatprep.subr.mxu0 0.0
    %v6572 = vand.u32 %v76, 4294901760
    %6573 = vmatpush1.msra.mxu0 %v6572
    %6574 = vmatprep.subr.mxu0 0.0
    %v6575 = vand.u32 %v77, 4294901760
    %6576 = vmatpush1.msra.mxu0 %v6575
    %6577 = vmatprep.subr.mxu0 0.0
    %v6578 = vand.u32 %v78, 4294901760
    %6579 = vmatpush1.msra.mxu0 %v6578
    %6580 = vmatprep.subr.mxu0 0.0
    %v6581 = vand.u32 %v79, 4294901760
    %6582 = vmatpush1.msra.mxu0 %v6581
    %6583 = vmatprep.subr.mxu0 0.0
    %6584 = vmatpush1.msra.mxu0 0.0
    %6585 = vmatprep.subr.mxu0 0.0
    %6586 = vmatpush1.msra.mxu0 0.0
    %6587 = vmatprep.subr.mxu0 0.0
    %6588 = vmatpush1.msra.mxu0 0.0
    %6589 = vmatprep.subr.mxu0 0.0
    %6590 = vmatpush1.msra.mxu0 0.0
    %6591 = vmatprep.subr.mxu0 0.0
    %6592 = vmatpush1.msra.mxu0 0.0
    %6593 = vmatprep.subr.mxu0 0.0
    %6594 = vmatpush1.msra.mxu0 0.0
    %6595 = vmatprep.subr.mxu0 0.0
    %6596 = vmatpush1.msra.mxu0 0.0
    %6597 = vmatprep.subr.mxu0 0.0
    %6598 = vmatpush1.msra.mxu0 0.0
    %6599 = vmatprep.subr.mxu0 0.0
    %6600 = vmatpush1.msra.mxu0 0.0
    %6601 = vmatprep.subr.mxu0 0.0
    %6602 = vmatpush1.msra.mxu0 0.0
    %6603 = vmatprep.subr.mxu0 0.0
    %6604 = vmatpush1.msra.mxu0 0.0
    %6605 = vmatprep.subr.mxu0 0.0
    %6606 = vmatpush1.msra.mxu0 0.0
    %6607 = vmatprep.subr.mxu0 0.0
    %6608 = vmatpush1.msra.mxu0 0.0
    %6609 = vmatprep.subr.mxu0 0.0
    %6610 = vmatpush1.msra.mxu0 0.0
    %6611 = vmatprep.subr.mxu0 0.0
    %6612 = vmatpush1.msra.mxu0 0.0
    %6613 = vmatprep.subr.mxu0 0.0
    %6614 = vmatpush1.msra.mxu0 0.0
    %6615 = vmatprep.subr.mxu0 0.0
    %6616 = vmatpush1.msra.mxu0 0.0
    %6617 = vmatprep.subr.mxu0 0.0
    %6618 = vmatpush1.msra.mxu0 0.0
    %6619 = vmatprep.subr.mxu0 0.0
    %6620 = vmatpush1.msra.mxu0 0.0
    %6621 = vmatprep.subr.mxu0 0.0
    %6622 = vmatpush1.msra.mxu0 0.0
    %6623 = vmatprep.subr.mxu0 0.0
    %6624 = vmatpush1.msra.mxu0 0.0
    %6625 = vmatprep.subr.mxu0 0.0
    %6626 = vmatpush1.msra.mxu0 0.0
    %6627 = vmatprep.subr.mxu0 0.0
    %6628 = vmatpush1.msra.mxu0 0.0
    %6629 = vmatprep.subr.mxu0 0.0
    %6630 = vmatpush1.msra.mxu0 0.0
    %6631 = vmatprep.subr.mxu0 0.0
    %6632 = vmatpush1.msra.mxu0 0.0
    %6633 = vmatprep.subr.mxu0 0.0
    %6634 = vmatpush1.msra.mxu0 0.0
    %6635 = vmatprep.subr.mxu0 0.0
    %6636 = vmatpush1.msra.mxu0 0.0
    %6637 = vmatprep.subr.mxu0 0.0
    %6638 = vmatpush1.msra.mxu0 0.0
    %6639 = vmatprep.mubr.f32.mxu0 0.0
    %v6640 = vand.u32 %v291, 4294901760
    %6641 = vmatmul.mubr.f32.gmra.mrb[0].mxu0 %v6640
    %v6642 = vpop.f32.mrb[0].mxu0
    %v6643 = vadd.f32 %v6568, %v6642
    %v6644 = vpop.f32.mrb[0].mxu0
    %6645 = vdwg.mxu0
    %v6646 = vadd.f32 %v6160, %v6643
    %6647 = vst [vmem:[#allocation5] sm:$0x1] %v6646
    // Predicated region
    $region22: #{tpu_custom_call.1} parent=1 // pred_check
      %p6648 = pneg %p52
    $region23: #{tpu_custom_call.1} parent=1 // pred_check_branch
      %6650 = sbr.rel (%p6648) target = $region25
    $region24: #{tpu_custom_call.1} parent=1 // pred_region
      %v6651 = vld [vmem:[#allocation2] sm:$0xf]
      %6652 = vst [vmem:[#allocation11] sm:$0xf] %v6651
      %v6653 = vld [vmem:[#allocation3] sm:$0xf]
      %s6654 = scalar_lea.vmem [#allocation11], 4
      %6655 = vst [vmem:[%s6654] sm:$0xf] %v6653
      %v6656 = vld [vmem:[#allocation4] sm:$0xf]
      %s6657 = scalar_lea.vmem [#allocation11], 8
      %6658 = vst [vmem:[%s6657] sm:$0xf] %v6656
      %v6659 = vld [vmem:[#allocation5] sm:$0x1]
      %v6661 = vlaneseq
      %v6662 = vshrl.u32 %v6661, 7
      %v6663 = vsub.s32 0, %v6662
      %v6664 = vrot.slane %v6659, %v6663
      %s6666 = scalar_lea.vmem [#allocation11], 12
      %6667 = vst [vmem:[%s6666] sm:$0xf] %v6664
    $region25: #{tpu_custom_call.1} parent=1 // pred_fallthru
      _
    // Predicated region
    $region26: #{tpu_custom_call.1} parent=1 // pred_check
      _
    $region27: #{tpu_custom_call.1} parent=1 // pred_check_branch
      %6669 = sbr.rel (0) target = $region29
    $region28: #{tpu_custom_call.1} parent=1 // pred_region
      %s6671 = ssub.s32 256, 256
      %6672 = vsyncadd [#allocation8], %s6671
      %s6673 = sshll.u32 [#allocation11], 4
      %s6674 = int_to_ptr.vmem [resolvable:$true] %s6673
      %6679 = dma.vmem_to_hbm [thread:$0]  %s6674, 256, %s2, [#allocation8], 64, 64, 4
    $region29: #{tpu_custom_call.1} parent=1 // pred_fallthru
      _
    // Predicated region
    $region30: #{tpu_custom_call.1} parent=1 // pred_check
      _
    $region31: #{tpu_custom_call.1} parent=1 // pred_check_branch
      %6681 = sbr.rel (0) target = $region33
    $region32: #{tpu_custom_call.1} parent=1 // pred_region
      %6682 = dma.done [#allocation8], 256
    $region33: #{tpu_custom_call.1} parent=1 // pred_fallthru
      _
    %6683 = vsyncpa [#allocation7], 1
    %6684 = vsyncpa [#allocation10], 1
    %6685 = vsyncpa [#allocation8], 1

</llo_original>
